<compile_context>
chip_gen: v6e
topology: v6e:2x2x1
jax: 0.10.0
libtpu: 0.0.40
codegen_flags: <defaults>
</compile_context>

<pallas_src>
import functools
import math

import jax
import jax.numpy as jnp
from jax.experimental import pallas as pl
from jax.experimental.pallas import tpu as pltpu


def _round_up(x, m):
    return ((x + m - 1) // m) * m


def _primary_caps_kernel(x_ref, w_ref, b_ref, o_ref, *,
                         K, stride, cin, Ho, Wpp, plane_rows,
                         num_caps, out_ch_pad):
    # x_ref : (1, stride*stride*plane_rows, cin) bf16  -- phase planes, 1 image
    # w_ref : (K*K*cin, n_pad)                   bf16  -- VMEM-resident weights
    # b_ref : (1, n_pad)                         f32
    # o_ref : (1, Ho*Wpp, n_pad)                 f32   -- doubles as accumulator
    L = Ho * Wpp
    tap = 0
    for kh in range(K):                     # static, fully unrolled (K*K taps)
        for kw in range(K):
            plane = (kh % stride) * stride + (kw % stride)
            start = plane * plane_rows + (kh // stride) * Wpp + (kw // stride)
            a = x_ref[0, pl.ds(start, L), :]                      # (L, cin)
            w_tap = w_ref[pl.ds((kh * K + kw) * cin, cin), :]     # (cin, n_pad)
            contrib = jnp.dot(a, w_tap, preferred_element_type=jnp.float32)
            if tap == 0:
                o_ref[0, :, :] = contrib        # first tap: no zero-init needed
            else:
                o_ref[0, :, :] = o_ref[0, :, :] + contrib
            tap += 1

    # ---- bias + capsule squash epilogue (columns are cap-major) ----
    y = o_ref[0, :, :] + b_ref[...]             # (L, n_pad) f32
    t = y * y
    if num_caps & (num_caps - 1) == 0:
        # lane-roll doubling reduction: every lane ends up holding the capsule
        # squared-norm for its out-channel; stays full (L, n_pad) width.
        shift = out_ch_pad
        while shift < num_caps * out_ch_pad:
            t = t + pltpu.roll(t, shift, 1)
            shift *= 2
        sn = t
    else:
        # fallback for non power-of-two num_caps (not exercised here)
        sn_small = jnp.zeros((L, out_ch_pad), jnp.float32)
        for c in range(num_caps):
            yc = y[:, c * out_ch_pad:(c + 1) * out_ch_pad]
            sn_small = sn_small + yc * yc
        sn = jnp.concatenate([sn_small] * num_caps, axis=1)
    # squash: v = (|s|^2/(1+|s|^2)) * s/|s| = s * sqrt(sn)/(1+sn); finite at 0.
    scale = jnp.sqrt(sn) / (1.0 + sn)
    o_ref[0, :, :] = (y * scale).astype(o_ref.dtype)


def primary_caps_forward(x, weights, biases, *, stride=2):
    """x: (B, Cin, H, W) NCHW.  weights: (num_caps, out_ch, Cin, K, K).
    biases: (num_caps, out_ch).  Returns (B, out_ch*Ho*Wo, num_caps),
    matching the PyTorch module's output layout."""
    num_caps, out_ch, cin, K, K2 = weights.shape
    assert K == K2
    B, cx, H, W = x.shape
    assert cx == cin
    Ho = (H - K) // stride + 1
    Wo = (W - K) // stride + 1
    q = -(-K // stride)              # taps per spatial dim within a phase
    Hp = Ho + q                      # phase-plane rows (incl. slack row)
    Wpp = Wo + q - 1                 # phase-plane cols == padded out row width
    plane_rows = Hp * Wpp
    M_img = Ho * Wpp

    # Pad out_ch so n_pad = num_caps*out_ch_pad is a multiple of 128 lanes.
    col_unit = 128 // math.gcd(num_caps, 128)
    out_ch_pad = _round_up(out_ch, col_unit)
    n_pad = num_caps * out_ch_pad

    # ---- input: NHWC bf16 -> stride*stride phase planes, flattened ----
    xn = jnp.transpose(x, (0, 2, 3, 1)).astype(jnp.bfloat16)      # (B,H,W,C)
    H2, W2 = stride * Hp, stride * Wpp
    xn = xn[:, :H2, :W2, :]
    xn = jnp.pad(xn, ((0, 0), (0, H2 - xn.shape[1]),
                      (0, W2 - xn.shape[2]), (0, 0)))
    xph = xn.reshape(B, Hp, stride, Wpp, stride, cin)
    xph = jnp.transpose(xph, (0, 2, 4, 1, 3, 5))   # (B, ph, pw, Hp, Wpp, C)
    xph = xph.reshape(B, stride * stride * plane_rows, cin)

    # ---- weights: (K*K*Cin, n_pad), rows (kh,kw,cin), cols cap-major ----
    wt = jnp.transpose(weights, (3, 4, 2, 0, 1))   # (K,K,Cin,caps,out_ch)
    wt = jnp.pad(wt, ((0, 0), (0, 0), (0, 0), (0, 0), (0, out_ch_pad - out_ch)))
    w_mat = wt.reshape(K * K * cin, n_pad).astype(jnp.bfloat16)
    b_mat = jnp.pad(biases, ((0, 0), (0, out_ch_pad - out_ch))
                    ).reshape(1, n_pad).astype(jnp.float32)

    kernel = functools.partial(
        _primary_caps_kernel, K=K, stride=stride, cin=cin, Ho=Ho, Wpp=Wpp,
        plane_rows=plane_rows, num_caps=num_caps, out_ch_pad=out_ch_pad)

    out = pl.pallas_call(
        kernel,
        out_shape=jax.ShapeDtypeStruct((B, M_img, n_pad), jnp.float32),
        grid_spec=pltpu.PrefetchScalarGridSpec(
            num_scalar_prefetch=0,
            grid=(B,),
            in_specs=[
                # one image's phase planes per step
                pl.BlockSpec((1, stride * stride * plane_rows, cin),
                             lambda b: (b, 0, 0)),
                # full weight matrix, VMEM-resident (constant index map)
                pl.BlockSpec((K * K * cin, n_pad), lambda b: (0, 0)),
                pl.BlockSpec((1, n_pad), lambda b: (0, 0)),
            ],
            out_specs=pl.BlockSpec((1, M_img, n_pad), lambda b: (b, 0, 0)),
        ),
        compiler_params=pltpu.CompilerParams(
            dimension_semantics=("parallel",),
            vmem_limit_bytes=48 * 1024 * 1024),
    )(xph, w_mat, b_mat)

    # Strip column/row padding and move to the PyTorch u_squash layout.
    out = out.reshape(B, Ho, Wpp, num_caps, out_ch_pad)[:, :, :Wo, :, :out_ch]
    out = jnp.transpose(out, (0, 4, 1, 2, 3))      # (B, out_ch, Ho, Wo, caps)
    return out.reshape(B, out_ch * Ho * Wo, num_caps)


def _reference(x, weights, biases, stride):
    """Pure-JAX reference of the PyTorch forward.  Inputs rounded to bf16
    (matching the kernel's matmul operand dtype); accumulation in f32."""
    B = x.shape[0]
    xb = x.astype(jnp.bfloat16).astype(jnp.float32)
    wb = weights.astype(jnp.bfloat16).astype(jnp.float32)
    num_caps = weights.shape[0]
    us = []
    for c in range(num_caps):
        y = jax.lax.conv_general_dilated(
            xb, wb[c], (stride, stride), "VALID",
            dimension_numbers=("NCHW", "OIHW", "NCHW"))
        y = y + biases[c][None, :, None, None]
        us.append(y.reshape(B, -1, 1))
    u = jnp.concatenate(us, axis=-1)
    sn = jnp.sum(u * u, axis=-1, keepdims=True)
    return u * jnp.sqrt(sn) / (1.0 + sn)   # same (safe, finite-at-0) squash form


if __name__ == "__main__":
    # Small shapes consistent with the module (num_capsules=8, kernel=8,
    # stride=2); in_channels / out_channels shrunk for the demo.
    B, Cin, H, W = 2, 16, 16, 16
    NUM_CAPS, OUT_CH, K, STRIDE = 8, 8, 8, 2

    key = jax.random.PRNGKey(0)
    kx, kw_, kb = jax.random.split(key, 3)
    x = jax.random.normal(kx, (B, Cin, H, W), jnp.float32)
    weights = 0.05 * jax.random.normal(
        kw_, (NUM_CAPS, OUT_CH, Cin, K, K), jnp.float32)
    biases = 0.05 * jax.random.normal(kb, (NUM_CAPS, OUT_CH), jnp.float32)

    out = primary_caps_forward(x, weights, biases, stride=STRIDE)
    out = jax.block_until_ready(out)

    ref = _reference(x, weights, biases, STRIDE)
    assert out.shape == ref.shape, (out.shape, ref.shape)
    err = float(jnp.max(jnp.abs(out - ref)))
    assert jnp.allclose(out, ref, atol=5e-3, rtol=5e-3), err
    print("KERNEL_OK")
</pallas_src>

<mosaic_0001>
module attributes {stable_mosaic.version = 11 : i64} {
  func.func @_primary_caps_kernel(%arg0: i32, %arg1: memref<1x288x16xbf16, #tpu.memory_space<vmem>>, %arg2: memref<1024x128xbf16, #tpu.memory_space<vmem>>, %arg3: memref<1x128xf32, #tpu.memory_space<vmem>>, %arg4: memref<1x40x128xf32, #tpu.memory_space<vmem>>) attributes {dimension_semantics = [#tpu.dimension_semantics<parallel>], iteration_bounds = array<i64: 2>, scalar_prefetch = 0 : i64, scratch_operands = 0 : i64, tpu.core_type = #tpu.core_type<tc>, window_params = [{transform_indices = @transform_0, window_bounds = array<i64: 1, 288, 16>}, {pipeline_mode = #tpu.pipeline_mode<synchronous>, transform_indices = @transform_1, window_bounds = array<i64: 1024, 128>}, {pipeline_mode = #tpu.pipeline_mode<synchronous>, transform_indices = @transform_2, window_bounds = array<i64: 1, 128>}, {transform_indices = @transform_3, window_bounds = array<i64: 1, 40, 128>}]} {
    %c0 = arith.constant 0 : index
    %c0_0 = arith.constant 0 : index
    %c0_1 = arith.constant 0 : index
    %0 = vector.load %arg1[%c0, %c0_0, %c0_1] : memref<1x288x16xbf16, #tpu.memory_space<vmem>>, vector<1x40x16xbf16>
    %1 = vector.shape_cast %0 : vector<1x40x16xbf16> to vector<40x16xbf16>
    %c0_2 = arith.constant 0 : index
    %c0_3 = arith.constant 0 : index
    %2 = vector.load %arg2[%c0_2, %c0_3] : memref<1024x128xbf16, #tpu.memory_space<vmem>>, vector<16x128xbf16>
    %cst = arith.constant dense<0.000000e+00> : vector<40x128xf32>
    %3 = tpu.matmul %1, %2, %cst {dimension_numbers = #tpu.dot_dimension_numbers<[1], [0], [0], [1], [0, 0, 1, 1], [], []>} : vector<40x16xbf16>, vector<16x128xbf16>, vector<40x128xf32> -> vector<40x128xf32>
    %c0_4 = arith.constant 0 : index
    %c0_5 = arith.constant 0 : index
    %c0_6 = arith.constant 0 : index
    %4 = vector.load %arg4[%c0_4, %c0_5, %c0_6] : memref<1x40x128xf32, #tpu.memory_space<vmem>>, vector<1x40x128xf32>
    %5 = vector.shape_cast %4 : vector<1x40x128xf32> to vector<40x128xf32>
    %6 = vector.shape_cast %3 : vector<40x128xf32> to vector<1x40x128xf32>
    tpu.vector_store %arg4[%c0_4, %c0_5, %c0_6], %6 {strides = array<i32>} : memref<1x40x128xf32, #tpu.memory_space<vmem>>, vector<1x40x128xf32>,
    %c0_7 = arith.constant 0 : index
    %c72 = arith.constant 72 : index
    %c0_8 = arith.constant 0 : index
    %7 = vector.load %arg1[%c0_7, %c72, %c0_8] : memref<1x288x16xbf16, #tpu.memory_space<vmem>>, vector<1x40x16xbf16>
    %8 = vector.shape_cast %7 : vector<1x40x16xbf16> to vector<40x16xbf16>
    %c16 = arith.constant 16 : index
    %c0_9 = arith.constant 0 : index
    %9 = vector.load %arg2[%c16, %c0_9] : memref<1024x128xbf16, #tpu.memory_space<vmem>>, vector<16x128xbf16>
    %cst_10 = arith.constant dense<0.000000e+00> : vector<40x128xf32>
    %10 = tpu.matmul %8, %9, %cst_10 {dimension_numbers = #tpu.dot_dimension_numbers<[1], [0], [0], [1], [0, 0, 1, 1], [], []>} : vector<40x16xbf16>, vector<16x128xbf16>, vector<40x128xf32> -> vector<40x128xf32>
    %c0_11 = arith.constant 0 : index
    %c0_12 = arith.constant 0 : index
    %c0_13 = arith.constant 0 : index
    %11 = vector.load %arg4[%c0_11, %c0_12, %c0_13] : memref<1x40x128xf32, #tpu.memory_space<vmem>>, vector<1x40x128xf32>
    %12 = vector.shape_cast %11 : vector<1x40x128xf32> to vector<40x128xf32>
    %13 = arith.addf %12, %10 : vector<40x128xf32>
    %c0_14 = arith.constant 0 : index
    %c0_15 = arith.constant 0 : index
    %c0_16 = arith.constant 0 : index
    %14 = vector.load %arg4[%c0_14, %c0_15, %c0_16] : memref<1x40x128xf32, #tpu.memory_space<vmem>>, vector<1x40x128xf32>
    %15 = vector.shape_cast %14 : vector<1x40x128xf32> to vector<40x128xf32>
    %16 = vector.shape_cast %13 : vector<40x128xf32> to vector<1x40x128xf32>
    tpu.vector_store %arg4[%c0_14, %c0_15, %c0_16], %16 {strides = array<i32>} : memref<1x40x128xf32, #tpu.memory_space<vmem>>, vector<1x40x128xf32>,
    %c0_17 = arith.constant 0 : index
    %c1 = arith.constant 1 : index
    %c0_18 = arith.constant 0 : index
    %17 = vector.load %arg1[%c0_17, %c1, %c0_18] : memref<1x288x16xbf16, #tpu.memory_space<vmem>>, vector<1x40x16xbf16>
    %18 = vector.shape_cast %17 : vector<1x40x16xbf16> to vector<40x16xbf16>
    %c32 = arith.constant 32 : index
    %c0_19 = arith.constant 0 : index
    %19 = vector.load %arg2[%c32, %c0_19] : memref<1024x128xbf16, #tpu.memory_space<vmem>>, vector<16x128xbf16>
    %cst_20 = arith.constant dense<0.000000e+00> : vector<40x128xf32>
    %20 = tpu.matmul %18, %19, %cst_20 {dimension_numbers = #tpu.dot_dimension_numbers<[1], [0], [0], [1], [0, 0, 1, 1], [], []>} : vector<40x16xbf16>, vector<16x128xbf16>, vector<40x128xf32> -> vector<40x128xf32>
    %c0_21 = arith.constant 0 : index
    %c0_22 = arith.constant 0 : index
    %c0_23 = arith.constant 0 : index
    %21 = vector.load %arg4[%c0_21, %c0_22, %c0_23] : memref<1x40x128xf32, #tpu.memory_space<vmem>>, vector<1x40x128xf32>
    %22 = vector.shape_cast %21 : vector<1x40x128xf32> to vector<40x128xf32>
    %23 = arith.addf %22, %20 : vector<40x128xf32>
    %c0_24 = arith.constant 0 : index
    %c0_25 = arith.constant 0 : index
    %c0_26 = arith.constant 0 : index
    %24 = vector.load %arg4[%c0_24, %c0_25, %c0_26] : memref<1x40x128xf32, #tpu.memory_space<vmem>>, vector<1x40x128xf32>
    %25 = vector.shape_cast %24 : vector<1x40x128xf32> to vector<40x128xf32>
    %26 = vector.shape_cast %23 : vector<40x128xf32> to vector<1x40x128xf32>
    tpu.vector_store %arg4[%c0_24, %c0_25, %c0_26], %26 {strides = array<i32>} : memref<1x40x128xf32, #tpu.memory_space<vmem>>, vector<1x40x128xf32>,
    %c0_27 = arith.constant 0 : index
    %c73 = arith.constant 73 : index
    %c0_28 = arith.constant 0 : index
    %27 = vector.load %arg1[%c0_27, %c73, %c0_28] : memref<1x288x16xbf16, #tpu.memory_space<vmem>>, vector<1x40x16xbf16>
    %28 = vector.shape_cast %27 : vector<1x40x16xbf16> to vector<40x16xbf16>
    %c48 = arith.constant 48 : index
    %c0_29 = arith.constant 0 : index
    %29 = vector.load %arg2[%c48, %c0_29] : memref<1024x128xbf16, #tpu.memory_space<vmem>>, vector<16x128xbf16>
    %cst_30 = arith.constant dense<0.000000e+00> : vector<40x128xf32>
    %30 = tpu.matmul %28, %29, %cst_30 {dimension_numbers = #tpu.dot_dimension_numbers<[1], [0], [0], [1], [0, 0, 1, 1], [], []>} : vector<40x16xbf16>, vector<16x128xbf16>, vector<40x128xf32> -> vector<40x128xf32>
    %c0_31 = arith.constant 0 : index
    %c0_32 = arith.constant 0 : index
    %c0_33 = arith.constant 0 : index
    %31 = vector.load %arg4[%c0_31, %c0_32, %c0_33] : memref<1x40x128xf32, #tpu.memory_space<vmem>>, vector<1x40x128xf32>
    %32 = vector.shape_cast %31 : vector<1x40x128xf32> to vector<40x128xf32>
    %33 = arith.addf %32, %30 : vector<40x128xf32>
    %c0_34 = arith.constant 0 : index
    %c0_35 = arith.constant 0 : index
    %c0_36 = arith.constant 0 : index
    %34 = vector.load %arg4[%c0_34, %c0_35, %c0_36] : memref<1x40x128xf32, #tpu.memory_space<vmem>>, vector<1x40x128xf32>
    %35 = vector.shape_cast %34 : vector<1x40x128xf32> to vector<40x128xf32>
    %36 = vector.shape_cast %33 : vector<40x128xf32> to vector<1x40x128xf32>
    tpu.vector_store %arg4[%c0_34, %c0_35, %c0_36], %36 {strides = array<i32>} : memref<1x40x128xf32, #tpu.memory_space<vmem>>, vector<1x40x128xf32>,
    %c0_37 = arith.constant 0 : index
    %c2 = arith.constant 2 : index
    %c0_38 = arith.constant 0 : index
    %37 = vector.load %arg1[%c0_37, %c2, %c0_38] : memref<1x288x16xbf16, #tpu.memory_space<vmem>>, vector<1x40x16xbf16>
    %38 = vector.shape_cast %37 : vector<1x40x16xbf16> to vector<40x16xbf16>
    %c64 = arith.constant 64 : index
    %c0_39 = arith.constant 0 : index
    %39 = vector.load %arg2[%c64, %c0_39] : memref<1024x128xbf16, #tpu.memory_space<vmem>>, vector<16x128xbf16>
    %cst_40 = arith.constant dense<0.000000e+00> : vector<40x128xf32>
    %40 = tpu.matmul %38, %39, %cst_40 {dimension_numbers = #tpu.dot_dimension_numbers<[1], [0], [0], [1], [0, 0, 1, 1], [], []>} : vector<40x16xbf16>, vector<16x128xbf16>, vector<40x128xf32> -> vector<40x128xf32>
    %c0_41 = arith.constant 0 : index
    %c0_42 = arith.constant 0 : index
    %c0_43 = arith.constant 0 : index
    %41 = vector.load %arg4[%c0_41, %c0_42, %c0_43] : memref<1x40x128xf32, #tpu.memory_space<vmem>>, vector<1x40x128xf32>
    %42 = vector.shape_cast %41 : vector<1x40x128xf32> to vector<40x128xf32>
    %43 = arith.addf %42, %40 : vector<40x128xf32>
    %c0_44 = arith.constant 0 : index
    %c0_45 = arith.constant 0 : index
    %c0_46 = arith.constant 0 : index
    %44 = vector.load %arg4[%c0_44, %c0_45, %c0_46] : memref<1x40x128xf32, #tpu.memory_space<vmem>>, vector<1x40x128xf32>
    %45 = vector.shape_cast %44 : vector<1x40x128xf32> to vector<40x128xf32>
    %46 = vector.shape_cast %43 : vector<40x128xf32> to vector<1x40x128xf32>
    tpu.vector_store %arg4[%c0_44, %c0_45, %c0_46], %46 {strides = array<i32>} : memref<1x40x128xf32, #tpu.memory_space<vmem>>, vector<1x40x128xf32>,
    %c0_47 = arith.constant 0 : index
    %c74 = arith.constant 74 : index
    %c0_48 = arith.constant 0 : index
    %47 = vector.load %arg1[%c0_47, %c74, %c0_48] : memref<1x288x16xbf16, #tpu.memory_space<vmem>>, vector<1x40x16xbf16>
    %48 = vector.shape_cast %47 : vector<1x40x16xbf16> to vector<40x16xbf16>
    %c80 = arith.constant 80 : index
    %c0_49 = arith.constant 0 : index
    %49 = vector.load %arg2[%c80, %c0_49] : memref<1024x128xbf16, #tpu.memory_space<vmem>>, vector<16x128xbf16>
    %cst_50 = arith.constant dense<0.000000e+00> : vector<40x128xf32>
    %50 = tpu.matmul %48, %49, %cst_50 {dimension_numbers = #tpu.dot_dimension_numbers<[1], [0], [0], [1], [0, 0, 1, 1], [], []>} : vector<40x16xbf16>, vector<16x128xbf16>, vector<40x128xf32> -> vector<40x128xf32>
    %c0_51 = arith.constant 0 : index
    %c0_52 = arith.constant 0 : index
    %c0_53 = arith.constant 0 : index
    %51 = vector.load %arg4[%c0_51, %c0_52, %c0_53] : memref<1x40x128xf32, #tpu.memory_space<vmem>>, vector<1x40x128xf32>
    %52 = vector.shape_cast %51 : vector<1x40x128xf32> to vector<40x128xf32>
    %53 = arith.addf %52, %50 : vector<40x128xf32>
    %c0_54 = arith.constant 0 : index
    %c0_55 = arith.constant 0 : index
    %c0_56 = arith.constant 0 : index
    %54 = vector.load %arg4[%c0_54, %c0_55, %c0_56] : memref<1x40x128xf32, #tpu.memory_space<vmem>>, vector<1x40x128xf32>
    %55 = vector.shape_cast %54 : vector<1x40x128xf32> to vector<40x128xf32>
    %56 = vector.shape_cast %53 : vector<40x128xf32> to vector<1x40x128xf32>
    tpu.vector_store %arg4[%c0_54, %c0_55, %c0_56], %56 {strides = array<i32>} : memref<1x40x128xf32, #tpu.memory_space<vmem>>, vector<1x40x128xf32>,
    %c0_57 = arith.constant 0 : index
    %c3 = arith.constant 3 : index
    %c0_58 = arith.constant 0 : index
    %57 = vector.load %arg1[%c0_57, %c3, %c0_58] : memref<1x288x16xbf16, #tpu.memory_space<vmem>>, vector<1x40x16xbf16>
    %58 = vector.shape_cast %57 : vector<1x40x16xbf16> to vector<40x16xbf16>
    %c96 = arith.constant 96 : index
    %c0_59 = arith.constant 0 : index
    %59 = vector.load %arg2[%c96, %c0_59] : memref<1024x128xbf16, #tpu.memory_space<vmem>>, vector<16x128xbf16>
    %cst_60 = arith.constant dense<0.000000e+00> : vector<40x128xf32>
    %60 = tpu.matmul %58, %59, %cst_60 {dimension_numbers = #tpu.dot_dimension_numbers<[1], [0], [0], [1], [0, 0, 1, 1], [], []>} : vector<40x16xbf16>, vector<16x128xbf16>, vector<40x128xf32> -> vector<40x128xf32>
    %c0_61 = arith.constant 0 : index
    %c0_62 = arith.constant 0 : index
    %c0_63 = arith.constant 0 : index
    %61 = vector.load %arg4[%c0_61, %c0_62, %c0_63] : memref<1x40x128xf32, #tpu.memory_space<vmem>>, vector<1x40x128xf32>
    %62 = vector.shape_cast %61 : vector<1x40x128xf32> to vector<40x128xf32>
    %63 = arith.addf %62, %60 : vector<40x128xf32>
    %c0_64 = arith.constant 0 : index
    %c0_65 = arith.constant 0 : index
    %c0_66 = arith.constant 0 : index
    %64 = vector.load %arg4[%c0_64, %c0_65, %c0_66] : memref<1x40x128xf32, #tpu.memory_space<vmem>>, vector<1x40x128xf32>
    %65 = vector.shape_cast %64 : vector<1x40x128xf32> to vector<40x128xf32>
    %66 = vector.shape_cast %63 : vector<40x128xf32> to vector<1x40x128xf32>
    tpu.vector_store %arg4[%c0_64, %c0_65, %c0_66], %66 {strides = array<i32>} : memref<1x40x128xf32, #tpu.memory_space<vmem>>, vector<1x40x128xf32>,
    %c0_67 = arith.constant 0 : index
    %c75 = arith.constant 75 : index
    %c0_68 = arith.constant 0 : index
    %67 = vector.load %arg1[%c0_67, %c75, %c0_68] : memref<1x288x16xbf16, #tpu.memory_space<vmem>>, vector<1x40x16xbf16>
    %68 = vector.shape_cast %67 : vector<1x40x16xbf16> to vector<40x16xbf16>
    %c112 = arith.constant 112 : index
    %c0_69 = arith.constant 0 : index
    %69 = vector.load %arg2[%c112, %c0_69] : memref<1024x128xbf16, #tpu.memory_space<vmem>>, vector<16x128xbf16>
    %cst_70 = arith.constant dense<0.000000e+00> : vector<40x128xf32>
    %70 = tpu.matmul %68, %69, %cst_70 {dimension_numbers = #tpu.dot_dimension_numbers<[1], [0], [0], [1], [0, 0, 1, 1], [], []>} : vector<40x16xbf16>, vector<16x128xbf16>, vector<40x128xf32> -> vector<40x128xf32>
    %c0_71 = arith.constant 0 : index
    %c0_72 = arith.constant 0 : index
    %c0_73 = arith.constant 0 : index
    %71 = vector.load %arg4[%c0_71, %c0_72, %c0_73] : memref<1x40x128xf32, #tpu.memory_space<vmem>>, vector<1x40x128xf32>
    %72 = vector.shape_cast %71 : vector<1x40x128xf32> to vector<40x128xf32>
    %73 = arith.addf %72, %70 : vector<40x128xf32>
    %c0_74 = arith.constant 0 : index
    %c0_75 = arith.constant 0 : index
    %c0_76 = arith.constant 0 : index
    %74 = vector.load %arg4[%c0_74, %c0_75, %c0_76] : memref<1x40x128xf32, #tpu.memory_space<vmem>>, vector<1x40x128xf32>
    %75 = vector.shape_cast %74 : vector<1x40x128xf32> to vector<40x128xf32>
    %76 = vector.shape_cast %73 : vector<40x128xf32> to vector<1x40x128xf32>
    tpu.vector_store %arg4[%c0_74, %c0_75, %c0_76], %76 {strides = array<i32>} : memref<1x40x128xf32, #tpu.memory_space<vmem>>, vector<1x40x128xf32>,
    %c0_77 = arith.constant 0 : index
    %c144 = arith.constant 144 : index
    %c0_78 = arith.constant 0 : index
    %77 = vector.load %arg1[%c0_77, %c144, %c0_78] : memref<1x288x16xbf16, #tpu.memory_space<vmem>>, vector<1x40x16xbf16>
    %78 = vector.shape_cast %77 : vector<1x40x16xbf16> to vector<40x16xbf16>
    %c128 = arith.constant 128 : index
    %c0_79 = arith.constant 0 : index
    %79 = vector.load %arg2[%c128, %c0_79] : memref<1024x128xbf16, #tpu.memory_space<vmem>>, vector<16x128xbf16>
    %cst_80 = arith.constant dense<0.000000e+00> : vector<40x128xf32>
    %80 = tpu.matmul %78, %79, %cst_80 {dimension_numbers = #tpu.dot_dimension_numbers<[1], [0], [0], [1], [0, 0, 1, 1], [], []>} : vector<40x16xbf16>, vector<16x128xbf16>, vector<40x128xf32> -> vector<40x128xf32>
    %c0_81 = arith.constant 0 : index
    %c0_82 = arith.constant 0 : index
    %c0_83 = arith.constant 0 : index
    %81 = vector.load %arg4[%c0_81, %c0_82, %c0_83] : memref<1x40x128xf32, #tpu.memory_space<vmem>>, vector<1x40x128xf32>
    %82 = vector.shape_cast %81 : vector<1x40x128xf32> to vector<40x128xf32>
    %83 = arith.addf %82, %80 : vector<40x128xf32>
    %c0_84 = arith.constant 0 : index
    %c0_85 = arith.constant 0 : index
    %c0_86 = arith.constant 0 : index
    %84 = vector.load %arg4[%c0_84, %c0_85, %c0_86] : memref<1x40x128xf32, #tpu.memory_space<vmem>>, vector<1x40x128xf32>
    %85 = vector.shape_cast %84 : vector<1x40x128xf32> to vector<40x128xf32>
    %86 = vector.shape_cast %83 : vector<40x128xf32> to vector<1x40x128xf32>
    tpu.vector_store %arg4[%c0_84, %c0_85, %c0_86], %86 {strides = array<i32>} : memref<1x40x128xf32, #tpu.memory_space<vmem>>, vector<1x40x128xf32>,
    %c0_87 = arith.constant 0 : index
    %c216 = arith.constant 216 : index
    %c0_88 = arith.constant 0 : index
    %87 = vector.load %arg1[%c0_87, %c216, %c0_88] : memref<1x288x16xbf16, #tpu.memory_space<vmem>>, vector<1x40x16xbf16>
    %88 = vector.shape_cast %87 : vector<1x40x16xbf16> to vector<40x16xbf16>
    %c144_89 = arith.constant 144 : index
    %c0_90 = arith.constant 0 : index
    %89 = vector.load %arg2[%c144_89, %c0_90] : memref<1024x128xbf16, #tpu.memory_space<vmem>>, vector<16x128xbf16>
    %cst_91 = arith.constant dense<0.000000e+00> : vector<40x128xf32>
    %90 = tpu.matmul %88, %89, %cst_91 {dimension_numbers = #tpu.dot_dimension_numbers<[1], [0], [0], [1], [0, 0, 1, 1], [], []>} : vector<40x16xbf16>, vector<16x128xbf16>, vector<40x128xf32> -> vector<40x128xf32>
    %c0_92 = arith.constant 0 : index
    %c0_93 = arith.constant 0 : index
    %c0_94 = arith.constant 0 : index
    %91 = vector.load %arg4[%c0_92, %c0_93, %c0_94] : memref<1x40x128xf32, #tpu.memory_space<vmem>>, vector<1x40x128xf32>
    %92 = vector.shape_cast %91 : vector<1x40x128xf32> to vector<40x128xf32>
    %93 = arith.addf %92, %90 : vector<40x128xf32>
    %c0_95 = arith.constant 0 : index
    %c0_96 = arith.constant 0 : index
    %c0_97 = arith.constant 0 : index
    %94 = vector.load %arg4[%c0_95, %c0_96, %c0_97] : memref<1x40x128xf32, #tpu.memory_space<vmem>>, vector<1x40x128xf32>
    %95 = vector.shape_cast %94 : vector<1x40x128xf32> to vector<40x128xf32>
    %96 = vector.shape_cast %93 : vector<40x128xf32> to vector<1x40x128xf32>
    tpu.vector_store %arg4[%c0_95, %c0_96, %c0_97], %96 {strides = array<i32>} : memref<1x40x128xf32, #tpu.memory_space<vmem>>, vector<1x40x128xf32>,
    %c0_98 = arith.constant 0 : index
    %c145 = arith.constant 145 : index
    %c0_99 = arith.constant 0 : index
    %97 = vector.load %arg1[%c0_98, %c145, %c0_99] : memref<1x288x16xbf16, #tpu.memory_space<vmem>>, vector<1x40x16xbf16>
    %98 = vector.shape_cast %97 : vector<1x40x16xbf16> to vector<40x16xbf16>
    %c160 = arith.constant 160 : index
    %c0_100 = arith.constant 0 : index
    %99 = vector.load %arg2[%c160, %c0_100] : memref<1024x128xbf16, #tpu.memory_space<vmem>>, vector<16x128xbf16>
    %cst_101 = arith.constant dense<0.000000e+00> : vector<40x128xf32>
    %100 = tpu.matmul %98, %99, %cst_101 {dimension_numbers = #tpu.dot_dimension_numbers<[1], [0], [0], [1], [0, 0, 1, 1], [], []>} : vector<40x16xbf16>, vector<16x128xbf16>, vector<40x128xf32> -> vector<40x128xf32>
    %c0_102 = arith.constant 0 : index
    %c0_103 = arith.constant 0 : index
    %c0_104 = arith.constant 0 : index
    %101 = vector.load %arg4[%c0_102, %c0_103, %c0_104] : memref<1x40x128xf32, #tpu.memory_space<vmem>>, vector<1x40x128xf32>
    %102 = vector.shape_cast %101 : vector<1x40x128xf32> to vector<40x128xf32>
    %103 = arith.addf %102, %100 : vector<40x128xf32>
    %c0_105 = arith.constant 0 : index
    %c0_106 = arith.constant 0 : index
    %c0_107 = arith.constant 0 : index
    %104 = vector.load %arg4[%c0_105, %c0_106, %c0_107] : memref<1x40x128xf32, #tpu.memory_space<vmem>>, vector<1x40x128xf32>
    %105 = vector.shape_cast %104 : vector<1x40x128xf32> to vector<40x128xf32>
    %106 = vector.shape_cast %103 : vector<40x128xf32> to vector<1x40x128xf32>
    tpu.vector_store %arg4[%c0_105, %c0_106, %c0_107], %106 {strides = array<i32>} : memref<1x40x128xf32, #tpu.memory_space<vmem>>, vector<1x40x128xf32>,
    %c0_108 = arith.constant 0 : index
    %c217 = arith.constant 217 : index
    %c0_109 = arith.constant 0 : index
    %107 = vector.load %arg1[%c0_108, %c217, %c0_109] : memref<1x288x16xbf16, #tpu.memory_space<vmem>>, vector<1x40x16xbf16>
    %108 = vector.shape_cast %107 : vector<1x40x16xbf16> to vector<40x16xbf16>
    %c176 = arith.constant 176 : index
    %c0_110 = arith.constant 0 : index
    %109 = vector.load %arg2[%c176, %c0_110] : memref<1024x128xbf16, #tpu.memory_space<vmem>>, vector<16x128xbf16>
    %cst_111 = arith.constant dense<0.000000e+00> : vector<40x128xf32>
    %110 = tpu.matmul %108, %109, %cst_111 {dimension_numbers = #tpu.dot_dimension_numbers<[1], [0], [0], [1], [0, 0, 1, 1], [], []>} : vector<40x16xbf16>, vector<16x128xbf16>, vector<40x128xf32> -> vector<40x128xf32>
    %c0_112 = arith.constant 0 : index
    %c0_113 = arith.constant 0 : index
    %c0_114 = arith.constant 0 : index
    %111 = vector.load %arg4[%c0_112, %c0_113, %c0_114] : memref<1x40x128xf32, #tpu.memory_space<vmem>>, vector<1x40x128xf32>
    %112 = vector.shape_cast %111 : vector<1x40x128xf32> to vector<40x128xf32>
    %113 = arith.addf %112, %110 : vector<40x128xf32>
    %c0_115 = arith.constant 0 : index
    %c0_116 = arith.constant 0 : index
    %c0_117 = arith.constant 0 : index
    %114 = vector.load %arg4[%c0_115, %c0_116, %c0_117] : memref<1x40x128xf32, #tpu.memory_space<vmem>>, vector<1x40x128xf32>
    %115 = vector.shape_cast %114 : vector<1x40x128xf32> to vector<40x128xf32>
    %116 = vector.shape_cast %113 : vector<40x128xf32> to vector<1x40x128xf32>
    tpu.vector_store %arg4[%c0_115, %c0_116, %c0_117], %116 {strides = array<i32>} : memref<1x40x128xf32, #tpu.memory_space<vmem>>, vector<1x40x128xf32>,
    %c0_118 = arith.constant 0 : index
    %c146 = arith.constant 146 : index
    %c0_119 = arith.constant 0 : index
    %117 = vector.load %arg1[%c0_118, %c146, %c0_119] : memref<1x288x16xbf16, #tpu.memory_space<vmem>>, vector<1x40x16xbf16>
    %118 = vector.shape_cast %117 : vector<1x40x16xbf16> to vector<40x16xbf16>
    %c192 = arith.constant 192 : index
    %c0_120 = arith.constant 0 : index
    %119 = vector.load %arg2[%c192, %c0_120] : memref<1024x128xbf16, #tpu.memory_space<vmem>>, vector<16x128xbf16>
    %cst_121 = arith.constant dense<0.000000e+00> : vector<40x128xf32>
    %120 = tpu.matmul %118, %119, %cst_121 {dimension_numbers = #tpu.dot_dimension_numbers<[1], [0], [0], [1], [0, 0, 1, 1], [], []>} : vector<40x16xbf16>, vector<16x128xbf16>, vector<40x128xf32> -> vector<40x128xf32>
    %c0_122 = arith.constant 0 : index
    %c0_123 = arith.constant 0 : index
    %c0_124 = arith.constant 0 : index
    %121 = vector.load %arg4[%c0_122, %c0_123, %c0_124] : memref<1x40x128xf32, #tpu.memory_space<vmem>>, vector<1x40x128xf32>
    %122 = vector.shape_cast %121 : vector<1x40x128xf32> to vector<40x128xf32>
    %123 = arith.addf %122, %120 : vector<40x128xf32>
    %c0_125 = arith.constant 0 : index
    %c0_126 = arith.constant 0 : index
    %c0_127 = arith.constant 0 : index
    %124 = vector.load %arg4[%c0_125, %c0_126, %c0_127] : memref<1x40x128xf32, #tpu.memory_space<vmem>>, vector<1x40x128xf32>
    %125 = vector.shape_cast %124 : vector<1x40x128xf32> to vector<40x128xf32>
    %126 = vector.shape_cast %123 : vector<40x128xf32> to vector<1x40x128xf32>
    tpu.vector_store %arg4[%c0_125, %c0_126, %c0_127], %126 {strides = array<i32>} : memref<1x40x128xf32, #tpu.memory_space<vmem>>, vector<1x40x128xf32>,
    %c0_128 = arith.constant 0 : index
    %c218 = arith.constant 218 : index
    %c0_129 = arith.constant 0 : index
    %127 = vector.load %arg1[%c0_128, %c218, %c0_129] : memref<1x288x16xbf16, #tpu.memory_space<vmem>>, vector<1x40x16xbf16>
    %128 = vector.shape_cast %127 : vector<1x40x16xbf16> to vector<40x16xbf16>
    %c208 = arith.constant 208 : index
    %c0_130 = arith.constant 0 : index
    %129 = vector.load %arg2[%c208, %c0_130] : memref<1024x128xbf16, #tpu.memory_space<vmem>>, vector<16x128xbf16>
    %cst_131 = arith.constant dense<0.000000e+00> : vector<40x128xf32>
    %130 = tpu.matmul %128, %129, %cst_131 {dimension_numbers = #tpu.dot_dimension_numbers<[1], [0], [0], [1], [0, 0, 1, 1], [], []>} : vector<40x16xbf16>, vector<16x128xbf16>, vector<40x128xf32> -> vector<40x128xf32>
    %c0_132 = arith.constant 0 : index
    %c0_133 = arith.constant 0 : index
    %c0_134 = arith.constant 0 : index
    %131 = vector.load %arg4[%c0_132, %c0_133, %c0_134] : memref<1x40x128xf32, #tpu.memory_space<vmem>>, vector<1x40x128xf32>
    %132 = vector.shape_cast %131 : vector<1x40x128xf32> to vector<40x128xf32>
    %133 = arith.addf %132, %130 : vector<40x128xf32>
    %c0_135 = arith.constant 0 : index
    %c0_136 = arith.constant 0 : index
    %c0_137 = arith.constant 0 : index
    %134 = vector.load %arg4[%c0_135, %c0_136, %c0_137] : memref<1x40x128xf32, #tpu.memory_space<vmem>>, vector<1x40x128xf32>
    %135 = vector.shape_cast %134 : vector<1x40x128xf32> to vector<40x128xf32>
    %136 = vector.shape_cast %133 : vector<40x128xf32> to vector<1x40x128xf32>
    tpu.vector_store %arg4[%c0_135, %c0_136, %c0_137], %136 {strides = array<i32>} : memref<1x40x128xf32, #tpu.memory_space<vmem>>, vector<1x40x128xf32>,
    %c0_138 = arith.constant 0 : index
    %c147 = arith.constant 147 : index
    %c0_139 = arith.constant 0 : index
    %137 = vector.load %arg1[%c0_138, %c147, %c0_139] : memref<1x288x16xbf16, #tpu.memory_space<vmem>>, vector<1x40x16xbf16>
    %138 = vector.shape_cast %137 : vector<1x40x16xbf16> to vector<40x16xbf16>
    %c224 = arith.constant 224 : index
    %c0_140 = arith.constant 0 : index
    %139 = vector.load %arg2[%c224, %c0_140] : memref<1024x128xbf16, #tpu.memory_space<vmem>>, vector<16x128xbf16>
    %cst_141 = arith.constant dense<0.000000e+00> : vector<40x128xf32>
    %140 = tpu.matmul %138, %139, %cst_141 {dimension_numbers = #tpu.dot_dimension_numbers<[1], [0], [0], [1], [0, 0, 1, 1], [], []>} : vector<40x16xbf16>, vector<16x128xbf16>, vector<40x128xf32> -> vector<40x128xf32>
    %c0_142 = arith.constant 0 : index
    %c0_143 = arith.constant 0 : index
    %c0_144 = arith.constant 0 : index
    %141 = vector.load %arg4[%c0_142, %c0_143, %c0_144] : memref<1x40x128xf32, #tpu.memory_space<vmem>>, vector<1x40x128xf32>
    %142 = vector.shape_cast %141 : vector<1x40x128xf32> to vector<40x128xf32>
    %143 = arith.addf %142, %140 : vector<40x128xf32>
    %c0_145 = arith.constant 0 : index
    %c0_146 = arith.constant 0 : index
    %c0_147 = arith.constant 0 : index
    %144 = vector.load %arg4[%c0_145, %c0_146, %c0_147] : memref<1x40x128xf32, #tpu.memory_space<vmem>>, vector<1x40x128xf32>
    %145 = vector.shape_cast %144 : vector<1x40x128xf32> to vector<40x128xf32>
    %146 = vector.shape_cast %143 : vector<40x128xf32> to vector<1x40x128xf32>
    tpu.vector_store %arg4[%c0_145, %c0_146, %c0_147], %146 {strides = array<i32>} : memref<1x40x128xf32, #tpu.memory_space<vmem>>, vector<1x40x128xf32>,
    %c0_148 = arith.constant 0 : index
    %c219 = arith.constant 219 : index
    %c0_149 = arith.constant 0 : index
    %147 = vector.load %arg1[%c0_148, %c219, %c0_149] : memref<1x288x16xbf16, #tpu.memory_space<vmem>>, vector<1x40x16xbf16>
    %148 = vector.shape_cast %147 : vector<1x40x16xbf16> to vector<40x16xbf16>
    %c240 = arith.constant 240 : index
    %c0_150 = arith.constant 0 : index
    %149 = vector.load %arg2[%c240, %c0_150] : memref<1024x128xbf16, #tpu.memory_space<vmem>>, vector<16x128xbf16>
    %cst_151 = arith.constant dense<0.000000e+00> : vector<40x128xf32>
    %150 = tpu.matmul %148, %149, %cst_151 {dimension_numbers = #tpu.dot_dimension_numbers<[1], [0], [0], [1], [0, 0, 1, 1], [], []>} : vector<40x16xbf16>, vector<16x128xbf16>, vector<40x128xf32> -> vector<40x128xf32>
    %c0_152 = arith.constant 0 : index
    %c0_153 = arith.constant 0 : index
    %c0_154 = arith.constant 0 : index
    %151 = vector.load %arg4[%c0_152, %c0_153, %c0_154] : memref<1x40x128xf32, #tpu.memory_space<vmem>>, vector<1x40x128xf32>
    %152 = vector.shape_cast %151 : vector<1x40x128xf32> to vector<40x128xf32>
    %153 = arith.addf %152, %150 : vector<40x128xf32>
    %c0_155 = arith.constant 0 : index
    %c0_156 = arith.constant 0 : index
    %c0_157 = arith.constant 0 : index
    %154 = vector.load %arg4[%c0_155, %c0_156, %c0_157] : memref<1x40x128xf32, #tpu.memory_space<vmem>>, vector<1x40x128xf32>
    %155 = vector.shape_cast %154 : vector<1x40x128xf32> to vector<40x128xf32>
    %156 = vector.shape_cast %153 : vector<40x128xf32> to vector<1x40x128xf32>
    tpu.vector_store %arg4[%c0_155, %c0_156, %c0_157], %156 {strides = array<i32>} : memref<1x40x128xf32, #tpu.memory_space<vmem>>, vector<1x40x128xf32>,
    %c0_158 = arith.constant 0 : index
    %c8 = arith.constant 8 : index
    %c0_159 = arith.constant 0 : index
    %157 = vector.load %arg1[%c0_158, %c8, %c0_159] : memref<1x288x16xbf16, #tpu.memory_space<vmem>>, vector<1x40x16xbf16>
    %158 = vector.shape_cast %157 : vector<1x40x16xbf16> to vector<40x16xbf16>
    %c256 = arith.constant 256 : index
    %c0_160 = arith.constant 0 : index
    %159 = vector.load %arg2[%c256, %c0_160] : memref<1024x128xbf16, #tpu.memory_space<vmem>>, vector<16x128xbf16>
    %cst_161 = arith.constant dense<0.000000e+00> : vector<40x128xf32>
    %160 = tpu.matmul %158, %159, %cst_161 {dimension_numbers = #tpu.dot_dimension_numbers<[1], [0], [0], [1], [0, 0, 1, 1], [], []>} : vector<40x16xbf16>, vector<16x128xbf16>, vector<40x128xf32> -> vector<40x128xf32>
    %c0_162 = arith.constant 0 : index
    %c0_163 = arith.constant 0 : index
    %c0_164 = arith.constant 0 : index
    %161 = vector.load %arg4[%c0_162, %c0_163, %c0_164] : memref<1x40x128xf32, #tpu.memory_space<vmem>>, vector<1x40x128xf32>
    %162 = vector.shape_cast %161 : vector<1x40x128xf32> to vector<40x128xf32>
    %163 = arith.addf %162, %160 : vector<40x128xf32>
    %c0_165 = arith.constant 0 : index
    %c0_166 = arith.constant 0 : index
    %c0_167 = arith.constant 0 : index
    %164 = vector.load %arg4[%c0_165, %c0_166, %c0_167] : memref<1x40x128xf32, #tpu.memory_space<vmem>>, vector<1x40x128xf32>
    %165 = vector.shape_cast %164 : vector<1x40x128xf32> to vector<40x128xf32>
    %166 = vector.shape_cast %163 : vector<40x128xf32> to vector<1x40x128xf32>
    tpu.vector_store %arg4[%c0_165, %c0_166, %c0_167], %166 {strides = array<i32>} : memref<1x40x128xf32, #tpu.memory_space<vmem>>, vector<1x40x128xf32>,
    %c0_168 = arith.constant 0 : index
    %c80_169 = arith.constant 80 : index
    %c0_170 = arith.constant 0 : index
    %167 = vector.load %arg1[%c0_168, %c80_169, %c0_170] : memref<1x288x16xbf16, #tpu.memory_space<vmem>>, vector<1x40x16xbf16>
    %168 = vector.shape_cast %167 : vector<1x40x16xbf16> to vector<40x16xbf16>
    %c272 = arith.constant 272 : index
    %c0_171 = arith.constant 0 : index
    %169 = vector.load %arg2[%c272, %c0_171] : memref<1024x128xbf16, #tpu.memory_space<vmem>>, vector<16x128xbf16>
    %cst_172 = arith.constant dense<0.000000e+00> : vector<40x128xf32>
    %170 = tpu.matmul %168, %169, %cst_172 {dimension_numbers = #tpu.dot_dimension_numbers<[1], [0], [0], [1], [0, 0, 1, 1], [], []>} : vector<40x16xbf16>, vector<16x128xbf16>, vector<40x128xf32> -> vector<40x128xf32>
    %c0_173 = arith.constant 0 : index
    %c0_174 = arith.constant 0 : index
    %c0_175 = arith.constant 0 : index
    %171 = vector.load %arg4[%c0_173, %c0_174, %c0_175] : memref<1x40x128xf32, #tpu.memory_space<vmem>>, vector<1x40x128xf32>
    %172 = vector.shape_cast %171 : vector<1x40x128xf32> to vector<40x128xf32>
    %173 = arith.addf %172, %170 : vector<40x128xf32>
    %c0_176 = arith.constant 0 : index
    %c0_177 = arith.constant 0 : index
    %c0_178 = arith.constant 0 : index
    %174 = vector.load %arg4[%c0_176, %c0_177, %c0_178] : memref<1x40x128xf32, #tpu.memory_space<vmem>>, vector<1x40x128xf32>
    %175 = vector.shape_cast %174 : vector<1x40x128xf32> to vector<40x128xf32>
    %176 = vector.shape_cast %173 : vector<40x128xf32> to vector<1x40x128xf32>
    tpu.vector_store %arg4[%c0_176, %c0_177, %c0_178], %176 {strides = array<i32>} : memref<1x40x128xf32, #tpu.memory_space<vmem>>, vector<1x40x128xf32>,
    %c0_179 = arith.constant 0 : index
    %c9 = arith.constant 9 : index
    %c0_180 = arith.constant 0 : index
    %177 = vector.load %arg1[%c0_179, %c9, %c0_180] : memref<1x288x16xbf16, #tpu.memory_space<vmem>>, vector<1x40x16xbf16>
    %178 = vector.shape_cast %177 : vector<1x40x16xbf16> to vector<40x16xbf16>
    %c288 = arith.constant 288 : index
    %c0_181 = arith.constant 0 : index
    %179 = vector.load %arg2[%c288, %c0_181] : memref<1024x128xbf16, #tpu.memory_space<vmem>>, vector<16x128xbf16>
    %cst_182 = arith.constant dense<0.000000e+00> : vector<40x128xf32>
    %180 = tpu.matmul %178, %179, %cst_182 {dimension_numbers = #tpu.dot_dimension_numbers<[1], [0], [0], [1], [0, 0, 1, 1], [], []>} : vector<40x16xbf16>, vector<16x128xbf16>, vector<40x128xf32> -> vector<40x128xf32>
    %c0_183 = arith.constant 0 : index
    %c0_184 = arith.constant 0 : index
    %c0_185 = arith.constant 0 : index
    %181 = vector.load %arg4[%c0_183, %c0_184, %c0_185] : memref<1x40x128xf32, #tpu.memory_space<vmem>>, vector<1x40x128xf32>
    %182 = vector.shape_cast %181 : vector<1x40x128xf32> to vector<40x128xf32>
    %183 = arith.addf %182, %180 : vector<40x128xf32>
    %c0_186 = arith.constant 0 : index
    %c0_187 = arith.constant 0 : index
    %c0_188 = arith.constant 0 : index
    %184 = vector.load %arg4[%c0_186, %c0_187, %c0_188] : memref<1x40x128xf32, #tpu.memory_space<vmem>>, vector<1x40x128xf32>
    %185 = vector.shape_cast %184 : vector<1x40x128xf32> to vector<40x128xf32>
    %186 = vector.shape_cast %183 : vector<40x128xf32> to vector<1x40x128xf32>
    tpu.vector_store %arg4[%c0_186, %c0_187, %c0_188], %186 {strides = array<i32>} : memref<1x40x128xf32, #tpu.memory_space<vmem>>, vector<1x40x128xf32>,
    %c0_189 = arith.constant 0 : index
    %c81 = arith.constant 81 : index
    %c0_190 = arith.constant 0 : index
    %187 = vector.load %arg1[%c0_189, %c81, %c0_190] : memref<1x288x16xbf16, #tpu.memory_space<vmem>>, vector<1x40x16xbf16>
    %188 = vector.shape_cast %187 : vector<1x40x16xbf16> to vector<40x16xbf16>
    %c304 = arith.constant 304 : index
    %c0_191 = arith.constant 0 : index
    %189 = vector.load %arg2[%c304, %c0_191] : memref<1024x128xbf16, #tpu.memory_space<vmem>>, vector<16x128xbf16>
    %cst_192 = arith.constant dense<0.000000e+00> : vector<40x128xf32>
    %190 = tpu.matmul %188, %189, %cst_192 {dimension_numbers = #tpu.dot_dimension_numbers<[1], [0], [0], [1], [0, 0, 1, 1], [], []>} : vector<40x16xbf16>, vector<16x128xbf16>, vector<40x128xf32> -> vector<40x128xf32>
    %c0_193 = arith.constant 0 : index
    %c0_194 = arith.constant 0 : index
    %c0_195 = arith.constant 0 : index
    %191 = vector.load %arg4[%c0_193, %c0_194, %c0_195] : memref<1x40x128xf32, #tpu.memory_space<vmem>>, vector<1x40x128xf32>
    %192 = vector.shape_cast %191 : vector<1x40x128xf32> to vector<40x128xf32>
    %193 = arith.addf %192, %190 : vector<40x128xf32>
    %c0_196 = arith.constant 0 : index
    %c0_197 = arith.constant 0 : index
    %c0_198 = arith.constant 0 : index
    %194 = vector.load %arg4[%c0_196, %c0_197, %c0_198] : memref<1x40x128xf32, #tpu.memory_space<vmem>>, vector<1x40x128xf32>
    %195 = vector.shape_cast %194 : vector<1x40x128xf32> to vector<40x128xf32>
    %196 = vector.shape_cast %193 : vector<40x128xf32> to vector<1x40x128xf32>
    tpu.vector_store %arg4[%c0_196, %c0_197, %c0_198], %196 {strides = array<i32>} : memref<1x40x128xf32, #tpu.memory_space<vmem>>, vector<1x40x128xf32>,
    %c0_199 = arith.constant 0 : index
    %c10 = arith.constant 10 : index
    %c0_200 = arith.constant 0 : index
    %197 = vector.load %arg1[%c0_199, %c10, %c0_200] : memref<1x288x16xbf16, #tpu.memory_space<vmem>>, vector<1x40x16xbf16>
    %198 = vector.shape_cast %197 : vector<1x40x16xbf16> to vector<40x16xbf16>
    %c320 = arith.constant 320 : index
    %c0_201 = arith.constant 0 : index
    %199 = vector.load %arg2[%c320, %c0_201] : memref<1024x128xbf16, #tpu.memory_space<vmem>>, vector<16x128xbf16>
    %cst_202 = arith.constant dense<0.000000e+00> : vector<40x128xf32>
    %200 = tpu.matmul %198, %199, %cst_202 {dimension_numbers = #tpu.dot_dimension_numbers<[1], [0], [0], [1], [0, 0, 1, 1], [], []>} : vector<40x16xbf16>, vector<16x128xbf16>, vector<40x128xf32> -> vector<40x128xf32>
    %c0_203 = arith.constant 0 : index
    %c0_204 = arith.constant 0 : index
    %c0_205 = arith.constant 0 : index
    %201 = vector.load %arg4[%c0_203, %c0_204, %c0_205] : memref<1x40x128xf32, #tpu.memory_space<vmem>>, vector<1x40x128xf32>
    %202 = vector.shape_cast %201 : vector<1x40x128xf32> to vector<40x128xf32>
    %203 = arith.addf %202, %200 : vector<40x128xf32>
    %c0_206 = arith.constant 0 : index
    %c0_207 = arith.constant 0 : index
    %c0_208 = arith.constant 0 : index
    %204 = vector.load %arg4[%c0_206, %c0_207, %c0_208] : memref<1x40x128xf32, #tpu.memory_space<vmem>>, vector<1x40x128xf32>
    %205 = vector.shape_cast %204 : vector<1x40x128xf32> to vector<40x128xf32>
    %206 = vector.shape_cast %203 : vector<40x128xf32> to vector<1x40x128xf32>
    tpu.vector_store %arg4[%c0_206, %c0_207, %c0_208], %206 {strides = array<i32>} : memref<1x40x128xf32, #tpu.memory_space<vmem>>, vector<1x40x128xf32>,
    %c0_209 = arith.constant 0 : index
    %c82 = arith.constant 82 : index
    %c0_210 = arith.constant 0 : index
    %207 = vector.load %arg1[%c0_209, %c82, %c0_210] : memref<1x288x16xbf16, #tpu.memory_space<vmem>>, vector<1x40x16xbf16>
    %208 = vector.shape_cast %207 : vector<1x40x16xbf16> to vector<40x16xbf16>
    %c336 = arith.constant 336 : index
    %c0_211 = arith.constant 0 : index
    %209 = vector.load %arg2[%c336, %c0_211] : memref<1024x128xbf16, #tpu.memory_space<vmem>>, vector<16x128xbf16>
    %cst_212 = arith.constant dense<0.000000e+00> : vector<40x128xf32>
    %210 = tpu.matmul %208, %209, %cst_212 {dimension_numbers = #tpu.dot_dimension_numbers<[1], [0], [0], [1], [0, 0, 1, 1], [], []>} : vector<40x16xbf16>, vector<16x128xbf16>, vector<40x128xf32> -> vector<40x128xf32>
    %c0_213 = arith.constant 0 : index
    %c0_214 = arith.constant 0 : index
    %c0_215 = arith.constant 0 : index
    %211 = vector.load %arg4[%c0_213, %c0_214, %c0_215] : memref<1x40x128xf32, #tpu.memory_space<vmem>>, vector<1x40x128xf32>
    %212 = vector.shape_cast %211 : vector<1x40x128xf32> to vector<40x128xf32>
    %213 = arith.addf %212, %210 : vector<40x128xf32>
    %c0_216 = arith.constant 0 : index
    %c0_217 = arith.constant 0 : index
    %c0_218 = arith.constant 0 : index
    %214 = vector.load %arg4[%c0_216, %c0_217, %c0_218] : memref<1x40x128xf32, #tpu.memory_space<vmem>>, vector<1x40x128xf32>
    %215 = vector.shape_cast %214 : vector<1x40x128xf32> to vector<40x128xf32>
    %216 = vector.shape_cast %213 : vector<40x128xf32> to vector<1x40x128xf32>
    tpu.vector_store %arg4[%c0_216, %c0_217, %c0_218], %216 {strides = array<i32>} : memref<1x40x128xf32, #tpu.memory_space<vmem>>, vector<1x40x128xf32>,
    %c0_219 = arith.constant 0 : index
    %c11 = arith.constant 11 : index
    %c0_220 = arith.constant 0 : index
    %217 = vector.load %arg1[%c0_219, %c11, %c0_220] : memref<1x288x16xbf16, #tpu.memory_space<vmem>>, vector<1x40x16xbf16>
    %218 = vector.shape_cast %217 : vector<1x40x16xbf16> to vector<40x16xbf16>
    %c352 = arith.constant 352 : index
    %c0_221 = arith.constant 0 : index
    %219 = vector.load %arg2[%c352, %c0_221] : memref<1024x128xbf16, #tpu.memory_space<vmem>>, vector<16x128xbf16>
    %cst_222 = arith.constant dense<0.000000e+00> : vector<40x128xf32>
    %220 = tpu.matmul %218, %219, %cst_222 {dimension_numbers = #tpu.dot_dimension_numbers<[1], [0], [0], [1], [0, 0, 1, 1], [], []>} : vector<40x16xbf16>, vector<16x128xbf16>, vector<40x128xf32> -> vector<40x128xf32>
    %c0_223 = arith.constant 0 : index
    %c0_224 = arith.constant 0 : index
    %c0_225 = arith.constant 0 : index
    %221 = vector.load %arg4[%c0_223, %c0_224, %c0_225] : memref<1x40x128xf32, #tpu.memory_space<vmem>>, vector<1x40x128xf32>
    %222 = vector.shape_cast %221 : vector<1x40x128xf32> to vector<40x128xf32>
    %223 = arith.addf %222, %220 : vector<40x128xf32>
    %c0_226 = arith.constant 0 : index
    %c0_227 = arith.constant 0 : index
    %c0_228 = arith.constant 0 : index
    %224 = vector.load %arg4[%c0_226, %c0_227, %c0_228] : memref<1x40x128xf32, #tpu.memory_space<vmem>>, vector<1x40x128xf32>
    %225 = vector.shape_cast %224 : vector<1x40x128xf32> to vector<40x128xf32>
    %226 = vector.shape_cast %223 : vector<40x128xf32> to vector<1x40x128xf32>
    tpu.vector_store %arg4[%c0_226, %c0_227, %c0_228], %226 {strides = array<i32>} : memref<1x40x128xf32, #tpu.memory_space<vmem>>, vector<1x40x128xf32>,
    %c0_229 = arith.constant 0 : index
    %c83 = arith.constant 83 : index
    %c0_230 = arith.constant 0 : index
    %227 = vector.load %arg1[%c0_229, %c83, %c0_230] : memref<1x288x16xbf16, #tpu.memory_space<vmem>>, vector<1x40x16xbf16>
    %228 = vector.shape_cast %227 : vector<1x40x16xbf16> to vector<40x16xbf16>
    %c368 = arith.constant 368 : index
    %c0_231 = arith.constant 0 : index
    %229 = vector.load %arg2[%c368, %c0_231] : memref<1024x128xbf16, #tpu.memory_space<vmem>>, vector<16x128xbf16>
    %cst_232 = arith.constant dense<0.000000e+00> : vector<40x128xf32>
    %230 = tpu.matmul %228, %229, %cst_232 {dimension_numbers = #tpu.dot_dimension_numbers<[1], [0], [0], [1], [0, 0, 1, 1], [], []>} : vector<40x16xbf16>, vector<16x128xbf16>, vector<40x128xf32> -> vector<40x128xf32>
    %c0_233 = arith.constant 0 : index
    %c0_234 = arith.constant 0 : index
    %c0_235 = arith.constant 0 : index
    %231 = vector.load %arg4[%c0_233, %c0_234, %c0_235] : memref<1x40x128xf32, #tpu.memory_space<vmem>>, vector<1x40x128xf32>
    %232 = vector.shape_cast %231 : vector<1x40x128xf32> to vector<40x128xf32>
    %233 = arith.addf %232, %230 : vector<40x128xf32>
    %c0_236 = arith.constant 0 : index
    %c0_237 = arith.constant 0 : index
    %c0_238 = arith.constant 0 : index
    %234 = vector.load %arg4[%c0_236, %c0_237, %c0_238] : memref<1x40x128xf32, #tpu.memory_space<vmem>>, vector<1x40x128xf32>
    %235 = vector.shape_cast %234 : vector<1x40x128xf32> to vector<40x128xf32>
    %236 = vector.shape_cast %233 : vector<40x128xf32> to vector<1x40x128xf32>
    tpu.vector_store %arg4[%c0_236, %c0_237, %c0_238], %236 {strides = array<i32>} : memref<1x40x128xf32, #tpu.memory_space<vmem>>, vector<1x40x128xf32>,
    %c0_239 = arith.constant 0 : index
    %c152 = arith.constant 152 : index
    %c0_240 = arith.constant 0 : index
    %237 = vector.load %arg1[%c0_239, %c152, %c0_240] : memref<1x288x16xbf16, #tpu.memory_space<vmem>>, vector<1x40x16xbf16>
    %238 = vector.shape_cast %237 : vector<1x40x16xbf16> to vector<40x16xbf16>
    %c384 = arith.constant 384 : index
    %c0_241 = arith.constant 0 : index
    %239 = vector.load %arg2[%c384, %c0_241] : memref<1024x128xbf16, #tpu.memory_space<vmem>>, vector<16x128xbf16>
    %cst_242 = arith.constant dense<0.000000e+00> : vector<40x128xf32>
    %240 = tpu.matmul %238, %239, %cst_242 {dimension_numbers = #tpu.dot_dimension_numbers<[1], [0], [0], [1], [0, 0, 1, 1], [], []>} : vector<40x16xbf16>, vector<16x128xbf16>, vector<40x128xf32> -> vector<40x128xf32>
    %c0_243 = arith.constant 0 : index
    %c0_244 = arith.constant 0 : index
    %c0_245 = arith.constant 0 : index
    %241 = vector.load %arg4[%c0_243, %c0_244, %c0_245] : memref<1x40x128xf32, #tpu.memory_space<vmem>>, vector<1x40x128xf32>
    %242 = vector.shape_cast %241 : vector<1x40x128xf32> to vector<40x128xf32>
    %243 = arith.addf %242, %240 : vector<40x128xf32>
    %c0_246 = arith.constant 0 : index
    %c0_247 = arith.constant 0 : index
    %c0_248 = arith.constant 0 : index
    %244 = vector.load %arg4[%c0_246, %c0_247, %c0_248] : memref<1x40x128xf32, #tpu.memory_space<vmem>>, vector<1x40x128xf32>
    %245 = vector.shape_cast %244 : vector<1x40x128xf32> to vector<40x128xf32>
    %246 = vector.shape_cast %243 : vector<40x128xf32> to vector<1x40x128xf32>
    tpu.vector_store %arg4[%c0_246, %c0_247, %c0_248], %246 {strides = array<i32>} : memref<1x40x128xf32, #tpu.memory_space<vmem>>, vector<1x40x128xf32>,
    %c0_249 = arith.constant 0 : index
    %c224_250 = arith.constant 224 : index
    %c0_251 = arith.constant 0 : index
    %247 = vector.load %arg1[%c0_249, %c224_250, %c0_251] : memref<1x288x16xbf16, #tpu.memory_space<vmem>>, vector<1x40x16xbf16>
    %248 = vector.shape_cast %247 : vector<1x40x16xbf16> to vector<40x16xbf16>
    %c400 = arith.constant 400 : index
    %c0_252 = arith.constant 0 : index
    %249 = vector.load %arg2[%c400, %c0_252] : memref<1024x128xbf16, #tpu.memory_space<vmem>>, vector<16x128xbf16>
    %cst_253 = arith.constant dense<0.000000e+00> : vector<40x128xf32>
    %250 = tpu.matmul %248, %249, %cst_253 {dimension_numbers = #tpu.dot_dimension_numbers<[1], [0], [0], [1], [0, 0, 1, 1], [], []>} : vector<40x16xbf16>, vector<16x128xbf16>, vector<40x128xf32> -> vector<40x128xf32>
    %c0_254 = arith.constant 0 : index
    %c0_255 = arith.constant 0 : index
    %c0_256 = arith.constant 0 : index
    %251 = vector.load %arg4[%c0_254, %c0_255, %c0_256] : memref<1x40x128xf32, #tpu.memory_space<vmem>>, vector<1x40x128xf32>
    %252 = vector.shape_cast %251 : vector<1x40x128xf32> to vector<40x128xf32>
    %253 = arith.addf %252, %250 : vector<40x128xf32>
    %c0_257 = arith.constant 0 : index
    %c0_258 = arith.constant 0 : index
    %c0_259 = arith.constant 0 : index
    %254 = vector.load %arg4[%c0_257, %c0_258, %c0_259] : memref<1x40x128xf32, #tpu.memory_space<vmem>>, vector<1x40x128xf32>
    %255 = vector.shape_cast %254 : vector<1x40x128xf32> to vector<40x128xf32>
    %256 = vector.shape_cast %253 : vector<40x128xf32> to vector<1x40x128xf32>
    tpu.vector_store %arg4[%c0_257, %c0_258, %c0_259], %256 {strides = array<i32>} : memref<1x40x128xf32, #tpu.memory_space<vmem>>, vector<1x40x128xf32>,
    %c0_260 = arith.constant 0 : index
    %c153 = arith.constant 153 : index
    %c0_261 = arith.constant 0 : index
    %257 = vector.load %arg1[%c0_260, %c153, %c0_261] : memref<1x288x16xbf16, #tpu.memory_space<vmem>>, vector<1x40x16xbf16>
    %258 = vector.shape_cast %257 : vector<1x40x16xbf16> to vector<40x16xbf16>
    %c416 = arith.constant 416 : index
    %c0_262 = arith.constant 0 : index
    %259 = vector.load %arg2[%c416, %c0_262] : memref<1024x128xbf16, #tpu.memory_space<vmem>>, vector<16x128xbf16>
    %cst_263 = arith.constant dense<0.000000e+00> : vector<40x128xf32>
    %260 = tpu.matmul %258, %259, %cst_263 {dimension_numbers = #tpu.dot_dimension_numbers<[1], [0], [0], [1], [0, 0, 1, 1], [], []>} : vector<40x16xbf16>, vector<16x128xbf16>, vector<40x128xf32> -> vector<40x128xf32>
    %c0_264 = arith.constant 0 : index
    %c0_265 = arith.constant 0 : index
    %c0_266 = arith.constant 0 : index
    %261 = vector.load %arg4[%c0_264, %c0_265, %c0_266] : memref<1x40x128xf32, #tpu.memory_space<vmem>>, vector<1x40x128xf32>
    %262 = vector.shape_cast %261 : vector<1x40x128xf32> to vector<40x128xf32>
    %263 = arith.addf %262, %260 : vector<40x128xf32>
    %c0_267 = arith.constant 0 : index
    %c0_268 = arith.constant 0 : index
    %c0_269 = arith.constant 0 : index
    %264 = vector.load %arg4[%c0_267, %c0_268, %c0_269] : memref<1x40x128xf32, #tpu.memory_space<vmem>>, vector<1x40x128xf32>
    %265 = vector.shape_cast %264 : vector<1x40x128xf32> to vector<40x128xf32>
    %266 = vector.shape_cast %263 : vector<40x128xf32> to vector<1x40x128xf32>
    tpu.vector_store %arg4[%c0_267, %c0_268, %c0_269], %266 {strides = array<i32>} : memref<1x40x128xf32, #tpu.memory_space<vmem>>, vector<1x40x128xf32>,
    %c0_270 = arith.constant 0 : index
    %c225 = arith.constant 225 : index
    %c0_271 = arith.constant 0 : index
    %267 = vector.load %arg1[%c0_270, %c225, %c0_271] : memref<1x288x16xbf16, #tpu.memory_space<vmem>>, vector<1x40x16xbf16>
    %268 = vector.shape_cast %267 : vector<1x40x16xbf16> to vector<40x16xbf16>
    %c432 = arith.constant 432 : index
    %c0_272 = arith.constant 0 : index
    %269 = vector.load %arg2[%c432, %c0_272] : memref<1024x128xbf16, #tpu.memory_space<vmem>>, vector<16x128xbf16>
    %cst_273 = arith.constant dense<0.000000e+00> : vector<40x128xf32>
    %270 = tpu.matmul %268, %269, %cst_273 {dimension_numbers = #tpu.dot_dimension_numbers<[1], [0], [0], [1], [0, 0, 1, 1], [], []>} : vector<40x16xbf16>, vector<16x128xbf16>, vector<40x128xf32> -> vector<40x128xf32>
    %c0_274 = arith.constant 0 : index
    %c0_275 = arith.constant 0 : index
    %c0_276 = arith.constant 0 : index
    %271 = vector.load %arg4[%c0_274, %c0_275, %c0_276] : memref<1x40x128xf32, #tpu.memory_space<vmem>>, vector<1x40x128xf32>
    %272 = vector.shape_cast %271 : vector<1x40x128xf32> to vector<40x128xf32>
    %273 = arith.addf %272, %270 : vector<40x128xf32>
    %c0_277 = arith.constant 0 : index
    %c0_278 = arith.constant 0 : index
    %c0_279 = arith.constant 0 : index
    %274 = vector.load %arg4[%c0_277, %c0_278, %c0_279] : memref<1x40x128xf32, #tpu.memory_space<vmem>>, vector<1x40x128xf32>
    %275 = vector.shape_cast %274 : vector<1x40x128xf32> to vector<40x128xf32>
    %276 = vector.shape_cast %273 : vector<40x128xf32> to vector<1x40x128xf32>
    tpu.vector_store %arg4[%c0_277, %c0_278, %c0_279], %276 {strides = array<i32>} : memref<1x40x128xf32, #tpu.memory_space<vmem>>, vector<1x40x128xf32>,
    %c0_280 = arith.constant 0 : index
    %c154 = arith.constant 154 : index
    %c0_281 = arith.constant 0 : index
    %277 = vector.load %arg1[%c0_280, %c154, %c0_281] : memref<1x288x16xbf16, #tpu.memory_space<vmem>>, vector<1x40x16xbf16>
    %278 = vector.shape_cast %277 : vector<1x40x16xbf16> to vector<40x16xbf16>
    %c448 = arith.constant 448 : index
    %c0_282 = arith.constant 0 : index
    %279 = vector.load %arg2[%c448, %c0_282] : memref<1024x128xbf16, #tpu.memory_space<vmem>>, vector<16x128xbf16>
    %cst_283 = arith.constant dense<0.000000e+00> : vector<40x128xf32>
    %280 = tpu.matmul %278, %279, %cst_283 {dimension_numbers = #tpu.dot_dimension_numbers<[1], [0], [0], [1], [0, 0, 1, 1], [], []>} : vector<40x16xbf16>, vector<16x128xbf16>, vector<40x128xf32> -> vector<40x128xf32>
    %c0_284 = arith.constant 0 : index
    %c0_285 = arith.constant 0 : index
    %c0_286 = arith.constant 0 : index
    %281 = vector.load %arg4[%c0_284, %c0_285, %c0_286] : memref<1x40x128xf32, #tpu.memory_space<vmem>>, vector<1x40x128xf32>
    %282 = vector.shape_cast %281 : vector<1x40x128xf32> to vector<40x128xf32>
    %283 = arith.addf %282, %280 : vector<40x128xf32>
    %c0_287 = arith.constant 0 : index
    %c0_288 = arith.constant 0 : index
    %c0_289 = arith.constant 0 : index
    %284 = vector.load %arg4[%c0_287, %c0_288, %c0_289] : memref<1x40x128xf32, #tpu.memory_space<vmem>>, vector<1x40x128xf32>
    %285 = vector.shape_cast %284 : vector<1x40x128xf32> to vector<40x128xf32>
    %286 = vector.shape_cast %283 : vector<40x128xf32> to vector<1x40x128xf32>
    tpu.vector_store %arg4[%c0_287, %c0_288, %c0_289], %286 {strides = array<i32>} : memref<1x40x128xf32, #tpu.memory_space<vmem>>, vector<1x40x128xf32>,
    %c0_290 = arith.constant 0 : index
    %c226 = arith.constant 226 : index
    %c0_291 = arith.constant 0 : index
    %287 = vector.load %arg1[%c0_290, %c226, %c0_291] : memref<1x288x16xbf16, #tpu.memory_space<vmem>>, vector<1x40x16xbf16>
    %288 = vector.shape_cast %287 : vector<1x40x16xbf16> to vector<40x16xbf16>
    %c464 = arith.constant 464 : index
    %c0_292 = arith.constant 0 : index
    %289 = vector.load %arg2[%c464, %c0_292] : memref<1024x128xbf16, #tpu.memory_space<vmem>>, vector<16x128xbf16>
    %cst_293 = arith.constant dense<0.000000e+00> : vector<40x128xf32>
    %290 = tpu.matmul %288, %289, %cst_293 {dimension_numbers = #tpu.dot_dimension_numbers<[1], [0], [0], [1], [0, 0, 1, 1], [], []>} : vector<40x16xbf16>, vector<16x128xbf16>, vector<40x128xf32> -> vector<40x128xf32>
    %c0_294 = arith.constant 0 : index
    %c0_295 = arith.constant 0 : index
    %c0_296 = arith.constant 0 : index
    %291 = vector.load %arg4[%c0_294, %c0_295, %c0_296] : memref<1x40x128xf32, #tpu.memory_space<vmem>>, vector<1x40x128xf32>
    %292 = vector.shape_cast %291 : vector<1x40x128xf32> to vector<40x128xf32>
    %293 = arith.addf %292, %290 : vector<40x128xf32>
    %c0_297 = arith.constant 0 : index
    %c0_298 = arith.constant 0 : index
    %c0_299 = arith.constant 0 : index
    %294 = vector.load %arg4[%c0_297, %c0_298, %c0_299] : memref<1x40x128xf32, #tpu.memory_space<vmem>>, vector<1x40x128xf32>
    %295 = vector.shape_cast %294 : vector<1x40x128xf32> to vector<40x128xf32>
    %296 = vector.shape_cast %293 : vector<40x128xf32> to vector<1x40x128xf32>
    tpu.vector_store %arg4[%c0_297, %c0_298, %c0_299], %296 {strides = array<i32>} : memref<1x40x128xf32, #tpu.memory_space<vmem>>, vector<1x40x128xf32>,
    %c0_300 = arith.constant 0 : index
    %c155 = arith.constant 155 : index
    %c0_301 = arith.constant 0 : index
    %297 = vector.load %arg1[%c0_300, %c155, %c0_301] : memref<1x288x16xbf16, #tpu.memory_space<vmem>>, vector<1x40x16xbf16>
    %298 = vector.shape_cast %297 : vector<1x40x16xbf16> to vector<40x16xbf16>
    %c480 = arith.constant 480 : index
    %c0_302 = arith.constant 0 : index
    %299 = vector.load %arg2[%c480, %c0_302] : memref<1024x128xbf16, #tpu.memory_space<vmem>>, vector<16x128xbf16>
    %cst_303 = arith.constant dense<0.000000e+00> : vector<40x128xf32>
    %300 = tpu.matmul %298, %299, %cst_303 {dimension_numbers = #tpu.dot_dimension_numbers<[1], [0], [0], [1], [0, 0, 1, 1], [], []>} : vector<40x16xbf16>, vector<16x128xbf16>, vector<40x128xf32> -> vector<40x128xf32>
    %c0_304 = arith.constant 0 : index
    %c0_305 = arith.constant 0 : index
    %c0_306 = arith.constant 0 : index
    %301 = vector.load %arg4[%c0_304, %c0_305, %c0_306] : memref<1x40x128xf32, #tpu.memory_space<vmem>>, vector<1x40x128xf32>
    %302 = vector.shape_cast %301 : vector<1x40x128xf32> to vector<40x128xf32>
    %303 = arith.addf %302, %300 : vector<40x128xf32>
    %c0_307 = arith.constant 0 : index
    %c0_308 = arith.constant 0 : index
    %c0_309 = arith.constant 0 : index
    %304 = vector.load %arg4[%c0_307, %c0_308, %c0_309] : memref<1x40x128xf32, #tpu.memory_space<vmem>>, vector<1x40x128xf32>
    %305 = vector.shape_cast %304 : vector<1x40x128xf32> to vector<40x128xf32>
    %306 = vector.shape_cast %303 : vector<40x128xf32> to vector<1x40x128xf32>
    tpu.vector_store %arg4[%c0_307, %c0_308, %c0_309], %306 {strides = array<i32>} : memref<1x40x128xf32, #tpu.memory_space<vmem>>, vector<1x40x128xf32>,
    %c0_310 = arith.constant 0 : index
    %c227 = arith.constant 227 : index
    %c0_311 = arith.constant 0 : index
    %307 = vector.load %arg1[%c0_310, %c227, %c0_311] : memref<1x288x16xbf16, #tpu.memory_space<vmem>>, vector<1x40x16xbf16>
    %308 = vector.shape_cast %307 : vector<1x40x16xbf16> to vector<40x16xbf16>
    %c496 = arith.constant 496 : index
    %c0_312 = arith.constant 0 : index
    %309 = vector.load %arg2[%c496, %c0_312] : memref<1024x128xbf16, #tpu.memory_space<vmem>>, vector<16x128xbf16>
    %cst_313 = arith.constant dense<0.000000e+00> : vector<40x128xf32>
    %310 = tpu.matmul %308, %309, %cst_313 {dimension_numbers = #tpu.dot_dimension_numbers<[1], [0], [0], [1], [0, 0, 1, 1], [], []>} : vector<40x16xbf16>, vector<16x128xbf16>, vector<40x128xf32> -> vector<40x128xf32>
    %c0_314 = arith.constant 0 : index
    %c0_315 = arith.constant 0 : index
    %c0_316 = arith.constant 0 : index
    %311 = vector.load %arg4[%c0_314, %c0_315, %c0_316] : memref<1x40x128xf32, #tpu.memory_space<vmem>>, vector<1x40x128xf32>
    %312 = vector.shape_cast %311 : vector<1x40x128xf32> to vector<40x128xf32>
    %313 = arith.addf %312, %310 : vector<40x128xf32>
    %c0_317 = arith.constant 0 : index
    %c0_318 = arith.constant 0 : index
    %c0_319 = arith.constant 0 : index
    %314 = vector.load %arg4[%c0_317, %c0_318, %c0_319] : memref<1x40x128xf32, #tpu.memory_space<vmem>>, vector<1x40x128xf32>
    %315 = vector.shape_cast %314 : vector<1x40x128xf32> to vector<40x128xf32>
    %316 = vector.shape_cast %313 : vector<40x128xf32> to vector<1x40x128xf32>
    tpu.vector_store %arg4[%c0_317, %c0_318, %c0_319], %316 {strides = array<i32>} : memref<1x40x128xf32, #tpu.memory_space<vmem>>, vector<1x40x128xf32>,
    %c0_320 = arith.constant 0 : index
    %c16_321 = arith.constant 16 : index
    %c0_322 = arith.constant 0 : index
    %317 = vector.load %arg1[%c0_320, %c16_321, %c0_322] : memref<1x288x16xbf16, #tpu.memory_space<vmem>>, vector<1x40x16xbf16>
    %318 = vector.shape_cast %317 : vector<1x40x16xbf16> to vector<40x16xbf16>
    %c512 = arith.constant 512 : index
    %c0_323 = arith.constant 0 : index
    %319 = vector.load %arg2[%c512, %c0_323] : memref<1024x128xbf16, #tpu.memory_space<vmem>>, vector<16x128xbf16>
    %cst_324 = arith.constant dense<0.000000e+00> : vector<40x128xf32>
    %320 = tpu.matmul %318, %319, %cst_324 {dimension_numbers = #tpu.dot_dimension_numbers<[1], [0], [0], [1], [0, 0, 1, 1], [], []>} : vector<40x16xbf16>, vector<16x128xbf16>, vector<40x128xf32> -> vector<40x128xf32>
    %c0_325 = arith.constant 0 : index
    %c0_326 = arith.constant 0 : index
    %c0_327 = arith.constant 0 : index
    %321 = vector.load %arg4[%c0_325, %c0_326, %c0_327] : memref<1x40x128xf32, #tpu.memory_space<vmem>>, vector<1x40x128xf32>
    %322 = vector.shape_cast %321 : vector<1x40x128xf32> to vector<40x128xf32>
    %323 = arith.addf %322, %320 : vector<40x128xf32>
    %c0_328 = arith.constant 0 : index
    %c0_329 = arith.constant 0 : index
    %c0_330 = arith.constant 0 : index
    %324 = vector.load %arg4[%c0_328, %c0_329, %c0_330] : memref<1x40x128xf32, #tpu.memory_space<vmem>>, vector<1x40x128xf32>
    %325 = vector.shape_cast %324 : vector<1x40x128xf32> to vector<40x128xf32>
    %326 = vector.shape_cast %323 : vector<40x128xf32> to vector<1x40x128xf32>
    tpu.vector_store %arg4[%c0_328, %c0_329, %c0_330], %326 {strides = array<i32>} : memref<1x40x128xf32, #tpu.memory_space<vmem>>, vector<1x40x128xf32>,
    %c0_331 = arith.constant 0 : index
    %c88 = arith.constant 88 : index
    %c0_332 = arith.constant 0 : index
    %327 = vector.load %arg1[%c0_331, %c88, %c0_332] : memref<1x288x16xbf16, #tpu.memory_space<vmem>>, vector<1x40x16xbf16>
    %328 = vector.shape_cast %327 : vector<1x40x16xbf16> to vector<40x16xbf16>
    %c528 = arith.constant 528 : index
    %c0_333 = arith.constant 0 : index
    %329 = vector.load %arg2[%c528, %c0_333] : memref<1024x128xbf16, #tpu.memory_space<vmem>>, vector<16x128xbf16>
    %cst_334 = arith.constant dense<0.000000e+00> : vector<40x128xf32>
    %330 = tpu.matmul %328, %329, %cst_334 {dimension_numbers = #tpu.dot_dimension_numbers<[1], [0], [0], [1], [0, 0, 1, 1], [], []>} : vector<40x16xbf16>, vector<16x128xbf16>, vector<40x128xf32> -> vector<40x128xf32>
    %c0_335 = arith.constant 0 : index
    %c0_336 = arith.constant 0 : index
    %c0_337 = arith.constant 0 : index
    %331 = vector.load %arg4[%c0_335, %c0_336, %c0_337] : memref<1x40x128xf32, #tpu.memory_space<vmem>>, vector<1x40x128xf32>
    %332 = vector.shape_cast %331 : vector<1x40x128xf32> to vector<40x128xf32>
    %333 = arith.addf %332, %330 : vector<40x128xf32>
    %c0_338 = arith.constant 0 : index
    %c0_339 = arith.constant 0 : index
    %c0_340 = arith.constant 0 : index
    %334 = vector.load %arg4[%c0_338, %c0_339, %c0_340] : memref<1x40x128xf32, #tpu.memory_space<vmem>>, vector<1x40x128xf32>
    %335 = vector.shape_cast %334 : vector<1x40x128xf32> to vector<40x128xf32>
    %336 = vector.shape_cast %333 : vector<40x128xf32> to vector<1x40x128xf32>
    tpu.vector_store %arg4[%c0_338, %c0_339, %c0_340], %336 {strides = array<i32>} : memref<1x40x128xf32, #tpu.memory_space<vmem>>, vector<1x40x128xf32>,
    %c0_341 = arith.constant 0 : index
    %c17 = arith.constant 17 : index
    %c0_342 = arith.constant 0 : index
    %337 = vector.load %arg1[%c0_341, %c17, %c0_342] : memref<1x288x16xbf16, #tpu.memory_space<vmem>>, vector<1x40x16xbf16>
    %338 = vector.shape_cast %337 : vector<1x40x16xbf16> to vector<40x16xbf16>
    %c544 = arith.constant 544 : index
    %c0_343 = arith.constant 0 : index
    %339 = vector.load %arg2[%c544, %c0_343] : memref<1024x128xbf16, #tpu.memory_space<vmem>>, vector<16x128xbf16>
    %cst_344 = arith.constant dense<0.000000e+00> : vector<40x128xf32>
    %340 = tpu.matmul %338, %339, %cst_344 {dimension_numbers = #tpu.dot_dimension_numbers<[1], [0], [0], [1], [0, 0, 1, 1], [], []>} : vector<40x16xbf16>, vector<16x128xbf16>, vector<40x128xf32> -> vector<40x128xf32>
    %c0_345 = arith.constant 0 : index
    %c0_346 = arith.constant 0 : index
    %c0_347 = arith.constant 0 : index
    %341 = vector.load %arg4[%c0_345, %c0_346, %c0_347] : memref<1x40x128xf32, #tpu.memory_space<vmem>>, vector<1x40x128xf32>
    %342 = vector.shape_cast %341 : vector<1x40x128xf32> to vector<40x128xf32>
    %343 = arith.addf %342, %340 : vector<40x128xf32>
    %c0_348 = arith.constant 0 : index
    %c0_349 = arith.constant 0 : index
    %c0_350 = arith.constant 0 : index
    %344 = vector.load %arg4[%c0_348, %c0_349, %c0_350] : memref<1x40x128xf32, #tpu.memory_space<vmem>>, vector<1x40x128xf32>
    %345 = vector.shape_cast %344 : vector<1x40x128xf32> to vector<40x128xf32>
    %346 = vector.shape_cast %343 : vector<40x128xf32> to vector<1x40x128xf32>
    tpu.vector_store %arg4[%c0_348, %c0_349, %c0_350], %346 {strides = array<i32>} : memref<1x40x128xf32, #tpu.memory_space<vmem>>, vector<1x40x128xf32>,
    %c0_351 = arith.constant 0 : index
    %c89 = arith.constant 89 : index
    %c0_352 = arith.constant 0 : index
    %347 = vector.load %arg1[%c0_351, %c89, %c0_352] : memref<1x288x16xbf16, #tpu.memory_space<vmem>>, vector<1x40x16xbf16>
    %348 = vector.shape_cast %347 : vector<1x40x16xbf16> to vector<40x16xbf16>
    %c560 = arith.constant 560 : index
    %c0_353 = arith.constant 0 : index
    %349 = vector.load %arg2[%c560, %c0_353] : memref<1024x128xbf16, #tpu.memory_space<vmem>>, vector<16x128xbf16>
    %cst_354 = arith.constant dense<0.000000e+00> : vector<40x128xf32>
    %350 = tpu.matmul %348, %349, %cst_354 {dimension_numbers = #tpu.dot_dimension_numbers<[1], [0], [0], [1], [0, 0, 1, 1], [], []>} : vector<40x16xbf16>, vector<16x128xbf16>, vector<40x128xf32> -> vector<40x128xf32>
    %c0_355 = arith.constant 0 : index
    %c0_356 = arith.constant 0 : index
    %c0_357 = arith.constant 0 : index
    %351 = vector.load %arg4[%c0_355, %c0_356, %c0_357] : memref<1x40x128xf32, #tpu.memory_space<vmem>>, vector<1x40x128xf32>
    %352 = vector.shape_cast %351 : vector<1x40x128xf32> to vector<40x128xf32>
    %353 = arith.addf %352, %350 : vector<40x128xf32>
    %c0_358 = arith.constant 0 : index
    %c0_359 = arith.constant 0 : index
    %c0_360 = arith.constant 0 : index
    %354 = vector.load %arg4[%c0_358, %c0_359, %c0_360] : memref<1x40x128xf32, #tpu.memory_space<vmem>>, vector<1x40x128xf32>
    %355 = vector.shape_cast %354 : vector<1x40x128xf32> to vector<40x128xf32>
    %356 = vector.shape_cast %353 : vector<40x128xf32> to vector<1x40x128xf32>
    tpu.vector_store %arg4[%c0_358, %c0_359, %c0_360], %356 {strides = array<i32>} : memref<1x40x128xf32, #tpu.memory_space<vmem>>, vector<1x40x128xf32>,
    %c0_361 = arith.constant 0 : index
    %c18 = arith.constant 18 : index
    %c0_362 = arith.constant 0 : index
    %357 = vector.load %arg1[%c0_361, %c18, %c0_362] : memref<1x288x16xbf16, #tpu.memory_space<vmem>>, vector<1x40x16xbf16>
    %358 = vector.shape_cast %357 : vector<1x40x16xbf16> to vector<40x16xbf16>
    %c576 = arith.constant 576 : index
    %c0_363 = arith.constant 0 : index
    %359 = vector.load %arg2[%c576, %c0_363] : memref<1024x128xbf16, #tpu.memory_space<vmem>>, vector<16x128xbf16>
    %cst_364 = arith.constant dense<0.000000e+00> : vector<40x128xf32>
    %360 = tpu.matmul %358, %359, %cst_364 {dimension_numbers = #tpu.dot_dimension_numbers<[1], [0], [0], [1], [0, 0, 1, 1], [], []>} : vector<40x16xbf16>, vector<16x128xbf16>, vector<40x128xf32> -> vector<40x128xf32>
    %c0_365 = arith.constant 0 : index
    %c0_366 = arith.constant 0 : index
    %c0_367 = arith.constant 0 : index
    %361 = vector.load %arg4[%c0_365, %c0_366, %c0_367] : memref<1x40x128xf32, #tpu.memory_space<vmem>>, vector<1x40x128xf32>
    %362 = vector.shape_cast %361 : vector<1x40x128xf32> to vector<40x128xf32>
    %363 = arith.addf %362, %360 : vector<40x128xf32>
    %c0_368 = arith.constant 0 : index
    %c0_369 = arith.constant 0 : index
    %c0_370 = arith.constant 0 : index
    %364 = vector.load %arg4[%c0_368, %c0_369, %c0_370] : memref<1x40x128xf32, #tpu.memory_space<vmem>>, vector<1x40x128xf32>
    %365 = vector.shape_cast %364 : vector<1x40x128xf32> to vector<40x128xf32>
    %366 = vector.shape_cast %363 : vector<40x128xf32> to vector<1x40x128xf32>
    tpu.vector_store %arg4[%c0_368, %c0_369, %c0_370], %366 {strides = array<i32>} : memref<1x40x128xf32, #tpu.memory_space<vmem>>, vector<1x40x128xf32>,
    %c0_371 = arith.constant 0 : index
    %c90 = arith.constant 90 : index
    %c0_372 = arith.constant 0 : index
    %367 = vector.load %arg1[%c0_371, %c90, %c0_372] : memref<1x288x16xbf16, #tpu.memory_space<vmem>>, vector<1x40x16xbf16>
    %368 = vector.shape_cast %367 : vector<1x40x16xbf16> to vector<40x16xbf16>
    %c592 = arith.constant 592 : index
    %c0_373 = arith.constant 0 : index
    %369 = vector.load %arg2[%c592, %c0_373] : memref<1024x128xbf16, #tpu.memory_space<vmem>>, vector<16x128xbf16>
    %cst_374 = arith.constant dense<0.000000e+00> : vector<40x128xf32>
    %370 = tpu.matmul %368, %369, %cst_374 {dimension_numbers = #tpu.dot_dimension_numbers<[1], [0], [0], [1], [0, 0, 1, 1], [], []>} : vector<40x16xbf16>, vector<16x128xbf16>, vector<40x128xf32> -> vector<40x128xf32>
    %c0_375 = arith.constant 0 : index
    %c0_376 = arith.constant 0 : index
    %c0_377 = arith.constant 0 : index
    %371 = vector.load %arg4[%c0_375, %c0_376, %c0_377] : memref<1x40x128xf32, #tpu.memory_space<vmem>>, vector<1x40x128xf32>
    %372 = vector.shape_cast %371 : vector<1x40x128xf32> to vector<40x128xf32>
    %373 = arith.addf %372, %370 : vector<40x128xf32>
    %c0_378 = arith.constant 0 : index
    %c0_379 = arith.constant 0 : index
    %c0_380 = arith.constant 0 : index
    %374 = vector.load %arg4[%c0_378, %c0_379, %c0_380] : memref<1x40x128xf32, #tpu.memory_space<vmem>>, vector<1x40x128xf32>
    %375 = vector.shape_cast %374 : vector<1x40x128xf32> to vector<40x128xf32>
    %376 = vector.shape_cast %373 : vector<40x128xf32> to vector<1x40x128xf32>
    tpu.vector_store %arg4[%c0_378, %c0_379, %c0_380], %376 {strides = array<i32>} : memref<1x40x128xf32, #tpu.memory_space<vmem>>, vector<1x40x128xf32>,
    %c0_381 = arith.constant 0 : index
    %c19 = arith.constant 19 : index
    %c0_382 = arith.constant 0 : index
    %377 = vector.load %arg1[%c0_381, %c19, %c0_382] : memref<1x288x16xbf16, #tpu.memory_space<vmem>>, vector<1x40x16xbf16>
    %378 = vector.shape_cast %377 : vector<1x40x16xbf16> to vector<40x16xbf16>
    %c608 = arith.constant 608 : index
    %c0_383 = arith.constant 0 : index
    %379 = vector.load %arg2[%c608, %c0_383] : memref<1024x128xbf16, #tpu.memory_space<vmem>>, vector<16x128xbf16>
    %cst_384 = arith.constant dense<0.000000e+00> : vector<40x128xf32>
    %380 = tpu.matmul %378, %379, %cst_384 {dimension_numbers = #tpu.dot_dimension_numbers<[1], [0], [0], [1], [0, 0, 1, 1], [], []>} : vector<40x16xbf16>, vector<16x128xbf16>, vector<40x128xf32> -> vector<40x128xf32>
    %c0_385 = arith.constant 0 : index
    %c0_386 = arith.constant 0 : index
    %c0_387 = arith.constant 0 : index
    %381 = vector.load %arg4[%c0_385, %c0_386, %c0_387] : memref<1x40x128xf32, #tpu.memory_space<vmem>>, vector<1x40x128xf32>
    %382 = vector.shape_cast %381 : vector<1x40x128xf32> to vector<40x128xf32>
    %383 = arith.addf %382, %380 : vector<40x128xf32>
    %c0_388 = arith.constant 0 : index
    %c0_389 = arith.constant 0 : index
    %c0_390 = arith.constant 0 : index
    %384 = vector.load %arg4[%c0_388, %c0_389, %c0_390] : memref<1x40x128xf32, #tpu.memory_space<vmem>>, vector<1x40x128xf32>
    %385 = vector.shape_cast %384 : vector<1x40x128xf32> to vector<40x128xf32>
    %386 = vector.shape_cast %383 : vector<40x128xf32> to vector<1x40x128xf32>
    tpu.vector_store %arg4[%c0_388, %c0_389, %c0_390], %386 {strides = array<i32>} : memref<1x40x128xf32, #tpu.memory_space<vmem>>, vector<1x40x128xf32>,
    %c0_391 = arith.constant 0 : index
    %c91 = arith.constant 91 : index
    %c0_392 = arith.constant 0 : index
    %387 = vector.load %arg1[%c0_391, %c91, %c0_392] : memref<1x288x16xbf16, #tpu.memory_space<vmem>>, vector<1x40x16xbf16>
    %388 = vector.shape_cast %387 : vector<1x40x16xbf16> to vector<40x16xbf16>
    %c624 = arith.constant 624 : index
    %c0_393 = arith.constant 0 : index
    %389 = vector.load %arg2[%c624, %c0_393] : memref<1024x128xbf16, #tpu.memory_space<vmem>>, vector<16x128xbf16>
    %cst_394 = arith.constant dense<0.000000e+00> : vector<40x128xf32>
    %390 = tpu.matmul %388, %389, %cst_394 {dimension_numbers = #tpu.dot_dimension_numbers<[1], [0], [0], [1], [0, 0, 1, 1], [], []>} : vector<40x16xbf16>, vector<16x128xbf16>, vector<40x128xf32> -> vector<40x128xf32>
    %c0_395 = arith.constant 0 : index
    %c0_396 = arith.constant 0 : index
    %c0_397 = arith.constant 0 : index
    %391 = vector.load %arg4[%c0_395, %c0_396, %c0_397] : memref<1x40x128xf32, #tpu.memory_space<vmem>>, vector<1x40x128xf32>
    %392 = vector.shape_cast %391 : vector<1x40x128xf32> to vector<40x128xf32>
    %393 = arith.addf %392, %390 : vector<40x128xf32>
    %c0_398 = arith.constant 0 : index
    %c0_399 = arith.constant 0 : index
    %c0_400 = arith.constant 0 : index
    %394 = vector.load %arg4[%c0_398, %c0_399, %c0_400] : memref<1x40x128xf32, #tpu.memory_space<vmem>>, vector<1x40x128xf32>
    %395 = vector.shape_cast %394 : vector<1x40x128xf32> to vector<40x128xf32>
    %396 = vector.shape_cast %393 : vector<40x128xf32> to vector<1x40x128xf32>
    tpu.vector_store %arg4[%c0_398, %c0_399, %c0_400], %396 {strides = array<i32>} : memref<1x40x128xf32, #tpu.memory_space<vmem>>, vector<1x40x128xf32>,
    %c0_401 = arith.constant 0 : index
    %c160_402 = arith.constant 160 : index
    %c0_403 = arith.constant 0 : index
    %397 = vector.load %arg1[%c0_401, %c160_402, %c0_403] : memref<1x288x16xbf16, #tpu.memory_space<vmem>>, vector<1x40x16xbf16>
    %398 = vector.shape_cast %397 : vector<1x40x16xbf16> to vector<40x16xbf16>
    %c640 = arith.constant 640 : index
    %c0_404 = arith.constant 0 : index
    %399 = vector.load %arg2[%c640, %c0_404] : memref<1024x128xbf16, #tpu.memory_space<vmem>>, vector<16x128xbf16>
    %cst_405 = arith.constant dense<0.000000e+00> : vector<40x128xf32>
    %400 = tpu.matmul %398, %399, %cst_405 {dimension_numbers = #tpu.dot_dimension_numbers<[1], [0], [0], [1], [0, 0, 1, 1], [], []>} : vector<40x16xbf16>, vector<16x128xbf16>, vector<40x128xf32> -> vector<40x128xf32>
    %c0_406 = arith.constant 0 : index
    %c0_407 = arith.constant 0 : index
    %c0_408 = arith.constant 0 : index
    %401 = vector.load %arg4[%c0_406, %c0_407, %c0_408] : memref<1x40x128xf32, #tpu.memory_space<vmem>>, vector<1x40x128xf32>
    %402 = vector.shape_cast %401 : vector<1x40x128xf32> to vector<40x128xf32>
    %403 = arith.addf %402, %400 : vector<40x128xf32>
    %c0_409 = arith.constant 0 : index
    %c0_410 = arith.constant 0 : index
    %c0_411 = arith.constant 0 : index
    %404 = vector.load %arg4[%c0_409, %c0_410, %c0_411] : memref<1x40x128xf32, #tpu.memory_space<vmem>>, vector<1x40x128xf32>
    %405 = vector.shape_cast %404 : vector<1x40x128xf32> to vector<40x128xf32>
    %406 = vector.shape_cast %403 : vector<40x128xf32> to vector<1x40x128xf32>
    tpu.vector_store %arg4[%c0_409, %c0_410, %c0_411], %406 {strides = array<i32>} : memref<1x40x128xf32, #tpu.memory_space<vmem>>, vector<1x40x128xf32>,
    %c0_412 = arith.constant 0 : index
    %c232 = arith.constant 232 : index
    %c0_413 = arith.constant 0 : index
    %407 = vector.load %arg1[%c0_412, %c232, %c0_413] : memref<1x288x16xbf16, #tpu.memory_space<vmem>>, vector<1x40x16xbf16>
    %408 = vector.shape_cast %407 : vector<1x40x16xbf16> to vector<40x16xbf16>
    %c656 = arith.constant 656 : index
    %c0_414 = arith.constant 0 : index
    %409 = vector.load %arg2[%c656, %c0_414] : memref<1024x128xbf16, #tpu.memory_space<vmem>>, vector<16x128xbf16>
    %cst_415 = arith.constant dense<0.000000e+00> : vector<40x128xf32>
    %410 = tpu.matmul %408, %409, %cst_415 {dimension_numbers = #tpu.dot_dimension_numbers<[1], [0], [0], [1], [0, 0, 1, 1], [], []>} : vector<40x16xbf16>, vector<16x128xbf16>, vector<40x128xf32> -> vector<40x128xf32>
    %c0_416 = arith.constant 0 : index
    %c0_417 = arith.constant 0 : index
    %c0_418 = arith.constant 0 : index
    %411 = vector.load %arg4[%c0_416, %c0_417, %c0_418] : memref<1x40x128xf32, #tpu.memory_space<vmem>>, vector<1x40x128xf32>
    %412 = vector.shape_cast %411 : vector<1x40x128xf32> to vector<40x128xf32>
    %413 = arith.addf %412, %410 : vector<40x128xf32>
    %c0_419 = arith.constant 0 : index
    %c0_420 = arith.constant 0 : index
    %c0_421 = arith.constant 0 : index
    %414 = vector.load %arg4[%c0_419, %c0_420, %c0_421] : memref<1x40x128xf32, #tpu.memory_space<vmem>>, vector<1x40x128xf32>
    %415 = vector.shape_cast %414 : vector<1x40x128xf32> to vector<40x128xf32>
    %416 = vector.shape_cast %413 : vector<40x128xf32> to vector<1x40x128xf32>
    tpu.vector_store %arg4[%c0_419, %c0_420, %c0_421], %416 {strides = array<i32>} : memref<1x40x128xf32, #tpu.memory_space<vmem>>, vector<1x40x128xf32>,
    %c0_422 = arith.constant 0 : index
    %c161 = arith.constant 161 : index
    %c0_423 = arith.constant 0 : index
    %417 = vector.load %arg1[%c0_422, %c161, %c0_423] : memref<1x288x16xbf16, #tpu.memory_space<vmem>>, vector<1x40x16xbf16>
    %418 = vector.shape_cast %417 : vector<1x40x16xbf16> to vector<40x16xbf16>
    %c672 = arith.constant 672 : index
    %c0_424 = arith.constant 0 : index
    %419 = vector.load %arg2[%c672, %c0_424] : memref<1024x128xbf16, #tpu.memory_space<vmem>>, vector<16x128xbf16>
    %cst_425 = arith.constant dense<0.000000e+00> : vector<40x128xf32>
    %420 = tpu.matmul %418, %419, %cst_425 {dimension_numbers = #tpu.dot_dimension_numbers<[1], [0], [0], [1], [0, 0, 1, 1], [], []>} : vector<40x16xbf16>, vector<16x128xbf16>, vector<40x128xf32> -> vector<40x128xf32>
    %c0_426 = arith.constant 0 : index
    %c0_427 = arith.constant 0 : index
    %c0_428 = arith.constant 0 : index
    %421 = vector.load %arg4[%c0_426, %c0_427, %c0_428] : memref<1x40x128xf32, #tpu.memory_space<vmem>>, vector<1x40x128xf32>
    %422 = vector.shape_cast %421 : vector<1x40x128xf32> to vector<40x128xf32>
    %423 = arith.addf %422, %420 : vector<40x128xf32>
    %c0_429 = arith.constant 0 : index
    %c0_430 = arith.constant 0 : index
    %c0_431 = arith.constant 0 : index
    %424 = vector.load %arg4[%c0_429, %c0_430, %c0_431] : memref<1x40x128xf32, #tpu.memory_space<vmem>>, vector<1x40x128xf32>
    %425 = vector.shape_cast %424 : vector<1x40x128xf32> to vector<40x128xf32>
    %426 = vector.shape_cast %423 : vector<40x128xf32> to vector<1x40x128xf32>
    tpu.vector_store %arg4[%c0_429, %c0_430, %c0_431], %426 {strides = array<i32>} : memref<1x40x128xf32, #tpu.memory_space<vmem>>, vector<1x40x128xf32>,
    %c0_432 = arith.constant 0 : index
    %c233 = arith.constant 233 : index
    %c0_433 = arith.constant 0 : index
    %427 = vector.load %arg1[%c0_432, %c233, %c0_433] : memref<1x288x16xbf16, #tpu.memory_space<vmem>>, vector<1x40x16xbf16>
    %428 = vector.shape_cast %427 : vector<1x40x16xbf16> to vector<40x16xbf16>
    %c688 = arith.constant 688 : index
    %c0_434 = arith.constant 0 : index
    %429 = vector.load %arg2[%c688, %c0_434] : memref<1024x128xbf16, #tpu.memory_space<vmem>>, vector<16x128xbf16>
    %cst_435 = arith.constant dense<0.000000e+00> : vector<40x128xf32>
    %430 = tpu.matmul %428, %429, %cst_435 {dimension_numbers = #tpu.dot_dimension_numbers<[1], [0], [0], [1], [0, 0, 1, 1], [], []>} : vector<40x16xbf16>, vector<16x128xbf16>, vector<40x128xf32> -> vector<40x128xf32>
    %c0_436 = arith.constant 0 : index
    %c0_437 = arith.constant 0 : index
    %c0_438 = arith.constant 0 : index
    %431 = vector.load %arg4[%c0_436, %c0_437, %c0_438] : memref<1x40x128xf32, #tpu.memory_space<vmem>>, vector<1x40x128xf32>
    %432 = vector.shape_cast %431 : vector<1x40x128xf32> to vector<40x128xf32>
    %433 = arith.addf %432, %430 : vector<40x128xf32>
    %c0_439 = arith.constant 0 : index
    %c0_440 = arith.constant 0 : index
    %c0_441 = arith.constant 0 : index
    %434 = vector.load %arg4[%c0_439, %c0_440, %c0_441] : memref<1x40x128xf32, #tpu.memory_space<vmem>>, vector<1x40x128xf32>
    %435 = vector.shape_cast %434 : vector<1x40x128xf32> to vector<40x128xf32>
    %436 = vector.shape_cast %433 : vector<40x128xf32> to vector<1x40x128xf32>
    tpu.vector_store %arg4[%c0_439, %c0_440, %c0_441], %436 {strides = array<i32>} : memref<1x40x128xf32, #tpu.memory_space<vmem>>, vector<1x40x128xf32>,
    %c0_442 = arith.constant 0 : index
    %c162 = arith.constant 162 : index
    %c0_443 = arith.constant 0 : index
    %437 = vector.load %arg1[%c0_442, %c162, %c0_443] : memref<1x288x16xbf16, #tpu.memory_space<vmem>>, vector<1x40x16xbf16>
    %438 = vector.shape_cast %437 : vector<1x40x16xbf16> to vector<40x16xbf16>
    %c704 = arith.constant 704 : index
    %c0_444 = arith.constant 0 : index
    %439 = vector.load %arg2[%c704, %c0_444] : memref<1024x128xbf16, #tpu.memory_space<vmem>>, vector<16x128xbf16>
    %cst_445 = arith.constant dense<0.000000e+00> : vector<40x128xf32>
    %440 = tpu.matmul %438, %439, %cst_445 {dimension_numbers = #tpu.dot_dimension_numbers<[1], [0], [0], [1], [0, 0, 1, 1], [], []>} : vector<40x16xbf16>, vector<16x128xbf16>, vector<40x128xf32> -> vector<40x128xf32>
    %c0_446 = arith.constant 0 : index
    %c0_447 = arith.constant 0 : index
    %c0_448 = arith.constant 0 : index
    %441 = vector.load %arg4[%c0_446, %c0_447, %c0_448] : memref<1x40x128xf32, #tpu.memory_space<vmem>>, vector<1x40x128xf32>
    %442 = vector.shape_cast %441 : vector<1x40x128xf32> to vector<40x128xf32>
    %443 = arith.addf %442, %440 : vector<40x128xf32>
    %c0_449 = arith.constant 0 : index
    %c0_450 = arith.constant 0 : index
    %c0_451 = arith.constant 0 : index
    %444 = vector.load %arg4[%c0_449, %c0_450, %c0_451] : memref<1x40x128xf32, #tpu.memory_space<vmem>>, vector<1x40x128xf32>
    %445 = vector.shape_cast %444 : vector<1x40x128xf32> to vector<40x128xf32>
    %446 = vector.shape_cast %443 : vector<40x128xf32> to vector<1x40x128xf32>
    tpu.vector_store %arg4[%c0_449, %c0_450, %c0_451], %446 {strides = array<i32>} : memref<1x40x128xf32, #tpu.memory_space<vmem>>, vector<1x40x128xf32>,
    %c0_452 = arith.constant 0 : index
    %c234 = arith.constant 234 : index
    %c0_453 = arith.constant 0 : index
    %447 = vector.load %arg1[%c0_452, %c234, %c0_453] : memref<1x288x16xbf16, #tpu.memory_space<vmem>>, vector<1x40x16xbf16>
    %448 = vector.shape_cast %447 : vector<1x40x16xbf16> to vector<40x16xbf16>
    %c720 = arith.constant 720 : index
    %c0_454 = arith.constant 0 : index
    %449 = vector.load %arg2[%c720, %c0_454] : memref<1024x128xbf16, #tpu.memory_space<vmem>>, vector<16x128xbf16>
    %cst_455 = arith.constant dense<0.000000e+00> : vector<40x128xf32>
    %450 = tpu.matmul %448, %449, %cst_455 {dimension_numbers = #tpu.dot_dimension_numbers<[1], [0], [0], [1], [0, 0, 1, 1], [], []>} : vector<40x16xbf16>, vector<16x128xbf16>, vector<40x128xf32> -> vector<40x128xf32>
    %c0_456 = arith.constant 0 : index
    %c0_457 = arith.constant 0 : index
    %c0_458 = arith.constant 0 : index
    %451 = vector.load %arg4[%c0_456, %c0_457, %c0_458] : memref<1x40x128xf32, #tpu.memory_space<vmem>>, vector<1x40x128xf32>
    %452 = vector.shape_cast %451 : vector<1x40x128xf32> to vector<40x128xf32>
    %453 = arith.addf %452, %450 : vector<40x128xf32>
    %c0_459 = arith.constant 0 : index
    %c0_460 = arith.constant 0 : index
    %c0_461 = arith.constant 0 : index
    %454 = vector.load %arg4[%c0_459, %c0_460, %c0_461] : memref<1x40x128xf32, #tpu.memory_space<vmem>>, vector<1x40x128xf32>
    %455 = vector.shape_cast %454 : vector<1x40x128xf32> to vector<40x128xf32>
    %456 = vector.shape_cast %453 : vector<40x128xf32> to vector<1x40x128xf32>
    tpu.vector_store %arg4[%c0_459, %c0_460, %c0_461], %456 {strides = array<i32>} : memref<1x40x128xf32, #tpu.memory_space<vmem>>, vector<1x40x128xf32>,
    %c0_462 = arith.constant 0 : index
    %c163 = arith.constant 163 : index
    %c0_463 = arith.constant 0 : index
    %457 = vector.load %arg1[%c0_462, %c163, %c0_463] : memref<1x288x16xbf16, #tpu.memory_space<vmem>>, vector<1x40x16xbf16>
    %458 = vector.shape_cast %457 : vector<1x40x16xbf16> to vector<40x16xbf16>
    %c736 = arith.constant 736 : index
    %c0_464 = arith.constant 0 : index
    %459 = vector.load %arg2[%c736, %c0_464] : memref<1024x128xbf16, #tpu.memory_space<vmem>>, vector<16x128xbf16>
    %cst_465 = arith.constant dense<0.000000e+00> : vector<40x128xf32>
    %460 = tpu.matmul %458, %459, %cst_465 {dimension_numbers = #tpu.dot_dimension_numbers<[1], [0], [0], [1], [0, 0, 1, 1], [], []>} : vector<40x16xbf16>, vector<16x128xbf16>, vector<40x128xf32> -> vector<40x128xf32>
    %c0_466 = arith.constant 0 : index
    %c0_467 = arith.constant 0 : index
    %c0_468 = arith.constant 0 : index
    %461 = vector.load %arg4[%c0_466, %c0_467, %c0_468] : memref<1x40x128xf32, #tpu.memory_space<vmem>>, vector<1x40x128xf32>
    %462 = vector.shape_cast %461 : vector<1x40x128xf32> to vector<40x128xf32>
    %463 = arith.addf %462, %460 : vector<40x128xf32>
    %c0_469 = arith.constant 0 : index
    %c0_470 = arith.constant 0 : index
    %c0_471 = arith.constant 0 : index
    %464 = vector.load %arg4[%c0_469, %c0_470, %c0_471] : memref<1x40x128xf32, #tpu.memory_space<vmem>>, vector<1x40x128xf32>
    %465 = vector.shape_cast %464 : vector<1x40x128xf32> to vector<40x128xf32>
    %466 = vector.shape_cast %463 : vector<40x128xf32> to vector<1x40x128xf32>
    tpu.vector_store %arg4[%c0_469, %c0_470, %c0_471], %466 {strides = array<i32>} : memref<1x40x128xf32, #tpu.memory_space<vmem>>, vector<1x40x128xf32>,
    %c0_472 = arith.constant 0 : index
    %c235 = arith.constant 235 : index
    %c0_473 = arith.constant 0 : index
    %467 = vector.load %arg1[%c0_472, %c235, %c0_473] : memref<1x288x16xbf16, #tpu.memory_space<vmem>>, vector<1x40x16xbf16>
    %468 = vector.shape_cast %467 : vector<1x40x16xbf16> to vector<40x16xbf16>
    %c752 = arith.constant 752 : index
    %c0_474 = arith.constant 0 : index
    %469 = vector.load %arg2[%c752, %c0_474] : memref<1024x128xbf16, #tpu.memory_space<vmem>>, vector<16x128xbf16>
    %cst_475 = arith.constant dense<0.000000e+00> : vector<40x128xf32>
    %470 = tpu.matmul %468, %469, %cst_475 {dimension_numbers = #tpu.dot_dimension_numbers<[1], [0], [0], [1], [0, 0, 1, 1], [], []>} : vector<40x16xbf16>, vector<16x128xbf16>, vector<40x128xf32> -> vector<40x128xf32>
    %c0_476 = arith.constant 0 : index
    %c0_477 = arith.constant 0 : index
    %c0_478 = arith.constant 0 : index
    %471 = vector.load %arg4[%c0_476, %c0_477, %c0_478] : memref<1x40x128xf32, #tpu.memory_space<vmem>>, vector<1x40x128xf32>
    %472 = vector.shape_cast %471 : vector<1x40x128xf32> to vector<40x128xf32>
    %473 = arith.addf %472, %470 : vector<40x128xf32>
    %c0_479 = arith.constant 0 : index
    %c0_480 = arith.constant 0 : index
    %c0_481 = arith.constant 0 : index
    %474 = vector.load %arg4[%c0_479, %c0_480, %c0_481] : memref<1x40x128xf32, #tpu.memory_space<vmem>>, vector<1x40x128xf32>
    %475 = vector.shape_cast %474 : vector<1x40x128xf32> to vector<40x128xf32>
    %476 = vector.shape_cast %473 : vector<40x128xf32> to vector<1x40x128xf32>
    tpu.vector_store %arg4[%c0_479, %c0_480, %c0_481], %476 {strides = array<i32>} : memref<1x40x128xf32, #tpu.memory_space<vmem>>, vector<1x40x128xf32>,
    %c0_482 = arith.constant 0 : index
    %c24 = arith.constant 24 : index
    %c0_483 = arith.constant 0 : index
    %477 = vector.load %arg1[%c0_482, %c24, %c0_483] : memref<1x288x16xbf16, #tpu.memory_space<vmem>>, vector<1x40x16xbf16>
    %478 = vector.shape_cast %477 : vector<1x40x16xbf16> to vector<40x16xbf16>
    %c768 = arith.constant 768 : index
    %c0_484 = arith.constant 0 : index
    %479 = vector.load %arg2[%c768, %c0_484] : memref<1024x128xbf16, #tpu.memory_space<vmem>>, vector<16x128xbf16>
    %cst_485 = arith.constant dense<0.000000e+00> : vector<40x128xf32>
    %480 = tpu.matmul %478, %479, %cst_485 {dimension_numbers = #tpu.dot_dimension_numbers<[1], [0], [0], [1], [0, 0, 1, 1], [], []>} : vector<40x16xbf16>, vector<16x128xbf16>, vector<40x128xf32> -> vector<40x128xf32>
    %c0_486 = arith.constant 0 : index
    %c0_487 = arith.constant 0 : index
    %c0_488 = arith.constant 0 : index
    %481 = vector.load %arg4[%c0_486, %c0_487, %c0_488] : memref<1x40x128xf32, #tpu.memory_space<vmem>>, vector<1x40x128xf32>
    %482 = vector.shape_cast %481 : vector<1x40x128xf32> to vector<40x128xf32>
    %483 = arith.addf %482, %480 : vector<40x128xf32>
    %c0_489 = arith.constant 0 : index
    %c0_490 = arith.constant 0 : index
    %c0_491 = arith.constant 0 : index
    %484 = vector.load %arg4[%c0_489, %c0_490, %c0_491] : memref<1x40x128xf32, #tpu.memory_space<vmem>>, vector<1x40x128xf32>
    %485 = vector.shape_cast %484 : vector<1x40x128xf32> to vector<40x128xf32>
    %486 = vector.shape_cast %483 : vector<40x128xf32> to vector<1x40x128xf32>
    tpu.vector_store %arg4[%c0_489, %c0_490, %c0_491], %486 {strides = array<i32>} : memref<1x40x128xf32, #tpu.memory_space<vmem>>, vector<1x40x128xf32>,
    %c0_492 = arith.constant 0 : index
    %c96_493 = arith.constant 96 : index
    %c0_494 = arith.constant 0 : index
    %487 = vector.load %arg1[%c0_492, %c96_493, %c0_494] : memref<1x288x16xbf16, #tpu.memory_space<vmem>>, vector<1x40x16xbf16>
    %488 = vector.shape_cast %487 : vector<1x40x16xbf16> to vector<40x16xbf16>
    %c784 = arith.constant 784 : index
    %c0_495 = arith.constant 0 : index
    %489 = vector.load %arg2[%c784, %c0_495] : memref<1024x128xbf16, #tpu.memory_space<vmem>>, vector<16x128xbf16>
    %cst_496 = arith.constant dense<0.000000e+00> : vector<40x128xf32>
    %490 = tpu.matmul %488, %489, %cst_496 {dimension_numbers = #tpu.dot_dimension_numbers<[1], [0], [0], [1], [0, 0, 1, 1], [], []>} : vector<40x16xbf16>, vector<16x128xbf16>, vector<40x128xf32> -> vector<40x128xf32>
    %c0_497 = arith.constant 0 : index
    %c0_498 = arith.constant 0 : index
    %c0_499 = arith.constant 0 : index
    %491 = vector.load %arg4[%c0_497, %c0_498, %c0_499] : memref<1x40x128xf32, #tpu.memory_space<vmem>>, vector<1x40x128xf32>
    %492 = vector.shape_cast %491 : vector<1x40x128xf32> to vector<40x128xf32>
    %493 = arith.addf %492, %490 : vector<40x128xf32>
    %c0_500 = arith.constant 0 : index
    %c0_501 = arith.constant 0 : index
    %c0_502 = arith.constant 0 : index
    %494 = vector.load %arg4[%c0_500, %c0_501, %c0_502] : memref<1x40x128xf32, #tpu.memory_space<vmem>>, vector<1x40x128xf32>
    %495 = vector.shape_cast %494 : vector<1x40x128xf32> to vector<40x128xf32>
    %496 = vector.shape_cast %493 : vector<40x128xf32> to vector<1x40x128xf32>
    tpu.vector_store %arg4[%c0_500, %c0_501, %c0_502], %496 {strides = array<i32>} : memref<1x40x128xf32, #tpu.memory_space<vmem>>, vector<1x40x128xf32>,
    %c0_503 = arith.constant 0 : index
    %c25 = arith.constant 25 : index
    %c0_504 = arith.constant 0 : index
    %497 = vector.load %arg1[%c0_503, %c25, %c0_504] : memref<1x288x16xbf16, #tpu.memory_space<vmem>>, vector<1x40x16xbf16>
    %498 = vector.shape_cast %497 : vector<1x40x16xbf16> to vector<40x16xbf16>
    %c800 = arith.constant 800 : index
    %c0_505 = arith.constant 0 : index
    %499 = vector.load %arg2[%c800, %c0_505] : memref<1024x128xbf16, #tpu.memory_space<vmem>>, vector<16x128xbf16>
    %cst_506 = arith.constant dense<0.000000e+00> : vector<40x128xf32>
    %500 = tpu.matmul %498, %499, %cst_506 {dimension_numbers = #tpu.dot_dimension_numbers<[1], [0], [0], [1], [0, 0, 1, 1], [], []>} : vector<40x16xbf16>, vector<16x128xbf16>, vector<40x128xf32> -> vector<40x128xf32>
    %c0_507 = arith.constant 0 : index
    %c0_508 = arith.constant 0 : index
    %c0_509 = arith.constant 0 : index
    %501 = vector.load %arg4[%c0_507, %c0_508, %c0_509] : memref<1x40x128xf32, #tpu.memory_space<vmem>>, vector<1x40x128xf32>
    %502 = vector.shape_cast %501 : vector<1x40x128xf32> to vector<40x128xf32>
    %503 = arith.addf %502, %500 : vector<40x128xf32>
    %c0_510 = arith.constant 0 : index
    %c0_511 = arith.constant 0 : index
    %c0_512 = arith.constant 0 : index
    %504 = vector.load %arg4[%c0_510, %c0_511, %c0_512] : memref<1x40x128xf32, #tpu.memory_space<vmem>>, vector<1x40x128xf32>
    %505 = vector.shape_cast %504 : vector<1x40x128xf32> to vector<40x128xf32>
    %506 = vector.shape_cast %503 : vector<40x128xf32> to vector<1x40x128xf32>
    tpu.vector_store %arg4[%c0_510, %c0_511, %c0_512], %506 {strides = array<i32>} : memref<1x40x128xf32, #tpu.memory_space<vmem>>, vector<1x40x128xf32>,
    %c0_513 = arith.constant 0 : index
    %c97 = arith.constant 97 : index
    %c0_514 = arith.constant 0 : index
    %507 = vector.load %arg1[%c0_513, %c97, %c0_514] : memref<1x288x16xbf16, #tpu.memory_space<vmem>>, vector<1x40x16xbf16>
    %508 = vector.shape_cast %507 : vector<1x40x16xbf16> to vector<40x16xbf16>
    %c816 = arith.constant 816 : index
    %c0_515 = arith.constant 0 : index
    %509 = vector.load %arg2[%c816, %c0_515] : memref<1024x128xbf16, #tpu.memory_space<vmem>>, vector<16x128xbf16>
    %cst_516 = arith.constant dense<0.000000e+00> : vector<40x128xf32>
    %510 = tpu.matmul %508, %509, %cst_516 {dimension_numbers = #tpu.dot_dimension_numbers<[1], [0], [0], [1], [0, 0, 1, 1], [], []>} : vector<40x16xbf16>, vector<16x128xbf16>, vector<40x128xf32> -> vector<40x128xf32>
    %c0_517 = arith.constant 0 : index
    %c0_518 = arith.constant 0 : index
    %c0_519 = arith.constant 0 : index
    %511 = vector.load %arg4[%c0_517, %c0_518, %c0_519] : memref<1x40x128xf32, #tpu.memory_space<vmem>>, vector<1x40x128xf32>
    %512 = vector.shape_cast %511 : vector<1x40x128xf32> to vector<40x128xf32>
    %513 = arith.addf %512, %510 : vector<40x128xf32>
    %c0_520 = arith.constant 0 : index
    %c0_521 = arith.constant 0 : index
    %c0_522 = arith.constant 0 : index
    %514 = vector.load %arg4[%c0_520, %c0_521, %c0_522] : memref<1x40x128xf32, #tpu.memory_space<vmem>>, vector<1x40x128xf32>
    %515 = vector.shape_cast %514 : vector<1x40x128xf32> to vector<40x128xf32>
    %516 = vector.shape_cast %513 : vector<40x128xf32> to vector<1x40x128xf32>
    tpu.vector_store %arg4[%c0_520, %c0_521, %c0_522], %516 {strides = array<i32>} : memref<1x40x128xf32, #tpu.memory_space<vmem>>, vector<1x40x128xf32>,
    %c0_523 = arith.constant 0 : index
    %c26 = arith.constant 26 : index
    %c0_524 = arith.constant 0 : index
    %517 = vector.load %arg1[%c0_523, %c26, %c0_524] : memref<1x288x16xbf16, #tpu.memory_space<vmem>>, vector<1x40x16xbf16>
    %518 = vector.shape_cast %517 : vector<1x40x16xbf16> to vector<40x16xbf16>
    %c832 = arith.constant 832 : index
    %c0_525 = arith.constant 0 : index
    %519 = vector.load %arg2[%c832, %c0_525] : memref<1024x128xbf16, #tpu.memory_space<vmem>>, vector<16x128xbf16>
    %cst_526 = arith.constant dense<0.000000e+00> : vector<40x128xf32>
    %520 = tpu.matmul %518, %519, %cst_526 {dimension_numbers = #tpu.dot_dimension_numbers<[1], [0], [0], [1], [0, 0, 1, 1], [], []>} : vector<40x16xbf16>, vector<16x128xbf16>, vector<40x128xf32> -> vector<40x128xf32>
    %c0_527 = arith.constant 0 : index
    %c0_528 = arith.constant 0 : index
    %c0_529 = arith.constant 0 : index
    %521 = vector.load %arg4[%c0_527, %c0_528, %c0_529] : memref<1x40x128xf32, #tpu.memory_space<vmem>>, vector<1x40x128xf32>
    %522 = vector.shape_cast %521 : vector<1x40x128xf32> to vector<40x128xf32>
    %523 = arith.addf %522, %520 : vector<40x128xf32>
    %c0_530 = arith.constant 0 : index
    %c0_531 = arith.constant 0 : index
    %c0_532 = arith.constant 0 : index
    %524 = vector.load %arg4[%c0_530, %c0_531, %c0_532] : memref<1x40x128xf32, #tpu.memory_space<vmem>>, vector<1x40x128xf32>
    %525 = vector.shape_cast %524 : vector<1x40x128xf32> to vector<40x128xf32>
    %526 = vector.shape_cast %523 : vector<40x128xf32> to vector<1x40x128xf32>
    tpu.vector_store %arg4[%c0_530, %c0_531, %c0_532], %526 {strides = array<i32>} : memref<1x40x128xf32, #tpu.memory_space<vmem>>, vector<1x40x128xf32>,
    %c0_533 = arith.constant 0 : index
    %c98 = arith.constant 98 : index
    %c0_534 = arith.constant 0 : index
    %527 = vector.load %arg1[%c0_533, %c98, %c0_534] : memref<1x288x16xbf16, #tpu.memory_space<vmem>>, vector<1x40x16xbf16>
    %528 = vector.shape_cast %527 : vector<1x40x16xbf16> to vector<40x16xbf16>
    %c848 = arith.constant 848 : index
    %c0_535 = arith.constant 0 : index
    %529 = vector.load %arg2[%c848, %c0_535] : memref<1024x128xbf16, #tpu.memory_space<vmem>>, vector<16x128xbf16>
    %cst_536 = arith.constant dense<0.000000e+00> : vector<40x128xf32>
    %530 = tpu.matmul %528, %529, %cst_536 {dimension_numbers = #tpu.dot_dimension_numbers<[1], [0], [0], [1], [0, 0, 1, 1], [], []>} : vector<40x16xbf16>, vector<16x128xbf16>, vector<40x128xf32> -> vector<40x128xf32>
    %c0_537 = arith.constant 0 : index
    %c0_538 = arith.constant 0 : index
    %c0_539 = arith.constant 0 : index
    %531 = vector.load %arg4[%c0_537, %c0_538, %c0_539] : memref<1x40x128xf32, #tpu.memory_space<vmem>>, vector<1x40x128xf32>
    %532 = vector.shape_cast %531 : vector<1x40x128xf32> to vector<40x128xf32>
    %533 = arith.addf %532, %530 : vector<40x128xf32>
    %c0_540 = arith.constant 0 : index
    %c0_541 = arith.constant 0 : index
    %c0_542 = arith.constant 0 : index
    %534 = vector.load %arg4[%c0_540, %c0_541, %c0_542] : memref<1x40x128xf32, #tpu.memory_space<vmem>>, vector<1x40x128xf32>
    %535 = vector.shape_cast %534 : vector<1x40x128xf32> to vector<40x128xf32>
    %536 = vector.shape_cast %533 : vector<40x128xf32> to vector<1x40x128xf32>
    tpu.vector_store %arg4[%c0_540, %c0_541, %c0_542], %536 {strides = array<i32>} : memref<1x40x128xf32, #tpu.memory_space<vmem>>, vector<1x40x128xf32>,
    %c0_543 = arith.constant 0 : index
    %c27 = arith.constant 27 : index
    %c0_544 = arith.constant 0 : index
    %537 = vector.load %arg1[%c0_543, %c27, %c0_544] : memref<1x288x16xbf16, #tpu.memory_space<vmem>>, vector<1x40x16xbf16>
    %538 = vector.shape_cast %537 : vector<1x40x16xbf16> to vector<40x16xbf16>
    %c864 = arith.constant 864 : index
    %c0_545 = arith.constant 0 : index
    %539 = vector.load %arg2[%c864, %c0_545] : memref<1024x128xbf16, #tpu.memory_space<vmem>>, vector<16x128xbf16>
    %cst_546 = arith.constant dense<0.000000e+00> : vector<40x128xf32>
    %540 = tpu.matmul %538, %539, %cst_546 {dimension_numbers = #tpu.dot_dimension_numbers<[1], [0], [0], [1], [0, 0, 1, 1], [], []>} : vector<40x16xbf16>, vector<16x128xbf16>, vector<40x128xf32> -> vector<40x128xf32>
    %c0_547 = arith.constant 0 : index
    %c0_548 = arith.constant 0 : index
    %c0_549 = arith.constant 0 : index
    %541 = vector.load %arg4[%c0_547, %c0_548, %c0_549] : memref<1x40x128xf32, #tpu.memory_space<vmem>>, vector<1x40x128xf32>
    %542 = vector.shape_cast %541 : vector<1x40x128xf32> to vector<40x128xf32>
    %543 = arith.addf %542, %540 : vector<40x128xf32>
    %c0_550 = arith.constant 0 : index
    %c0_551 = arith.constant 0 : index
    %c0_552 = arith.constant 0 : index
    %544 = vector.load %arg4[%c0_550, %c0_551, %c0_552] : memref<1x40x128xf32, #tpu.memory_space<vmem>>, vector<1x40x128xf32>
    %545 = vector.shape_cast %544 : vector<1x40x128xf32> to vector<40x128xf32>
    %546 = vector.shape_cast %543 : vector<40x128xf32> to vector<1x40x128xf32>
    tpu.vector_store %arg4[%c0_550, %c0_551, %c0_552], %546 {strides = array<i32>} : memref<1x40x128xf32, #tpu.memory_space<vmem>>, vector<1x40x128xf32>,
    %c0_553 = arith.constant 0 : index
    %c99 = arith.constant 99 : index
    %c0_554 = arith.constant 0 : index
    %547 = vector.load %arg1[%c0_553, %c99, %c0_554] : memref<1x288x16xbf16, #tpu.memory_space<vmem>>, vector<1x40x16xbf16>
    %548 = vector.shape_cast %547 : vector<1x40x16xbf16> to vector<40x16xbf16>
    %c880 = arith.constant 880 : index
    %c0_555 = arith.constant 0 : index
    %549 = vector.load %arg2[%c880, %c0_555] : memref<1024x128xbf16, #tpu.memory_space<vmem>>, vector<16x128xbf16>
    %cst_556 = arith.constant dense<0.000000e+00> : vector<40x128xf32>
    %550 = tpu.matmul %548, %549, %cst_556 {dimension_numbers = #tpu.dot_dimension_numbers<[1], [0], [0], [1], [0, 0, 1, 1], [], []>} : vector<40x16xbf16>, vector<16x128xbf16>, vector<40x128xf32> -> vector<40x128xf32>
    %c0_557 = arith.constant 0 : index
    %c0_558 = arith.constant 0 : index
    %c0_559 = arith.constant 0 : index
    %551 = vector.load %arg4[%c0_557, %c0_558, %c0_559] : memref<1x40x128xf32, #tpu.memory_space<vmem>>, vector<1x40x128xf32>
    %552 = vector.shape_cast %551 : vector<1x40x128xf32> to vector<40x128xf32>
    %553 = arith.addf %552, %550 : vector<40x128xf32>
    %c0_560 = arith.constant 0 : index
    %c0_561 = arith.constant 0 : index
    %c0_562 = arith.constant 0 : index
    %554 = vector.load %arg4[%c0_560, %c0_561, %c0_562] : memref<1x40x128xf32, #tpu.memory_space<vmem>>, vector<1x40x128xf32>
    %555 = vector.shape_cast %554 : vector<1x40x128xf32> to vector<40x128xf32>
    %556 = vector.shape_cast %553 : vector<40x128xf32> to vector<1x40x128xf32>
    tpu.vector_store %arg4[%c0_560, %c0_561, %c0_562], %556 {strides = array<i32>} : memref<1x40x128xf32, #tpu.memory_space<vmem>>, vector<1x40x128xf32>,
    %c0_563 = arith.constant 0 : index
    %c168 = arith.constant 168 : index
    %c0_564 = arith.constant 0 : index
    %557 = vector.load %arg1[%c0_563, %c168, %c0_564] : memref<1x288x16xbf16, #tpu.memory_space<vmem>>, vector<1x40x16xbf16>
    %558 = vector.shape_cast %557 : vector<1x40x16xbf16> to vector<40x16xbf16>
    %c896 = arith.constant 896 : index
    %c0_565 = arith.constant 0 : index
    %559 = vector.load %arg2[%c896, %c0_565] : memref<1024x128xbf16, #tpu.memory_space<vmem>>, vector<16x128xbf16>
    %cst_566 = arith.constant dense<0.000000e+00> : vector<40x128xf32>
    %560 = tpu.matmul %558, %559, %cst_566 {dimension_numbers = #tpu.dot_dimension_numbers<[1], [0], [0], [1], [0, 0, 1, 1], [], []>} : vector<40x16xbf16>, vector<16x128xbf16>, vector<40x128xf32> -> vector<40x128xf32>
    %c0_567 = arith.constant 0 : index
    %c0_568 = arith.constant 0 : index
    %c0_569 = arith.constant 0 : index
    %561 = vector.load %arg4[%c0_567, %c0_568, %c0_569] : memref<1x40x128xf32, #tpu.memory_space<vmem>>, vector<1x40x128xf32>
    %562 = vector.shape_cast %561 : vector<1x40x128xf32> to vector<40x128xf32>
    %563 = arith.addf %562, %560 : vector<40x128xf32>
    %c0_570 = arith.constant 0 : index
    %c0_571 = arith.constant 0 : index
    %c0_572 = arith.constant 0 : index
    %564 = vector.load %arg4[%c0_570, %c0_571, %c0_572] : memref<1x40x128xf32, #tpu.memory_space<vmem>>, vector<1x40x128xf32>
    %565 = vector.shape_cast %564 : vector<1x40x128xf32> to vector<40x128xf32>
    %566 = vector.shape_cast %563 : vector<40x128xf32> to vector<1x40x128xf32>
    tpu.vector_store %arg4[%c0_570, %c0_571, %c0_572], %566 {strides = array<i32>} : memref<1x40x128xf32, #tpu.memory_space<vmem>>, vector<1x40x128xf32>,
    %c0_573 = arith.constant 0 : index
    %c240_574 = arith.constant 240 : index
    %c0_575 = arith.constant 0 : index
    %567 = vector.load %arg1[%c0_573, %c240_574, %c0_575] : memref<1x288x16xbf16, #tpu.memory_space<vmem>>, vector<1x40x16xbf16>
    %568 = vector.shape_cast %567 : vector<1x40x16xbf16> to vector<40x16xbf16>
    %c912 = arith.constant 912 : index
    %c0_576 = arith.constant 0 : index
    %569 = vector.load %arg2[%c912, %c0_576] : memref<1024x128xbf16, #tpu.memory_space<vmem>>, vector<16x128xbf16>
    %cst_577 = arith.constant dense<0.000000e+00> : vector<40x128xf32>
    %570 = tpu.matmul %568, %569, %cst_577 {dimension_numbers = #tpu.dot_dimension_numbers<[1], [0], [0], [1], [0, 0, 1, 1], [], []>} : vector<40x16xbf16>, vector<16x128xbf16>, vector<40x128xf32> -> vector<40x128xf32>
    %c0_578 = arith.constant 0 : index
    %c0_579 = arith.constant 0 : index
    %c0_580 = arith.constant 0 : index
    %571 = vector.load %arg4[%c0_578, %c0_579, %c0_580] : memref<1x40x128xf32, #tpu.memory_space<vmem>>, vector<1x40x128xf32>
    %572 = vector.shape_cast %571 : vector<1x40x128xf32> to vector<40x128xf32>
    %573 = arith.addf %572, %570 : vector<40x128xf32>
    %c0_581 = arith.constant 0 : index
    %c0_582 = arith.constant 0 : index
    %c0_583 = arith.constant 0 : index
    %574 = vector.load %arg4[%c0_581, %c0_582, %c0_583] : memref<1x40x128xf32, #tpu.memory_space<vmem>>, vector<1x40x128xf32>
    %575 = vector.shape_cast %574 : vector<1x40x128xf32> to vector<40x128xf32>
    %576 = vector.shape_cast %573 : vector<40x128xf32> to vector<1x40x128xf32>
    tpu.vector_store %arg4[%c0_581, %c0_582, %c0_583], %576 {strides = array<i32>} : memref<1x40x128xf32, #tpu.memory_space<vmem>>, vector<1x40x128xf32>,
    %c0_584 = arith.constant 0 : index
    %c169 = arith.constant 169 : index
    %c0_585 = arith.constant 0 : index
    %577 = vector.load %arg1[%c0_584, %c169, %c0_585] : memref<1x288x16xbf16, #tpu.memory_space<vmem>>, vector<1x40x16xbf16>
    %578 = vector.shape_cast %577 : vector<1x40x16xbf16> to vector<40x16xbf16>
    %c928 = arith.constant 928 : index
    %c0_586 = arith.constant 0 : index
    %579 = vector.load %arg2[%c928, %c0_586] : memref<1024x128xbf16, #tpu.memory_space<vmem>>, vector<16x128xbf16>
    %cst_587 = arith.constant dense<0.000000e+00> : vector<40x128xf32>
    %580 = tpu.matmul %578, %579, %cst_587 {dimension_numbers = #tpu.dot_dimension_numbers<[1], [0], [0], [1], [0, 0, 1, 1], [], []>} : vector<40x16xbf16>, vector<16x128xbf16>, vector<40x128xf32> -> vector<40x128xf32>
    %c0_588 = arith.constant 0 : index
    %c0_589 = arith.constant 0 : index
    %c0_590 = arith.constant 0 : index
    %581 = vector.load %arg4[%c0_588, %c0_589, %c0_590] : memref<1x40x128xf32, #tpu.memory_space<vmem>>, vector<1x40x128xf32>
    %582 = vector.shape_cast %581 : vector<1x40x128xf32> to vector<40x128xf32>
    %583 = arith.addf %582, %580 : vector<40x128xf32>
    %c0_591 = arith.constant 0 : index
    %c0_592 = arith.constant 0 : index
    %c0_593 = arith.constant 0 : index
    %584 = vector.load %arg4[%c0_591, %c0_592, %c0_593] : memref<1x40x128xf32, #tpu.memory_space<vmem>>, vector<1x40x128xf32>
    %585 = vector.shape_cast %584 : vector<1x40x128xf32> to vector<40x128xf32>
    %586 = vector.shape_cast %583 : vector<40x128xf32> to vector<1x40x128xf32>
    tpu.vector_store %arg4[%c0_591, %c0_592, %c0_593], %586 {strides = array<i32>} : memref<1x40x128xf32, #tpu.memory_space<vmem>>, vector<1x40x128xf32>,
    %c0_594 = arith.constant 0 : index
    %c241 = arith.constant 241 : index
    %c0_595 = arith.constant 0 : index
    %587 = vector.load %arg1[%c0_594, %c241, %c0_595] : memref<1x288x16xbf16, #tpu.memory_space<vmem>>, vector<1x40x16xbf16>
    %588 = vector.shape_cast %587 : vector<1x40x16xbf16> to vector<40x16xbf16>
    %c944 = arith.constant 944 : index
    %c0_596 = arith.constant 0 : index
    %589 = vector.load %arg2[%c944, %c0_596] : memref<1024x128xbf16, #tpu.memory_space<vmem>>, vector<16x128xbf16>
    %cst_597 = arith.constant dense<0.000000e+00> : vector<40x128xf32>
    %590 = tpu.matmul %588, %589, %cst_597 {dimension_numbers = #tpu.dot_dimension_numbers<[1], [0], [0], [1], [0, 0, 1, 1], [], []>} : vector<40x16xbf16>, vector<16x128xbf16>, vector<40x128xf32> -> vector<40x128xf32>
    %c0_598 = arith.constant 0 : index
    %c0_599 = arith.constant 0 : index
    %c0_600 = arith.constant 0 : index
    %591 = vector.load %arg4[%c0_598, %c0_599, %c0_600] : memref<1x40x128xf32, #tpu.memory_space<vmem>>, vector<1x40x128xf32>
    %592 = vector.shape_cast %591 : vector<1x40x128xf32> to vector<40x128xf32>
    %593 = arith.addf %592, %590 : vector<40x128xf32>
    %c0_601 = arith.constant 0 : index
    %c0_602 = arith.constant 0 : index
    %c0_603 = arith.constant 0 : index
    %594 = vector.load %arg4[%c0_601, %c0_602, %c0_603] : memref<1x40x128xf32, #tpu.memory_space<vmem>>, vector<1x40x128xf32>
    %595 = vector.shape_cast %594 : vector<1x40x128xf32> to vector<40x128xf32>
    %596 = vector.shape_cast %593 : vector<40x128xf32> to vector<1x40x128xf32>
    tpu.vector_store %arg4[%c0_601, %c0_602, %c0_603], %596 {strides = array<i32>} : memref<1x40x128xf32, #tpu.memory_space<vmem>>, vector<1x40x128xf32>,
    %c0_604 = arith.constant 0 : index
    %c170 = arith.constant 170 : index
    %c0_605 = arith.constant 0 : index
    %597 = vector.load %arg1[%c0_604, %c170, %c0_605] : memref<1x288x16xbf16, #tpu.memory_space<vmem>>, vector<1x40x16xbf16>
    %598 = vector.shape_cast %597 : vector<1x40x16xbf16> to vector<40x16xbf16>
    %c960 = arith.constant 960 : index
    %c0_606 = arith.constant 0 : index
    %599 = vector.load %arg2[%c960, %c0_606] : memref<1024x128xbf16, #tpu.memory_space<vmem>>, vector<16x128xbf16>
    %cst_607 = arith.constant dense<0.000000e+00> : vector<40x128xf32>
    %600 = tpu.matmul %598, %599, %cst_607 {dimension_numbers = #tpu.dot_dimension_numbers<[1], [0], [0], [1], [0, 0, 1, 1], [], []>} : vector<40x16xbf16>, vector<16x128xbf16>, vector<40x128xf32> -> vector<40x128xf32>
    %c0_608 = arith.constant 0 : index
    %c0_609 = arith.constant 0 : index
    %c0_610 = arith.constant 0 : index
    %601 = vector.load %arg4[%c0_608, %c0_609, %c0_610] : memref<1x40x128xf32, #tpu.memory_space<vmem>>, vector<1x40x128xf32>
    %602 = vector.shape_cast %601 : vector<1x40x128xf32> to vector<40x128xf32>
    %603 = arith.addf %602, %600 : vector<40x128xf32>
    %c0_611 = arith.constant 0 : index
    %c0_612 = arith.constant 0 : index
    %c0_613 = arith.constant 0 : index
    %604 = vector.load %arg4[%c0_611, %c0_612, %c0_613] : memref<1x40x128xf32, #tpu.memory_space<vmem>>, vector<1x40x128xf32>
    %605 = vector.shape_cast %604 : vector<1x40x128xf32> to vector<40x128xf32>
    %606 = vector.shape_cast %603 : vector<40x128xf32> to vector<1x40x128xf32>
    tpu.vector_store %arg4[%c0_611, %c0_612, %c0_613], %606 {strides = array<i32>} : memref<1x40x128xf32, #tpu.memory_space<vmem>>, vector<1x40x128xf32>,
    %c0_614 = arith.constant 0 : index
    %c242 = arith.constant 242 : index
    %c0_615 = arith.constant 0 : index
    %607 = vector.load %arg1[%c0_614, %c242, %c0_615] : memref<1x288x16xbf16, #tpu.memory_space<vmem>>, vector<1x40x16xbf16>
    %608 = vector.shape_cast %607 : vector<1x40x16xbf16> to vector<40x16xbf16>
    %c976 = arith.constant 976 : index
    %c0_616 = arith.constant 0 : index
    %609 = vector.load %arg2[%c976, %c0_616] : memref<1024x128xbf16, #tpu.memory_space<vmem>>, vector<16x128xbf16>
    %cst_617 = arith.constant dense<0.000000e+00> : vector<40x128xf32>
    %610 = tpu.matmul %608, %609, %cst_617 {dimension_numbers = #tpu.dot_dimension_numbers<[1], [0], [0], [1], [0, 0, 1, 1], [], []>} : vector<40x16xbf16>, vector<16x128xbf16>, vector<40x128xf32> -> vector<40x128xf32>
    %c0_618 = arith.constant 0 : index
    %c0_619 = arith.constant 0 : index
    %c0_620 = arith.constant 0 : index
    %611 = vector.load %arg4[%c0_618, %c0_619, %c0_620] : memref<1x40x128xf32, #tpu.memory_space<vmem>>, vector<1x40x128xf32>
    %612 = vector.shape_cast %611 : vector<1x40x128xf32> to vector<40x128xf32>
    %613 = arith.addf %612, %610 : vector<40x128xf32>
    %c0_621 = arith.constant 0 : index
    %c0_622 = arith.constant 0 : index
    %c0_623 = arith.constant 0 : index
    %614 = vector.load %arg4[%c0_621, %c0_622, %c0_623] : memref<1x40x128xf32, #tpu.memory_space<vmem>>, vector<1x40x128xf32>
    %615 = vector.shape_cast %614 : vector<1x40x128xf32> to vector<40x128xf32>
    %616 = vector.shape_cast %613 : vector<40x128xf32> to vector<1x40x128xf32>
    tpu.vector_store %arg4[%c0_621, %c0_622, %c0_623], %616 {strides = array<i32>} : memref<1x40x128xf32, #tpu.memory_space<vmem>>, vector<1x40x128xf32>,
    %c0_624 = arith.constant 0 : index
    %c171 = arith.constant 171 : index
    %c0_625 = arith.constant 0 : index
    %617 = vector.load %arg1[%c0_624, %c171, %c0_625] : memref<1x288x16xbf16, #tpu.memory_space<vmem>>, vector<1x40x16xbf16>
    %618 = vector.shape_cast %617 : vector<1x40x16xbf16> to vector<40x16xbf16>
    %c992 = arith.constant 992 : index
    %c0_626 = arith.constant 0 : index
    %619 = vector.load %arg2[%c992, %c0_626] : memref<1024x128xbf16, #tpu.memory_space<vmem>>, vector<16x128xbf16>
    %cst_627 = arith.constant dense<0.000000e+00> : vector<40x128xf32>
    %620 = tpu.matmul %618, %619, %cst_627 {dimension_numbers = #tpu.dot_dimension_numbers<[1], [0], [0], [1], [0, 0, 1, 1], [], []>} : vector<40x16xbf16>, vector<16x128xbf16>, vector<40x128xf32> -> vector<40x128xf32>
    %c0_628 = arith.constant 0 : index
    %c0_629 = arith.constant 0 : index
    %c0_630 = arith.constant 0 : index
    %621 = vector.load %arg4[%c0_628, %c0_629, %c0_630] : memref<1x40x128xf32, #tpu.memory_space<vmem>>, vector<1x40x128xf32>
    %622 = vector.shape_cast %621 : vector<1x40x128xf32> to vector<40x128xf32>
    %623 = arith.addf %622, %620 : vector<40x128xf32>
    %c0_631 = arith.constant 0 : index
    %c0_632 = arith.constant 0 : index
    %c0_633 = arith.constant 0 : index
    %624 = vector.load %arg4[%c0_631, %c0_632, %c0_633] : memref<1x40x128xf32, #tpu.memory_space<vmem>>, vector<1x40x128xf32>
    %625 = vector.shape_cast %624 : vector<1x40x128xf32> to vector<40x128xf32>
    %626 = vector.shape_cast %623 : vector<40x128xf32> to vector<1x40x128xf32>
    tpu.vector_store %arg4[%c0_631, %c0_632, %c0_633], %626 {strides = array<i32>} : memref<1x40x128xf32, #tpu.memory_space<vmem>>, vector<1x40x128xf32>,
    %c0_634 = arith.constant 0 : index
    %c243 = arith.constant 243 : index
    %c0_635 = arith.constant 0 : index
    %627 = vector.load %arg1[%c0_634, %c243, %c0_635] : memref<1x288x16xbf16, #tpu.memory_space<vmem>>, vector<1x40x16xbf16>
    %628 = vector.shape_cast %627 : vector<1x40x16xbf16> to vector<40x16xbf16>
    %c1008 = arith.constant 1008 : index
    %c0_636 = arith.constant 0 : index
    %629 = vector.load %arg2[%c1008, %c0_636] : memref<1024x128xbf16, #tpu.memory_space<vmem>>, vector<16x128xbf16>
    %cst_637 = arith.constant dense<0.000000e+00> : vector<40x128xf32>
    %630 = tpu.matmul %628, %629, %cst_637 {dimension_numbers = #tpu.dot_dimension_numbers<[1], [0], [0], [1], [0, 0, 1, 1], [], []>} : vector<40x16xbf16>, vector<16x128xbf16>, vector<40x128xf32> -> vector<40x128xf32>
    %c0_638 = arith.constant 0 : index
    %c0_639 = arith.constant 0 : index
    %c0_640 = arith.constant 0 : index
    %631 = vector.load %arg4[%c0_638, %c0_639, %c0_640] : memref<1x40x128xf32, #tpu.memory_space<vmem>>, vector<1x40x128xf32>
    %632 = vector.shape_cast %631 : vector<1x40x128xf32> to vector<40x128xf32>
    %633 = arith.addf %632, %630 : vector<40x128xf32>
    %c0_641 = arith.constant 0 : index
    %c0_642 = arith.constant 0 : index
    %c0_643 = arith.constant 0 : index
    %634 = vector.load %arg4[%c0_641, %c0_642, %c0_643] : memref<1x40x128xf32, #tpu.memory_space<vmem>>, vector<1x40x128xf32>
    %635 = vector.shape_cast %634 : vector<1x40x128xf32> to vector<40x128xf32>
    %636 = vector.shape_cast %633 : vector<40x128xf32> to vector<1x40x128xf32>
    tpu.vector_store %arg4[%c0_641, %c0_642, %c0_643], %636 {strides = array<i32>} : memref<1x40x128xf32, #tpu.memory_space<vmem>>, vector<1x40x128xf32>,
    %c0_644 = arith.constant 0 : index
    %c0_645 = arith.constant 0 : index
    %c0_646 = arith.constant 0 : index
    %637 = vector.load %arg4[%c0_644, %c0_645, %c0_646] : memref<1x40x128xf32, #tpu.memory_space<vmem>>, vector<1x40x128xf32>
    %638 = vector.shape_cast %637 : vector<1x40x128xf32> to vector<40x128xf32>
    %c0_647 = arith.constant 0 : index
    %c0_648 = arith.constant 0 : index
    %639 = vector.load %arg3[%c0_647, %c0_648] : memref<1x128xf32, #tpu.memory_space<vmem>>, vector<1x128xf32>
    %640 = vector.broadcast %639 : vector<1x128xf32> to vector<40x128xf32>
    %641 = arith.addf %638, %640 : vector<40x128xf32>
    %642 = arith.mulf %641, %641 : vector<40x128xf32>
    %c16_i32 = arith.constant 16 : i32
    %643 = tpu.dynamic_rotate %642 by %c16_i32 dim 1 : vector<40x128xf32>, i32 -> vector<40x128xf32>
    %644 = arith.addf %642, %643 : vector<40x128xf32>
    %c32_i32 = arith.constant 32 : i32
    %645 = tpu.dynamic_rotate %644 by %c32_i32 dim 1 : vector<40x128xf32>, i32 -> vector<40x128xf32>
    %646 = arith.addf %644, %645 : vector<40x128xf32>
    %c64_i32 = arith.constant 64 : i32
    %647 = tpu.dynamic_rotate %646 by %c64_i32 dim 1 : vector<40x128xf32>, i32 -> vector<40x128xf32>
    %648 = arith.addf %646, %647 : vector<40x128xf32>
    %649 = math.sqrt %648 : vector<40x128xf32>
    %cst_649 = arith.constant 1.000000e+00 : f32
    %650 = vector.broadcast %cst_649 : f32 to vector<40x128xf32>
    %651 = arith.addf %650, %648 : vector<40x128xf32>
    %652 = arith.divf %649, %651 : vector<40x128xf32>
    %653 = arith.mulf %641, %652 : vector<40x128xf32>
    %c0_650 = arith.constant 0 : index
    %c0_651 = arith.constant 0 : index
    %c0_652 = arith.constant 0 : index
    %654 = vector.load %arg4[%c0_650, %c0_651, %c0_652] : memref<1x40x128xf32, #tpu.memory_space<vmem>>, vector<1x40x128xf32>
    %655 = vector.shape_cast %654 : vector<1x40x128xf32> to vector<40x128xf32>
    %656 = vector.shape_cast %653 : vector<40x128xf32> to vector<1x40x128xf32>
    tpu.vector_store %arg4[%c0_650, %c0_651, %c0_652], %656 {strides = array<i32>} : memref<1x40x128xf32, #tpu.memory_space<vmem>>, vector<1x40x128xf32>,
    return
  }
  func.func @transform_0(%arg0: i32) -> (i32, i32, i32) {
    %c0_i32 = arith.constant 0 : i32
    %c0_i32_0 = arith.constant 0 : i32
    %c0_i32_1 = arith.constant 0 : i32
    return %arg0, %c0_i32, %c0_i32_0 : i32, i32, i32
  }
  func.func @transform_1(%arg0: i32) -> (i32, i32) {
    %c0_i32 = arith.constant 0 : i32
    %c0_i32_0 = arith.constant 0 : i32
    %c0_i32_1 = arith.constant 0 : i32
    return %c0_i32, %c0_i32_0 : i32, i32
  }
  func.func @transform_2(%arg0: i32) -> (i32, i32) {
    %c0_i32 = arith.constant 0 : i32
    %c0_i32_0 = arith.constant 0 : i32
    %c0_i32_1 = arith.constant 0 : i32
    return %c0_i32, %c0_i32_0 : i32, i32
  }
  func.func @transform_3(%arg0: i32) -> (i32, i32, i32) {
    %c0_i32 = arith.constant 0 : i32
    %c0_i32_0 = arith.constant 0 : i32
    %c0_i32_1 = arith.constant 0 : i32
    return %arg0, %c0_i32, %c0_i32_0 : i32, i32, i32
  }
}

</mosaic_0001>

<llo_original>
// kernel: tpu_custom_call.1
$region0: #{tpu_custom_call.1}
  #allocation0 [shape = 'u32[]', space=smem, size = 0x4, offset = 0x4, fixed_abs, tag = 'smem constant byte address 0x4 - core index']
  #allocation1 [shape = 'u32[144,128]{1,0:T(1,128)}', space=vmem, size = 0x12000, scoped, tag = 'internal scratch']
  %s0 = inlined_call_operand.vmem [shape: bf16[2,288,16], index: 0, kind: input, shape index: {}]
  %s1 = inlined_call_operand.hbm [shape: bf16[1024,128], index: 1, kind: input, shape index: {}]
  %s2 = inlined_call_operand.vmem [shape: f32[1,128], index: 2, kind: input, shape index: {}]
  %s3 = inlined_call_operand.hbm [shape: f32[2,40,128], index: 3, kind: output, shape index: {}]
  %s4 = sld [smem:[#allocation0]]
  $region49: #{tpu_custom_call.1} parent=0
    _
  %s6 = ssub.s32 1, %s4
  %s7 = scalar_select 0, %s6, %s4
  $region1: #{tpu_custom_call.1} parent=0
    #allocation2 [shape = 'u8[262144]{0}', space=vmem, size = 0x40000, scoped, tag = 'input window, operand 1, single buffered']
    #allocation3 [shape = 's32[2]{0}', space=sflag, size = 0x8, scoped, tag = 'scoped memory for tpu_custom_call.1']
    #allocation4 [shape = 's32[2]{0}', space=sflag, size = 0x8, scoped, tag = 'scoped memory for tpu_custom_call.1']
    #allocation5 [shape = 'u8[40960]{0}', space=vmem, size = 0xa000, scoped, tag = 'output window, operand 0']
    %8 = vsyncpa [#allocation3], 0
    %9 = vsyncpa [#allocation4], 0
    %s10 = scalar_lea.sflag [#allocation4], 1
    %11 = vsyncpa %s10, 0
    loop: start=0, step=1, limit=4
    $region2: #{tpu_custom_call.1} parent=1 // loop_pre_header
      _
    $region3: #{tpu_custom_call.1} parent=1 // loop_header
      %s13 = sphi 0, %s17
      %p14 = scmp.ge.s32.totalorder %s13, 4
      %s23 = sphi 0, %s25
      %s26 = sphi 0, %s23
      %s27 = sphi 0, %s26
      %s43 = sphi 0, %s27
      %s47 = sphi 0, %s47
      %s49 = sphi 0, %s47
      %s50 = sphi 0, %s49
      %s64 = sphi 0, %s50
      %s68 = sphi 0, %s68
      %s70 = sphi 0, %s68
      %s71 = sphi 0, %s70
      %s85 = sphi 0, %s71
      %s91 = sphi 0, %s93
      %s94 = sphi 0, %s91
      %s95 = sphi 0, %s94
      %s111 = sphi 0, %s95
    $region4: #{tpu_custom_call.1} parent=1 // loop_header_branch
      %16 = sbr.rel (%p14) target = $region8
    $region5: #{tpu_custom_call.1} parent=1 // loop_body
      %s18 = ssub.s32 %s13, 1
      %s19 = ssub.s32 %s13, 2
      %s20 = sadd.s32 %s13, 1
      %s21 = ssub.s32 %s13, %s20
      %p22 = scmp.eq.s32.totalorder %s21, 0
      %s24 = sadd.s32 %s23, 1
      %s25 = scalar_select %p22, %s23, %s24
      %p28 = pneg %p22
      %p29 = scmp.eq.s32.totalorder %s13, 1
      %p30 = por %p28, %p29
      %p31 = scmp.ne.s32.totalorder %s23, %s26
      %p32 = scmp.eq.s32.totalorder %s13, 0
      %p33 = por %p31, %p32
      %p34 = scmp.ne.s32.totalorder %s23, %s26
      %p35 = scmp.eq.s32.totalorder %s18, 1
      %p36 = por %p34, %p35
      %p37 = scmp.ne.s32.totalorder %s26, %s27
      %p38 = scmp.eq.s32.totalorder %s18, 0
      %p39 = por %p37, %p38
      %p40 = scmp.ne.s32.totalorder %s26, %s27
      %p41 = scmp.eq.s32.totalorder %s19, 1
      %p42 = por %p40, %p41
      %p44 = scmp.ne.s32.totalorder %s27, %s43
      %p45 = scmp.eq.s32.totalorder %s19, 0
      %p46 = por %p44, %p45
      %s48 = sadd.s32 %s47, 1
      %p51 = scmp.eq.s32.totalorder %s13, 1
      %p52 = scmp.ne.s32.totalorder %s47, %s49
      %p53 = scmp.eq.s32.totalorder %s13, 0
      %p54 = por %p52, %p53
      %p55 = scmp.ne.s32.totalorder %s47, %s49
      %p56 = scmp.eq.s32.totalorder %s18, 1
      %p57 = por %p55, %p56
      %p58 = scmp.ne.s32.totalorder %s49, %s50
      %p59 = scmp.eq.s32.totalorder %s18, 0
      %p60 = por %p58, %p59
      %p61 = scmp.ne.s32.totalorder %s49, %s50
      %p62 = scmp.eq.s32.totalorder %s19, 1
      %p63 = por %p61, %p62
      %p65 = scmp.ne.s32.totalorder %s50, %s64
      %p66 = scmp.eq.s32.totalorder %s19, 0
      %p67 = por %p65, %p66
      %s69 = sadd.s32 %s68, 1
      %p72 = scmp.eq.s32.totalorder %s13, 1
      %p73 = scmp.ne.s32.totalorder %s68, %s70
      %p74 = scmp.eq.s32.totalorder %s13, 0
      %p75 = por %p73, %p74
      %p76 = scmp.ne.s32.totalorder %s68, %s70
      %p77 = scmp.eq.s32.totalorder %s18, 1
      %p78 = por %p76, %p77
      %p79 = scmp.ne.s32.totalorder %s70, %s71
      %p80 = scmp.eq.s32.totalorder %s18, 0
      %p81 = por %p79, %p80
      %p82 = scmp.ne.s32.totalorder %s70, %s71
      %p83 = scmp.eq.s32.totalorder %s19, 1
      %p84 = por %p82, %p83
      %p86 = scmp.ne.s32.totalorder %s71, %s85
      %p87 = scmp.eq.s32.totalorder %s19, 0
      %p88 = por %p86, %p87
      %s89 = ssub.s32 %s13, %s20
      %p90 = scmp.eq.s32.totalorder %s89, 0
      %s92 = sadd.s32 %s91, 1
      %s93 = scalar_select %p90, %s91, %s92
      %p96 = pneg %p90
      %p97 = scmp.eq.s32.totalorder %s13, 1
      %p98 = por %p96, %p97
      %p99 = scmp.ne.s32.totalorder %s91, %s94
      %p100 = scmp.eq.s32.totalorder %s13, 0
      %p101 = por %p99, %p100
      %p102 = scmp.ne.s32.totalorder %s91, %s94
      %p103 = scmp.eq.s32.totalorder %s18, 1
      %p104 = por %p102, %p103
      %p105 = scmp.ne.s32.totalorder %s94, %s95
      %p106 = scmp.eq.s32.totalorder %s18, 0
      %p107 = por %p105, %p106
      %p108 = scmp.ne.s32.totalorder %s94, %s95
      %p109 = scmp.eq.s32.totalorder %s19, 1
      %p110 = por %p108, %p109
      %p112 = scmp.ne.s32.totalorder %s95, %s111
      %p113 = scmp.eq.s32.totalorder %s19, 0
      %p114 = por %p112, %p113
      %p115 = scmp.le.s32.totalorder 1, %s13
      %p116 = scmp.lt.s32.totalorder %s13, 3
      %p117 = pnand %p115, %p116
      %p118 = pneg %p117
      // Predicated region
      $region9: #{tpu_custom_call.1} parent=5 // pred_check
        _
      $region10: #{tpu_custom_call.1} parent=5 // pred_check_branch
        %120 = sbr.rel (%p117) target = $region12
      $region11: #{tpu_custom_call.1} parent=5 // pred_region
        %s121 = ssub.s32 %s13, 1
        // Predicated region
        $region13: #{tpu_custom_call.1} parent=11 // pred_check
          %p122 = pneg %p60
        $region14: #{tpu_custom_call.1} parent=11 // pred_check_branch
          %124 = sbr.rel (%p122) target = $region16
        $region15: #{tpu_custom_call.1} parent=11 // pred_region
          %s126 = ssub.s32 8192, 8192
          %127 = vsyncadd [#allocation3], %s126
          %s128 = sshll.u32 [#allocation2], 4
          %s129 = int_to_ptr.vmem [resolvable:$true] %s128
          %134 = dma.hbm_to_vmem [thread:$0]  %s1, 8192, %s129, [#allocation3], 64, 64, 4
        $region16: #{tpu_custom_call.1} parent=11 // pred_fallthru
          _
        // Predicated region
        $region17: #{tpu_custom_call.1} parent=11 // pred_check
          %p135 = pneg %p81
        $region18: #{tpu_custom_call.1} parent=11 // pred_check_branch
          %137 = sbr.rel (%p135) target = $region20
        $region19: #{tpu_custom_call.1} parent=11 // pred_region
          _
        $region20: #{tpu_custom_call.1} parent=11 // pred_fallthru
          _
      $region12: #{tpu_custom_call.1} parent=5 // pred_fallthru
        _
      %p138 = scmp.lt.s32.totalorder %s13, 2
      // Predicated region
      $region21: #{tpu_custom_call.1} parent=5 // pred_check
        %p139 = pneg %p138
      $region22: #{tpu_custom_call.1} parent=5 // pred_check_branch
        %141 = sbr.rel (%p139) target = $region24
      $region23: #{tpu_custom_call.1} parent=5 // pred_region
        // Predicated region
        $region25: #{tpu_custom_call.1} parent=23 // pred_check
          %p142 = pneg %p33
        $region26: #{tpu_custom_call.1} parent=23 // pred_check_branch
          %144 = sbr.rel (%p142) target = $region28
        $region27: #{tpu_custom_call.1} parent=23 // pred_region
          %p145 = scmp.lt.s32.totalorder %s13, 1
          %s146 = scalar_select %p145, %s13, 1
          %s147 = smul.addr %s146, 36
          %s148 = smul.addr %s147, 4
          %s149 = scalar_lea.vmem %s0, %s148
        $region28: #{tpu_custom_call.1} parent=23 // pred_fallthru
          _
      $region24: #{tpu_custom_call.1} parent=5 // pred_fallthru
        _
      %p150 = scmp.le.s32.totalorder 1, %s13
      %p151 = scmp.lt.s32.totalorder %s13, 3
      %p152 = pnand %p150, %p151
      %p153 = pneg %p152
      // Predicated region
      $region29: #{tpu_custom_call.1} parent=5 // pred_check
        _
      $region30: #{tpu_custom_call.1} parent=5 // pred_check_branch
        %155 = sbr.rel (%p152) target = $region32
      $region31: #{tpu_custom_call.1} parent=5 // pred_region
        %s156 = ssub.s32 %s13, 1
        // Predicated region
        $region33: #{tpu_custom_call.1} parent=31 // pred_check
          %p157 = pneg %p60
        $region34: #{tpu_custom_call.1} parent=31 // pred_check_branch
          %159 = sbr.rel (%p157) target = $region36
        $region35: #{tpu_custom_call.1} parent=31 // pred_region
          %160 = dma.done [#allocation3], 8192
        $region36: #{tpu_custom_call.1} parent=31 // pred_fallthru
          _
        %p161 = scmp.lt.s32.totalorder %s18, 1
        %s162 = scalar_select %p161, %s18, 1
        %s163 = smul.addr %s162, 36
        %s164 = smul.addr %s163, 4
        %s165 = scalar_lea.vmem %s0, %s164
        %p166 = pneg %p39
        %p167 = pneg %p36
        %p168 = pneg %p60
        %p169 = pneg %p57
        %p170 = pneg %p81
        %p171 = pneg %p78
        %p172 = pneg %p107
        %p173 = pneg %p104
        %s174 = sand.u32 %s94, 1
        %s175 = scalar_lea.sflag [#allocation4], %s174
        %s176 = sand.u32 %s94, 1
        %s177 = smul.addr %s176, 40
        %s178 = scalar_lea.vmem [#allocation5], %s177
        %p179 = scmp.lt.s32.totalorder %s18, 1
        %s180 = scalar_select %p179, %s18, 1
        %s181 = smul.addr %s180, 36
        %s182 = smul.addr %s181, 4
        %s183 = scalar_lea.vmem %s0, %s182
        %v185 = vld [vmem:[%s183] sm:$0xf]
        %v186 = vld [vmem:[%s183 + $0x4] sm:$0xf]
        %v187 = vld [vmem:[%s183 + $0x8] sm:$0xf]
        %v188 = vld [vmem:[%s183 + $0xc] sm:$0xf]
        %v189 = vld [vmem:[%s183 + $0x10] sm:$0xf]
        %v190 = vld [vmem:[#allocation2] sm:$0xf]
        %v191 = vld [vmem:[#allocation2 + $0x4] sm:$0xf]
        %v197 = vunpack.c.l.b16 %v185
        %v198 = vunpack.c.l.b16 %v186
        %v199 = vunpack.c.l.b16 %v187
        %v200 = vunpack.c.l.b16 %v188
        %v201 = vunpack.c.l.b16 %v189
        %v202 = vpack.c.b16 %v198, %v197
        %v203 = vpack.c.b16 %v200, %v199
        %v204 = vpack.c.b16 %v201, %v201
        %v207 = vunpack.c.l.b16 %v190
        %v208 = vunpack.c.l.b16 %v191
        %v209 = vpack.c.b16 %v208, %v207
        %vm211 = vcmask 130048
        %v213 = vsel %vm211, %v202, 0
        %v216 = vsel %vm211, %v203, 0
        %v219 = vsel %vm211, %v204, 0
        %221 = vmatprep.subr.bf16.mxu0 0
        %222 = vmatpush1.bf16.msra.mxu0 0
        %223 = vmatprep.subr.bf16.mxu0 0
        %224 = vmatpush1.bf16.msra.mxu0 0
        %225 = vmatprep.subr.bf16.mxu0 0
        %226 = vmatpush1.bf16.msra.mxu0 0
        %227 = vmatprep.subr.bf16.mxu0 0
        %228 = vmatpush1.bf16.msra.mxu0 0
        %229 = vmatprep.subr.bf16.mxu0 0
        %230 = vmatpush1.bf16.msra.mxu0 0
        %231 = vmatprep.subr.bf16.mxu0 0
        %232 = vmatpush1.bf16.msra.mxu0 0
        %233 = vmatprep.subr.bf16.mxu0 0
        %234 = vmatpush1.bf16.msra.mxu0 0
        %235 = vmatprep.subr.bf16.mxu0 0
        %236 = vmatpush1.bf16.msra.mxu0 %v209
        %237 = vmatprep.subr.bf16.mxu0 0
        %238 = vmatpush2.bf16.msra.mxu0 0
        %239 = vmatprep.subr.bf16.mxu0 0
        %240 = vmatpush2.bf16.msra.mxu0 0
        %241 = vmatprep.subr.bf16.mxu0 0
        %242 = vmatpush2.bf16.msra.mxu0 0
        %243 = vmatprep.subr.bf16.mxu0 0
        %244 = vmatpush2.bf16.msra.mxu0 0
        %245 = vmatprep.subr.bf16.mxu0 0
        %246 = vmatpush2.bf16.msra.mxu0 0
        %247 = vmatprep.subr.bf16.mxu0 0
        %248 = vmatpush2.bf16.msra.mxu0 0
        %249 = vmatprep.subr.bf16.mxu0 0
        %250 = vmatpush2.bf16.msra.mxu0 0
        %251 = vmatprep.subr.bf16.mxu0 0
        %252 = vmatpush2.bf16.msra.mxu0 0
        %253 = vmatprep.mubr.bf16.mxu0 0
        %254 = vmatmul.mubr.bf16.gmra.mxu0 %v213
        %v255 = vpop.f32.mrf.mxu0
        %v256 = vadd.f32 0.0, %v255
        %v257 = vpop.f32.mrf.mxu0
        %v258 = vpop.f32.mrf.mxu0
        %v259 = vadd.f32 0.0, %v258
        %v260 = vpop.f32.mrf.mxu0
        %261 = vmatprep.mubr.bf16.mxu0 0
        %262 = vmatmul.mubr.bf16.gmra.mxu0 %v216
        %v263 = vpop.f32.mrf.mxu0
        %v264 = vadd.f32 0.0, %v263
        %v265 = vpop.f32.mrf.mxu0
        %v266 = vpop.f32.mrf.mxu0
        %v267 = vadd.f32 0.0, %v266
        %v268 = vpop.f32.mrf.mxu0
        %269 = vmatprep.mubr.bf16.mxu0 0
        %270 = vmatmul.mubr.bf16.gmra.mxu0 %v219
        %v271 = vpop.f32.mrf.mxu0
        %v272 = vadd.f32 0.0, %v271
        %v273 = vpop.f32.mrf.mxu0
        %v274 = vpop.f32.mrf.mxu0
        %v275 = vpop.f32.mrf.mxu0
        %276 = vdwg.mxu0
        %277 = vst [vmem:[%s178] sm:$0xff] %v256
        %278 = vst [vmem:[%s178 + $0x8] sm:$0xff] %v259
        %279 = vst [vmem:[%s178 + $0x10] sm:$0xff] %v264
        %280 = vst [vmem:[%s178 + $0x18] sm:$0xff] %v267
        %281 = vst [vmem:[%s178 + $0x20] sm:$0xff] %v272
        %v282 = vld [vmem:[%s183 + $0x24] sm:$0xf]
        %v283 = vld [vmem:[%s183 + $0x28] sm:$0xf]
        %v284 = vld [vmem:[%s183 + $0x2c] sm:$0xf]
        %v285 = vld [vmem:[%s183 + $0x30] sm:$0xf]
        %v286 = vld [vmem:[%s183 + $0x34] sm:$0xf]
        %v287 = vld [vmem:[#allocation2 + $0x8] sm:$0xf]
        %v288 = vld [vmem:[#allocation2 + $0xc] sm:$0xf]
        %v294 = vunpack.c.l.b16 %v282
        %v295 = vunpack.c.l.b16 %v283
        %v296 = vunpack.c.l.b16 %v284
        %v297 = vunpack.c.l.b16 %v285
        %v298 = vunpack.c.l.b16 %v286
        %v299 = vpack.c.b16 %v295, %v294
        %v300 = vpack.c.b16 %v297, %v296
        %v301 = vpack.c.b16 %v298, %v298
        %v304 = vunpack.c.l.b16 %v287
        %v305 = vunpack.c.l.b16 %v288
        %v306 = vpack.c.b16 %v305, %v304
        %v309 = vsel %vm211, %v299, 0
        %v312 = vsel %vm211, %v300, 0
        %v315 = vsel %vm211, %v301, 0
        %317 = vmatprep.subr.bf16.mxu0 0
        %318 = vmatpush1.bf16.msra.mxu0 0
        %319 = vmatprep.subr.bf16.mxu0 0
        %320 = vmatpush1.bf16.msra.mxu0 0
        %321 = vmatprep.subr.bf16.mxu0 0
        %322 = vmatpush1.bf16.msra.mxu0 0
        %323 = vmatprep.subr.bf16.mxu0 0
        %324 = vmatpush1.bf16.msra.mxu0 0
        %325 = vmatprep.subr.bf16.mxu0 0
        %326 = vmatpush1.bf16.msra.mxu0 0
        %327 = vmatprep.subr.bf16.mxu0 0
        %328 = vmatpush1.bf16.msra.mxu0 0
        %329 = vmatprep.subr.bf16.mxu0 0
        %330 = vmatpush1.bf16.msra.mxu0 0
        %331 = vmatprep.subr.bf16.mxu0 0
        %332 = vmatpush1.bf16.msra.mxu0 %v306
        %333 = vmatprep.subr.bf16.mxu0 0
        %334 = vmatpush2.bf16.msra.mxu0 0
        %335 = vmatprep.subr.bf16.mxu0 0
        %336 = vmatpush2.bf16.msra.mxu0 0
        %337 = vmatprep.subr.bf16.mxu0 0
        %338 = vmatpush2.bf16.msra.mxu0 0
        %339 = vmatprep.subr.bf16.mxu0 0
        %340 = vmatpush2.bf16.msra.mxu0 0
        %341 = vmatprep.subr.bf16.mxu0 0
        %342 = vmatpush2.bf16.msra.mxu0 0
        %343 = vmatprep.subr.bf16.mxu0 0
        %344 = vmatpush2.bf16.msra.mxu0 0
        %345 = vmatprep.subr.bf16.mxu0 0
        %346 = vmatpush2.bf16.msra.mxu0 0
        %347 = vmatprep.subr.bf16.mxu0 0
        %348 = vmatpush2.bf16.msra.mxu0 0
        %349 = vmatprep.mubr.bf16.mxu0 0
        %350 = vmatmul.mubr.bf16.gmra.mxu0 %v309
        %v351 = vpop.f32.mrf.mxu0
        %v352 = vadd.f32 0.0, %v351
        %v353 = vpop.f32.mrf.mxu0
        %v354 = vpop.f32.mrf.mxu0
        %v355 = vadd.f32 0.0, %v354
        %v356 = vpop.f32.mrf.mxu0
        %357 = vmatprep.mubr.bf16.mxu0 0
        %358 = vmatmul.mubr.bf16.gmra.mxu0 %v312
        %v359 = vpop.f32.mrf.mxu0
        %v360 = vadd.f32 0.0, %v359
        %v361 = vpop.f32.mrf.mxu0
        %v362 = vpop.f32.mrf.mxu0
        %v363 = vadd.f32 0.0, %v362
        %v364 = vpop.f32.mrf.mxu0
        %365 = vmatprep.mubr.bf16.mxu0 0
        %366 = vmatmul.mubr.bf16.gmra.mxu0 %v315
        %v367 = vpop.f32.mrf.mxu0
        %v368 = vadd.f32 0.0, %v367
        %v369 = vpop.f32.mrf.mxu0
        %v370 = vpop.f32.mrf.mxu0
        %v371 = vpop.f32.mrf.mxu0
        %372 = vdwg.mxu0
        %v373 = vld [vmem:[%s178] sm:$0xff]
        %v374 = vld [vmem:[%s178 + $0x8] sm:$0xff]
        %v375 = vld [vmem:[%s178 + $0x10] sm:$0xff]
        %v376 = vld [vmem:[%s178 + $0x18] sm:$0xff]
        %v377 = vld [vmem:[%s178 + $0x20] sm:$0xff]
        %v378 = vadd.f32 %v373, %v352
        %v379 = vadd.f32 %v374, %v355
        %v380 = vadd.f32 %v375, %v360
        %v381 = vadd.f32 %v376, %v363
        %v382 = vadd.f32 %v377, %v368
        %383 = vst [vmem:[%s178] sm:$0xff] %v378
        %384 = vst [vmem:[%s178 + $0x8] sm:$0xff] %v379
        %385 = vst [vmem:[%s178 + $0x10] sm:$0xff] %v380
        %386 = vst [vmem:[%s178 + $0x18] sm:$0xff] %v381
        %387 = vst [vmem:[%s178 + $0x20] sm:$0xff] %v382
        %v388 = vld [vmem:[%s183] sm:$0xf]
        %v389 = vld [vmem:[%s183 + $0x4] sm:$0xf]
        %v390 = vld [vmem:[%s183 + $0x8] sm:$0xf]
        %v391 = vld [vmem:[%s183 + $0xc] sm:$0xf]
        %v392 = vld [vmem:[%s183 + $0x10] sm:$0xf]
        %v393 = vld [vmem:[%s183 + $0x14] sm:$0x1]
        %v394 = vld [vmem:[#allocation2 + $0x10] sm:$0xf]
        %v395 = vld [vmem:[#allocation2 + $0x14] sm:$0xf]
        %v402 = vunpack.c.l.b16 %v388
        %v403 = vunpack.c.l.b16 %v389
        %v404 = vunpack.c.l.b16 %v390
        %v405 = vunpack.c.l.b16 %v391
        %v406 = vunpack.c.l.b16 %v392
        %v407 = vunpack.c.l.b16 %v393
        %v408 = vpack.c.b16 %v403, %v402
        %v409 = vpack.c.b16 %v405, %v404
        %v410 = vpack.c.b16 %v407, %v406
        %vm411 = vsmask.f32 7424
        %v413 = vshrl.u32 %v408, 16
        %v415 = vshll.u32 %v408, 16
        %v417 = vrot.slane %v415, 1
        %v418 = vor.u32 %v413, %v417
        %v420 = vshll.u32 %v409, 16
        %v422 = vrot.slane %v420, 1
        %v423 = vsel %vm411, %v418, %v422
        %v424 = vshrl.u32 %v409, 16
        %v426 = vor.u32 %v424, %v422
        %v428 = vshll.u32 %v410, 16
        %v430 = vrot.slane %v428, 1
        %v431 = vsel %vm411, %v426, %v430
        %v432 = vshrl.u32 %v410, 16
        %v434 = vor.u32 %v432, %v430
        %v437 = vunpack.c.l.b16 %v394
        %v438 = vunpack.c.l.b16 %v395
        %v439 = vpack.c.b16 %v438, %v437
        %v442 = vsel %vm211, %v423, 0
        %v445 = vsel %vm211, %v431, 0
        %v448 = vsel %vm211, %v434, 0
        %450 = vmatprep.subr.bf16.mxu0 0
        %451 = vmatpush1.bf16.msra.mxu0 0
        %452 = vmatprep.subr.bf16.mxu0 0
        %453 = vmatpush1.bf16.msra.mxu0 0
        %454 = vmatprep.subr.bf16.mxu0 0
        %455 = vmatpush1.bf16.msra.mxu0 0
        %456 = vmatprep.subr.bf16.mxu0 0
        %457 = vmatpush1.bf16.msra.mxu0 0
        %458 = vmatprep.subr.bf16.mxu0 0
        %459 = vmatpush1.bf16.msra.mxu0 0
        %460 = vmatprep.subr.bf16.mxu0 0
        %461 = vmatpush1.bf16.msra.mxu0 0
        %462 = vmatprep.subr.bf16.mxu0 0
        %463 = vmatpush1.bf16.msra.mxu0 0
        %464 = vmatprep.subr.bf16.mxu0 0
        %465 = vmatpush1.bf16.msra.mxu0 %v439
        %466 = vmatprep.subr.bf16.mxu0 0
        %467 = vmatpush2.bf16.msra.mxu0 0
        %468 = vmatprep.subr.bf16.mxu0 0
        %469 = vmatpush2.bf16.msra.mxu0 0
        %470 = vmatprep.subr.bf16.mxu0 0
        %471 = vmatpush2.bf16.msra.mxu0 0
        %472 = vmatprep.subr.bf16.mxu0 0
        %473 = vmatpush2.bf16.msra.mxu0 0
        %474 = vmatprep.subr.bf16.mxu0 0
        %475 = vmatpush2.bf16.msra.mxu0 0
        %476 = vmatprep.subr.bf16.mxu0 0
        %477 = vmatpush2.bf16.msra.mxu0 0
        %478 = vmatprep.subr.bf16.mxu0 0
        %479 = vmatpush2.bf16.msra.mxu0 0
        %480 = vmatprep.subr.bf16.mxu0 0
        %481 = vmatpush2.bf16.msra.mxu0 0
        %482 = vmatprep.mubr.bf16.mxu0 0
        %483 = vmatmul.mubr.bf16.gmra.mxu0 %v442
        %v484 = vpop.f32.mrf.mxu0
        %v485 = vadd.f32 0.0, %v484
        %v486 = vpop.f32.mrf.mxu0
        %v487 = vpop.f32.mrf.mxu0
        %v488 = vadd.f32 0.0, %v487
        %v489 = vpop.f32.mrf.mxu0
        %490 = vmatprep.mubr.bf16.mxu0 0
        %491 = vmatmul.mubr.bf16.gmra.mxu0 %v445
        %v492 = vpop.f32.mrf.mxu0
        %v493 = vadd.f32 0.0, %v492
        %v494 = vpop.f32.mrf.mxu0
        %v495 = vpop.f32.mrf.mxu0
        %v496 = vadd.f32 0.0, %v495
        %v497 = vpop.f32.mrf.mxu0
        %498 = vmatprep.mubr.bf16.mxu0 0
        %499 = vmatmul.mubr.bf16.gmra.mxu0 %v448
        %v500 = vpop.f32.mrf.mxu0
        %v501 = vadd.f32 0.0, %v500
        %v502 = vpop.f32.mrf.mxu0
        %v503 = vpop.f32.mrf.mxu0
        %v504 = vpop.f32.mrf.mxu0
        %505 = vdwg.mxu0
        %v506 = vld [vmem:[%s178] sm:$0xff]
        %v507 = vld [vmem:[%s178 + $0x8] sm:$0xff]
        %v508 = vld [vmem:[%s178 + $0x10] sm:$0xff]
        %v509 = vld [vmem:[%s178 + $0x18] sm:$0xff]
        %v510 = vld [vmem:[%s178 + $0x20] sm:$0xff]
        %v511 = vadd.f32 %v506, %v485
        %v512 = vadd.f32 %v507, %v488
        %v513 = vadd.f32 %v508, %v493
        %v514 = vadd.f32 %v509, %v496
        %v515 = vadd.f32 %v510, %v501
        %516 = vst [vmem:[%s178] sm:$0xff] %v511
        %517 = vst [vmem:[%s178 + $0x8] sm:$0xff] %v512
        %518 = vst [vmem:[%s178 + $0x10] sm:$0xff] %v513
        %519 = vst [vmem:[%s178 + $0x18] sm:$0xff] %v514
        %520 = vst [vmem:[%s178 + $0x20] sm:$0xff] %v515
        %v521 = vld [vmem:[%s183 + $0x24] sm:$0xf]
        %v522 = vld [vmem:[%s183 + $0x28] sm:$0xf]
        %v523 = vld [vmem:[%s183 + $0x2c] sm:$0xf]
        %v524 = vld [vmem:[%s183 + $0x30] sm:$0xf]
        %v525 = vld [vmem:[%s183 + $0x34] sm:$0xf]
        %v526 = vld [vmem:[%s183 + $0x38] sm:$0x1]
        %v527 = vld [vmem:[#allocation2 + $0x18] sm:$0xf]
        %v528 = vld [vmem:[#allocation2 + $0x1c] sm:$0xf]
        %v535 = vunpack.c.l.b16 %v521
        %v536 = vunpack.c.l.b16 %v522
        %v537 = vunpack.c.l.b16 %v523
        %v538 = vunpack.c.l.b16 %v524
        %v539 = vunpack.c.l.b16 %v525
        %v540 = vunpack.c.l.b16 %v526
        %v541 = vpack.c.b16 %v536, %v535
        %v542 = vpack.c.b16 %v538, %v537
        %v543 = vpack.c.b16 %v540, %v539
        %v545 = vshrl.u32 %v541, 16
        %v547 = vshll.u32 %v541, 16
        %v549 = vrot.slane %v547, 1
        %v550 = vor.u32 %v545, %v549
        %v552 = vshll.u32 %v542, 16
        %v554 = vrot.slane %v552, 1
        %v555 = vsel %vm411, %v550, %v554
        %v556 = vshrl.u32 %v542, 16
        %v558 = vor.u32 %v556, %v554
        %v560 = vshll.u32 %v543, 16
        %v562 = vrot.slane %v560, 1
        %v563 = vsel %vm411, %v558, %v562
        %v564 = vshrl.u32 %v543, 16
        %v566 = vor.u32 %v564, %v562
        %v569 = vunpack.c.l.b16 %v527
        %v570 = vunpack.c.l.b16 %v528
        %v571 = vpack.c.b16 %v570, %v569
        %v574 = vsel %vm211, %v555, 0
        %v577 = vsel %vm211, %v563, 0
        %v580 = vsel %vm211, %v566, 0
        %582 = vmatprep.subr.bf16.mxu0 0
        %583 = vmatpush1.bf16.msra.mxu0 0
        %584 = vmatprep.subr.bf16.mxu0 0
        %585 = vmatpush1.bf16.msra.mxu0 0
        %586 = vmatprep.subr.bf16.mxu0 0
        %587 = vmatpush1.bf16.msra.mxu0 0
        %588 = vmatprep.subr.bf16.mxu0 0
        %589 = vmatpush1.bf16.msra.mxu0 0
        %590 = vmatprep.subr.bf16.mxu0 0
        %591 = vmatpush1.bf16.msra.mxu0 0
        %592 = vmatprep.subr.bf16.mxu0 0
        %593 = vmatpush1.bf16.msra.mxu0 0
        %594 = vmatprep.subr.bf16.mxu0 0
        %595 = vmatpush1.bf16.msra.mxu0 0
        %596 = vmatprep.subr.bf16.mxu0 0
        %597 = vmatpush1.bf16.msra.mxu0 %v571
        %598 = vmatprep.subr.bf16.mxu0 0
        %599 = vmatpush2.bf16.msra.mxu0 0
        %600 = vmatprep.subr.bf16.mxu0 0
        %601 = vmatpush2.bf16.msra.mxu0 0
        %602 = vmatprep.subr.bf16.mxu0 0
        %603 = vmatpush2.bf16.msra.mxu0 0
        %604 = vmatprep.subr.bf16.mxu0 0
        %605 = vmatpush2.bf16.msra.mxu0 0
        %606 = vmatprep.subr.bf16.mxu0 0
        %607 = vmatpush2.bf16.msra.mxu0 0
        %608 = vmatprep.subr.bf16.mxu0 0
        %609 = vmatpush2.bf16.msra.mxu0 0
        %610 = vmatprep.subr.bf16.mxu0 0
        %611 = vmatpush2.bf16.msra.mxu0 0
        %612 = vmatprep.subr.bf16.mxu0 0
        %613 = vmatpush2.bf16.msra.mxu0 0
        %614 = vmatprep.mubr.bf16.mxu0 0
        %615 = vmatmul.mubr.bf16.gmra.mxu0 %v574
        %v616 = vpop.f32.mrf.mxu0
        %v617 = vadd.f32 0.0, %v616
        %v618 = vpop.f32.mrf.mxu0
        %v619 = vpop.f32.mrf.mxu0
        %v620 = vadd.f32 0.0, %v619
        %v621 = vpop.f32.mrf.mxu0
        %622 = vmatprep.mubr.bf16.mxu0 0
        %623 = vmatmul.mubr.bf16.gmra.mxu0 %v577
        %v624 = vpop.f32.mrf.mxu0
        %v625 = vadd.f32 0.0, %v624
        %v626 = vpop.f32.mrf.mxu0
        %v627 = vpop.f32.mrf.mxu0
        %v628 = vadd.f32 0.0, %v627
        %v629 = vpop.f32.mrf.mxu0
        %630 = vmatprep.mubr.bf16.mxu0 0
        %631 = vmatmul.mubr.bf16.gmra.mxu0 %v580
        %v632 = vpop.f32.mrf.mxu0
        %v633 = vadd.f32 0.0, %v632
        %v634 = vpop.f32.mrf.mxu0
        %v635 = vpop.f32.mrf.mxu0
        %v636 = vpop.f32.mrf.mxu0
        %637 = vdwg.mxu0
        %v638 = vld [vmem:[%s178] sm:$0xff]
        %v639 = vld [vmem:[%s178 + $0x8] sm:$0xff]
        %v640 = vld [vmem:[%s178 + $0x10] sm:$0xff]
        %v641 = vld [vmem:[%s178 + $0x18] sm:$0xff]
        %v642 = vld [vmem:[%s178 + $0x20] sm:$0xff]
        %v643 = vadd.f32 %v638, %v617
        %v644 = vadd.f32 %v639, %v620
        %v645 = vadd.f32 %v640, %v625
        %v646 = vadd.f32 %v641, %v628
        %v647 = vadd.f32 %v642, %v633
        %648 = vst [vmem:[%s178] sm:$0xff] %v643
        %649 = vst [vmem:[%s178 + $0x8] sm:$0xff] %v644
        %650 = vst [vmem:[%s178 + $0x10] sm:$0xff] %v645
        %651 = vst [vmem:[%s178 + $0x18] sm:$0xff] %v646
        %652 = vst [vmem:[%s178 + $0x20] sm:$0xff] %v647
        %v653 = vld [vmem:[%s183] sm:$0xe]
        %v654 = vld [vmem:[%s183 + $0x4] sm:$0xf]
        %v655 = vld [vmem:[%s183 + $0x8] sm:$0xf]
        %v656 = vld [vmem:[%s183 + $0xc] sm:$0xf]
        %v657 = vld [vmem:[%s183 + $0x10] sm:$0xf]
        %v658 = vld [vmem:[%s183 + $0x14] sm:$0x1]
        %v659 = vld [vmem:[#allocation2 + $0x20] sm:$0xf]
        %v660 = vld [vmem:[#allocation2 + $0x24] sm:$0xf]
        %v667 = vunpack.c.l.b16 %v653
        %v668 = vunpack.c.l.b16 %v654
        %v669 = vunpack.c.l.b16 %v655
        %v670 = vunpack.c.l.b16 %v656
        %v671 = vunpack.c.l.b16 %v657
        %v672 = vunpack.c.l.b16 %v658
        %v673 = vpack.c.b16 %v668, %v667
        %v674 = vpack.c.b16 %v670, %v669
        %v675 = vpack.c.b16 %v672, %v671
        %vm676 = vcmask 1046528
        %v677 = vrot.slane %v673, 1
        %v678 = vrot.slane %v674, 1
        %v679 = vsel %vm676, %v677, %v678
        %v680 = vrot.slane %v675, 1
        %v681 = vsel %vm676, %v678, %v680
        %v684 = vunpack.c.l.b16 %v659
        %v685 = vunpack.c.l.b16 %v660
        %v686 = vpack.c.b16 %v685, %v684
        %v689 = vsel %vm211, %v679, 0
        %v692 = vsel %vm211, %v681, 0
        %v695 = vsel %vm211, %v680, 0
        %697 = vmatprep.subr.bf16.mxu0 0
        %698 = vmatpush1.bf16.msra.mxu0 0
        %699 = vmatprep.subr.bf16.mxu0 0
        %700 = vmatpush1.bf16.msra.mxu0 0
        %701 = vmatprep.subr.bf16.mxu0 0
        %702 = vmatpush1.bf16.msra.mxu0 0
        %703 = vmatprep.subr.bf16.mxu0 0
        %704 = vmatpush1.bf16.msra.mxu0 0
        %705 = vmatprep.subr.bf16.mxu0 0
        %706 = vmatpush1.bf16.msra.mxu0 0
        %707 = vmatprep.subr.bf16.mxu0 0
        %708 = vmatpush1.bf16.msra.mxu0 0
        %709 = vmatprep.subr.bf16.mxu0 0
        %710 = vmatpush1.bf16.msra.mxu0 0
        %711 = vmatprep.subr.bf16.mxu0 0
        %712 = vmatpush1.bf16.msra.mxu0 %v686
        %713 = vmatprep.subr.bf16.mxu0 0
        %714 = vmatpush2.bf16.msra.mxu0 0
        %715 = vmatprep.subr.bf16.mxu0 0
        %716 = vmatpush2.bf16.msra.mxu0 0
        %717 = vmatprep.subr.bf16.mxu0 0
        %718 = vmatpush2.bf16.msra.mxu0 0
        %719 = vmatprep.subr.bf16.mxu0 0
        %720 = vmatpush2.bf16.msra.mxu0 0
        %721 = vmatprep.subr.bf16.mxu0 0
        %722 = vmatpush2.bf16.msra.mxu0 0
        %723 = vmatprep.subr.bf16.mxu0 0
        %724 = vmatpush2.bf16.msra.mxu0 0
        %725 = vmatprep.subr.bf16.mxu0 0
        %726 = vmatpush2.bf16.msra.mxu0 0
        %727 = vmatprep.subr.bf16.mxu0 0
        %728 = vmatpush2.bf16.msra.mxu0 0
        %729 = vmatprep.mubr.bf16.mxu0 0
        %730 = vmatmul.mubr.bf16.gmra.mxu0 %v689
        %v731 = vpop.f32.mrf.mxu0
        %v732 = vadd.f32 0.0, %v731
        %v733 = vpop.f32.mrf.mxu0
        %v734 = vpop.f32.mrf.mxu0
        %v735 = vadd.f32 0.0, %v734
        %v736 = vpop.f32.mrf.mxu0
        %737 = vmatprep.mubr.bf16.mxu0 0
        %738 = vmatmul.mubr.bf16.gmra.mxu0 %v692
        %v739 = vpop.f32.mrf.mxu0
        %v740 = vadd.f32 0.0, %v739
        %v741 = vpop.f32.mrf.mxu0
        %v742 = vpop.f32.mrf.mxu0
        %v743 = vadd.f32 0.0, %v742
        %v744 = vpop.f32.mrf.mxu0
        %745 = vmatprep.mubr.bf16.mxu0 0
        %746 = vmatmul.mubr.bf16.gmra.mxu0 %v695
        %v747 = vpop.f32.mrf.mxu0
        %v748 = vadd.f32 0.0, %v747
        %v749 = vpop.f32.mrf.mxu0
        %v750 = vpop.f32.mrf.mxu0
        %v751 = vpop.f32.mrf.mxu0
        %752 = vdwg.mxu0
        %v753 = vld [vmem:[%s178] sm:$0xff]
        %v754 = vld [vmem:[%s178 + $0x8] sm:$0xff]
        %v755 = vld [vmem:[%s178 + $0x10] sm:$0xff]
        %v756 = vld [vmem:[%s178 + $0x18] sm:$0xff]
        %v757 = vld [vmem:[%s178 + $0x20] sm:$0xff]
        %v758 = vadd.f32 %v753, %v732
        %v759 = vadd.f32 %v754, %v735
        %v760 = vadd.f32 %v755, %v740
        %v761 = vadd.f32 %v756, %v743
        %v762 = vadd.f32 %v757, %v748
        %763 = vst [vmem:[%s178] sm:$0xff] %v758
        %764 = vst [vmem:[%s178 + $0x8] sm:$0xff] %v759
        %765 = vst [vmem:[%s178 + $0x10] sm:$0xff] %v760
        %766 = vst [vmem:[%s178 + $0x18] sm:$0xff] %v761
        %767 = vst [vmem:[%s178 + $0x20] sm:$0xff] %v762
        %v768 = vld [vmem:[%s183 + $0x24] sm:$0xe]
        %v769 = vld [vmem:[%s183 + $0x28] sm:$0xf]
        %v770 = vld [vmem:[%s183 + $0x2c] sm:$0xf]
        %v771 = vld [vmem:[%s183 + $0x30] sm:$0xf]
        %v772 = vld [vmem:[%s183 + $0x34] sm:$0xf]
        %v773 = vld [vmem:[%s183 + $0x38] sm:$0x1]
        %v774 = vld [vmem:[#allocation2 + $0x28] sm:$0xf]
        %v775 = vld [vmem:[#allocation2 + $0x2c] sm:$0xf]
        %v782 = vunpack.c.l.b16 %v768
        %v783 = vunpack.c.l.b16 %v769
        %v784 = vunpack.c.l.b16 %v770
        %v785 = vunpack.c.l.b16 %v771
        %v786 = vunpack.c.l.b16 %v772
        %v787 = vunpack.c.l.b16 %v773
        %v788 = vpack.c.b16 %v783, %v782
        %v789 = vpack.c.b16 %v785, %v784
        %v790 = vpack.c.b16 %v787, %v786
        %v791 = vrot.slane %v788, 1
        %v792 = vrot.slane %v789, 1
        %v793 = vsel %vm676, %v791, %v792
        %v794 = vrot.slane %v790, 1
        %v795 = vsel %vm676, %v792, %v794
        %v798 = vunpack.c.l.b16 %v774
        %v799 = vunpack.c.l.b16 %v775
        %v800 = vpack.c.b16 %v799, %v798
        %v803 = vsel %vm211, %v793, 0
        %v806 = vsel %vm211, %v795, 0
        %v809 = vsel %vm211, %v794, 0
        %811 = vmatprep.subr.bf16.mxu0 0
        %812 = vmatpush1.bf16.msra.mxu0 0
        %813 = vmatprep.subr.bf16.mxu0 0
        %814 = vmatpush1.bf16.msra.mxu0 0
        %815 = vmatprep.subr.bf16.mxu0 0
        %816 = vmatpush1.bf16.msra.mxu0 0
        %817 = vmatprep.subr.bf16.mxu0 0
        %818 = vmatpush1.bf16.msra.mxu0 0
        %819 = vmatprep.subr.bf16.mxu0 0
        %820 = vmatpush1.bf16.msra.mxu0 0
        %821 = vmatprep.subr.bf16.mxu0 0
        %822 = vmatpush1.bf16.msra.mxu0 0
        %823 = vmatprep.subr.bf16.mxu0 0
        %824 = vmatpush1.bf16.msra.mxu0 0
        %825 = vmatprep.subr.bf16.mxu0 0
        %826 = vmatpush1.bf16.msra.mxu0 %v800
        %827 = vmatprep.subr.bf16.mxu0 0
        %828 = vmatpush2.bf16.msra.mxu0 0
        %829 = vmatprep.subr.bf16.mxu0 0
        %830 = vmatpush2.bf16.msra.mxu0 0
        %831 = vmatprep.subr.bf16.mxu0 0
        %832 = vmatpush2.bf16.msra.mxu0 0
        %833 = vmatprep.subr.bf16.mxu0 0
        %834 = vmatpush2.bf16.msra.mxu0 0
        %835 = vmatprep.subr.bf16.mxu0 0
        %836 = vmatpush2.bf16.msra.mxu0 0
        %837 = vmatprep.subr.bf16.mxu0 0
        %838 = vmatpush2.bf16.msra.mxu0 0
        %839 = vmatprep.subr.bf16.mxu0 0
        %840 = vmatpush2.bf16.msra.mxu0 0
        %841 = vmatprep.subr.bf16.mxu0 0
        %842 = vmatpush2.bf16.msra.mxu0 0
        %843 = vmatprep.mubr.bf16.mxu0 0
        %844 = vmatmul.mubr.bf16.gmra.mxu0 %v803
        %v845 = vpop.f32.mrf.mxu0
        %v846 = vadd.f32 0.0, %v845
        %v847 = vpop.f32.mrf.mxu0
        %v848 = vpop.f32.mrf.mxu0
        %v849 = vadd.f32 0.0, %v848
        %v850 = vpop.f32.mrf.mxu0
        %851 = vmatprep.mubr.bf16.mxu0 0
        %852 = vmatmul.mubr.bf16.gmra.mxu0 %v806
        %v853 = vpop.f32.mrf.mxu0
        %v854 = vadd.f32 0.0, %v853
        %v855 = vpop.f32.mrf.mxu0
        %v856 = vpop.f32.mrf.mxu0
        %v857 = vadd.f32 0.0, %v856
        %v858 = vpop.f32.mrf.mxu0
        %859 = vmatprep.mubr.bf16.mxu0 0
        %860 = vmatmul.mubr.bf16.gmra.mxu0 %v809
        %v861 = vpop.f32.mrf.mxu0
        %v862 = vadd.f32 0.0, %v861
        %v863 = vpop.f32.mrf.mxu0
        %v864 = vpop.f32.mrf.mxu0
        %v865 = vpop.f32.mrf.mxu0
        %866 = vdwg.mxu0
        %v867 = vld [vmem:[%s178] sm:$0xff]
        %v868 = vld [vmem:[%s178 + $0x8] sm:$0xff]
        %v869 = vld [vmem:[%s178 + $0x10] sm:$0xff]
        %v870 = vld [vmem:[%s178 + $0x18] sm:$0xff]
        %v871 = vld [vmem:[%s178 + $0x20] sm:$0xff]
        %v872 = vadd.f32 %v867, %v846
        %v873 = vadd.f32 %v868, %v849
        %v874 = vadd.f32 %v869, %v854
        %v875 = vadd.f32 %v870, %v857
        %v876 = vadd.f32 %v871, %v862
        %877 = vst [vmem:[%s178] sm:$0xff] %v872
        %878 = vst [vmem:[%s178 + $0x8] sm:$0xff] %v873
        %879 = vst [vmem:[%s178 + $0x10] sm:$0xff] %v874
        %880 = vst [vmem:[%s178 + $0x18] sm:$0xff] %v875
        %881 = vst [vmem:[%s178 + $0x20] sm:$0xff] %v876
        %v882 = vld [vmem:[%s183] sm:$0xe]
        %v883 = vld [vmem:[%s183 + $0x4] sm:$0xf]
        %v884 = vld [vmem:[%s183 + $0x8] sm:$0xf]
        %v885 = vld [vmem:[%s183 + $0xc] sm:$0xf]
        %v886 = vld [vmem:[%s183 + $0x10] sm:$0xf]
        %v887 = vld [vmem:[%s183 + $0x14] sm:$0x3]
        %v888 = vld [vmem:[#allocation2 + $0x30] sm:$0xf]
        %v889 = vld [vmem:[#allocation2 + $0x34] sm:$0xf]
        %v896 = vunpack.c.l.b16 %v882
        %v897 = vunpack.c.l.b16 %v883
        %v898 = vunpack.c.l.b16 %v884
        %v899 = vunpack.c.l.b16 %v885
        %v900 = vunpack.c.l.b16 %v886
        %v901 = vunpack.c.l.b16 %v887
        %v902 = vpack.c.b16 %v897, %v896
        %v903 = vpack.c.b16 %v899, %v898
        %v904 = vpack.c.b16 %v901, %v900
        %vm905 = vsmask.f32 6400
        %v907 = vshrl.u32 %v902, 16
        %v909 = vrot.slane %v907, 1
        %v910 = vshll.u32 %v902, 16
        %v912 = vrot.slane %v910, 2
        %v913 = vor.u32 %v909, %v912
        %v915 = vshrl.u32 %v903, 16
        %v917 = vrot.slane %v915, 1
        %v918 = vshll.u32 %v903, 16
        %v920 = vrot.slane %v918, 2
        %v921 = vor.u32 %v917, %v920
        %v922 = vsel %vm905, %v913, %v921
        %v924 = vshrl.u32 %v904, 16
        %v926 = vrot.slane %v924, 1
        %v927 = vshll.u32 %v904, 16
        %v929 = vrot.slane %v927, 2
        %v930 = vor.u32 %v926, %v929
        %v931 = vsel %vm905, %v921, %v930
        %v934 = vunpack.c.l.b16 %v888
        %v935 = vunpack.c.l.b16 %v889
        %v936 = vpack.c.b16 %v935, %v934
        %v939 = vsel %vm211, %v922, 0
        %v942 = vsel %vm211, %v931, 0
        %v945 = vsel %vm211, %v930, 0
        %947 = vmatprep.subr.bf16.mxu0 0
        %948 = vmatpush1.bf16.msra.mxu0 0
        %949 = vmatprep.subr.bf16.mxu0 0
        %950 = vmatpush1.bf16.msra.mxu0 0
        %951 = vmatprep.subr.bf16.mxu0 0
        %952 = vmatpush1.bf16.msra.mxu0 0
        %953 = vmatprep.subr.bf16.mxu0 0
        %954 = vmatpush1.bf16.msra.mxu0 0
        %955 = vmatprep.subr.bf16.mxu0 0
        %956 = vmatpush1.bf16.msra.mxu0 0
        %957 = vmatprep.subr.bf16.mxu0 0
        %958 = vmatpush1.bf16.msra.mxu0 0
        %959 = vmatprep.subr.bf16.mxu0 0
        %960 = vmatpush1.bf16.msra.mxu0 0
        %961 = vmatprep.subr.bf16.mxu0 0
        %962 = vmatpush1.bf16.msra.mxu0 %v936
        %963 = vmatprep.subr.bf16.mxu0 0
        %964 = vmatpush2.bf16.msra.mxu0 0
        %965 = vmatprep.subr.bf16.mxu0 0
        %966 = vmatpush2.bf16.msra.mxu0 0
        %967 = vmatprep.subr.bf16.mxu0 0
        %968 = vmatpush2.bf16.msra.mxu0 0
        %969 = vmatprep.subr.bf16.mxu0 0
        %970 = vmatpush2.bf16.msra.mxu0 0
        %971 = vmatprep.subr.bf16.mxu0 0
        %972 = vmatpush2.bf16.msra.mxu0 0
        %973 = vmatprep.subr.bf16.mxu0 0
        %974 = vmatpush2.bf16.msra.mxu0 0
        %975 = vmatprep.subr.bf16.mxu0 0
        %976 = vmatpush2.bf16.msra.mxu0 0
        %977 = vmatprep.subr.bf16.mxu0 0
        %978 = vmatpush2.bf16.msra.mxu0 0
        %979 = vmatprep.mubr.bf16.mxu0 0
        %980 = vmatmul.mubr.bf16.gmra.mxu0 %v939
        %v981 = vpop.f32.mrf.mxu0
        %v982 = vadd.f32 0.0, %v981
        %v983 = vpop.f32.mrf.mxu0
        %v984 = vpop.f32.mrf.mxu0
        %v985 = vadd.f32 0.0, %v984
        %v986 = vpop.f32.mrf.mxu0
        %987 = vmatprep.mubr.bf16.mxu0 0
        %988 = vmatmul.mubr.bf16.gmra.mxu0 %v942
        %v989 = vpop.f32.mrf.mxu0
        %v990 = vadd.f32 0.0, %v989
        %v991 = vpop.f32.mrf.mxu0
        %v992 = vpop.f32.mrf.mxu0
        %v993 = vadd.f32 0.0, %v992
        %v994 = vpop.f32.mrf.mxu0
        %995 = vmatprep.mubr.bf16.mxu0 0
        %996 = vmatmul.mubr.bf16.gmra.mxu0 %v945
        %v997 = vpop.f32.mrf.mxu0
        %v998 = vadd.f32 0.0, %v997
        %v999 = vpop.f32.mrf.mxu0
        %v1000 = vpop.f32.mrf.mxu0
        %v1001 = vpop.f32.mrf.mxu0
        %1002 = vdwg.mxu0
        %v1003 = vld [vmem:[%s178] sm:$0xff]
        %v1004 = vld [vmem:[%s178 + $0x8] sm:$0xff]
        %v1005 = vld [vmem:[%s178 + $0x10] sm:$0xff]
        %v1006 = vld [vmem:[%s178 + $0x18] sm:$0xff]
        %v1007 = vld [vmem:[%s178 + $0x20] sm:$0xff]
        %v1008 = vadd.f32 %v1003, %v982
        %v1009 = vadd.f32 %v1004, %v985
        %v1010 = vadd.f32 %v1005, %v990
        %v1011 = vadd.f32 %v1006, %v993
        %v1012 = vadd.f32 %v1007, %v998
        %1013 = vst [vmem:[%s178] sm:$0xff] %v1008
        %1014 = vst [vmem:[%s178 + $0x8] sm:$0xff] %v1009
        %1015 = vst [vmem:[%s178 + $0x10] sm:$0xff] %v1010
        %1016 = vst [vmem:[%s178 + $0x18] sm:$0xff] %v1011
        %1017 = vst [vmem:[%s178 + $0x20] sm:$0xff] %v1012
        %v1018 = vld [vmem:[%s183 + $0x24] sm:$0xe]
        %v1019 = vld [vmem:[%s183 + $0x28] sm:$0xf]
        %v1020 = vld [vmem:[%s183 + $0x2c] sm:$0xf]
        %v1021 = vld [vmem:[%s183 + $0x30] sm:$0xf]
        %v1022 = vld [vmem:[%s183 + $0x34] sm:$0xf]
        %v1023 = vld [vmem:[%s183 + $0x38] sm:$0x3]
        %v1024 = vld [vmem:[#allocation2 + $0x38] sm:$0xf]
        %v1025 = vld [vmem:[#allocation2 + $0x3c] sm:$0xf]
        %v1032 = vunpack.c.l.b16 %v1018
        %v1033 = vunpack.c.l.b16 %v1019
        %v1034 = vunpack.c.l.b16 %v1020
        %v1035 = vunpack.c.l.b16 %v1021
        %v1036 = vunpack.c.l.b16 %v1022
        %v1037 = vunpack.c.l.b16 %v1023
        %v1038 = vpack.c.b16 %v1033, %v1032
        %v1039 = vpack.c.b16 %v1035, %v1034
        %v1040 = vpack.c.b16 %v1037, %v1036
        %v1042 = vshrl.u32 %v1038, 16
        %v1044 = vrot.slane %v1042, 1
        %v1045 = vshll.u32 %v1038, 16
        %v1047 = vrot.slane %v1045, 2
        %v1048 = vor.u32 %v1044, %v1047
        %v1050 = vshrl.u32 %v1039, 16
        %v1052 = vrot.slane %v1050, 1
        %v1053 = vshll.u32 %v1039, 16
        %v1055 = vrot.slane %v1053, 2
        %v1056 = vor.u32 %v1052, %v1055
        %v1057 = vsel %vm905, %v1048, %v1056
        %v1059 = vshrl.u32 %v1040, 16
        %v1061 = vrot.slane %v1059, 1
        %v1062 = vshll.u32 %v1040, 16
        %v1064 = vrot.slane %v1062, 2
        %v1065 = vor.u32 %v1061, %v1064
        %v1066 = vsel %vm905, %v1056, %v1065
        %v1069 = vunpack.c.l.b16 %v1024
        %v1070 = vunpack.c.l.b16 %v1025
        %v1071 = vpack.c.b16 %v1070, %v1069
        %v1074 = vsel %vm211, %v1057, 0
        %v1077 = vsel %vm211, %v1066, 0
        %v1080 = vsel %vm211, %v1065, 0
        %1082 = vmatprep.subr.bf16.mxu0 0
        %1083 = vmatpush1.bf16.msra.mxu0 0
        %1084 = vmatprep.subr.bf16.mxu0 0
        %1085 = vmatpush1.bf16.msra.mxu0 0
        %1086 = vmatprep.subr.bf16.mxu0 0
        %1087 = vmatpush1.bf16.msra.mxu0 0
        %1088 = vmatprep.subr.bf16.mxu0 0
        %1089 = vmatpush1.bf16.msra.mxu0 0
        %1090 = vmatprep.subr.bf16.mxu0 0
        %1091 = vmatpush1.bf16.msra.mxu0 0
        %1092 = vmatprep.subr.bf16.mxu0 0
        %1093 = vmatpush1.bf16.msra.mxu0 0
        %1094 = vmatprep.subr.bf16.mxu0 0
        %1095 = vmatpush1.bf16.msra.mxu0 0
        %1096 = vmatprep.subr.bf16.mxu0 0
        %1097 = vmatpush1.bf16.msra.mxu0 %v1071
        %1098 = vmatprep.subr.bf16.mxu0 0
        %1099 = vmatpush2.bf16.msra.mxu0 0
        %1100 = vmatprep.subr.bf16.mxu0 0
        %1101 = vmatpush2.bf16.msra.mxu0 0
        %1102 = vmatprep.subr.bf16.mxu0 0
        %1103 = vmatpush2.bf16.msra.mxu0 0
        %1104 = vmatprep.subr.bf16.mxu0 0
        %1105 = vmatpush2.bf16.msra.mxu0 0
        %1106 = vmatprep.subr.bf16.mxu0 0
        %1107 = vmatpush2.bf16.msra.mxu0 0
        %1108 = vmatprep.subr.bf16.mxu0 0
        %1109 = vmatpush2.bf16.msra.mxu0 0
        %1110 = vmatprep.subr.bf16.mxu0 0
        %1111 = vmatpush2.bf16.msra.mxu0 0
        %1112 = vmatprep.subr.bf16.mxu0 0
        %1113 = vmatpush2.bf16.msra.mxu0 0
        %1114 = vmatprep.mubr.bf16.mxu0 0
        %1115 = vmatmul.mubr.bf16.gmra.mxu0 %v1074
        %v1116 = vpop.f32.mrf.mxu0
        %v1117 = vadd.f32 0.0, %v1116
        %v1118 = vpop.f32.mrf.mxu0
        %v1119 = vpop.f32.mrf.mxu0
        %v1120 = vadd.f32 0.0, %v1119
        %v1121 = vpop.f32.mrf.mxu0
        %1122 = vmatprep.mubr.bf16.mxu0 0
        %1123 = vmatmul.mubr.bf16.gmra.mxu0 %v1077
        %v1124 = vpop.f32.mrf.mxu0
        %v1125 = vadd.f32 0.0, %v1124
        %v1126 = vpop.f32.mrf.mxu0
        %v1127 = vpop.f32.mrf.mxu0
        %v1128 = vadd.f32 0.0, %v1127
        %v1129 = vpop.f32.mrf.mxu0
        %1130 = vmatprep.mubr.bf16.mxu0 0
        %1131 = vmatmul.mubr.bf16.gmra.mxu0 %v1080
        %v1132 = vpop.f32.mrf.mxu0
        %v1133 = vadd.f32 0.0, %v1132
        %v1134 = vpop.f32.mrf.mxu0
        %v1135 = vpop.f32.mrf.mxu0
        %v1136 = vpop.f32.mrf.mxu0
        %1137 = vdwg.mxu0
        %v1138 = vld [vmem:[%s178] sm:$0xff]
        %v1139 = vld [vmem:[%s178 + $0x8] sm:$0xff]
        %v1140 = vld [vmem:[%s178 + $0x10] sm:$0xff]
        %v1141 = vld [vmem:[%s178 + $0x18] sm:$0xff]
        %v1142 = vld [vmem:[%s178 + $0x20] sm:$0xff]
        %v1143 = vadd.f32 %v1138, %v1117
        %v1144 = vadd.f32 %v1139, %v1120
        %v1145 = vadd.f32 %v1140, %v1125
        %v1146 = vadd.f32 %v1141, %v1128
        %v1147 = vadd.f32 %v1142, %v1133
        %1148 = vst [vmem:[%s178] sm:$0xff] %v1143
        %1149 = vst [vmem:[%s178 + $0x8] sm:$0xff] %v1144
        %1150 = vst [vmem:[%s178 + $0x10] sm:$0xff] %v1145
        %1151 = vst [vmem:[%s178 + $0x18] sm:$0xff] %v1146
        %1152 = vst [vmem:[%s178 + $0x20] sm:$0xff] %v1147
        %v1153 = vld [vmem:[%s183 + $0x48] sm:$0xf]
        %v1154 = vld [vmem:[%s183 + $0x4c] sm:$0xf]
        %v1155 = vld [vmem:[%s183 + $0x50] sm:$0xf]
        %v1156 = vld [vmem:[%s183 + $0x54] sm:$0xf]
        %v1157 = vld [vmem:[%s183 + $0x58] sm:$0xf]
        %v1158 = vld [vmem:[#allocation2 + $0x40] sm:$0xf]
        %v1159 = vld [vmem:[#allocation2 + $0x44] sm:$0xf]
        %v1165 = vunpack.c.l.b16 %v1153
        %v1166 = vunpack.c.l.b16 %v1154
        %v1167 = vunpack.c.l.b16 %v1155
        %v1168 = vunpack.c.l.b16 %v1156
        %v1169 = vunpack.c.l.b16 %v1157
        %v1170 = vpack.c.b16 %v1166, %v1165
        %v1171 = vpack.c.b16 %v1168, %v1167
        %v1172 = vpack.c.b16 %v1169, %v1169
        %v1175 = vunpack.c.l.b16 %v1158
        %v1176 = vunpack.c.l.b16 %v1159
        %v1177 = vpack.c.b16 %v1176, %v1175
        %v1180 = vsel %vm211, %v1170, 0
        %v1183 = vsel %vm211, %v1171, 0
        %v1186 = vsel %vm211, %v1172, 0
        %1188 = vmatprep.subr.bf16.mxu0 0
        %1189 = vmatpush1.bf16.msra.mxu0 0
        %1190 = vmatprep.subr.bf16.mxu0 0
        %1191 = vmatpush1.bf16.msra.mxu0 0
        %1192 = vmatprep.subr.bf16.mxu0 0
        %1193 = vmatpush1.bf16.msra.mxu0 0
        %1194 = vmatprep.subr.bf16.mxu0 0
        %1195 = vmatpush1.bf16.msra.mxu0 0
        %1196 = vmatprep.subr.bf16.mxu0 0
        %1197 = vmatpush1.bf16.msra.mxu0 0
        %1198 = vmatprep.subr.bf16.mxu0 0
        %1199 = vmatpush1.bf16.msra.mxu0 0
        %1200 = vmatprep.subr.bf16.mxu0 0
        %1201 = vmatpush1.bf16.msra.mxu0 0
        %1202 = vmatprep.subr.bf16.mxu0 0
        %1203 = vmatpush1.bf16.msra.mxu0 %v1177
        %1204 = vmatprep.subr.bf16.mxu0 0
        %1205 = vmatpush2.bf16.msra.mxu0 0
        %1206 = vmatprep.subr.bf16.mxu0 0
        %1207 = vmatpush2.bf16.msra.mxu0 0
        %1208 = vmatprep.subr.bf16.mxu0 0
        %1209 = vmatpush2.bf16.msra.mxu0 0
        %1210 = vmatprep.subr.bf16.mxu0 0
        %1211 = vmatpush2.bf16.msra.mxu0 0
        %1212 = vmatprep.subr.bf16.mxu0 0
        %1213 = vmatpush2.bf16.msra.mxu0 0
        %1214 = vmatprep.subr.bf16.mxu0 0
        %1215 = vmatpush2.bf16.msra.mxu0 0
        %1216 = vmatprep.subr.bf16.mxu0 0
        %1217 = vmatpush2.bf16.msra.mxu0 0
        %1218 = vmatprep.subr.bf16.mxu0 0
        %1219 = vmatpush2.bf16.msra.mxu0 0
        %1220 = vmatprep.mubr.bf16.mxu0 0
        %1221 = vmatmul.mubr.bf16.gmra.mxu0 %v1180
        %v1222 = vpop.f32.mrf.mxu0
        %v1223 = vadd.f32 0.0, %v1222
        %v1224 = vpop.f32.mrf.mxu0
        %v1225 = vpop.f32.mrf.mxu0
        %v1226 = vadd.f32 0.0, %v1225
        %v1227 = vpop.f32.mrf.mxu0
        %1228 = vmatprep.mubr.bf16.mxu0 0
        %1229 = vmatmul.mubr.bf16.gmra.mxu0 %v1183
        %v1230 = vpop.f32.mrf.mxu0
        %v1231 = vadd.f32 0.0, %v1230
        %v1232 = vpop.f32.mrf.mxu0
        %v1233 = vpop.f32.mrf.mxu0
        %v1234 = vadd.f32 0.0, %v1233
        %v1235 = vpop.f32.mrf.mxu0
        %1236 = vmatprep.mubr.bf16.mxu0 0
        %1237 = vmatmul.mubr.bf16.gmra.mxu0 %v1186
        %v1238 = vpop.f32.mrf.mxu0
        %v1239 = vadd.f32 0.0, %v1238
        %v1240 = vpop.f32.mrf.mxu0
        %v1241 = vpop.f32.mrf.mxu0
        %v1242 = vpop.f32.mrf.mxu0
        %1243 = vdwg.mxu0
        %v1244 = vld [vmem:[%s178] sm:$0xff]
        %v1245 = vld [vmem:[%s178 + $0x8] sm:$0xff]
        %v1246 = vld [vmem:[%s178 + $0x10] sm:$0xff]
        %v1247 = vld [vmem:[%s178 + $0x18] sm:$0xff]
        %v1248 = vld [vmem:[%s178 + $0x20] sm:$0xff]
        %v1249 = vadd.f32 %v1244, %v1223
        %v1250 = vadd.f32 %v1245, %v1226
        %v1251 = vadd.f32 %v1246, %v1231
        %v1252 = vadd.f32 %v1247, %v1234
        %v1253 = vadd.f32 %v1248, %v1239
        %1254 = vst [vmem:[%s178] sm:$0xff] %v1249
        %1255 = vst [vmem:[%s178 + $0x8] sm:$0xff] %v1250
        %1256 = vst [vmem:[%s178 + $0x10] sm:$0xff] %v1251
        %1257 = vst [vmem:[%s178 + $0x18] sm:$0xff] %v1252
        %1258 = vst [vmem:[%s178 + $0x20] sm:$0xff] %v1253
        %v1259 = vld [vmem:[%s183 + $0x6c] sm:$0xf]
        %v1260 = vld [vmem:[%s183 + $0x70] sm:$0xf]
        %v1261 = vld [vmem:[%s183 + $0x74] sm:$0xf]
        %v1262 = vld [vmem:[%s183 + $0x78] sm:$0xf]
        %v1263 = vld [vmem:[%s183 + $0x7c] sm:$0xf]
        %v1264 = vld [vmem:[#allocation2 + $0x48] sm:$0xf]
        %v1265 = vld [vmem:[#allocation2 + $0x4c] sm:$0xf]
        %v1271 = vunpack.c.l.b16 %v1259
        %v1272 = vunpack.c.l.b16 %v1260
        %v1273 = vunpack.c.l.b16 %v1261
        %v1274 = vunpack.c.l.b16 %v1262
        %v1275 = vunpack.c.l.b16 %v1263
        %v1276 = vpack.c.b16 %v1272, %v1271
        %v1277 = vpack.c.b16 %v1274, %v1273
        %v1278 = vpack.c.b16 %v1275, %v1275
        %v1281 = vunpack.c.l.b16 %v1264
        %v1282 = vunpack.c.l.b16 %v1265
        %v1283 = vpack.c.b16 %v1282, %v1281
        %v1286 = vsel %vm211, %v1276, 0
        %v1289 = vsel %vm211, %v1277, 0
        %v1292 = vsel %vm211, %v1278, 0
        %1294 = vmatprep.subr.bf16.mxu0 0
        %1295 = vmatpush1.bf16.msra.mxu0 0
        %1296 = vmatprep.subr.bf16.mxu0 0
        %1297 = vmatpush1.bf16.msra.mxu0 0
        %1298 = vmatprep.subr.bf16.mxu0 0
        %1299 = vmatpush1.bf16.msra.mxu0 0
        %1300 = vmatprep.subr.bf16.mxu0 0
        %1301 = vmatpush1.bf16.msra.mxu0 0
        %1302 = vmatprep.subr.bf16.mxu0 0
        %1303 = vmatpush1.bf16.msra.mxu0 0
        %1304 = vmatprep.subr.bf16.mxu0 0
        %1305 = vmatpush1.bf16.msra.mxu0 0
        %1306 = vmatprep.subr.bf16.mxu0 0
        %1307 = vmatpush1.bf16.msra.mxu0 0
        %1308 = vmatprep.subr.bf16.mxu0 0
        %1309 = vmatpush1.bf16.msra.mxu0 %v1283
        %1310 = vmatprep.subr.bf16.mxu0 0
        %1311 = vmatpush2.bf16.msra.mxu0 0
        %1312 = vmatprep.subr.bf16.mxu0 0
        %1313 = vmatpush2.bf16.msra.mxu0 0
        %1314 = vmatprep.subr.bf16.mxu0 0
        %1315 = vmatpush2.bf16.msra.mxu0 0
        %1316 = vmatprep.subr.bf16.mxu0 0
        %1317 = vmatpush2.bf16.msra.mxu0 0
        %1318 = vmatprep.subr.bf16.mxu0 0
        %1319 = vmatpush2.bf16.msra.mxu0 0
        %1320 = vmatprep.subr.bf16.mxu0 0
        %1321 = vmatpush2.bf16.msra.mxu0 0
        %1322 = vmatprep.subr.bf16.mxu0 0
        %1323 = vmatpush2.bf16.msra.mxu0 0
        %1324 = vmatprep.subr.bf16.mxu0 0
        %1325 = vmatpush2.bf16.msra.mxu0 0
        %1326 = vmatprep.mubr.bf16.mxu0 0
        %1327 = vmatmul.mubr.bf16.gmra.mxu0 %v1286
        %v1328 = vpop.f32.mrf.mxu0
        %v1329 = vadd.f32 0.0, %v1328
        %v1330 = vpop.f32.mrf.mxu0
        %v1331 = vpop.f32.mrf.mxu0
        %v1332 = vadd.f32 0.0, %v1331
        %v1333 = vpop.f32.mrf.mxu0
        %1334 = vmatprep.mubr.bf16.mxu0 0
        %1335 = vmatmul.mubr.bf16.gmra.mxu0 %v1289
        %v1336 = vpop.f32.mrf.mxu0
        %v1337 = vadd.f32 0.0, %v1336
        %v1338 = vpop.f32.mrf.mxu0
        %v1339 = vpop.f32.mrf.mxu0
        %v1340 = vadd.f32 0.0, %v1339
        %v1341 = vpop.f32.mrf.mxu0
        %1342 = vmatprep.mubr.bf16.mxu0 0
        %1343 = vmatmul.mubr.bf16.gmra.mxu0 %v1292
        %v1344 = vpop.f32.mrf.mxu0
        %v1345 = vadd.f32 0.0, %v1344
        %v1346 = vpop.f32.mrf.mxu0
        %v1347 = vpop.f32.mrf.mxu0
        %v1348 = vpop.f32.mrf.mxu0
        %1349 = vdwg.mxu0
        %v1350 = vld [vmem:[%s178] sm:$0xff]
        %v1351 = vld [vmem:[%s178 + $0x8] sm:$0xff]
        %v1352 = vld [vmem:[%s178 + $0x10] sm:$0xff]
        %v1353 = vld [vmem:[%s178 + $0x18] sm:$0xff]
        %v1354 = vld [vmem:[%s178 + $0x20] sm:$0xff]
        %v1355 = vadd.f32 %v1350, %v1329
        %v1356 = vadd.f32 %v1351, %v1332
        %v1357 = vadd.f32 %v1352, %v1337
        %v1358 = vadd.f32 %v1353, %v1340
        %v1359 = vadd.f32 %v1354, %v1345
        %1360 = vst [vmem:[%s178] sm:$0xff] %v1355
        %1361 = vst [vmem:[%s178 + $0x8] sm:$0xff] %v1356
        %1362 = vst [vmem:[%s178 + $0x10] sm:$0xff] %v1357
        %1363 = vst [vmem:[%s178 + $0x18] sm:$0xff] %v1358
        %1364 = vst [vmem:[%s178 + $0x20] sm:$0xff] %v1359
        %v1365 = vld [vmem:[%s183 + $0x48] sm:$0xf]
        %v1366 = vld [vmem:[%s183 + $0x4c] sm:$0xf]
        %v1367 = vld [vmem:[%s183 + $0x50] sm:$0xf]
        %v1368 = vld [vmem:[%s183 + $0x54] sm:$0xf]
        %v1369 = vld [vmem:[%s183 + $0x58] sm:$0xf]
        %v1370 = vld [vmem:[%s183 + $0x5c] sm:$0x1]
        %v1371 = vld [vmem:[#allocation2 + $0x50] sm:$0xf]
        %v1372 = vld [vmem:[#allocation2 + $0x54] sm:$0xf]
        %v1379 = vunpack.c.l.b16 %v1365
        %v1380 = vunpack.c.l.b16 %v1366
        %v1381 = vunpack.c.l.b16 %v1367
        %v1382 = vunpack.c.l.b16 %v1368
        %v1383 = vunpack.c.l.b16 %v1369
        %v1384 = vunpack.c.l.b16 %v1370
        %v1385 = vpack.c.b16 %v1380, %v1379
        %v1386 = vpack.c.b16 %v1382, %v1381
        %v1387 = vpack.c.b16 %v1384, %v1383
        %v1389 = vshrl.u32 %v1385, 16
        %v1391 = vshll.u32 %v1385, 16
        %v1393 = vrot.slane %v1391, 1
        %v1394 = vor.u32 %v1389, %v1393
        %v1396 = vshll.u32 %v1386, 16
        %v1398 = vrot.slane %v1396, 1
        %v1399 = vsel %vm411, %v1394, %v1398
        %v1400 = vshrl.u32 %v1386, 16
        %v1402 = vor.u32 %v1400, %v1398
        %v1404 = vshll.u32 %v1387, 16
        %v1406 = vrot.slane %v1404, 1
        %v1407 = vsel %vm411, %v1402, %v1406
        %v1408 = vshrl.u32 %v1387, 16
        %v1410 = vor.u32 %v1408, %v1406
        %v1413 = vunpack.c.l.b16 %v1371
        %v1414 = vunpack.c.l.b16 %v1372
        %v1415 = vpack.c.b16 %v1414, %v1413
        %v1418 = vsel %vm211, %v1399, 0
        %v1421 = vsel %vm211, %v1407, 0
        %v1424 = vsel %vm211, %v1410, 0
        %1426 = vmatprep.subr.bf16.mxu0 0
        %1427 = vmatpush1.bf16.msra.mxu0 0
        %1428 = vmatprep.subr.bf16.mxu0 0
        %1429 = vmatpush1.bf16.msra.mxu0 0
        %1430 = vmatprep.subr.bf16.mxu0 0
        %1431 = vmatpush1.bf16.msra.mxu0 0
        %1432 = vmatprep.subr.bf16.mxu0 0
        %1433 = vmatpush1.bf16.msra.mxu0 0
        %1434 = vmatprep.subr.bf16.mxu0 0
        %1435 = vmatpush1.bf16.msra.mxu0 0
        %1436 = vmatprep.subr.bf16.mxu0 0
        %1437 = vmatpush1.bf16.msra.mxu0 0
        %1438 = vmatprep.subr.bf16.mxu0 0
        %1439 = vmatpush1.bf16.msra.mxu0 0
        %1440 = vmatprep.subr.bf16.mxu0 0
        %1441 = vmatpush1.bf16.msra.mxu0 %v1415
        %1442 = vmatprep.subr.bf16.mxu0 0
        %1443 = vmatpush2.bf16.msra.mxu0 0
        %1444 = vmatprep.subr.bf16.mxu0 0
        %1445 = vmatpush2.bf16.msra.mxu0 0
        %1446 = vmatprep.subr.bf16.mxu0 0
        %1447 = vmatpush2.bf16.msra.mxu0 0
        %1448 = vmatprep.subr.bf16.mxu0 0
        %1449 = vmatpush2.bf16.msra.mxu0 0
        %1450 = vmatprep.subr.bf16.mxu0 0
        %1451 = vmatpush2.bf16.msra.mxu0 0
        %1452 = vmatprep.subr.bf16.mxu0 0
        %1453 = vmatpush2.bf16.msra.mxu0 0
        %1454 = vmatprep.subr.bf16.mxu0 0
        %1455 = vmatpush2.bf16.msra.mxu0 0
        %1456 = vmatprep.subr.bf16.mxu0 0
        %1457 = vmatpush2.bf16.msra.mxu0 0
        %1458 = vmatprep.mubr.bf16.mxu0 0
        %1459 = vmatmul.mubr.bf16.gmra.mxu0 %v1418
        %v1460 = vpop.f32.mrf.mxu0
        %v1461 = vadd.f32 0.0, %v1460
        %v1462 = vpop.f32.mrf.mxu0
        %v1463 = vpop.f32.mrf.mxu0
        %v1464 = vadd.f32 0.0, %v1463
        %v1465 = vpop.f32.mrf.mxu0
        %1466 = vmatprep.mubr.bf16.mxu0 0
        %1467 = vmatmul.mubr.bf16.gmra.mxu0 %v1421
        %v1468 = vpop.f32.mrf.mxu0
        %v1469 = vadd.f32 0.0, %v1468
        %v1470 = vpop.f32.mrf.mxu0
        %v1471 = vpop.f32.mrf.mxu0
        %v1472 = vadd.f32 0.0, %v1471
        %v1473 = vpop.f32.mrf.mxu0
        %1474 = vmatprep.mubr.bf16.mxu0 0
        %1475 = vmatmul.mubr.bf16.gmra.mxu0 %v1424
        %v1476 = vpop.f32.mrf.mxu0
        %v1477 = vadd.f32 0.0, %v1476
        %v1478 = vpop.f32.mrf.mxu0
        %v1479 = vpop.f32.mrf.mxu0
        %v1480 = vpop.f32.mrf.mxu0
        %1481 = vdwg.mxu0
        %v1482 = vld [vmem:[%s178] sm:$0xff]
        %v1483 = vld [vmem:[%s178 + $0x8] sm:$0xff]
        %v1484 = vld [vmem:[%s178 + $0x10] sm:$0xff]
        %v1485 = vld [vmem:[%s178 + $0x18] sm:$0xff]
        %v1486 = vld [vmem:[%s178 + $0x20] sm:$0xff]
        %v1487 = vadd.f32 %v1482, %v1461
        %v1488 = vadd.f32 %v1483, %v1464
        %v1489 = vadd.f32 %v1484, %v1469
        %v1490 = vadd.f32 %v1485, %v1472
        %v1491 = vadd.f32 %v1486, %v1477
        %1492 = vst [vmem:[%s178] sm:$0xff] %v1487
        %1493 = vst [vmem:[%s178 + $0x8] sm:$0xff] %v1488
        %1494 = vst [vmem:[%s178 + $0x10] sm:$0xff] %v1489
        %1495 = vst [vmem:[%s178 + $0x18] sm:$0xff] %v1490
        %1496 = vst [vmem:[%s178 + $0x20] sm:$0xff] %v1491
        %v1497 = vld [vmem:[%s183 + $0x6c] sm:$0xf]
        %v1498 = vld [vmem:[%s183 + $0x70] sm:$0xf]
        %v1499 = vld [vmem:[%s183 + $0x74] sm:$0xf]
        %v1500 = vld [vmem:[%s183 + $0x78] sm:$0xf]
        %v1501 = vld [vmem:[%s183 + $0x7c] sm:$0xf]
        %v1502 = vld [vmem:[%s183 + $0x80] sm:$0x1]
        %v1503 = vld [vmem:[#allocation2 + $0x58] sm:$0xf]
        %v1504 = vld [vmem:[#allocation2 + $0x5c] sm:$0xf]
        %v1511 = vunpack.c.l.b16 %v1497
        %v1512 = vunpack.c.l.b16 %v1498
        %v1513 = vunpack.c.l.b16 %v1499
        %v1514 = vunpack.c.l.b16 %v1500
        %v1515 = vunpack.c.l.b16 %v1501
        %v1516 = vunpack.c.l.b16 %v1502
        %v1517 = vpack.c.b16 %v1512, %v1511
        %v1518 = vpack.c.b16 %v1514, %v1513
        %v1519 = vpack.c.b16 %v1516, %v1515
        %v1521 = vshrl.u32 %v1517, 16
        %v1523 = vshll.u32 %v1517, 16
        %v1525 = vrot.slane %v1523, 1
        %v1526 = vor.u32 %v1521, %v1525
        %v1528 = vshll.u32 %v1518, 16
        %v1530 = vrot.slane %v1528, 1
        %v1531 = vsel %vm411, %v1526, %v1530
        %v1532 = vshrl.u32 %v1518, 16
        %v1534 = vor.u32 %v1532, %v1530
        %v1536 = vshll.u32 %v1519, 16
        %v1538 = vrot.slane %v1536, 1
        %v1539 = vsel %vm411, %v1534, %v1538
        %v1540 = vshrl.u32 %v1519, 16
        %v1542 = vor.u32 %v1540, %v1538
        %v1545 = vunpack.c.l.b16 %v1503
        %v1546 = vunpack.c.l.b16 %v1504
        %v1547 = vpack.c.b16 %v1546, %v1545
        %v1550 = vsel %vm211, %v1531, 0
        %v1553 = vsel %vm211, %v1539, 0
        %v1556 = vsel %vm211, %v1542, 0
        %1558 = vmatprep.subr.bf16.mxu0 0
        %1559 = vmatpush1.bf16.msra.mxu0 0
        %1560 = vmatprep.subr.bf16.mxu0 0
        %1561 = vmatpush1.bf16.msra.mxu0 0
        %1562 = vmatprep.subr.bf16.mxu0 0
        %1563 = vmatpush1.bf16.msra.mxu0 0
        %1564 = vmatprep.subr.bf16.mxu0 0
        %1565 = vmatpush1.bf16.msra.mxu0 0
        %1566 = vmatprep.subr.bf16.mxu0 0
        %1567 = vmatpush1.bf16.msra.mxu0 0
        %1568 = vmatprep.subr.bf16.mxu0 0
        %1569 = vmatpush1.bf16.msra.mxu0 0
        %1570 = vmatprep.subr.bf16.mxu0 0
        %1571 = vmatpush1.bf16.msra.mxu0 0
        %1572 = vmatprep.subr.bf16.mxu0 0
        %1573 = vmatpush1.bf16.msra.mxu0 %v1547
        %1574 = vmatprep.subr.bf16.mxu0 0
        %1575 = vmatpush2.bf16.msra.mxu0 0
        %1576 = vmatprep.subr.bf16.mxu0 0
        %1577 = vmatpush2.bf16.msra.mxu0 0
        %1578 = vmatprep.subr.bf16.mxu0 0
        %1579 = vmatpush2.bf16.msra.mxu0 0
        %1580 = vmatprep.subr.bf16.mxu0 0
        %1581 = vmatpush2.bf16.msra.mxu0 0
        %1582 = vmatprep.subr.bf16.mxu0 0
        %1583 = vmatpush2.bf16.msra.mxu0 0
        %1584 = vmatprep.subr.bf16.mxu0 0
        %1585 = vmatpush2.bf16.msra.mxu0 0
        %1586 = vmatprep.subr.bf16.mxu0 0
        %1587 = vmatpush2.bf16.msra.mxu0 0
        %1588 = vmatprep.subr.bf16.mxu0 0
        %1589 = vmatpush2.bf16.msra.mxu0 0
        %1590 = vmatprep.mubr.bf16.mxu0 0
        %1591 = vmatmul.mubr.bf16.gmra.mxu0 %v1550
        %v1592 = vpop.f32.mrf.mxu0
        %v1593 = vadd.f32 0.0, %v1592
        %v1594 = vpop.f32.mrf.mxu0
        %v1595 = vpop.f32.mrf.mxu0
        %v1596 = vadd.f32 0.0, %v1595
        %v1597 = vpop.f32.mrf.mxu0
        %1598 = vmatprep.mubr.bf16.mxu0 0
        %1599 = vmatmul.mubr.bf16.gmra.mxu0 %v1553
        %v1600 = vpop.f32.mrf.mxu0
        %v1601 = vadd.f32 0.0, %v1600
        %v1602 = vpop.f32.mrf.mxu0
        %v1603 = vpop.f32.mrf.mxu0
        %v1604 = vadd.f32 0.0, %v1603
        %v1605 = vpop.f32.mrf.mxu0
        %1606 = vmatprep.mubr.bf16.mxu0 0
        %1607 = vmatmul.mubr.bf16.gmra.mxu0 %v1556
        %v1608 = vpop.f32.mrf.mxu0
        %v1609 = vadd.f32 0.0, %v1608
        %v1610 = vpop.f32.mrf.mxu0
        %v1611 = vpop.f32.mrf.mxu0
        %v1612 = vpop.f32.mrf.mxu0
        %1613 = vdwg.mxu0
        %v1614 = vld [vmem:[%s178] sm:$0xff]
        %v1615 = vld [vmem:[%s178 + $0x8] sm:$0xff]
        %v1616 = vld [vmem:[%s178 + $0x10] sm:$0xff]
        %v1617 = vld [vmem:[%s178 + $0x18] sm:$0xff]
        %v1618 = vld [vmem:[%s178 + $0x20] sm:$0xff]
        %v1619 = vadd.f32 %v1614, %v1593
        %v1620 = vadd.f32 %v1615, %v1596
        %v1621 = vadd.f32 %v1616, %v1601
        %v1622 = vadd.f32 %v1617, %v1604
        %v1623 = vadd.f32 %v1618, %v1609
        %1624 = vst [vmem:[%s178] sm:$0xff] %v1619
        %1625 = vst [vmem:[%s178 + $0x8] sm:$0xff] %v1620
        %1626 = vst [vmem:[%s178 + $0x10] sm:$0xff] %v1621
        %1627 = vst [vmem:[%s178 + $0x18] sm:$0xff] %v1622
        %1628 = vst [vmem:[%s178 + $0x20] sm:$0xff] %v1623
        %v1629 = vld [vmem:[%s183 + $0x48] sm:$0xe]
        %v1630 = vld [vmem:[%s183 + $0x4c] sm:$0xf]
        %v1631 = vld [vmem:[%s183 + $0x50] sm:$0xf]
        %v1632 = vld [vmem:[%s183 + $0x54] sm:$0xf]
        %v1633 = vld [vmem:[%s183 + $0x58] sm:$0xf]
        %v1634 = vld [vmem:[%s183 + $0x5c] sm:$0x1]
        %v1635 = vld [vmem:[#allocation2 + $0x60] sm:$0xf]
        %v1636 = vld [vmem:[#allocation2 + $0x64] sm:$0xf]
        %v1643 = vunpack.c.l.b16 %v1629
        %v1644 = vunpack.c.l.b16 %v1630
        %v1645 = vunpack.c.l.b16 %v1631
        %v1646 = vunpack.c.l.b16 %v1632
        %v1647 = vunpack.c.l.b16 %v1633
        %v1648 = vunpack.c.l.b16 %v1634
        %v1649 = vpack.c.b16 %v1644, %v1643
        %v1650 = vpack.c.b16 %v1646, %v1645
        %v1651 = vpack.c.b16 %v1648, %v1647
        %v1652 = vrot.slane %v1649, 1
        %v1653 = vrot.slane %v1650, 1
        %v1654 = vsel %vm676, %v1652, %v1653
        %v1655 = vrot.slane %v1651, 1
        %v1656 = vsel %vm676, %v1653, %v1655
        %v1659 = vunpack.c.l.b16 %v1635
        %v1660 = vunpack.c.l.b16 %v1636
        %v1661 = vpack.c.b16 %v1660, %v1659
        %v1664 = vsel %vm211, %v1654, 0
        %v1667 = vsel %vm211, %v1656, 0
        %v1670 = vsel %vm211, %v1655, 0
        %1672 = vmatprep.subr.bf16.mxu0 0
        %1673 = vmatpush1.bf16.msra.mxu0 0
        %1674 = vmatprep.subr.bf16.mxu0 0
        %1675 = vmatpush1.bf16.msra.mxu0 0
        %1676 = vmatprep.subr.bf16.mxu0 0
        %1677 = vmatpush1.bf16.msra.mxu0 0
        %1678 = vmatprep.subr.bf16.mxu0 0
        %1679 = vmatpush1.bf16.msra.mxu0 0
        %1680 = vmatprep.subr.bf16.mxu0 0
        %1681 = vmatpush1.bf16.msra.mxu0 0
        %1682 = vmatprep.subr.bf16.mxu0 0
        %1683 = vmatpush1.bf16.msra.mxu0 0
        %1684 = vmatprep.subr.bf16.mxu0 0
        %1685 = vmatpush1.bf16.msra.mxu0 0
        %1686 = vmatprep.subr.bf16.mxu0 0
        %1687 = vmatpush1.bf16.msra.mxu0 %v1661
        %1688 = vmatprep.subr.bf16.mxu0 0
        %1689 = vmatpush2.bf16.msra.mxu0 0
        %1690 = vmatprep.subr.bf16.mxu0 0
        %1691 = vmatpush2.bf16.msra.mxu0 0
        %1692 = vmatprep.subr.bf16.mxu0 0
        %1693 = vmatpush2.bf16.msra.mxu0 0
        %1694 = vmatprep.subr.bf16.mxu0 0
        %1695 = vmatpush2.bf16.msra.mxu0 0
        %1696 = vmatprep.subr.bf16.mxu0 0
        %1697 = vmatpush2.bf16.msra.mxu0 0
        %1698 = vmatprep.subr.bf16.mxu0 0
        %1699 = vmatpush2.bf16.msra.mxu0 0
        %1700 = vmatprep.subr.bf16.mxu0 0
        %1701 = vmatpush2.bf16.msra.mxu0 0
        %1702 = vmatprep.subr.bf16.mxu0 0
        %1703 = vmatpush2.bf16.msra.mxu0 0
        %1704 = vmatprep.mubr.bf16.mxu0 0
        %1705 = vmatmul.mubr.bf16.gmra.mxu0 %v1664
        %v1706 = vpop.f32.mrf.mxu0
        %v1707 = vadd.f32 0.0, %v1706
        %v1708 = vpop.f32.mrf.mxu0
        %v1709 = vpop.f32.mrf.mxu0
        %v1710 = vadd.f32 0.0, %v1709
        %v1711 = vpop.f32.mrf.mxu0
        %1712 = vmatprep.mubr.bf16.mxu0 0
        %1713 = vmatmul.mubr.bf16.gmra.mxu0 %v1667
        %v1714 = vpop.f32.mrf.mxu0
        %v1715 = vadd.f32 0.0, %v1714
        %v1716 = vpop.f32.mrf.mxu0
        %v1717 = vpop.f32.mrf.mxu0
        %v1718 = vadd.f32 0.0, %v1717
        %v1719 = vpop.f32.mrf.mxu0
        %1720 = vmatprep.mubr.bf16.mxu0 0
        %1721 = vmatmul.mubr.bf16.gmra.mxu0 %v1670
        %v1722 = vpop.f32.mrf.mxu0
        %v1723 = vadd.f32 0.0, %v1722
        %v1724 = vpop.f32.mrf.mxu0
        %v1725 = vpop.f32.mrf.mxu0
        %v1726 = vpop.f32.mrf.mxu0
        %1727 = vdwg.mxu0
        %v1728 = vld [vmem:[%s178] sm:$0xff]
        %v1729 = vld [vmem:[%s178 + $0x8] sm:$0xff]
        %v1730 = vld [vmem:[%s178 + $0x10] sm:$0xff]
        %v1731 = vld [vmem:[%s178 + $0x18] sm:$0xff]
        %v1732 = vld [vmem:[%s178 + $0x20] sm:$0xff]
        %v1733 = vadd.f32 %v1728, %v1707
        %v1734 = vadd.f32 %v1729, %v1710
        %v1735 = vadd.f32 %v1730, %v1715
        %v1736 = vadd.f32 %v1731, %v1718
        %v1737 = vadd.f32 %v1732, %v1723
        %1738 = vst [vmem:[%s178] sm:$0xff] %v1733
        %1739 = vst [vmem:[%s178 + $0x8] sm:$0xff] %v1734
        %1740 = vst [vmem:[%s178 + $0x10] sm:$0xff] %v1735
        %1741 = vst [vmem:[%s178 + $0x18] sm:$0xff] %v1736
        %1742 = vst [vmem:[%s178 + $0x20] sm:$0xff] %v1737
        %v1743 = vld [vmem:[%s183 + $0x6c] sm:$0xe]
        %v1744 = vld [vmem:[%s183 + $0x70] sm:$0xf]
        %v1745 = vld [vmem:[%s183 + $0x74] sm:$0xf]
        %v1746 = vld [vmem:[%s183 + $0x78] sm:$0xf]
        %v1747 = vld [vmem:[%s183 + $0x7c] sm:$0xf]
        %v1748 = vld [vmem:[%s183 + $0x80] sm:$0x1]
        %v1749 = vld [vmem:[#allocation2 + $0x68] sm:$0xf]
        %v1750 = vld [vmem:[#allocation2 + $0x6c] sm:$0xf]
        %v1757 = vunpack.c.l.b16 %v1743
        %v1758 = vunpack.c.l.b16 %v1744
        %v1759 = vunpack.c.l.b16 %v1745
        %v1760 = vunpack.c.l.b16 %v1746
        %v1761 = vunpack.c.l.b16 %v1747
        %v1762 = vunpack.c.l.b16 %v1748
        %v1763 = vpack.c.b16 %v1758, %v1757
        %v1764 = vpack.c.b16 %v1760, %v1759
        %v1765 = vpack.c.b16 %v1762, %v1761
        %v1766 = vrot.slane %v1763, 1
        %v1767 = vrot.slane %v1764, 1
        %v1768 = vsel %vm676, %v1766, %v1767
        %v1769 = vrot.slane %v1765, 1
        %v1770 = vsel %vm676, %v1767, %v1769
        %v1773 = vunpack.c.l.b16 %v1749
        %v1774 = vunpack.c.l.b16 %v1750
        %v1775 = vpack.c.b16 %v1774, %v1773
        %v1778 = vsel %vm211, %v1768, 0
        %v1781 = vsel %vm211, %v1770, 0
        %v1784 = vsel %vm211, %v1769, 0
        %1786 = vmatprep.subr.bf16.mxu0 0
        %1787 = vmatpush1.bf16.msra.mxu0 0
        %1788 = vmatprep.subr.bf16.mxu0 0
        %1789 = vmatpush1.bf16.msra.mxu0 0
        %1790 = vmatprep.subr.bf16.mxu0 0
        %1791 = vmatpush1.bf16.msra.mxu0 0
        %1792 = vmatprep.subr.bf16.mxu0 0
        %1793 = vmatpush1.bf16.msra.mxu0 0
        %1794 = vmatprep.subr.bf16.mxu0 0
        %1795 = vmatpush1.bf16.msra.mxu0 0
        %1796 = vmatprep.subr.bf16.mxu0 0
        %1797 = vmatpush1.bf16.msra.mxu0 0
        %1798 = vmatprep.subr.bf16.mxu0 0
        %1799 = vmatpush1.bf16.msra.mxu0 0
        %1800 = vmatprep.subr.bf16.mxu0 0
        %1801 = vmatpush1.bf16.msra.mxu0 %v1775
        %1802 = vmatprep.subr.bf16.mxu0 0
        %1803 = vmatpush2.bf16.msra.mxu0 0
        %1804 = vmatprep.subr.bf16.mxu0 0
        %1805 = vmatpush2.bf16.msra.mxu0 0
        %1806 = vmatprep.subr.bf16.mxu0 0
        %1807 = vmatpush2.bf16.msra.mxu0 0
        %1808 = vmatprep.subr.bf16.mxu0 0
        %1809 = vmatpush2.bf16.msra.mxu0 0
        %1810 = vmatprep.subr.bf16.mxu0 0
        %1811 = vmatpush2.bf16.msra.mxu0 0
        %1812 = vmatprep.subr.bf16.mxu0 0
        %1813 = vmatpush2.bf16.msra.mxu0 0
        %1814 = vmatprep.subr.bf16.mxu0 0
        %1815 = vmatpush2.bf16.msra.mxu0 0
        %1816 = vmatprep.subr.bf16.mxu0 0
        %1817 = vmatpush2.bf16.msra.mxu0 0
        %1818 = vmatprep.mubr.bf16.mxu0 0
        %1819 = vmatmul.mubr.bf16.gmra.mxu0 %v1778
        %v1820 = vpop.f32.mrf.mxu0
        %v1821 = vadd.f32 0.0, %v1820
        %v1822 = vpop.f32.mrf.mxu0
        %v1823 = vpop.f32.mrf.mxu0
        %v1824 = vadd.f32 0.0, %v1823
        %v1825 = vpop.f32.mrf.mxu0
        %1826 = vmatprep.mubr.bf16.mxu0 0
        %1827 = vmatmul.mubr.bf16.gmra.mxu0 %v1781
        %v1828 = vpop.f32.mrf.mxu0
        %v1829 = vadd.f32 0.0, %v1828
        %v1830 = vpop.f32.mrf.mxu0
        %v1831 = vpop.f32.mrf.mxu0
        %v1832 = vadd.f32 0.0, %v1831
        %v1833 = vpop.f32.mrf.mxu0
        %1834 = vmatprep.mubr.bf16.mxu0 0
        %1835 = vmatmul.mubr.bf16.gmra.mxu0 %v1784
        %v1836 = vpop.f32.mrf.mxu0
        %v1837 = vadd.f32 0.0, %v1836
        %v1838 = vpop.f32.mrf.mxu0
        %v1839 = vpop.f32.mrf.mxu0
        %v1840 = vpop.f32.mrf.mxu0
        %1841 = vdwg.mxu0
        %v1842 = vld [vmem:[%s178] sm:$0xff]
        %v1843 = vld [vmem:[%s178 + $0x8] sm:$0xff]
        %v1844 = vld [vmem:[%s178 + $0x10] sm:$0xff]
        %v1845 = vld [vmem:[%s178 + $0x18] sm:$0xff]
        %v1846 = vld [vmem:[%s178 + $0x20] sm:$0xff]
        %v1847 = vadd.f32 %v1842, %v1821
        %v1848 = vadd.f32 %v1843, %v1824
        %v1849 = vadd.f32 %v1844, %v1829
        %v1850 = vadd.f32 %v1845, %v1832
        %v1851 = vadd.f32 %v1846, %v1837
        %1852 = vst [vmem:[%s178] sm:$0xff] %v1847
        %1853 = vst [vmem:[%s178 + $0x8] sm:$0xff] %v1848
        %1854 = vst [vmem:[%s178 + $0x10] sm:$0xff] %v1849
        %1855 = vst [vmem:[%s178 + $0x18] sm:$0xff] %v1850
        %1856 = vst [vmem:[%s178 + $0x20] sm:$0xff] %v1851
        %v1857 = vld [vmem:[%s183 + $0x48] sm:$0xe]
        %v1858 = vld [vmem:[%s183 + $0x4c] sm:$0xf]
        %v1859 = vld [vmem:[%s183 + $0x50] sm:$0xf]
        %v1860 = vld [vmem:[%s183 + $0x54] sm:$0xf]
        %v1861 = vld [vmem:[%s183 + $0x58] sm:$0xf]
        %v1862 = vld [vmem:[%s183 + $0x5c] sm:$0x3]
        %v1863 = vld [vmem:[#allocation2 + $0x70] sm:$0xf]
        %v1864 = vld [vmem:[#allocation2 + $0x74] sm:$0xf]
        %v1871 = vunpack.c.l.b16 %v1857
        %v1872 = vunpack.c.l.b16 %v1858
        %v1873 = vunpack.c.l.b16 %v1859
        %v1874 = vunpack.c.l.b16 %v1860
        %v1875 = vunpack.c.l.b16 %v1861
        %v1876 = vunpack.c.l.b16 %v1862
        %v1877 = vpack.c.b16 %v1872, %v1871
        %v1878 = vpack.c.b16 %v1874, %v1873
        %v1879 = vpack.c.b16 %v1876, %v1875
        %v1881 = vshrl.u32 %v1877, 16
        %v1883 = vrot.slane %v1881, 1
        %v1884 = vshll.u32 %v1877, 16
        %v1886 = vrot.slane %v1884, 2
        %v1887 = vor.u32 %v1883, %v1886
        %v1889 = vshrl.u32 %v1878, 16
        %v1891 = vrot.slane %v1889, 1
        %v1892 = vshll.u32 %v1878, 16
        %v1894 = vrot.slane %v1892, 2
        %v1895 = vor.u32 %v1891, %v1894
        %v1896 = vsel %vm905, %v1887, %v1895
        %v1898 = vshrl.u32 %v1879, 16
        %v1900 = vrot.slane %v1898, 1
        %v1901 = vshll.u32 %v1879, 16
        %v1903 = vrot.slane %v1901, 2
        %v1904 = vor.u32 %v1900, %v1903
        %v1905 = vsel %vm905, %v1895, %v1904
        %v1908 = vunpack.c.l.b16 %v1863
        %v1909 = vunpack.c.l.b16 %v1864
        %v1910 = vpack.c.b16 %v1909, %v1908
        %v1913 = vsel %vm211, %v1896, 0
        %v1916 = vsel %vm211, %v1905, 0
        %v1919 = vsel %vm211, %v1904, 0
        %1921 = vmatprep.subr.bf16.mxu0 0
        %1922 = vmatpush1.bf16.msra.mxu0 0
        %1923 = vmatprep.subr.bf16.mxu0 0
        %1924 = vmatpush1.bf16.msra.mxu0 0
        %1925 = vmatprep.subr.bf16.mxu0 0
        %1926 = vmatpush1.bf16.msra.mxu0 0
        %1927 = vmatprep.subr.bf16.mxu0 0
        %1928 = vmatpush1.bf16.msra.mxu0 0
        %1929 = vmatprep.subr.bf16.mxu0 0
        %1930 = vmatpush1.bf16.msra.mxu0 0
        %1931 = vmatprep.subr.bf16.mxu0 0
        %1932 = vmatpush1.bf16.msra.mxu0 0
        %1933 = vmatprep.subr.bf16.mxu0 0
        %1934 = vmatpush1.bf16.msra.mxu0 0
        %1935 = vmatprep.subr.bf16.mxu0 0
        %1936 = vmatpush1.bf16.msra.mxu0 %v1910
        %1937 = vmatprep.subr.bf16.mxu0 0
        %1938 = vmatpush2.bf16.msra.mxu0 0
        %1939 = vmatprep.subr.bf16.mxu0 0
        %1940 = vmatpush2.bf16.msra.mxu0 0
        %1941 = vmatprep.subr.bf16.mxu0 0
        %1942 = vmatpush2.bf16.msra.mxu0 0
        %1943 = vmatprep.subr.bf16.mxu0 0
        %1944 = vmatpush2.bf16.msra.mxu0 0
        %1945 = vmatprep.subr.bf16.mxu0 0
        %1946 = vmatpush2.bf16.msra.mxu0 0
        %1947 = vmatprep.subr.bf16.mxu0 0
        %1948 = vmatpush2.bf16.msra.mxu0 0
        %1949 = vmatprep.subr.bf16.mxu0 0
        %1950 = vmatpush2.bf16.msra.mxu0 0
        %1951 = vmatprep.subr.bf16.mxu0 0
        %1952 = vmatpush2.bf16.msra.mxu0 0
        %1953 = vmatprep.mubr.bf16.mxu0 0
        %1954 = vmatmul.mubr.bf16.gmra.mxu0 %v1913
        %v1955 = vpop.f32.mrf.mxu0
        %v1956 = vadd.f32 0.0, %v1955
        %v1957 = vpop.f32.mrf.mxu0
        %v1958 = vpop.f32.mrf.mxu0
        %v1959 = vadd.f32 0.0, %v1958
        %v1960 = vpop.f32.mrf.mxu0
        %1961 = vmatprep.mubr.bf16.mxu0 0
        %1962 = vmatmul.mubr.bf16.gmra.mxu0 %v1916
        %v1963 = vpop.f32.mrf.mxu0
        %v1964 = vadd.f32 0.0, %v1963
        %v1965 = vpop.f32.mrf.mxu0
        %v1966 = vpop.f32.mrf.mxu0
        %v1967 = vadd.f32 0.0, %v1966
        %v1968 = vpop.f32.mrf.mxu0
        %1969 = vmatprep.mubr.bf16.mxu0 0
        %1970 = vmatmul.mubr.bf16.gmra.mxu0 %v1919
        %v1971 = vpop.f32.mrf.mxu0
        %v1972 = vadd.f32 0.0, %v1971
        %v1973 = vpop.f32.mrf.mxu0
        %v1974 = vpop.f32.mrf.mxu0
        %v1975 = vpop.f32.mrf.mxu0
        %1976 = vdwg.mxu0
        %v1977 = vld [vmem:[%s178] sm:$0xff]
        %v1978 = vld [vmem:[%s178 + $0x8] sm:$0xff]
        %v1979 = vld [vmem:[%s178 + $0x10] sm:$0xff]
        %v1980 = vld [vmem:[%s178 + $0x18] sm:$0xff]
        %v1981 = vld [vmem:[%s178 + $0x20] sm:$0xff]
        %v1982 = vadd.f32 %v1977, %v1956
        %v1983 = vadd.f32 %v1978, %v1959
        %v1984 = vadd.f32 %v1979, %v1964
        %v1985 = vadd.f32 %v1980, %v1967
        %v1986 = vadd.f32 %v1981, %v1972
        %1987 = vst [vmem:[%s178] sm:$0xff] %v1982
        %1988 = vst [vmem:[%s178 + $0x8] sm:$0xff] %v1983
        %1989 = vst [vmem:[%s178 + $0x10] sm:$0xff] %v1984
        %1990 = vst [vmem:[%s178 + $0x18] sm:$0xff] %v1985
        %1991 = vst [vmem:[%s178 + $0x20] sm:$0xff] %v1986
        %v1992 = vld [vmem:[%s183 + $0x6c] sm:$0xe]
        %v1993 = vld [vmem:[%s183 + $0x70] sm:$0xf]
        %v1994 = vld [vmem:[%s183 + $0x74] sm:$0xf]
        %v1995 = vld [vmem:[%s183 + $0x78] sm:$0xf]
        %v1996 = vld [vmem:[%s183 + $0x7c] sm:$0xf]
        %v1997 = vld [vmem:[%s183 + $0x80] sm:$0x3]
        %v1998 = vld [vmem:[#allocation2 + $0x78] sm:$0xf]
        %v1999 = vld [vmem:[#allocation2 + $0x7c] sm:$0xf]
        %v2006 = vunpack.c.l.b16 %v1992
        %v2007 = vunpack.c.l.b16 %v1993
        %v2008 = vunpack.c.l.b16 %v1994
        %v2009 = vunpack.c.l.b16 %v1995
        %v2010 = vunpack.c.l.b16 %v1996
        %v2011 = vunpack.c.l.b16 %v1997
        %v2012 = vpack.c.b16 %v2007, %v2006
        %v2013 = vpack.c.b16 %v2009, %v2008
        %v2014 = vpack.c.b16 %v2011, %v2010
        %v2016 = vshrl.u32 %v2012, 16
        %v2018 = vrot.slane %v2016, 1
        %v2019 = vshll.u32 %v2012, 16
        %v2021 = vrot.slane %v2019, 2
        %v2022 = vor.u32 %v2018, %v2021
        %v2024 = vshrl.u32 %v2013, 16
        %v2026 = vrot.slane %v2024, 1
        %v2027 = vshll.u32 %v2013, 16
        %v2029 = vrot.slane %v2027, 2
        %v2030 = vor.u32 %v2026, %v2029
        %v2031 = vsel %vm905, %v2022, %v2030
        %v2033 = vshrl.u32 %v2014, 16
        %v2035 = vrot.slane %v2033, 1
        %v2036 = vshll.u32 %v2014, 16
        %v2038 = vrot.slane %v2036, 2
        %v2039 = vor.u32 %v2035, %v2038
        %v2040 = vsel %vm905, %v2030, %v2039
        %v2043 = vunpack.c.l.b16 %v1998
        %v2044 = vunpack.c.l.b16 %v1999
        %v2045 = vpack.c.b16 %v2044, %v2043
        %v2048 = vsel %vm211, %v2031, 0
        %v2051 = vsel %vm211, %v2040, 0
        %v2054 = vsel %vm211, %v2039, 0
        %2056 = vmatprep.subr.bf16.mxu0 0
        %2057 = vmatpush1.bf16.msra.mxu0 0
        %2058 = vmatprep.subr.bf16.mxu0 0
        %2059 = vmatpush1.bf16.msra.mxu0 0
        %2060 = vmatprep.subr.bf16.mxu0 0
        %2061 = vmatpush1.bf16.msra.mxu0 0
        %2062 = vmatprep.subr.bf16.mxu0 0
        %2063 = vmatpush1.bf16.msra.mxu0 0
        %2064 = vmatprep.subr.bf16.mxu0 0
        %2065 = vmatpush1.bf16.msra.mxu0 0
        %2066 = vmatprep.subr.bf16.mxu0 0
        %2067 = vmatpush1.bf16.msra.mxu0 0
        %2068 = vmatprep.subr.bf16.mxu0 0
        %2069 = vmatpush1.bf16.msra.mxu0 0
        %2070 = vmatprep.subr.bf16.mxu0 0
        %2071 = vmatpush1.bf16.msra.mxu0 %v2045
        %2072 = vmatprep.subr.bf16.mxu0 0
        %2073 = vmatpush2.bf16.msra.mxu0 0
        %2074 = vmatprep.subr.bf16.mxu0 0
        %2075 = vmatpush2.bf16.msra.mxu0 0
        %2076 = vmatprep.subr.bf16.mxu0 0
        %2077 = vmatpush2.bf16.msra.mxu0 0
        %2078 = vmatprep.subr.bf16.mxu0 0
        %2079 = vmatpush2.bf16.msra.mxu0 0
        %2080 = vmatprep.subr.bf16.mxu0 0
        %2081 = vmatpush2.bf16.msra.mxu0 0
        %2082 = vmatprep.subr.bf16.mxu0 0
        %2083 = vmatpush2.bf16.msra.mxu0 0
        %2084 = vmatprep.subr.bf16.mxu0 0
        %2085 = vmatpush2.bf16.msra.mxu0 0
        %2086 = vmatprep.subr.bf16.mxu0 0
        %2087 = vmatpush2.bf16.msra.mxu0 0
        %2088 = vmatprep.mubr.bf16.mxu0 0
        %2089 = vmatmul.mubr.bf16.gmra.mxu0 %v2048
        %v2090 = vpop.f32.mrf.mxu0
        %v2091 = vadd.f32 0.0, %v2090
        %v2092 = vpop.f32.mrf.mxu0
        %v2093 = vpop.f32.mrf.mxu0
        %v2094 = vadd.f32 0.0, %v2093
        %v2095 = vpop.f32.mrf.mxu0
        %2096 = vmatprep.mubr.bf16.mxu0 0
        %2097 = vmatmul.mubr.bf16.gmra.mxu0 %v2051
        %v2098 = vpop.f32.mrf.mxu0
        %v2099 = vadd.f32 0.0, %v2098
        %v2100 = vpop.f32.mrf.mxu0
        %v2101 = vpop.f32.mrf.mxu0
        %v2102 = vadd.f32 0.0, %v2101
        %v2103 = vpop.f32.mrf.mxu0
        %2104 = vmatprep.mubr.bf16.mxu0 0
        %2105 = vmatmul.mubr.bf16.gmra.mxu0 %v2054
        %v2106 = vpop.f32.mrf.mxu0
        %v2107 = vadd.f32 0.0, %v2106
        %v2108 = vpop.f32.mrf.mxu0
        %v2109 = vpop.f32.mrf.mxu0
        %v2110 = vpop.f32.mrf.mxu0
        %2111 = vdwg.mxu0
        %v2112 = vld [vmem:[%s178] sm:$0xff]
        %v2113 = vld [vmem:[%s178 + $0x8] sm:$0xff]
        %v2114 = vld [vmem:[%s178 + $0x10] sm:$0xff]
        %v2115 = vld [vmem:[%s178 + $0x18] sm:$0xff]
        %v2116 = vld [vmem:[%s178 + $0x20] sm:$0xff]
        %v2117 = vadd.f32 %v2112, %v2091
        %v2118 = vadd.f32 %v2113, %v2094
        %v2119 = vadd.f32 %v2114, %v2099
        %v2120 = vadd.f32 %v2115, %v2102
        %v2121 = vadd.f32 %v2116, %v2107
        %2122 = vst [vmem:[%s178] sm:$0xff] %v2117
        %2123 = vst [vmem:[%s178 + $0x8] sm:$0xff] %v2118
        %2124 = vst [vmem:[%s178 + $0x10] sm:$0xff] %v2119
        %2125 = vst [vmem:[%s178 + $0x18] sm:$0xff] %v2120
        %2126 = vst [vmem:[%s178 + $0x20] sm:$0xff] %v2121
        %v2127 = vld [vmem:[%s183 + $0x4] sm:$0xf]
        %v2128 = vld [vmem:[%s183 + $0x8] sm:$0xf]
        %v2129 = vld [vmem:[%s183 + $0xc] sm:$0xf]
        %v2130 = vld [vmem:[%s183 + $0x10] sm:$0xf]
        %v2131 = vld [vmem:[%s183 + $0x14] sm:$0xf]
        %v2132 = vld [vmem:[#allocation2 + $0x80] sm:$0xf]
        %v2133 = vld [vmem:[#allocation2 + $0x84] sm:$0xf]
        %v2139 = vunpack.c.l.b16 %v2127
        %v2140 = vunpack.c.l.b16 %v2128
        %v2141 = vunpack.c.l.b16 %v2129
        %v2142 = vunpack.c.l.b16 %v2130
        %v2143 = vunpack.c.l.b16 %v2131
        %v2144 = vpack.c.b16 %v2140, %v2139
        %v2145 = vpack.c.b16 %v2142, %v2141
        %v2146 = vpack.c.b16 %v2143, %v2143
        %v2149 = vunpack.c.l.b16 %v2132
        %v2150 = vunpack.c.l.b16 %v2133
        %v2151 = vpack.c.b16 %v2150, %v2149
        %v2154 = vsel %vm211, %v2144, 0
        %v2157 = vsel %vm211, %v2145, 0
        %v2160 = vsel %vm211, %v2146, 0
        %2162 = vmatprep.subr.bf16.mxu0 0
        %2163 = vmatpush1.bf16.msra.mxu0 0
        %2164 = vmatprep.subr.bf16.mxu0 0
        %2165 = vmatpush1.bf16.msra.mxu0 0
        %2166 = vmatprep.subr.bf16.mxu0 0
        %2167 = vmatpush1.bf16.msra.mxu0 0
        %2168 = vmatprep.subr.bf16.mxu0 0
        %2169 = vmatpush1.bf16.msra.mxu0 0
        %2170 = vmatprep.subr.bf16.mxu0 0
        %2171 = vmatpush1.bf16.msra.mxu0 0
        %2172 = vmatprep.subr.bf16.mxu0 0
        %2173 = vmatpush1.bf16.msra.mxu0 0
        %2174 = vmatprep.subr.bf16.mxu0 0
        %2175 = vmatpush1.bf16.msra.mxu0 0
        %2176 = vmatprep.subr.bf16.mxu0 0
        %2177 = vmatpush1.bf16.msra.mxu0 %v2151
        %2178 = vmatprep.subr.bf16.mxu0 0
        %2179 = vmatpush2.bf16.msra.mxu0 0
        %2180 = vmatprep.subr.bf16.mxu0 0
        %2181 = vmatpush2.bf16.msra.mxu0 0
        %2182 = vmatprep.subr.bf16.mxu0 0
        %2183 = vmatpush2.bf16.msra.mxu0 0
        %2184 = vmatprep.subr.bf16.mxu0 0
        %2185 = vmatpush2.bf16.msra.mxu0 0
        %2186 = vmatprep.subr.bf16.mxu0 0
        %2187 = vmatpush2.bf16.msra.mxu0 0
        %2188 = vmatprep.subr.bf16.mxu0 0
        %2189 = vmatpush2.bf16.msra.mxu0 0
        %2190 = vmatprep.subr.bf16.mxu0 0
        %2191 = vmatpush2.bf16.msra.mxu0 0
        %2192 = vmatprep.subr.bf16.mxu0 0
        %2193 = vmatpush2.bf16.msra.mxu0 0
        %2194 = vmatprep.mubr.bf16.mxu0 0
        %2195 = vmatmul.mubr.bf16.gmra.mxu0 %v2154
        %v2196 = vpop.f32.mrf.mxu0
        %v2197 = vadd.f32 0.0, %v2196
        %v2198 = vpop.f32.mrf.mxu0
        %v2199 = vpop.f32.mrf.mxu0
        %v2200 = vadd.f32 0.0, %v2199
        %v2201 = vpop.f32.mrf.mxu0
        %2202 = vmatprep.mubr.bf16.mxu0 0
        %2203 = vmatmul.mubr.bf16.gmra.mxu0 %v2157
        %v2204 = vpop.f32.mrf.mxu0
        %v2205 = vadd.f32 0.0, %v2204
        %v2206 = vpop.f32.mrf.mxu0
        %v2207 = vpop.f32.mrf.mxu0
        %v2208 = vadd.f32 0.0, %v2207
        %v2209 = vpop.f32.mrf.mxu0
        %2210 = vmatprep.mubr.bf16.mxu0 0
        %2211 = vmatmul.mubr.bf16.gmra.mxu0 %v2160
        %v2212 = vpop.f32.mrf.mxu0
        %v2213 = vadd.f32 0.0, %v2212
        %v2214 = vpop.f32.mrf.mxu0
        %v2215 = vpop.f32.mrf.mxu0
        %v2216 = vpop.f32.mrf.mxu0
        %2217 = vdwg.mxu0
        %v2218 = vld [vmem:[%s178] sm:$0xff]
        %v2219 = vld [vmem:[%s178 + $0x8] sm:$0xff]
        %v2220 = vld [vmem:[%s178 + $0x10] sm:$0xff]
        %v2221 = vld [vmem:[%s178 + $0x18] sm:$0xff]
        %v2222 = vld [vmem:[%s178 + $0x20] sm:$0xff]
        %v2223 = vadd.f32 %v2218, %v2197
        %v2224 = vadd.f32 %v2219, %v2200
        %v2225 = vadd.f32 %v2220, %v2205
        %v2226 = vadd.f32 %v2221, %v2208
        %v2227 = vadd.f32 %v2222, %v2213
        %2228 = vst [vmem:[%s178] sm:$0xff] %v2223
        %2229 = vst [vmem:[%s178 + $0x8] sm:$0xff] %v2224
        %2230 = vst [vmem:[%s178 + $0x10] sm:$0xff] %v2225
        %2231 = vst [vmem:[%s178 + $0x18] sm:$0xff] %v2226
        %2232 = vst [vmem:[%s178 + $0x20] sm:$0xff] %v2227
        %v2233 = vld [vmem:[%s183 + $0x28] sm:$0xf]
        %v2234 = vld [vmem:[%s183 + $0x2c] sm:$0xf]
        %v2235 = vld [vmem:[%s183 + $0x30] sm:$0xf]
        %v2236 = vld [vmem:[%s183 + $0x34] sm:$0xf]
        %v2237 = vld [vmem:[%s183 + $0x38] sm:$0xf]
        %v2238 = vld [vmem:[#allocation2 + $0x88] sm:$0xf]
        %v2239 = vld [vmem:[#allocation2 + $0x8c] sm:$0xf]
        %v2245 = vunpack.c.l.b16 %v2233
        %v2246 = vunpack.c.l.b16 %v2234
        %v2247 = vunpack.c.l.b16 %v2235
        %v2248 = vunpack.c.l.b16 %v2236
        %v2249 = vunpack.c.l.b16 %v2237
        %v2250 = vpack.c.b16 %v2246, %v2245
        %v2251 = vpack.c.b16 %v2248, %v2247
        %v2252 = vpack.c.b16 %v2249, %v2249
        %v2255 = vunpack.c.l.b16 %v2238
        %v2256 = vunpack.c.l.b16 %v2239
        %v2257 = vpack.c.b16 %v2256, %v2255
        %v2260 = vsel %vm211, %v2250, 0
        %v2263 = vsel %vm211, %v2251, 0
        %v2266 = vsel %vm211, %v2252, 0
        %2268 = vmatprep.subr.bf16.mxu0 0
        %2269 = vmatpush1.bf16.msra.mxu0 0
        %2270 = vmatprep.subr.bf16.mxu0 0
        %2271 = vmatpush1.bf16.msra.mxu0 0
        %2272 = vmatprep.subr.bf16.mxu0 0
        %2273 = vmatpush1.bf16.msra.mxu0 0
        %2274 = vmatprep.subr.bf16.mxu0 0
        %2275 = vmatpush1.bf16.msra.mxu0 0
        %2276 = vmatprep.subr.bf16.mxu0 0
        %2277 = vmatpush1.bf16.msra.mxu0 0
        %2278 = vmatprep.subr.bf16.mxu0 0
        %2279 = vmatpush1.bf16.msra.mxu0 0
        %2280 = vmatprep.subr.bf16.mxu0 0
        %2281 = vmatpush1.bf16.msra.mxu0 0
        %2282 = vmatprep.subr.bf16.mxu0 0
        %2283 = vmatpush1.bf16.msra.mxu0 %v2257
        %2284 = vmatprep.subr.bf16.mxu0 0
        %2285 = vmatpush2.bf16.msra.mxu0 0
        %2286 = vmatprep.subr.bf16.mxu0 0
        %2287 = vmatpush2.bf16.msra.mxu0 0
        %2288 = vmatprep.subr.bf16.mxu0 0
        %2289 = vmatpush2.bf16.msra.mxu0 0
        %2290 = vmatprep.subr.bf16.mxu0 0
        %2291 = vmatpush2.bf16.msra.mxu0 0
        %2292 = vmatprep.subr.bf16.mxu0 0
        %2293 = vmatpush2.bf16.msra.mxu0 0
        %2294 = vmatprep.subr.bf16.mxu0 0
        %2295 = vmatpush2.bf16.msra.mxu0 0
        %2296 = vmatprep.subr.bf16.mxu0 0
        %2297 = vmatpush2.bf16.msra.mxu0 0
        %2298 = vmatprep.subr.bf16.mxu0 0
        %2299 = vmatpush2.bf16.msra.mxu0 0
        %2300 = vmatprep.mubr.bf16.mxu0 0
        %2301 = vmatmul.mubr.bf16.gmra.mxu0 %v2260
        %v2302 = vpop.f32.mrf.mxu0
        %v2303 = vadd.f32 0.0, %v2302
        %v2304 = vpop.f32.mrf.mxu0
        %v2305 = vpop.f32.mrf.mxu0
        %v2306 = vadd.f32 0.0, %v2305
        %v2307 = vpop.f32.mrf.mxu0
        %2308 = vmatprep.mubr.bf16.mxu0 0
        %2309 = vmatmul.mubr.bf16.gmra.mxu0 %v2263
        %v2310 = vpop.f32.mrf.mxu0
        %v2311 = vadd.f32 0.0, %v2310
        %v2312 = vpop.f32.mrf.mxu0
        %v2313 = vpop.f32.mrf.mxu0
        %v2314 = vadd.f32 0.0, %v2313
        %v2315 = vpop.f32.mrf.mxu0
        %2316 = vmatprep.mubr.bf16.mxu0 0
        %2317 = vmatmul.mubr.bf16.gmra.mxu0 %v2266
        %v2318 = vpop.f32.mrf.mxu0
        %v2319 = vadd.f32 0.0, %v2318
        %v2320 = vpop.f32.mrf.mxu0
        %v2321 = vpop.f32.mrf.mxu0
        %v2322 = vpop.f32.mrf.mxu0
        %2323 = vdwg.mxu0
        %v2324 = vld [vmem:[%s178] sm:$0xff]
        %v2325 = vld [vmem:[%s178 + $0x8] sm:$0xff]
        %v2326 = vld [vmem:[%s178 + $0x10] sm:$0xff]
        %v2327 = vld [vmem:[%s178 + $0x18] sm:$0xff]
        %v2328 = vld [vmem:[%s178 + $0x20] sm:$0xff]
        %v2329 = vadd.f32 %v2324, %v2303
        %v2330 = vadd.f32 %v2325, %v2306
        %v2331 = vadd.f32 %v2326, %v2311
        %v2332 = vadd.f32 %v2327, %v2314
        %v2333 = vadd.f32 %v2328, %v2319
        %2334 = vst [vmem:[%s178] sm:$0xff] %v2329
        %2335 = vst [vmem:[%s178 + $0x8] sm:$0xff] %v2330
        %2336 = vst [vmem:[%s178 + $0x10] sm:$0xff] %v2331
        %2337 = vst [vmem:[%s178 + $0x18] sm:$0xff] %v2332
        %2338 = vst [vmem:[%s178 + $0x20] sm:$0xff] %v2333
        %v2339 = vld [vmem:[%s183 + $0x4] sm:$0xf]
        %v2340 = vld [vmem:[%s183 + $0x8] sm:$0xf]
        %v2341 = vld [vmem:[%s183 + $0xc] sm:$0xf]
        %v2342 = vld [vmem:[%s183 + $0x10] sm:$0xf]
        %v2343 = vld [vmem:[%s183 + $0x14] sm:$0xf]
        %v2344 = vld [vmem:[%s183 + $0x18] sm:$0x1]
        %v2345 = vld [vmem:[#allocation2 + $0x90] sm:$0xf]
        %v2346 = vld [vmem:[#allocation2 + $0x94] sm:$0xf]
        %v2353 = vunpack.c.l.b16 %v2339
        %v2354 = vunpack.c.l.b16 %v2340
        %v2355 = vunpack.c.l.b16 %v2341
        %v2356 = vunpack.c.l.b16 %v2342
        %v2357 = vunpack.c.l.b16 %v2343
        %v2358 = vunpack.c.l.b16 %v2344
        %v2359 = vpack.c.b16 %v2354, %v2353
        %v2360 = vpack.c.b16 %v2356, %v2355
        %v2361 = vpack.c.b16 %v2358, %v2357
        %v2363 = vshrl.u32 %v2359, 16
        %v2365 = vshll.u32 %v2359, 16
        %v2367 = vrot.slane %v2365, 1
        %v2368 = vor.u32 %v2363, %v2367
        %v2370 = vshll.u32 %v2360, 16
        %v2372 = vrot.slane %v2370, 1
        %v2373 = vsel %vm411, %v2368, %v2372
        %v2374 = vshrl.u32 %v2360, 16
        %v2376 = vor.u32 %v2374, %v2372
        %v2378 = vshll.u32 %v2361, 16
        %v2380 = vrot.slane %v2378, 1
        %v2381 = vsel %vm411, %v2376, %v2380
        %v2382 = vshrl.u32 %v2361, 16
        %v2384 = vor.u32 %v2382, %v2380
        %v2387 = vunpack.c.l.b16 %v2345
        %v2388 = vunpack.c.l.b16 %v2346
        %v2389 = vpack.c.b16 %v2388, %v2387
        %v2392 = vsel %vm211, %v2373, 0
        %v2395 = vsel %vm211, %v2381, 0
        %v2398 = vsel %vm211, %v2384, 0
        %2400 = vmatprep.subr.bf16.mxu0 0
        %2401 = vmatpush1.bf16.msra.mxu0 0
        %2402 = vmatprep.subr.bf16.mxu0 0
        %2403 = vmatpush1.bf16.msra.mxu0 0
        %2404 = vmatprep.subr.bf16.mxu0 0
        %2405 = vmatpush1.bf16.msra.mxu0 0
        %2406 = vmatprep.subr.bf16.mxu0 0
        %2407 = vmatpush1.bf16.msra.mxu0 0
        %2408 = vmatprep.subr.bf16.mxu0 0
        %2409 = vmatpush1.bf16.msra.mxu0 0
        %2410 = vmatprep.subr.bf16.mxu0 0
        %2411 = vmatpush1.bf16.msra.mxu0 0
        %2412 = vmatprep.subr.bf16.mxu0 0
        %2413 = vmatpush1.bf16.msra.mxu0 0
        %2414 = vmatprep.subr.bf16.mxu0 0
        %2415 = vmatpush1.bf16.msra.mxu0 %v2389
        %2416 = vmatprep.subr.bf16.mxu0 0
        %2417 = vmatpush2.bf16.msra.mxu0 0
        %2418 = vmatprep.subr.bf16.mxu0 0
        %2419 = vmatpush2.bf16.msra.mxu0 0
        %2420 = vmatprep.subr.bf16.mxu0 0
        %2421 = vmatpush2.bf16.msra.mxu0 0
        %2422 = vmatprep.subr.bf16.mxu0 0
        %2423 = vmatpush2.bf16.msra.mxu0 0
        %2424 = vmatprep.subr.bf16.mxu0 0
        %2425 = vmatpush2.bf16.msra.mxu0 0
        %2426 = vmatprep.subr.bf16.mxu0 0
        %2427 = vmatpush2.bf16.msra.mxu0 0
        %2428 = vmatprep.subr.bf16.mxu0 0
        %2429 = vmatpush2.bf16.msra.mxu0 0
        %2430 = vmatprep.subr.bf16.mxu0 0
        %2431 = vmatpush2.bf16.msra.mxu0 0
        %2432 = vmatprep.mubr.bf16.mxu0 0
        %2433 = vmatmul.mubr.bf16.gmra.mxu0 %v2392
        %v2434 = vpop.f32.mrf.mxu0
        %v2435 = vadd.f32 0.0, %v2434
        %v2436 = vpop.f32.mrf.mxu0
        %v2437 = vpop.f32.mrf.mxu0
        %v2438 = vadd.f32 0.0, %v2437
        %v2439 = vpop.f32.mrf.mxu0
        %2440 = vmatprep.mubr.bf16.mxu0 0
        %2441 = vmatmul.mubr.bf16.gmra.mxu0 %v2395
        %v2442 = vpop.f32.mrf.mxu0
        %v2443 = vadd.f32 0.0, %v2442
        %v2444 = vpop.f32.mrf.mxu0
        %v2445 = vpop.f32.mrf.mxu0
        %v2446 = vadd.f32 0.0, %v2445
        %v2447 = vpop.f32.mrf.mxu0
        %2448 = vmatprep.mubr.bf16.mxu0 0
        %2449 = vmatmul.mubr.bf16.gmra.mxu0 %v2398
        %v2450 = vpop.f32.mrf.mxu0
        %v2451 = vadd.f32 0.0, %v2450
        %v2452 = vpop.f32.mrf.mxu0
        %v2453 = vpop.f32.mrf.mxu0
        %v2454 = vpop.f32.mrf.mxu0
        %2455 = vdwg.mxu0
        %v2456 = vld [vmem:[%s178] sm:$0xff]
        %v2457 = vld [vmem:[%s178 + $0x8] sm:$0xff]
        %v2458 = vld [vmem:[%s178 + $0x10] sm:$0xff]
        %v2459 = vld [vmem:[%s178 + $0x18] sm:$0xff]
        %v2460 = vld [vmem:[%s178 + $0x20] sm:$0xff]
        %v2461 = vadd.f32 %v2456, %v2435
        %v2462 = vadd.f32 %v2457, %v2438
        %v2463 = vadd.f32 %v2458, %v2443
        %v2464 = vadd.f32 %v2459, %v2446
        %v2465 = vadd.f32 %v2460, %v2451
        %2466 = vst [vmem:[%s178] sm:$0xff] %v2461
        %2467 = vst [vmem:[%s178 + $0x8] sm:$0xff] %v2462
        %2468 = vst [vmem:[%s178 + $0x10] sm:$0xff] %v2463
        %2469 = vst [vmem:[%s178 + $0x18] sm:$0xff] %v2464
        %2470 = vst [vmem:[%s178 + $0x20] sm:$0xff] %v2465
        %v2471 = vld [vmem:[%s183 + $0x28] sm:$0xf]
        %v2472 = vld [vmem:[%s183 + $0x2c] sm:$0xf]
        %v2473 = vld [vmem:[%s183 + $0x30] sm:$0xf]
        %v2474 = vld [vmem:[%s183 + $0x34] sm:$0xf]
        %v2475 = vld [vmem:[%s183 + $0x38] sm:$0xf]
        %v2476 = vld [vmem:[%s183 + $0x3c] sm:$0x1]
        %v2477 = vld [vmem:[#allocation2 + $0x98] sm:$0xf]
        %v2478 = vld [vmem:[#allocation2 + $0x9c] sm:$0xf]
        %v2485 = vunpack.c.l.b16 %v2471
        %v2486 = vunpack.c.l.b16 %v2472
        %v2487 = vunpack.c.l.b16 %v2473
        %v2488 = vunpack.c.l.b16 %v2474
        %v2489 = vunpack.c.l.b16 %v2475
        %v2490 = vunpack.c.l.b16 %v2476
        %v2491 = vpack.c.b16 %v2486, %v2485
        %v2492 = vpack.c.b16 %v2488, %v2487
        %v2493 = vpack.c.b16 %v2490, %v2489
        %v2495 = vshrl.u32 %v2491, 16
        %v2497 = vshll.u32 %v2491, 16
        %v2499 = vrot.slane %v2497, 1
        %v2500 = vor.u32 %v2495, %v2499
        %v2502 = vshll.u32 %v2492, 16
        %v2504 = vrot.slane %v2502, 1
        %v2505 = vsel %vm411, %v2500, %v2504
        %v2506 = vshrl.u32 %v2492, 16
        %v2508 = vor.u32 %v2506, %v2504
        %v2510 = vshll.u32 %v2493, 16
        %v2512 = vrot.slane %v2510, 1
        %v2513 = vsel %vm411, %v2508, %v2512
        %v2514 = vshrl.u32 %v2493, 16
        %v2516 = vor.u32 %v2514, %v2512
        %v2519 = vunpack.c.l.b16 %v2477
        %v2520 = vunpack.c.l.b16 %v2478
        %v2521 = vpack.c.b16 %v2520, %v2519
        %v2524 = vsel %vm211, %v2505, 0
        %v2527 = vsel %vm211, %v2513, 0
        %v2530 = vsel %vm211, %v2516, 0
        %2532 = vmatprep.subr.bf16.mxu0 0
        %2533 = vmatpush1.bf16.msra.mxu0 0
        %2534 = vmatprep.subr.bf16.mxu0 0
        %2535 = vmatpush1.bf16.msra.mxu0 0
        %2536 = vmatprep.subr.bf16.mxu0 0
        %2537 = vmatpush1.bf16.msra.mxu0 0
        %2538 = vmatprep.subr.bf16.mxu0 0
        %2539 = vmatpush1.bf16.msra.mxu0 0
        %2540 = vmatprep.subr.bf16.mxu0 0
        %2541 = vmatpush1.bf16.msra.mxu0 0
        %2542 = vmatprep.subr.bf16.mxu0 0
        %2543 = vmatpush1.bf16.msra.mxu0 0
        %2544 = vmatprep.subr.bf16.mxu0 0
        %2545 = vmatpush1.bf16.msra.mxu0 0
        %2546 = vmatprep.subr.bf16.mxu0 0
        %2547 = vmatpush1.bf16.msra.mxu0 %v2521
        %2548 = vmatprep.subr.bf16.mxu0 0
        %2549 = vmatpush2.bf16.msra.mxu0 0
        %2550 = vmatprep.subr.bf16.mxu0 0
        %2551 = vmatpush2.bf16.msra.mxu0 0
        %2552 = vmatprep.subr.bf16.mxu0 0
        %2553 = vmatpush2.bf16.msra.mxu0 0
        %2554 = vmatprep.subr.bf16.mxu0 0
        %2555 = vmatpush2.bf16.msra.mxu0 0
        %2556 = vmatprep.subr.bf16.mxu0 0
        %2557 = vmatpush2.bf16.msra.mxu0 0
        %2558 = vmatprep.subr.bf16.mxu0 0
        %2559 = vmatpush2.bf16.msra.mxu0 0
        %2560 = vmatprep.subr.bf16.mxu0 0
        %2561 = vmatpush2.bf16.msra.mxu0 0
        %2562 = vmatprep.subr.bf16.mxu0 0
        %2563 = vmatpush2.bf16.msra.mxu0 0
        %2564 = vmatprep.mubr.bf16.mxu0 0
        %2565 = vmatmul.mubr.bf16.gmra.mxu0 %v2524
        %v2566 = vpop.f32.mrf.mxu0
        %v2567 = vadd.f32 0.0, %v2566
        %v2568 = vpop.f32.mrf.mxu0
        %v2569 = vpop.f32.mrf.mxu0
        %v2570 = vadd.f32 0.0, %v2569
        %v2571 = vpop.f32.mrf.mxu0
        %2572 = vmatprep.mubr.bf16.mxu0 0
        %2573 = vmatmul.mubr.bf16.gmra.mxu0 %v2527
        %v2574 = vpop.f32.mrf.mxu0
        %v2575 = vadd.f32 0.0, %v2574
        %v2576 = vpop.f32.mrf.mxu0
        %v2577 = vpop.f32.mrf.mxu0
        %v2578 = vadd.f32 0.0, %v2577
        %v2579 = vpop.f32.mrf.mxu0
        %2580 = vmatprep.mubr.bf16.mxu0 0
        %2581 = vmatmul.mubr.bf16.gmra.mxu0 %v2530
        %v2582 = vpop.f32.mrf.mxu0
        %v2583 = vadd.f32 0.0, %v2582
        %v2584 = vpop.f32.mrf.mxu0
        %v2585 = vpop.f32.mrf.mxu0
        %v2586 = vpop.f32.mrf.mxu0
        %2587 = vdwg.mxu0
        %v2588 = vld [vmem:[%s178] sm:$0xff]
        %v2589 = vld [vmem:[%s178 + $0x8] sm:$0xff]
        %v2590 = vld [vmem:[%s178 + $0x10] sm:$0xff]
        %v2591 = vld [vmem:[%s178 + $0x18] sm:$0xff]
        %v2592 = vld [vmem:[%s178 + $0x20] sm:$0xff]
        %v2593 = vadd.f32 %v2588, %v2567
        %v2594 = vadd.f32 %v2589, %v2570
        %v2595 = vadd.f32 %v2590, %v2575
        %v2596 = vadd.f32 %v2591, %v2578
        %v2597 = vadd.f32 %v2592, %v2583
        %2598 = vst [vmem:[%s178] sm:$0xff] %v2593
        %2599 = vst [vmem:[%s178 + $0x8] sm:$0xff] %v2594
        %2600 = vst [vmem:[%s178 + $0x10] sm:$0xff] %v2595
        %2601 = vst [vmem:[%s178 + $0x18] sm:$0xff] %v2596
        %2602 = vst [vmem:[%s178 + $0x20] sm:$0xff] %v2597
        %v2603 = vld [vmem:[%s183 + $0x4] sm:$0xe]
        %v2604 = vld [vmem:[%s183 + $0x8] sm:$0xf]
        %v2605 = vld [vmem:[%s183 + $0xc] sm:$0xf]
        %v2606 = vld [vmem:[%s183 + $0x10] sm:$0xf]
        %v2607 = vld [vmem:[%s183 + $0x14] sm:$0xf]
        %v2608 = vld [vmem:[%s183 + $0x18] sm:$0x1]
        %v2609 = vld [vmem:[#allocation2 + $0xa0] sm:$0xf]
        %v2610 = vld [vmem:[#allocation2 + $0xa4] sm:$0xf]
        %v2617 = vunpack.c.l.b16 %v2603
        %v2618 = vunpack.c.l.b16 %v2604
        %v2619 = vunpack.c.l.b16 %v2605
        %v2620 = vunpack.c.l.b16 %v2606
        %v2621 = vunpack.c.l.b16 %v2607
        %v2622 = vunpack.c.l.b16 %v2608
        %v2623 = vpack.c.b16 %v2618, %v2617
        %v2624 = vpack.c.b16 %v2620, %v2619
        %v2625 = vpack.c.b16 %v2622, %v2621
        %v2626 = vrot.slane %v2623, 1
        %v2627 = vrot.slane %v2624, 1
        %v2628 = vsel %vm676, %v2626, %v2627
        %v2629 = vrot.slane %v2625, 1
        %v2630 = vsel %vm676, %v2627, %v2629
        %v2633 = vunpack.c.l.b16 %v2609
        %v2634 = vunpack.c.l.b16 %v2610
        %v2635 = vpack.c.b16 %v2634, %v2633
        %v2638 = vsel %vm211, %v2628, 0
        %v2641 = vsel %vm211, %v2630, 0
        %v2644 = vsel %vm211, %v2629, 0
        %2646 = vmatprep.subr.bf16.mxu0 0
        %2647 = vmatpush1.bf16.msra.mxu0 0
        %2648 = vmatprep.subr.bf16.mxu0 0
        %2649 = vmatpush1.bf16.msra.mxu0 0
        %2650 = vmatprep.subr.bf16.mxu0 0
        %2651 = vmatpush1.bf16.msra.mxu0 0
        %2652 = vmatprep.subr.bf16.mxu0 0
        %2653 = vmatpush1.bf16.msra.mxu0 0
        %2654 = vmatprep.subr.bf16.mxu0 0
        %2655 = vmatpush1.bf16.msra.mxu0 0
        %2656 = vmatprep.subr.bf16.mxu0 0
        %2657 = vmatpush1.bf16.msra.mxu0 0
        %2658 = vmatprep.subr.bf16.mxu0 0
        %2659 = vmatpush1.bf16.msra.mxu0 0
        %2660 = vmatprep.subr.bf16.mxu0 0
        %2661 = vmatpush1.bf16.msra.mxu0 %v2635
        %2662 = vmatprep.subr.bf16.mxu0 0
        %2663 = vmatpush2.bf16.msra.mxu0 0
        %2664 = vmatprep.subr.bf16.mxu0 0
        %2665 = vmatpush2.bf16.msra.mxu0 0
        %2666 = vmatprep.subr.bf16.mxu0 0
        %2667 = vmatpush2.bf16.msra.mxu0 0
        %2668 = vmatprep.subr.bf16.mxu0 0
        %2669 = vmatpush2.bf16.msra.mxu0 0
        %2670 = vmatprep.subr.bf16.mxu0 0
        %2671 = vmatpush2.bf16.msra.mxu0 0
        %2672 = vmatprep.subr.bf16.mxu0 0
        %2673 = vmatpush2.bf16.msra.mxu0 0
        %2674 = vmatprep.subr.bf16.mxu0 0
        %2675 = vmatpush2.bf16.msra.mxu0 0
        %2676 = vmatprep.subr.bf16.mxu0 0
        %2677 = vmatpush2.bf16.msra.mxu0 0
        %2678 = vmatprep.mubr.bf16.mxu0 0
        %2679 = vmatmul.mubr.bf16.gmra.mxu0 %v2638
        %v2680 = vpop.f32.mrf.mxu0
        %v2681 = vadd.f32 0.0, %v2680
        %v2682 = vpop.f32.mrf.mxu0
        %v2683 = vpop.f32.mrf.mxu0
        %v2684 = vadd.f32 0.0, %v2683
        %v2685 = vpop.f32.mrf.mxu0
        %2686 = vmatprep.mubr.bf16.mxu0 0
        %2687 = vmatmul.mubr.bf16.gmra.mxu0 %v2641
        %v2688 = vpop.f32.mrf.mxu0
        %v2689 = vadd.f32 0.0, %v2688
        %v2690 = vpop.f32.mrf.mxu0
        %v2691 = vpop.f32.mrf.mxu0
        %v2692 = vadd.f32 0.0, %v2691
        %v2693 = vpop.f32.mrf.mxu0
        %2694 = vmatprep.mubr.bf16.mxu0 0
        %2695 = vmatmul.mubr.bf16.gmra.mxu0 %v2644
        %v2696 = vpop.f32.mrf.mxu0
        %v2697 = vadd.f32 0.0, %v2696
        %v2698 = vpop.f32.mrf.mxu0
        %v2699 = vpop.f32.mrf.mxu0
        %v2700 = vpop.f32.mrf.mxu0
        %2701 = vdwg.mxu0
        %v2702 = vld [vmem:[%s178] sm:$0xff]
        %v2703 = vld [vmem:[%s178 + $0x8] sm:$0xff]
        %v2704 = vld [vmem:[%s178 + $0x10] sm:$0xff]
        %v2705 = vld [vmem:[%s178 + $0x18] sm:$0xff]
        %v2706 = vld [vmem:[%s178 + $0x20] sm:$0xff]
        %v2707 = vadd.f32 %v2702, %v2681
        %v2708 = vadd.f32 %v2703, %v2684
        %v2709 = vadd.f32 %v2704, %v2689
        %v2710 = vadd.f32 %v2705, %v2692
        %v2711 = vadd.f32 %v2706, %v2697
        %2712 = vst [vmem:[%s178] sm:$0xff] %v2707
        %2713 = vst [vmem:[%s178 + $0x8] sm:$0xff] %v2708
        %2714 = vst [vmem:[%s178 + $0x10] sm:$0xff] %v2709
        %2715 = vst [vmem:[%s178 + $0x18] sm:$0xff] %v2710
        %2716 = vst [vmem:[%s178 + $0x20] sm:$0xff] %v2711
        %v2717 = vld [vmem:[%s183 + $0x28] sm:$0xe]
        %v2718 = vld [vmem:[%s183 + $0x2c] sm:$0xf]
        %v2719 = vld [vmem:[%s183 + $0x30] sm:$0xf]
        %v2720 = vld [vmem:[%s183 + $0x34] sm:$0xf]
        %v2721 = vld [vmem:[%s183 + $0x38] sm:$0xf]
        %v2722 = vld [vmem:[%s183 + $0x3c] sm:$0x1]
        %v2723 = vld [vmem:[#allocation2 + $0xa8] sm:$0xf]
        %v2724 = vld [vmem:[#allocation2 + $0xac] sm:$0xf]
        %v2731 = vunpack.c.l.b16 %v2717
        %v2732 = vunpack.c.l.b16 %v2718
        %v2733 = vunpack.c.l.b16 %v2719
        %v2734 = vunpack.c.l.b16 %v2720
        %v2735 = vunpack.c.l.b16 %v2721
        %v2736 = vunpack.c.l.b16 %v2722
        %v2737 = vpack.c.b16 %v2732, %v2731
        %v2738 = vpack.c.b16 %v2734, %v2733
        %v2739 = vpack.c.b16 %v2736, %v2735
        %v2740 = vrot.slane %v2737, 1
        %v2741 = vrot.slane %v2738, 1
        %v2742 = vsel %vm676, %v2740, %v2741
        %v2743 = vrot.slane %v2739, 1
        %v2744 = vsel %vm676, %v2741, %v2743
        %v2747 = vunpack.c.l.b16 %v2723
        %v2748 = vunpack.c.l.b16 %v2724
        %v2749 = vpack.c.b16 %v2748, %v2747
        %v2752 = vsel %vm211, %v2742, 0
        %v2755 = vsel %vm211, %v2744, 0
        %v2758 = vsel %vm211, %v2743, 0
        %2760 = vmatprep.subr.bf16.mxu0 0
        %2761 = vmatpush1.bf16.msra.mxu0 0
        %2762 = vmatprep.subr.bf16.mxu0 0
        %2763 = vmatpush1.bf16.msra.mxu0 0
        %2764 = vmatprep.subr.bf16.mxu0 0
        %2765 = vmatpush1.bf16.msra.mxu0 0
        %2766 = vmatprep.subr.bf16.mxu0 0
        %2767 = vmatpush1.bf16.msra.mxu0 0
        %2768 = vmatprep.subr.bf16.mxu0 0
        %2769 = vmatpush1.bf16.msra.mxu0 0
        %2770 = vmatprep.subr.bf16.mxu0 0
        %2771 = vmatpush1.bf16.msra.mxu0 0
        %2772 = vmatprep.subr.bf16.mxu0 0
        %2773 = vmatpush1.bf16.msra.mxu0 0
        %2774 = vmatprep.subr.bf16.mxu0 0
        %2775 = vmatpush1.bf16.msra.mxu0 %v2749
        %2776 = vmatprep.subr.bf16.mxu0 0
        %2777 = vmatpush2.bf16.msra.mxu0 0
        %2778 = vmatprep.subr.bf16.mxu0 0
        %2779 = vmatpush2.bf16.msra.mxu0 0
        %2780 = vmatprep.subr.bf16.mxu0 0
        %2781 = vmatpush2.bf16.msra.mxu0 0
        %2782 = vmatprep.subr.bf16.mxu0 0
        %2783 = vmatpush2.bf16.msra.mxu0 0
        %2784 = vmatprep.subr.bf16.mxu0 0
        %2785 = vmatpush2.bf16.msra.mxu0 0
        %2786 = vmatprep.subr.bf16.mxu0 0
        %2787 = vmatpush2.bf16.msra.mxu0 0
        %2788 = vmatprep.subr.bf16.mxu0 0
        %2789 = vmatpush2.bf16.msra.mxu0 0
        %2790 = vmatprep.subr.bf16.mxu0 0
        %2791 = vmatpush2.bf16.msra.mxu0 0
        %2792 = vmatprep.mubr.bf16.mxu0 0
        %2793 = vmatmul.mubr.bf16.gmra.mxu0 %v2752
        %v2794 = vpop.f32.mrf.mxu0
        %v2795 = vadd.f32 0.0, %v2794
        %v2796 = vpop.f32.mrf.mxu0
        %v2797 = vpop.f32.mrf.mxu0
        %v2798 = vadd.f32 0.0, %v2797
        %v2799 = vpop.f32.mrf.mxu0
        %2800 = vmatprep.mubr.bf16.mxu0 0
        %2801 = vmatmul.mubr.bf16.gmra.mxu0 %v2755
        %v2802 = vpop.f32.mrf.mxu0
        %v2803 = vadd.f32 0.0, %v2802
        %v2804 = vpop.f32.mrf.mxu0
        %v2805 = vpop.f32.mrf.mxu0
        %v2806 = vadd.f32 0.0, %v2805
        %v2807 = vpop.f32.mrf.mxu0
        %2808 = vmatprep.mubr.bf16.mxu0 0
        %2809 = vmatmul.mubr.bf16.gmra.mxu0 %v2758
        %v2810 = vpop.f32.mrf.mxu0
        %v2811 = vadd.f32 0.0, %v2810
        %v2812 = vpop.f32.mrf.mxu0
        %v2813 = vpop.f32.mrf.mxu0
        %v2814 = vpop.f32.mrf.mxu0
        %2815 = vdwg.mxu0
        %v2816 = vld [vmem:[%s178] sm:$0xff]
        %v2817 = vld [vmem:[%s178 + $0x8] sm:$0xff]
        %v2818 = vld [vmem:[%s178 + $0x10] sm:$0xff]
        %v2819 = vld [vmem:[%s178 + $0x18] sm:$0xff]
        %v2820 = vld [vmem:[%s178 + $0x20] sm:$0xff]
        %v2821 = vadd.f32 %v2816, %v2795
        %v2822 = vadd.f32 %v2817, %v2798
        %v2823 = vadd.f32 %v2818, %v2803
        %v2824 = vadd.f32 %v2819, %v2806
        %v2825 = vadd.f32 %v2820, %v2811
        %2826 = vst [vmem:[%s178] sm:$0xff] %v2821
        %2827 = vst [vmem:[%s178 + $0x8] sm:$0xff] %v2822
        %2828 = vst [vmem:[%s178 + $0x10] sm:$0xff] %v2823
        %2829 = vst [vmem:[%s178 + $0x18] sm:$0xff] %v2824
        %2830 = vst [vmem:[%s178 + $0x20] sm:$0xff] %v2825
        %v2831 = vld [vmem:[%s183 + $0x4] sm:$0xe]
        %v2832 = vld [vmem:[%s183 + $0x8] sm:$0xf]
        %v2833 = vld [vmem:[%s183 + $0xc] sm:$0xf]
        %v2834 = vld [vmem:[%s183 + $0x10] sm:$0xf]
        %v2835 = vld [vmem:[%s183 + $0x14] sm:$0xf]
        %v2836 = vld [vmem:[%s183 + $0x18] sm:$0x3]
        %v2837 = vld [vmem:[#allocation2 + $0xb0] sm:$0xf]
        %v2838 = vld [vmem:[#allocation2 + $0xb4] sm:$0xf]
        %v2845 = vunpack.c.l.b16 %v2831
        %v2846 = vunpack.c.l.b16 %v2832
        %v2847 = vunpack.c.l.b16 %v2833
        %v2848 = vunpack.c.l.b16 %v2834
        %v2849 = vunpack.c.l.b16 %v2835
        %v2850 = vunpack.c.l.b16 %v2836
        %v2851 = vpack.c.b16 %v2846, %v2845
        %v2852 = vpack.c.b16 %v2848, %v2847
        %v2853 = vpack.c.b16 %v2850, %v2849
        %v2855 = vshrl.u32 %v2851, 16
        %v2857 = vrot.slane %v2855, 1
        %v2858 = vshll.u32 %v2851, 16
        %v2860 = vrot.slane %v2858, 2
        %v2861 = vor.u32 %v2857, %v2860
        %v2863 = vshrl.u32 %v2852, 16
        %v2865 = vrot.slane %v2863, 1
        %v2866 = vshll.u32 %v2852, 16
        %v2868 = vrot.slane %v2866, 2
        %v2869 = vor.u32 %v2865, %v2868
        %v2870 = vsel %vm905, %v2861, %v2869
        %v2872 = vshrl.u32 %v2853, 16
        %v2874 = vrot.slane %v2872, 1
        %v2875 = vshll.u32 %v2853, 16
        %v2877 = vrot.slane %v2875, 2
        %v2878 = vor.u32 %v2874, %v2877
        %v2879 = vsel %vm905, %v2869, %v2878
        %v2882 = vunpack.c.l.b16 %v2837
        %v2883 = vunpack.c.l.b16 %v2838
        %v2884 = vpack.c.b16 %v2883, %v2882
        %v2887 = vsel %vm211, %v2870, 0
        %v2890 = vsel %vm211, %v2879, 0
        %v2893 = vsel %vm211, %v2878, 0
        %2895 = vmatprep.subr.bf16.mxu0 0
        %2896 = vmatpush1.bf16.msra.mxu0 0
        %2897 = vmatprep.subr.bf16.mxu0 0
        %2898 = vmatpush1.bf16.msra.mxu0 0
        %2899 = vmatprep.subr.bf16.mxu0 0
        %2900 = vmatpush1.bf16.msra.mxu0 0
        %2901 = vmatprep.subr.bf16.mxu0 0
        %2902 = vmatpush1.bf16.msra.mxu0 0
        %2903 = vmatprep.subr.bf16.mxu0 0
        %2904 = vmatpush1.bf16.msra.mxu0 0
        %2905 = vmatprep.subr.bf16.mxu0 0
        %2906 = vmatpush1.bf16.msra.mxu0 0
        %2907 = vmatprep.subr.bf16.mxu0 0
        %2908 = vmatpush1.bf16.msra.mxu0 0
        %2909 = vmatprep.subr.bf16.mxu0 0
        %2910 = vmatpush1.bf16.msra.mxu0 %v2884
        %2911 = vmatprep.subr.bf16.mxu0 0
        %2912 = vmatpush2.bf16.msra.mxu0 0
        %2913 = vmatprep.subr.bf16.mxu0 0
        %2914 = vmatpush2.bf16.msra.mxu0 0
        %2915 = vmatprep.subr.bf16.mxu0 0
        %2916 = vmatpush2.bf16.msra.mxu0 0
        %2917 = vmatprep.subr.bf16.mxu0 0
        %2918 = vmatpush2.bf16.msra.mxu0 0
        %2919 = vmatprep.subr.bf16.mxu0 0
        %2920 = vmatpush2.bf16.msra.mxu0 0
        %2921 = vmatprep.subr.bf16.mxu0 0
        %2922 = vmatpush2.bf16.msra.mxu0 0
        %2923 = vmatprep.subr.bf16.mxu0 0
        %2924 = vmatpush2.bf16.msra.mxu0 0
        %2925 = vmatprep.subr.bf16.mxu0 0
        %2926 = vmatpush2.bf16.msra.mxu0 0
        %2927 = vmatprep.mubr.bf16.mxu0 0
        %2928 = vmatmul.mubr.bf16.gmra.mxu0 %v2887
        %v2929 = vpop.f32.mrf.mxu0
        %v2930 = vadd.f32 0.0, %v2929
        %v2931 = vpop.f32.mrf.mxu0
        %v2932 = vpop.f32.mrf.mxu0
        %v2933 = vadd.f32 0.0, %v2932
        %v2934 = vpop.f32.mrf.mxu0
        %2935 = vmatprep.mubr.bf16.mxu0 0
        %2936 = vmatmul.mubr.bf16.gmra.mxu0 %v2890
        %v2937 = vpop.f32.mrf.mxu0
        %v2938 = vadd.f32 0.0, %v2937
        %v2939 = vpop.f32.mrf.mxu0
        %v2940 = vpop.f32.mrf.mxu0
        %v2941 = vadd.f32 0.0, %v2940
        %v2942 = vpop.f32.mrf.mxu0
        %2943 = vmatprep.mubr.bf16.mxu0 0
        %2944 = vmatmul.mubr.bf16.gmra.mxu0 %v2893
        %v2945 = vpop.f32.mrf.mxu0
        %v2946 = vadd.f32 0.0, %v2945
        %v2947 = vpop.f32.mrf.mxu0
        %v2948 = vpop.f32.mrf.mxu0
        %v2949 = vpop.f32.mrf.mxu0
        %2950 = vdwg.mxu0
        %v2951 = vld [vmem:[%s178] sm:$0xff]
        %v2952 = vld [vmem:[%s178 + $0x8] sm:$0xff]
        %v2953 = vld [vmem:[%s178 + $0x10] sm:$0xff]
        %v2954 = vld [vmem:[%s178 + $0x18] sm:$0xff]
        %v2955 = vld [vmem:[%s178 + $0x20] sm:$0xff]
        %v2956 = vadd.f32 %v2951, %v2930
        %v2957 = vadd.f32 %v2952, %v2933
        %v2958 = vadd.f32 %v2953, %v2938
        %v2959 = vadd.f32 %v2954, %v2941
        %v2960 = vadd.f32 %v2955, %v2946
        %2961 = vst [vmem:[%s178] sm:$0xff] %v2956
        %2962 = vst [vmem:[%s178 + $0x8] sm:$0xff] %v2957
        %2963 = vst [vmem:[%s178 + $0x10] sm:$0xff] %v2958
        %2964 = vst [vmem:[%s178 + $0x18] sm:$0xff] %v2959
        %2965 = vst [vmem:[%s178 + $0x20] sm:$0xff] %v2960
        %v2966 = vld [vmem:[%s183 + $0x28] sm:$0xe]
        %v2967 = vld [vmem:[%s183 + $0x2c] sm:$0xf]
        %v2968 = vld [vmem:[%s183 + $0x30] sm:$0xf]
        %v2969 = vld [vmem:[%s183 + $0x34] sm:$0xf]
        %v2970 = vld [vmem:[%s183 + $0x38] sm:$0xf]
        %v2971 = vld [vmem:[%s183 + $0x3c] sm:$0x3]
        %v2972 = vld [vmem:[#allocation2 + $0xb8] sm:$0xf]
        %v2973 = vld [vmem:[#allocation2 + $0xbc] sm:$0xf]
        %v2980 = vunpack.c.l.b16 %v2966
        %v2981 = vunpack.c.l.b16 %v2967
        %v2982 = vunpack.c.l.b16 %v2968
        %v2983 = vunpack.c.l.b16 %v2969
        %v2984 = vunpack.c.l.b16 %v2970
        %v2985 = vunpack.c.l.b16 %v2971
        %v2986 = vpack.c.b16 %v2981, %v2980
        %v2987 = vpack.c.b16 %v2983, %v2982
        %v2988 = vpack.c.b16 %v2985, %v2984
        %v2990 = vshrl.u32 %v2986, 16
        %v2992 = vrot.slane %v2990, 1
        %v2993 = vshll.u32 %v2986, 16
        %v2995 = vrot.slane %v2993, 2
        %v2996 = vor.u32 %v2992, %v2995
        %v2998 = vshrl.u32 %v2987, 16
        %v3000 = vrot.slane %v2998, 1
        %v3001 = vshll.u32 %v2987, 16
        %v3003 = vrot.slane %v3001, 2
        %v3004 = vor.u32 %v3000, %v3003
        %v3005 = vsel %vm905, %v2996, %v3004
        %v3007 = vshrl.u32 %v2988, 16
        %v3009 = vrot.slane %v3007, 1
        %v3010 = vshll.u32 %v2988, 16
        %v3012 = vrot.slane %v3010, 2
        %v3013 = vor.u32 %v3009, %v3012
        %v3014 = vsel %vm905, %v3004, %v3013
        %v3017 = vunpack.c.l.b16 %v2972
        %v3018 = vunpack.c.l.b16 %v2973
        %v3019 = vpack.c.b16 %v3018, %v3017
        %v3022 = vsel %vm211, %v3005, 0
        %v3025 = vsel %vm211, %v3014, 0
        %v3028 = vsel %vm211, %v3013, 0
        %3030 = vmatprep.subr.bf16.mxu0 0
        %3031 = vmatpush1.bf16.msra.mxu0 0
        %3032 = vmatprep.subr.bf16.mxu0 0
        %3033 = vmatpush1.bf16.msra.mxu0 0
        %3034 = vmatprep.subr.bf16.mxu0 0
        %3035 = vmatpush1.bf16.msra.mxu0 0
        %3036 = vmatprep.subr.bf16.mxu0 0
        %3037 = vmatpush1.bf16.msra.mxu0 0
        %3038 = vmatprep.subr.bf16.mxu0 0
        %3039 = vmatpush1.bf16.msra.mxu0 0
        %3040 = vmatprep.subr.bf16.mxu0 0
        %3041 = vmatpush1.bf16.msra.mxu0 0
        %3042 = vmatprep.subr.bf16.mxu0 0
        %3043 = vmatpush1.bf16.msra.mxu0 0
        %3044 = vmatprep.subr.bf16.mxu0 0
        %3045 = vmatpush1.bf16.msra.mxu0 %v3019
        %3046 = vmatprep.subr.bf16.mxu0 0
        %3047 = vmatpush2.bf16.msra.mxu0 0
        %3048 = vmatprep.subr.bf16.mxu0 0
        %3049 = vmatpush2.bf16.msra.mxu0 0
        %3050 = vmatprep.subr.bf16.mxu0 0
        %3051 = vmatpush2.bf16.msra.mxu0 0
        %3052 = vmatprep.subr.bf16.mxu0 0
        %3053 = vmatpush2.bf16.msra.mxu0 0
        %3054 = vmatprep.subr.bf16.mxu0 0
        %3055 = vmatpush2.bf16.msra.mxu0 0
        %3056 = vmatprep.subr.bf16.mxu0 0
        %3057 = vmatpush2.bf16.msra.mxu0 0
        %3058 = vmatprep.subr.bf16.mxu0 0
        %3059 = vmatpush2.bf16.msra.mxu0 0
        %3060 = vmatprep.subr.bf16.mxu0 0
        %3061 = vmatpush2.bf16.msra.mxu0 0
        %3062 = vmatprep.mubr.bf16.mxu0 0
        %3063 = vmatmul.mubr.bf16.gmra.mxu0 %v3022
        %v3064 = vpop.f32.mrf.mxu0
        %v3065 = vadd.f32 0.0, %v3064
        %v3066 = vpop.f32.mrf.mxu0
        %v3067 = vpop.f32.mrf.mxu0
        %v3068 = vadd.f32 0.0, %v3067
        %v3069 = vpop.f32.mrf.mxu0
        %3070 = vmatprep.mubr.bf16.mxu0 0
        %3071 = vmatmul.mubr.bf16.gmra.mxu0 %v3025
        %v3072 = vpop.f32.mrf.mxu0
        %v3073 = vadd.f32 0.0, %v3072
        %v3074 = vpop.f32.mrf.mxu0
        %v3075 = vpop.f32.mrf.mxu0
        %v3076 = vadd.f32 0.0, %v3075
        %v3077 = vpop.f32.mrf.mxu0
        %3078 = vmatprep.mubr.bf16.mxu0 0
        %3079 = vmatmul.mubr.bf16.gmra.mxu0 %v3028
        %v3080 = vpop.f32.mrf.mxu0
        %v3081 = vadd.f32 0.0, %v3080
        %v3082 = vpop.f32.mrf.mxu0
        %v3083 = vpop.f32.mrf.mxu0
        %v3084 = vpop.f32.mrf.mxu0
        %3085 = vdwg.mxu0
        %v3086 = vld [vmem:[%s178] sm:$0xff]
        %v3087 = vld [vmem:[%s178 + $0x8] sm:$0xff]
        %v3088 = vld [vmem:[%s178 + $0x10] sm:$0xff]
        %v3089 = vld [vmem:[%s178 + $0x18] sm:$0xff]
        %v3090 = vld [vmem:[%s178 + $0x20] sm:$0xff]
        %v3091 = vadd.f32 %v3086, %v3065
        %v3092 = vadd.f32 %v3087, %v3068
        %v3093 = vadd.f32 %v3088, %v3073
        %v3094 = vadd.f32 %v3089, %v3076
        %v3095 = vadd.f32 %v3090, %v3081
        %3096 = vst [vmem:[%s178] sm:$0xff] %v3091
        %3097 = vst [vmem:[%s178 + $0x8] sm:$0xff] %v3092
        %3098 = vst [vmem:[%s178 + $0x10] sm:$0xff] %v3093
        %3099 = vst [vmem:[%s178 + $0x18] sm:$0xff] %v3094
        %3100 = vst [vmem:[%s178 + $0x20] sm:$0xff] %v3095
        %v3101 = vld [vmem:[%s183 + $0x4c] sm:$0xf]
        %v3102 = vld [vmem:[%s183 + $0x50] sm:$0xf]
        %v3103 = vld [vmem:[%s183 + $0x54] sm:$0xf]
        %v3104 = vld [vmem:[%s183 + $0x58] sm:$0xf]
        %v3105 = vld [vmem:[%s183 + $0x5c] sm:$0xf]
        %v3106 = vld [vmem:[#allocation2 + $0xc0] sm:$0xf]
        %v3107 = vld [vmem:[#allocation2 + $0xc4] sm:$0xf]
        %v3113 = vunpack.c.l.b16 %v3101
        %v3114 = vunpack.c.l.b16 %v3102
        %v3115 = vunpack.c.l.b16 %v3103
        %v3116 = vunpack.c.l.b16 %v3104
        %v3117 = vunpack.c.l.b16 %v3105
        %v3118 = vpack.c.b16 %v3114, %v3113
        %v3119 = vpack.c.b16 %v3116, %v3115
        %v3120 = vpack.c.b16 %v3117, %v3117
        %v3123 = vunpack.c.l.b16 %v3106
        %v3124 = vunpack.c.l.b16 %v3107
        %v3125 = vpack.c.b16 %v3124, %v3123
        %v3128 = vsel %vm211, %v3118, 0
        %v3131 = vsel %vm211, %v3119, 0
        %v3134 = vsel %vm211, %v3120, 0
        %3136 = vmatprep.subr.bf16.mxu0 0
        %3137 = vmatpush1.bf16.msra.mxu0 0
        %3138 = vmatprep.subr.bf16.mxu0 0
        %3139 = vmatpush1.bf16.msra.mxu0 0
        %3140 = vmatprep.subr.bf16.mxu0 0
        %3141 = vmatpush1.bf16.msra.mxu0 0
        %3142 = vmatprep.subr.bf16.mxu0 0
        %3143 = vmatpush1.bf16.msra.mxu0 0
        %3144 = vmatprep.subr.bf16.mxu0 0
        %3145 = vmatpush1.bf16.msra.mxu0 0
        %3146 = vmatprep.subr.bf16.mxu0 0
        %3147 = vmatpush1.bf16.msra.mxu0 0
        %3148 = vmatprep.subr.bf16.mxu0 0
        %3149 = vmatpush1.bf16.msra.mxu0 0
        %3150 = vmatprep.subr.bf16.mxu0 0
        %3151 = vmatpush1.bf16.msra.mxu0 %v3125
        %3152 = vmatprep.subr.bf16.mxu0 0
        %3153 = vmatpush2.bf16.msra.mxu0 0
        %3154 = vmatprep.subr.bf16.mxu0 0
        %3155 = vmatpush2.bf16.msra.mxu0 0
        %3156 = vmatprep.subr.bf16.mxu0 0
        %3157 = vmatpush2.bf16.msra.mxu0 0
        %3158 = vmatprep.subr.bf16.mxu0 0
        %3159 = vmatpush2.bf16.msra.mxu0 0
        %3160 = vmatprep.subr.bf16.mxu0 0
        %3161 = vmatpush2.bf16.msra.mxu0 0
        %3162 = vmatprep.subr.bf16.mxu0 0
        %3163 = vmatpush2.bf16.msra.mxu0 0
        %3164 = vmatprep.subr.bf16.mxu0 0
        %3165 = vmatpush2.bf16.msra.mxu0 0
        %3166 = vmatprep.subr.bf16.mxu0 0
        %3167 = vmatpush2.bf16.msra.mxu0 0
        %3168 = vmatprep.mubr.bf16.mxu0 0
        %3169 = vmatmul.mubr.bf16.gmra.mxu0 %v3128
        %v3170 = vpop.f32.mrf.mxu0
        %v3171 = vadd.f32 0.0, %v3170
        %v3172 = vpop.f32.mrf.mxu0
        %v3173 = vpop.f32.mrf.mxu0
        %v3174 = vadd.f32 0.0, %v3173
        %v3175 = vpop.f32.mrf.mxu0
        %3176 = vmatprep.mubr.bf16.mxu0 0
        %3177 = vmatmul.mubr.bf16.gmra.mxu0 %v3131
        %v3178 = vpop.f32.mrf.mxu0
        %v3179 = vadd.f32 0.0, %v3178
        %v3180 = vpop.f32.mrf.mxu0
        %v3181 = vpop.f32.mrf.mxu0
        %v3182 = vadd.f32 0.0, %v3181
        %v3183 = vpop.f32.mrf.mxu0
        %3184 = vmatprep.mubr.bf16.mxu0 0
        %3185 = vmatmul.mubr.bf16.gmra.mxu0 %v3134
        %v3186 = vpop.f32.mrf.mxu0
        %v3187 = vadd.f32 0.0, %v3186
        %v3188 = vpop.f32.mrf.mxu0
        %v3189 = vpop.f32.mrf.mxu0
        %v3190 = vpop.f32.mrf.mxu0
        %3191 = vdwg.mxu0
        %v3192 = vld [vmem:[%s178] sm:$0xff]
        %v3193 = vld [vmem:[%s178 + $0x8] sm:$0xff]
        %v3194 = vld [vmem:[%s178 + $0x10] sm:$0xff]
        %v3195 = vld [vmem:[%s178 + $0x18] sm:$0xff]
        %v3196 = vld [vmem:[%s178 + $0x20] sm:$0xff]
        %v3197 = vadd.f32 %v3192, %v3171
        %v3198 = vadd.f32 %v3193, %v3174
        %v3199 = vadd.f32 %v3194, %v3179
        %v3200 = vadd.f32 %v3195, %v3182
        %v3201 = vadd.f32 %v3196, %v3187
        %3202 = vst [vmem:[%s178] sm:$0xff] %v3197
        %3203 = vst [vmem:[%s178 + $0x8] sm:$0xff] %v3198
        %3204 = vst [vmem:[%s178 + $0x10] sm:$0xff] %v3199
        %3205 = vst [vmem:[%s178 + $0x18] sm:$0xff] %v3200
        %3206 = vst [vmem:[%s178 + $0x20] sm:$0xff] %v3201
        %v3207 = vld [vmem:[%s183 + $0x70] sm:$0xf]
        %v3208 = vld [vmem:[%s183 + $0x74] sm:$0xf]
        %v3209 = vld [vmem:[%s183 + $0x78] sm:$0xf]
        %v3210 = vld [vmem:[%s183 + $0x7c] sm:$0xf]
        %v3211 = vld [vmem:[%s183 + $0x80] sm:$0xf]
        %v3212 = vld [vmem:[#allocation2 + $0xc8] sm:$0xf]
        %v3213 = vld [vmem:[#allocation2 + $0xcc] sm:$0xf]
        %v3219 = vunpack.c.l.b16 %v3207
        %v3220 = vunpack.c.l.b16 %v3208
        %v3221 = vunpack.c.l.b16 %v3209
        %v3222 = vunpack.c.l.b16 %v3210
        %v3223 = vunpack.c.l.b16 %v3211
        %v3224 = vpack.c.b16 %v3220, %v3219
        %v3225 = vpack.c.b16 %v3222, %v3221
        %v3226 = vpack.c.b16 %v3223, %v3223
        %v3229 = vunpack.c.l.b16 %v3212
        %v3230 = vunpack.c.l.b16 %v3213
        %v3231 = vpack.c.b16 %v3230, %v3229
        %v3234 = vsel %vm211, %v3224, 0
        %v3237 = vsel %vm211, %v3225, 0
        %v3240 = vsel %vm211, %v3226, 0
        %3242 = vmatprep.subr.bf16.mxu0 0
        %3243 = vmatpush1.bf16.msra.mxu0 0
        %3244 = vmatprep.subr.bf16.mxu0 0
        %3245 = vmatpush1.bf16.msra.mxu0 0
        %3246 = vmatprep.subr.bf16.mxu0 0
        %3247 = vmatpush1.bf16.msra.mxu0 0
        %3248 = vmatprep.subr.bf16.mxu0 0
        %3249 = vmatpush1.bf16.msra.mxu0 0
        %3250 = vmatprep.subr.bf16.mxu0 0
        %3251 = vmatpush1.bf16.msra.mxu0 0
        %3252 = vmatprep.subr.bf16.mxu0 0
        %3253 = vmatpush1.bf16.msra.mxu0 0
        %3254 = vmatprep.subr.bf16.mxu0 0
        %3255 = vmatpush1.bf16.msra.mxu0 0
        %3256 = vmatprep.subr.bf16.mxu0 0
        %3257 = vmatpush1.bf16.msra.mxu0 %v3231
        %3258 = vmatprep.subr.bf16.mxu0 0
        %3259 = vmatpush2.bf16.msra.mxu0 0
        %3260 = vmatprep.subr.bf16.mxu0 0
        %3261 = vmatpush2.bf16.msra.mxu0 0
        %3262 = vmatprep.subr.bf16.mxu0 0
        %3263 = vmatpush2.bf16.msra.mxu0 0
        %3264 = vmatprep.subr.bf16.mxu0 0
        %3265 = vmatpush2.bf16.msra.mxu0 0
        %3266 = vmatprep.subr.bf16.mxu0 0
        %3267 = vmatpush2.bf16.msra.mxu0 0
        %3268 = vmatprep.subr.bf16.mxu0 0
        %3269 = vmatpush2.bf16.msra.mxu0 0
        %3270 = vmatprep.subr.bf16.mxu0 0
        %3271 = vmatpush2.bf16.msra.mxu0 0
        %3272 = vmatprep.subr.bf16.mxu0 0
        %3273 = vmatpush2.bf16.msra.mxu0 0
        %3274 = vmatprep.mubr.bf16.mxu0 0
        %3275 = vmatmul.mubr.bf16.gmra.mxu0 %v3234
        %v3276 = vpop.f32.mrf.mxu0
        %v3277 = vadd.f32 0.0, %v3276
        %v3278 = vpop.f32.mrf.mxu0
        %v3279 = vpop.f32.mrf.mxu0
        %v3280 = vadd.f32 0.0, %v3279
        %v3281 = vpop.f32.mrf.mxu0
        %3282 = vmatprep.mubr.bf16.mxu0 0
        %3283 = vmatmul.mubr.bf16.gmra.mxu0 %v3237
        %v3284 = vpop.f32.mrf.mxu0
        %v3285 = vadd.f32 0.0, %v3284
        %v3286 = vpop.f32.mrf.mxu0
        %v3287 = vpop.f32.mrf.mxu0
        %v3288 = vadd.f32 0.0, %v3287
        %v3289 = vpop.f32.mrf.mxu0
        %3290 = vmatprep.mubr.bf16.mxu0 0
        %3291 = vmatmul.mubr.bf16.gmra.mxu0 %v3240
        %v3292 = vpop.f32.mrf.mxu0
        %v3293 = vadd.f32 0.0, %v3292
        %v3294 = vpop.f32.mrf.mxu0
        %v3295 = vpop.f32.mrf.mxu0
        %v3296 = vpop.f32.mrf.mxu0
        %3297 = vdwg.mxu0
        %v3298 = vld [vmem:[%s178] sm:$0xff]
        %v3299 = vld [vmem:[%s178 + $0x8] sm:$0xff]
        %v3300 = vld [vmem:[%s178 + $0x10] sm:$0xff]
        %v3301 = vld [vmem:[%s178 + $0x18] sm:$0xff]
        %v3302 = vld [vmem:[%s178 + $0x20] sm:$0xff]
        %v3303 = vadd.f32 %v3298, %v3277
        %v3304 = vadd.f32 %v3299, %v3280
        %v3305 = vadd.f32 %v3300, %v3285
        %v3306 = vadd.f32 %v3301, %v3288
        %v3307 = vadd.f32 %v3302, %v3293
        %3308 = vst [vmem:[%s178] sm:$0xff] %v3303
        %3309 = vst [vmem:[%s178 + $0x8] sm:$0xff] %v3304
        %3310 = vst [vmem:[%s178 + $0x10] sm:$0xff] %v3305
        %3311 = vst [vmem:[%s178 + $0x18] sm:$0xff] %v3306
        %3312 = vst [vmem:[%s178 + $0x20] sm:$0xff] %v3307
        %v3313 = vld [vmem:[%s183 + $0x4c] sm:$0xf]
        %v3314 = vld [vmem:[%s183 + $0x50] sm:$0xf]
        %v3315 = vld [vmem:[%s183 + $0x54] sm:$0xf]
        %v3316 = vld [vmem:[%s183 + $0x58] sm:$0xf]
        %v3317 = vld [vmem:[%s183 + $0x5c] sm:$0xf]
        %v3318 = vld [vmem:[%s183 + $0x60] sm:$0x1]
        %v3319 = vld [vmem:[#allocation2 + $0xd0] sm:$0xf]
        %v3320 = vld [vmem:[#allocation2 + $0xd4] sm:$0xf]
        %v3327 = vunpack.c.l.b16 %v3313
        %v3328 = vunpack.c.l.b16 %v3314
        %v3329 = vunpack.c.l.b16 %v3315
        %v3330 = vunpack.c.l.b16 %v3316
        %v3331 = vunpack.c.l.b16 %v3317
        %v3332 = vunpack.c.l.b16 %v3318
        %v3333 = vpack.c.b16 %v3328, %v3327
        %v3334 = vpack.c.b16 %v3330, %v3329
        %v3335 = vpack.c.b16 %v3332, %v3331
        %v3337 = vshrl.u32 %v3333, 16
        %v3339 = vshll.u32 %v3333, 16
        %v3341 = vrot.slane %v3339, 1
        %v3342 = vor.u32 %v3337, %v3341
        %v3344 = vshll.u32 %v3334, 16
        %v3346 = vrot.slane %v3344, 1
        %v3347 = vsel %vm411, %v3342, %v3346
        %v3348 = vshrl.u32 %v3334, 16
        %v3350 = vor.u32 %v3348, %v3346
        %v3352 = vshll.u32 %v3335, 16
        %v3354 = vrot.slane %v3352, 1
        %v3355 = vsel %vm411, %v3350, %v3354
        %v3356 = vshrl.u32 %v3335, 16
        %v3358 = vor.u32 %v3356, %v3354
        %v3361 = vunpack.c.l.b16 %v3319
        %v3362 = vunpack.c.l.b16 %v3320
        %v3363 = vpack.c.b16 %v3362, %v3361
        %v3366 = vsel %vm211, %v3347, 0
        %v3369 = vsel %vm211, %v3355, 0
        %v3372 = vsel %vm211, %v3358, 0
        %3374 = vmatprep.subr.bf16.mxu0 0
        %3375 = vmatpush1.bf16.msra.mxu0 0
        %3376 = vmatprep.subr.bf16.mxu0 0
        %3377 = vmatpush1.bf16.msra.mxu0 0
        %3378 = vmatprep.subr.bf16.mxu0 0
        %3379 = vmatpush1.bf16.msra.mxu0 0
        %3380 = vmatprep.subr.bf16.mxu0 0
        %3381 = vmatpush1.bf16.msra.mxu0 0
        %3382 = vmatprep.subr.bf16.mxu0 0
        %3383 = vmatpush1.bf16.msra.mxu0 0
        %3384 = vmatprep.subr.bf16.mxu0 0
        %3385 = vmatpush1.bf16.msra.mxu0 0
        %3386 = vmatprep.subr.bf16.mxu0 0
        %3387 = vmatpush1.bf16.msra.mxu0 0
        %3388 = vmatprep.subr.bf16.mxu0 0
        %3389 = vmatpush1.bf16.msra.mxu0 %v3363
        %3390 = vmatprep.subr.bf16.mxu0 0
        %3391 = vmatpush2.bf16.msra.mxu0 0
        %3392 = vmatprep.subr.bf16.mxu0 0
        %3393 = vmatpush2.bf16.msra.mxu0 0
        %3394 = vmatprep.subr.bf16.mxu0 0
        %3395 = vmatpush2.bf16.msra.mxu0 0
        %3396 = vmatprep.subr.bf16.mxu0 0
        %3397 = vmatpush2.bf16.msra.mxu0 0
        %3398 = vmatprep.subr.bf16.mxu0 0
        %3399 = vmatpush2.bf16.msra.mxu0 0
        %3400 = vmatprep.subr.bf16.mxu0 0
        %3401 = vmatpush2.bf16.msra.mxu0 0
        %3402 = vmatprep.subr.bf16.mxu0 0
        %3403 = vmatpush2.bf16.msra.mxu0 0
        %3404 = vmatprep.subr.bf16.mxu0 0
        %3405 = vmatpush2.bf16.msra.mxu0 0
        %3406 = vmatprep.mubr.bf16.mxu0 0
        %3407 = vmatmul.mubr.bf16.gmra.mxu0 %v3366
        %v3408 = vpop.f32.mrf.mxu0
        %v3409 = vadd.f32 0.0, %v3408
        %v3410 = vpop.f32.mrf.mxu0
        %v3411 = vpop.f32.mrf.mxu0
        %v3412 = vadd.f32 0.0, %v3411
        %v3413 = vpop.f32.mrf.mxu0
        %3414 = vmatprep.mubr.bf16.mxu0 0
        %3415 = vmatmul.mubr.bf16.gmra.mxu0 %v3369
        %v3416 = vpop.f32.mrf.mxu0
        %v3417 = vadd.f32 0.0, %v3416
        %v3418 = vpop.f32.mrf.mxu0
        %v3419 = vpop.f32.mrf.mxu0
        %v3420 = vadd.f32 0.0, %v3419
        %v3421 = vpop.f32.mrf.mxu0
        %3422 = vmatprep.mubr.bf16.mxu0 0
        %3423 = vmatmul.mubr.bf16.gmra.mxu0 %v3372
        %v3424 = vpop.f32.mrf.mxu0
        %v3425 = vadd.f32 0.0, %v3424
        %v3426 = vpop.f32.mrf.mxu0
        %v3427 = vpop.f32.mrf.mxu0
        %v3428 = vpop.f32.mrf.mxu0
        %3429 = vdwg.mxu0
        %v3430 = vld [vmem:[%s178] sm:$0xff]
        %v3431 = vld [vmem:[%s178 + $0x8] sm:$0xff]
        %v3432 = vld [vmem:[%s178 + $0x10] sm:$0xff]
        %v3433 = vld [vmem:[%s178 + $0x18] sm:$0xff]
        %v3434 = vld [vmem:[%s178 + $0x20] sm:$0xff]
        %v3435 = vadd.f32 %v3430, %v3409
        %v3436 = vadd.f32 %v3431, %v3412
        %v3437 = vadd.f32 %v3432, %v3417
        %v3438 = vadd.f32 %v3433, %v3420
        %v3439 = vadd.f32 %v3434, %v3425
        %3440 = vst [vmem:[%s178] sm:$0xff] %v3435
        %3441 = vst [vmem:[%s178 + $0x8] sm:$0xff] %v3436
        %3442 = vst [vmem:[%s178 + $0x10] sm:$0xff] %v3437
        %3443 = vst [vmem:[%s178 + $0x18] sm:$0xff] %v3438
        %3444 = vst [vmem:[%s178 + $0x20] sm:$0xff] %v3439
        %v3445 = vld [vmem:[%s183 + $0x70] sm:$0xf]
        %v3446 = vld [vmem:[%s183 + $0x74] sm:$0xf]
        %v3447 = vld [vmem:[%s183 + $0x78] sm:$0xf]
        %v3448 = vld [vmem:[%s183 + $0x7c] sm:$0xf]
        %v3449 = vld [vmem:[%s183 + $0x80] sm:$0xf]
        %v3450 = vld [vmem:[%s183 + $0x84] sm:$0x1]
        %v3451 = vld [vmem:[#allocation2 + $0xd8] sm:$0xf]
        %v3452 = vld [vmem:[#allocation2 + $0xdc] sm:$0xf]
        %v3459 = vunpack.c.l.b16 %v3445
        %v3460 = vunpack.c.l.b16 %v3446
        %v3461 = vunpack.c.l.b16 %v3447
        %v3462 = vunpack.c.l.b16 %v3448
        %v3463 = vunpack.c.l.b16 %v3449
        %v3464 = vunpack.c.l.b16 %v3450
        %v3465 = vpack.c.b16 %v3460, %v3459
        %v3466 = vpack.c.b16 %v3462, %v3461
        %v3467 = vpack.c.b16 %v3464, %v3463
        %v3469 = vshrl.u32 %v3465, 16
        %v3471 = vshll.u32 %v3465, 16
        %v3473 = vrot.slane %v3471, 1
        %v3474 = vor.u32 %v3469, %v3473
        %v3476 = vshll.u32 %v3466, 16
        %v3478 = vrot.slane %v3476, 1
        %v3479 = vsel %vm411, %v3474, %v3478
        %v3480 = vshrl.u32 %v3466, 16
        %v3482 = vor.u32 %v3480, %v3478
        %v3484 = vshll.u32 %v3467, 16
        %v3486 = vrot.slane %v3484, 1
        %v3487 = vsel %vm411, %v3482, %v3486
        %v3488 = vshrl.u32 %v3467, 16
        %v3490 = vor.u32 %v3488, %v3486
        %v3493 = vunpack.c.l.b16 %v3451
        %v3494 = vunpack.c.l.b16 %v3452
        %v3495 = vpack.c.b16 %v3494, %v3493
        %v3498 = vsel %vm211, %v3479, 0
        %v3501 = vsel %vm211, %v3487, 0
        %v3504 = vsel %vm211, %v3490, 0
        %3506 = vmatprep.subr.bf16.mxu0 0
        %3507 = vmatpush1.bf16.msra.mxu0 0
        %3508 = vmatprep.subr.bf16.mxu0 0
        %3509 = vmatpush1.bf16.msra.mxu0 0
        %3510 = vmatprep.subr.bf16.mxu0 0
        %3511 = vmatpush1.bf16.msra.mxu0 0
        %3512 = vmatprep.subr.bf16.mxu0 0
        %3513 = vmatpush1.bf16.msra.mxu0 0
        %3514 = vmatprep.subr.bf16.mxu0 0
        %3515 = vmatpush1.bf16.msra.mxu0 0
        %3516 = vmatprep.subr.bf16.mxu0 0
        %3517 = vmatpush1.bf16.msra.mxu0 0
        %3518 = vmatprep.subr.bf16.mxu0 0
        %3519 = vmatpush1.bf16.msra.mxu0 0
        %3520 = vmatprep.subr.bf16.mxu0 0
        %3521 = vmatpush1.bf16.msra.mxu0 %v3495
        %3522 = vmatprep.subr.bf16.mxu0 0
        %3523 = vmatpush2.bf16.msra.mxu0 0
        %3524 = vmatprep.subr.bf16.mxu0 0
        %3525 = vmatpush2.bf16.msra.mxu0 0
        %3526 = vmatprep.subr.bf16.mxu0 0
        %3527 = vmatpush2.bf16.msra.mxu0 0
        %3528 = vmatprep.subr.bf16.mxu0 0
        %3529 = vmatpush2.bf16.msra.mxu0 0
        %3530 = vmatprep.subr.bf16.mxu0 0
        %3531 = vmatpush2.bf16.msra.mxu0 0
        %3532 = vmatprep.subr.bf16.mxu0 0
        %3533 = vmatpush2.bf16.msra.mxu0 0
        %3534 = vmatprep.subr.bf16.mxu0 0
        %3535 = vmatpush2.bf16.msra.mxu0 0
        %3536 = vmatprep.subr.bf16.mxu0 0
        %3537 = vmatpush2.bf16.msra.mxu0 0
        %3538 = vmatprep.mubr.bf16.mxu0 0
        %3539 = vmatmul.mubr.bf16.gmra.mxu0 %v3498
        %v3540 = vpop.f32.mrf.mxu0
        %v3541 = vadd.f32 0.0, %v3540
        %v3542 = vpop.f32.mrf.mxu0
        %v3543 = vpop.f32.mrf.mxu0
        %v3544 = vadd.f32 0.0, %v3543
        %v3545 = vpop.f32.mrf.mxu0
        %3546 = vmatprep.mubr.bf16.mxu0 0
        %3547 = vmatmul.mubr.bf16.gmra.mxu0 %v3501
        %v3548 = vpop.f32.mrf.mxu0
        %v3549 = vadd.f32 0.0, %v3548
        %v3550 = vpop.f32.mrf.mxu0
        %v3551 = vpop.f32.mrf.mxu0
        %v3552 = vadd.f32 0.0, %v3551
        %v3553 = vpop.f32.mrf.mxu0
        %3554 = vmatprep.mubr.bf16.mxu0 0
        %3555 = vmatmul.mubr.bf16.gmra.mxu0 %v3504
        %v3556 = vpop.f32.mrf.mxu0
        %v3557 = vadd.f32 0.0, %v3556
        %v3558 = vpop.f32.mrf.mxu0
        %v3559 = vpop.f32.mrf.mxu0
        %v3560 = vpop.f32.mrf.mxu0
        %3561 = vdwg.mxu0
        %v3562 = vld [vmem:[%s178] sm:$0xff]
        %v3563 = vld [vmem:[%s178 + $0x8] sm:$0xff]
        %v3564 = vld [vmem:[%s178 + $0x10] sm:$0xff]
        %v3565 = vld [vmem:[%s178 + $0x18] sm:$0xff]
        %v3566 = vld [vmem:[%s178 + $0x20] sm:$0xff]
        %v3567 = vadd.f32 %v3562, %v3541
        %v3568 = vadd.f32 %v3563, %v3544
        %v3569 = vadd.f32 %v3564, %v3549
        %v3570 = vadd.f32 %v3565, %v3552
        %v3571 = vadd.f32 %v3566, %v3557
        %3572 = vst [vmem:[%s178] sm:$0xff] %v3567
        %3573 = vst [vmem:[%s178 + $0x8] sm:$0xff] %v3568
        %3574 = vst [vmem:[%s178 + $0x10] sm:$0xff] %v3569
        %3575 = vst [vmem:[%s178 + $0x18] sm:$0xff] %v3570
        %3576 = vst [vmem:[%s178 + $0x20] sm:$0xff] %v3571
        %v3577 = vld [vmem:[%s183 + $0x4c] sm:$0xe]
        %v3578 = vld [vmem:[%s183 + $0x50] sm:$0xf]
        %v3579 = vld [vmem:[%s183 + $0x54] sm:$0xf]
        %v3580 = vld [vmem:[%s183 + $0x58] sm:$0xf]
        %v3581 = vld [vmem:[%s183 + $0x5c] sm:$0xf]
        %v3582 = vld [vmem:[%s183 + $0x60] sm:$0x1]
        %v3583 = vld [vmem:[#allocation2 + $0xe0] sm:$0xf]
        %v3584 = vld [vmem:[#allocation2 + $0xe4] sm:$0xf]
        %v3591 = vunpack.c.l.b16 %v3577
        %v3592 = vunpack.c.l.b16 %v3578
        %v3593 = vunpack.c.l.b16 %v3579
        %v3594 = vunpack.c.l.b16 %v3580
        %v3595 = vunpack.c.l.b16 %v3581
        %v3596 = vunpack.c.l.b16 %v3582
        %v3597 = vpack.c.b16 %v3592, %v3591
        %v3598 = vpack.c.b16 %v3594, %v3593
        %v3599 = vpack.c.b16 %v3596, %v3595
        %v3600 = vrot.slane %v3597, 1
        %v3601 = vrot.slane %v3598, 1
        %v3602 = vsel %vm676, %v3600, %v3601
        %v3603 = vrot.slane %v3599, 1
        %v3604 = vsel %vm676, %v3601, %v3603
        %v3607 = vunpack.c.l.b16 %v3583
        %v3608 = vunpack.c.l.b16 %v3584
        %v3609 = vpack.c.b16 %v3608, %v3607
        %v3612 = vsel %vm211, %v3602, 0
        %v3615 = vsel %vm211, %v3604, 0
        %v3618 = vsel %vm211, %v3603, 0
        %3620 = vmatprep.subr.bf16.mxu0 0
        %3621 = vmatpush1.bf16.msra.mxu0 0
        %3622 = vmatprep.subr.bf16.mxu0 0
        %3623 = vmatpush1.bf16.msra.mxu0 0
        %3624 = vmatprep.subr.bf16.mxu0 0
        %3625 = vmatpush1.bf16.msra.mxu0 0
        %3626 = vmatprep.subr.bf16.mxu0 0
        %3627 = vmatpush1.bf16.msra.mxu0 0
        %3628 = vmatprep.subr.bf16.mxu0 0
        %3629 = vmatpush1.bf16.msra.mxu0 0
        %3630 = vmatprep.subr.bf16.mxu0 0
        %3631 = vmatpush1.bf16.msra.mxu0 0
        %3632 = vmatprep.subr.bf16.mxu0 0
        %3633 = vmatpush1.bf16.msra.mxu0 0
        %3634 = vmatprep.subr.bf16.mxu0 0
        %3635 = vmatpush1.bf16.msra.mxu0 %v3609
        %3636 = vmatprep.subr.bf16.mxu0 0
        %3637 = vmatpush2.bf16.msra.mxu0 0
        %3638 = vmatprep.subr.bf16.mxu0 0
        %3639 = vmatpush2.bf16.msra.mxu0 0
        %3640 = vmatprep.subr.bf16.mxu0 0
        %3641 = vmatpush2.bf16.msra.mxu0 0
        %3642 = vmatprep.subr.bf16.mxu0 0
        %3643 = vmatpush2.bf16.msra.mxu0 0
        %3644 = vmatprep.subr.bf16.mxu0 0
        %3645 = vmatpush2.bf16.msra.mxu0 0
        %3646 = vmatprep.subr.bf16.mxu0 0
        %3647 = vmatpush2.bf16.msra.mxu0 0
        %3648 = vmatprep.subr.bf16.mxu0 0
        %3649 = vmatpush2.bf16.msra.mxu0 0
        %3650 = vmatprep.subr.bf16.mxu0 0
        %3651 = vmatpush2.bf16.msra.mxu0 0
        %3652 = vmatprep.mubr.bf16.mxu0 0
        %3653 = vmatmul.mubr.bf16.gmra.mxu0 %v3612
        %v3654 = vpop.f32.mrf.mxu0
        %v3655 = vadd.f32 0.0, %v3654
        %v3656 = vpop.f32.mrf.mxu0
        %v3657 = vpop.f32.mrf.mxu0
        %v3658 = vadd.f32 0.0, %v3657
        %v3659 = vpop.f32.mrf.mxu0
        %3660 = vmatprep.mubr.bf16.mxu0 0
        %3661 = vmatmul.mubr.bf16.gmra.mxu0 %v3615
        %v3662 = vpop.f32.mrf.mxu0
        %v3663 = vadd.f32 0.0, %v3662
        %v3664 = vpop.f32.mrf.mxu0
        %v3665 = vpop.f32.mrf.mxu0
        %v3666 = vadd.f32 0.0, %v3665
        %v3667 = vpop.f32.mrf.mxu0
        %3668 = vmatprep.mubr.bf16.mxu0 0
        %3669 = vmatmul.mubr.bf16.gmra.mxu0 %v3618
        %v3670 = vpop.f32.mrf.mxu0
        %v3671 = vadd.f32 0.0, %v3670
        %v3672 = vpop.f32.mrf.mxu0
        %v3673 = vpop.f32.mrf.mxu0
        %v3674 = vpop.f32.mrf.mxu0
        %3675 = vdwg.mxu0
        %v3676 = vld [vmem:[%s178] sm:$0xff]
        %v3677 = vld [vmem:[%s178 + $0x8] sm:$0xff]
        %v3678 = vld [vmem:[%s178 + $0x10] sm:$0xff]
        %v3679 = vld [vmem:[%s178 + $0x18] sm:$0xff]
        %v3680 = vld [vmem:[%s178 + $0x20] sm:$0xff]
        %v3681 = vadd.f32 %v3676, %v3655
        %v3682 = vadd.f32 %v3677, %v3658
        %v3683 = vadd.f32 %v3678, %v3663
        %v3684 = vadd.f32 %v3679, %v3666
        %v3685 = vadd.f32 %v3680, %v3671
        %3686 = vst [vmem:[%s178] sm:$0xff] %v3681
        %3687 = vst [vmem:[%s178 + $0x8] sm:$0xff] %v3682
        %3688 = vst [vmem:[%s178 + $0x10] sm:$0xff] %v3683
        %3689 = vst [vmem:[%s178 + $0x18] sm:$0xff] %v3684
        %3690 = vst [vmem:[%s178 + $0x20] sm:$0xff] %v3685
        %v3691 = vld [vmem:[%s183 + $0x70] sm:$0xe]
        %v3692 = vld [vmem:[%s183 + $0x74] sm:$0xf]
        %v3693 = vld [vmem:[%s183 + $0x78] sm:$0xf]
        %v3694 = vld [vmem:[%s183 + $0x7c] sm:$0xf]
        %v3695 = vld [vmem:[%s183 + $0x80] sm:$0xf]
        %v3696 = vld [vmem:[%s183 + $0x84] sm:$0x1]
        %v3697 = vld [vmem:[#allocation2 + $0xe8] sm:$0xf]
        %v3698 = vld [vmem:[#allocation2 + $0xec] sm:$0xf]
        %v3705 = vunpack.c.l.b16 %v3691
        %v3706 = vunpack.c.l.b16 %v3692
        %v3707 = vunpack.c.l.b16 %v3693
        %v3708 = vunpack.c.l.b16 %v3694
        %v3709 = vunpack.c.l.b16 %v3695
        %v3710 = vunpack.c.l.b16 %v3696
        %v3711 = vpack.c.b16 %v3706, %v3705
        %v3712 = vpack.c.b16 %v3708, %v3707
        %v3713 = vpack.c.b16 %v3710, %v3709
        %v3714 = vrot.slane %v3711, 1
        %v3715 = vrot.slane %v3712, 1
        %v3716 = vsel %vm676, %v3714, %v3715
        %v3717 = vrot.slane %v3713, 1
        %v3718 = vsel %vm676, %v3715, %v3717
        %v3721 = vunpack.c.l.b16 %v3697
        %v3722 = vunpack.c.l.b16 %v3698
        %v3723 = vpack.c.b16 %v3722, %v3721
        %v3726 = vsel %vm211, %v3716, 0
        %v3729 = vsel %vm211, %v3718, 0
        %v3732 = vsel %vm211, %v3717, 0
        %3734 = vmatprep.subr.bf16.mxu0 0
        %3735 = vmatpush1.bf16.msra.mxu0 0
        %3736 = vmatprep.subr.bf16.mxu0 0
        %3737 = vmatpush1.bf16.msra.mxu0 0
        %3738 = vmatprep.subr.bf16.mxu0 0
        %3739 = vmatpush1.bf16.msra.mxu0 0
        %3740 = vmatprep.subr.bf16.mxu0 0
        %3741 = vmatpush1.bf16.msra.mxu0 0
        %3742 = vmatprep.subr.bf16.mxu0 0
        %3743 = vmatpush1.bf16.msra.mxu0 0
        %3744 = vmatprep.subr.bf16.mxu0 0
        %3745 = vmatpush1.bf16.msra.mxu0 0
        %3746 = vmatprep.subr.bf16.mxu0 0
        %3747 = vmatpush1.bf16.msra.mxu0 0
        %3748 = vmatprep.subr.bf16.mxu0 0
        %3749 = vmatpush1.bf16.msra.mxu0 %v3723
        %3750 = vmatprep.subr.bf16.mxu0 0
        %3751 = vmatpush2.bf16.msra.mxu0 0
        %3752 = vmatprep.subr.bf16.mxu0 0
        %3753 = vmatpush2.bf16.msra.mxu0 0
        %3754 = vmatprep.subr.bf16.mxu0 0
        %3755 = vmatpush2.bf16.msra.mxu0 0
        %3756 = vmatprep.subr.bf16.mxu0 0
        %3757 = vmatpush2.bf16.msra.mxu0 0
        %3758 = vmatprep.subr.bf16.mxu0 0
        %3759 = vmatpush2.bf16.msra.mxu0 0
        %3760 = vmatprep.subr.bf16.mxu0 0
        %3761 = vmatpush2.bf16.msra.mxu0 0
        %3762 = vmatprep.subr.bf16.mxu0 0
        %3763 = vmatpush2.bf16.msra.mxu0 0
        %3764 = vmatprep.subr.bf16.mxu0 0
        %3765 = vmatpush2.bf16.msra.mxu0 0
        %3766 = vmatprep.mubr.bf16.mxu0 0
        %3767 = vmatmul.mubr.bf16.gmra.mxu0 %v3726
        %v3768 = vpop.f32.mrf.mxu0
        %v3769 = vadd.f32 0.0, %v3768
        %v3770 = vpop.f32.mrf.mxu0
        %v3771 = vpop.f32.mrf.mxu0
        %v3772 = vadd.f32 0.0, %v3771
        %v3773 = vpop.f32.mrf.mxu0
        %3774 = vmatprep.mubr.bf16.mxu0 0
        %3775 = vmatmul.mubr.bf16.gmra.mxu0 %v3729
        %v3776 = vpop.f32.mrf.mxu0
        %v3777 = vadd.f32 0.0, %v3776
        %v3778 = vpop.f32.mrf.mxu0
        %v3779 = vpop.f32.mrf.mxu0
        %v3780 = vadd.f32 0.0, %v3779
        %v3781 = vpop.f32.mrf.mxu0
        %3782 = vmatprep.mubr.bf16.mxu0 0
        %3783 = vmatmul.mubr.bf16.gmra.mxu0 %v3732
        %v3784 = vpop.f32.mrf.mxu0
        %v3785 = vadd.f32 0.0, %v3784
        %v3786 = vpop.f32.mrf.mxu0
        %v3787 = vpop.f32.mrf.mxu0
        %v3788 = vpop.f32.mrf.mxu0
        %3789 = vdwg.mxu0
        %v3790 = vld [vmem:[%s178] sm:$0xff]
        %v3791 = vld [vmem:[%s178 + $0x8] sm:$0xff]
        %v3792 = vld [vmem:[%s178 + $0x10] sm:$0xff]
        %v3793 = vld [vmem:[%s178 + $0x18] sm:$0xff]
        %v3794 = vld [vmem:[%s178 + $0x20] sm:$0xff]
        %v3795 = vadd.f32 %v3790, %v3769
        %v3796 = vadd.f32 %v3791, %v3772
        %v3797 = vadd.f32 %v3792, %v3777
        %v3798 = vadd.f32 %v3793, %v3780
        %v3799 = vadd.f32 %v3794, %v3785
        %3800 = vst [vmem:[%s178] sm:$0xff] %v3795
        %3801 = vst [vmem:[%s178 + $0x8] sm:$0xff] %v3796
        %3802 = vst [vmem:[%s178 + $0x10] sm:$0xff] %v3797
        %3803 = vst [vmem:[%s178 + $0x18] sm:$0xff] %v3798
        %3804 = vst [vmem:[%s178 + $0x20] sm:$0xff] %v3799
        %v3805 = vld [vmem:[%s183 + $0x4c] sm:$0xe]
        %v3806 = vld [vmem:[%s183 + $0x50] sm:$0xf]
        %v3807 = vld [vmem:[%s183 + $0x54] sm:$0xf]
        %v3808 = vld [vmem:[%s183 + $0x58] sm:$0xf]
        %v3809 = vld [vmem:[%s183 + $0x5c] sm:$0xf]
        %v3810 = vld [vmem:[%s183 + $0x60] sm:$0x3]
        %v3811 = vld [vmem:[#allocation2 + $0xf0] sm:$0xf]
        %v3812 = vld [vmem:[#allocation2 + $0xf4] sm:$0xf]
        %v3819 = vunpack.c.l.b16 %v3805
        %v3820 = vunpack.c.l.b16 %v3806
        %v3821 = vunpack.c.l.b16 %v3807
        %v3822 = vunpack.c.l.b16 %v3808
        %v3823 = vunpack.c.l.b16 %v3809
        %v3824 = vunpack.c.l.b16 %v3810
        %v3825 = vpack.c.b16 %v3820, %v3819
        %v3826 = vpack.c.b16 %v3822, %v3821
        %v3827 = vpack.c.b16 %v3824, %v3823
        %v3829 = vshrl.u32 %v3825, 16
        %v3831 = vrot.slane %v3829, 1
        %v3832 = vshll.u32 %v3825, 16
        %v3834 = vrot.slane %v3832, 2
        %v3835 = vor.u32 %v3831, %v3834
        %v3837 = vshrl.u32 %v3826, 16
        %v3839 = vrot.slane %v3837, 1
        %v3840 = vshll.u32 %v3826, 16
        %v3842 = vrot.slane %v3840, 2
        %v3843 = vor.u32 %v3839, %v3842
        %v3844 = vsel %vm905, %v3835, %v3843
        %v3846 = vshrl.u32 %v3827, 16
        %v3848 = vrot.slane %v3846, 1
        %v3849 = vshll.u32 %v3827, 16
        %v3851 = vrot.slane %v3849, 2
        %v3852 = vor.u32 %v3848, %v3851
        %v3853 = vsel %vm905, %v3843, %v3852
        %v3856 = vunpack.c.l.b16 %v3811
        %v3857 = vunpack.c.l.b16 %v3812
        %v3858 = vpack.c.b16 %v3857, %v3856
        %v3861 = vsel %vm211, %v3844, 0
        %v3864 = vsel %vm211, %v3853, 0
        %v3867 = vsel %vm211, %v3852, 0
        %3869 = vmatprep.subr.bf16.mxu0 0
        %3870 = vmatpush1.bf16.msra.mxu0 0
        %3871 = vmatprep.subr.bf16.mxu0 0
        %3872 = vmatpush1.bf16.msra.mxu0 0
        %3873 = vmatprep.subr.bf16.mxu0 0
        %3874 = vmatpush1.bf16.msra.mxu0 0
        %3875 = vmatprep.subr.bf16.mxu0 0
        %3876 = vmatpush1.bf16.msra.mxu0 0
        %3877 = vmatprep.subr.bf16.mxu0 0
        %3878 = vmatpush1.bf16.msra.mxu0 0
        %3879 = vmatprep.subr.bf16.mxu0 0
        %3880 = vmatpush1.bf16.msra.mxu0 0
        %3881 = vmatprep.subr.bf16.mxu0 0
        %3882 = vmatpush1.bf16.msra.mxu0 0
        %3883 = vmatprep.subr.bf16.mxu0 0
        %3884 = vmatpush1.bf16.msra.mxu0 %v3858
        %3885 = vmatprep.subr.bf16.mxu0 0
        %3886 = vmatpush2.bf16.msra.mxu0 0
        %3887 = vmatprep.subr.bf16.mxu0 0
        %3888 = vmatpush2.bf16.msra.mxu0 0
        %3889 = vmatprep.subr.bf16.mxu0 0
        %3890 = vmatpush2.bf16.msra.mxu0 0
        %3891 = vmatprep.subr.bf16.mxu0 0
        %3892 = vmatpush2.bf16.msra.mxu0 0
        %3893 = vmatprep.subr.bf16.mxu0 0
        %3894 = vmatpush2.bf16.msra.mxu0 0
        %3895 = vmatprep.subr.bf16.mxu0 0
        %3896 = vmatpush2.bf16.msra.mxu0 0
        %3897 = vmatprep.subr.bf16.mxu0 0
        %3898 = vmatpush2.bf16.msra.mxu0 0
        %3899 = vmatprep.subr.bf16.mxu0 0
        %3900 = vmatpush2.bf16.msra.mxu0 0
        %3901 = vmatprep.mubr.bf16.mxu0 0
        %3902 = vmatmul.mubr.bf16.gmra.mxu0 %v3861
        %v3903 = vpop.f32.mrf.mxu0
        %v3904 = vadd.f32 0.0, %v3903
        %v3905 = vpop.f32.mrf.mxu0
        %v3906 = vpop.f32.mrf.mxu0
        %v3907 = vadd.f32 0.0, %v3906
        %v3908 = vpop.f32.mrf.mxu0
        %3909 = vmatprep.mubr.bf16.mxu0 0
        %3910 = vmatmul.mubr.bf16.gmra.mxu0 %v3864
        %v3911 = vpop.f32.mrf.mxu0
        %v3912 = vadd.f32 0.0, %v3911
        %v3913 = vpop.f32.mrf.mxu0
        %v3914 = vpop.f32.mrf.mxu0
        %v3915 = vadd.f32 0.0, %v3914
        %v3916 = vpop.f32.mrf.mxu0
        %3917 = vmatprep.mubr.bf16.mxu0 0
        %3918 = vmatmul.mubr.bf16.gmra.mxu0 %v3867
        %v3919 = vpop.f32.mrf.mxu0
        %v3920 = vadd.f32 0.0, %v3919
        %v3921 = vpop.f32.mrf.mxu0
        %v3922 = vpop.f32.mrf.mxu0
        %v3923 = vpop.f32.mrf.mxu0
        %3924 = vdwg.mxu0
        %v3925 = vld [vmem:[%s178] sm:$0xff]
        %v3926 = vld [vmem:[%s178 + $0x8] sm:$0xff]
        %v3927 = vld [vmem:[%s178 + $0x10] sm:$0xff]
        %v3928 = vld [vmem:[%s178 + $0x18] sm:$0xff]
        %v3929 = vld [vmem:[%s178 + $0x20] sm:$0xff]
        %v3930 = vadd.f32 %v3925, %v3904
        %v3931 = vadd.f32 %v3926, %v3907
        %v3932 = vadd.f32 %v3927, %v3912
        %v3933 = vadd.f32 %v3928, %v3915
        %v3934 = vadd.f32 %v3929, %v3920
        %3935 = vst [vmem:[%s178] sm:$0xff] %v3930
        %3936 = vst [vmem:[%s178 + $0x8] sm:$0xff] %v3931
        %3937 = vst [vmem:[%s178 + $0x10] sm:$0xff] %v3932
        %3938 = vst [vmem:[%s178 + $0x18] sm:$0xff] %v3933
        %3939 = vst [vmem:[%s178 + $0x20] sm:$0xff] %v3934
        %v3940 = vld [vmem:[%s183 + $0x70] sm:$0xe]
        %v3941 = vld [vmem:[%s183 + $0x74] sm:$0xf]
        %v3942 = vld [vmem:[%s183 + $0x78] sm:$0xf]
        %v3943 = vld [vmem:[%s183 + $0x7c] sm:$0xf]
        %v3944 = vld [vmem:[%s183 + $0x80] sm:$0xf]
        %v3945 = vld [vmem:[%s183 + $0x84] sm:$0x3]
        %v3946 = vld [vmem:[#allocation2 + $0xf8] sm:$0xf]
        %v3947 = vld [vmem:[#allocation2 + $0xfc] sm:$0xf]
        %v3954 = vunpack.c.l.b16 %v3940
        %v3955 = vunpack.c.l.b16 %v3941
        %v3956 = vunpack.c.l.b16 %v3942
        %v3957 = vunpack.c.l.b16 %v3943
        %v3958 = vunpack.c.l.b16 %v3944
        %v3959 = vunpack.c.l.b16 %v3945
        %v3960 = vpack.c.b16 %v3955, %v3954
        %v3961 = vpack.c.b16 %v3957, %v3956
        %v3962 = vpack.c.b16 %v3959, %v3958
        %v3964 = vshrl.u32 %v3960, 16
        %v3966 = vrot.slane %v3964, 1
        %v3967 = vshll.u32 %v3960, 16
        %v3969 = vrot.slane %v3967, 2
        %v3970 = vor.u32 %v3966, %v3969
        %v3972 = vshrl.u32 %v3961, 16
        %v3974 = vrot.slane %v3972, 1
        %v3975 = vshll.u32 %v3961, 16
        %v3977 = vrot.slane %v3975, 2
        %v3978 = vor.u32 %v3974, %v3977
        %v3979 = vsel %vm905, %v3970, %v3978
        %v3981 = vshrl.u32 %v3962, 16
        %v3983 = vrot.slane %v3981, 1
        %v3984 = vshll.u32 %v3962, 16
        %v3986 = vrot.slane %v3984, 2
        %v3987 = vor.u32 %v3983, %v3986
        %v3988 = vsel %vm905, %v3978, %v3987
        %v3991 = vunpack.c.l.b16 %v3946
        %v3992 = vunpack.c.l.b16 %v3947
        %v3993 = vpack.c.b16 %v3992, %v3991
        %v3996 = vsel %vm211, %v3979, 0
        %v3999 = vsel %vm211, %v3988, 0
        %v4002 = vsel %vm211, %v3987, 0
        %4004 = vmatprep.subr.bf16.mxu0 0
        %4005 = vmatpush1.bf16.msra.mxu0 0
        %4006 = vmatprep.subr.bf16.mxu0 0
        %4007 = vmatpush1.bf16.msra.mxu0 0
        %4008 = vmatprep.subr.bf16.mxu0 0
        %4009 = vmatpush1.bf16.msra.mxu0 0
        %4010 = vmatprep.subr.bf16.mxu0 0
        %4011 = vmatpush1.bf16.msra.mxu0 0
        %4012 = vmatprep.subr.bf16.mxu0 0
        %4013 = vmatpush1.bf16.msra.mxu0 0
        %4014 = vmatprep.subr.bf16.mxu0 0
        %4015 = vmatpush1.bf16.msra.mxu0 0
        %4016 = vmatprep.subr.bf16.mxu0 0
        %4017 = vmatpush1.bf16.msra.mxu0 0
        %4018 = vmatprep.subr.bf16.mxu0 0
        %4019 = vmatpush1.bf16.msra.mxu0 %v3993
        %4020 = vmatprep.subr.bf16.mxu0 0
        %4021 = vmatpush2.bf16.msra.mxu0 0
        %4022 = vmatprep.subr.bf16.mxu0 0
        %4023 = vmatpush2.bf16.msra.mxu0 0
        %4024 = vmatprep.subr.bf16.mxu0 0
        %4025 = vmatpush2.bf16.msra.mxu0 0
        %4026 = vmatprep.subr.bf16.mxu0 0
        %4027 = vmatpush2.bf16.msra.mxu0 0
        %4028 = vmatprep.subr.bf16.mxu0 0
        %4029 = vmatpush2.bf16.msra.mxu0 0
        %4030 = vmatprep.subr.bf16.mxu0 0
        %4031 = vmatpush2.bf16.msra.mxu0 0
        %4032 = vmatprep.subr.bf16.mxu0 0
        %4033 = vmatpush2.bf16.msra.mxu0 0
        %4034 = vmatprep.subr.bf16.mxu0 0
        %4035 = vmatpush2.bf16.msra.mxu0 0
        %4036 = vmatprep.mubr.bf16.mxu0 0
        %4037 = vmatmul.mubr.bf16.gmra.mxu0 %v3996
        %v4038 = vpop.f32.mrf.mxu0
        %v4039 = vadd.f32 0.0, %v4038
        %v4040 = vpop.f32.mrf.mxu0
        %v4041 = vpop.f32.mrf.mxu0
        %v4042 = vadd.f32 0.0, %v4041
        %v4043 = vpop.f32.mrf.mxu0
        %4044 = vmatprep.mubr.bf16.mxu0 0
        %4045 = vmatmul.mubr.bf16.gmra.mxu0 %v3999
        %v4046 = vpop.f32.mrf.mxu0
        %v4047 = vadd.f32 0.0, %v4046
        %v4048 = vpop.f32.mrf.mxu0
        %v4049 = vpop.f32.mrf.mxu0
        %v4050 = vadd.f32 0.0, %v4049
        %v4051 = vpop.f32.mrf.mxu0
        %4052 = vmatprep.mubr.bf16.mxu0 0
        %4053 = vmatmul.mubr.bf16.gmra.mxu0 %v4002
        %v4054 = vpop.f32.mrf.mxu0
        %v4055 = vadd.f32 0.0, %v4054
        %v4056 = vpop.f32.mrf.mxu0
        %v4057 = vpop.f32.mrf.mxu0
        %v4058 = vpop.f32.mrf.mxu0
        %4059 = vdwg.mxu0
        %v4060 = vld [vmem:[%s178] sm:$0xff]
        %v4061 = vld [vmem:[%s178 + $0x8] sm:$0xff]
        %v4062 = vld [vmem:[%s178 + $0x10] sm:$0xff]
        %v4063 = vld [vmem:[%s178 + $0x18] sm:$0xff]
        %v4064 = vld [vmem:[%s178 + $0x20] sm:$0xff]
        %v4065 = vadd.f32 %v4060, %v4039
        %v4066 = vadd.f32 %v4061, %v4042
        %v4067 = vadd.f32 %v4062, %v4047
        %v4068 = vadd.f32 %v4063, %v4050
        %v4069 = vadd.f32 %v4064, %v4055
        %4070 = vst [vmem:[%s178] sm:$0xff] %v4065
        %4071 = vst [vmem:[%s178 + $0x8] sm:$0xff] %v4066
        %4072 = vst [vmem:[%s178 + $0x10] sm:$0xff] %v4067
        %4073 = vst [vmem:[%s178 + $0x18] sm:$0xff] %v4068
        %4074 = vst [vmem:[%s178 + $0x20] sm:$0xff] %v4069
        %v4075 = vld [vmem:[%s183 + $0x8] sm:$0xf]
        %v4076 = vld [vmem:[%s183 + $0xc] sm:$0xf]
        %v4077 = vld [vmem:[%s183 + $0x10] sm:$0xf]
        %v4078 = vld [vmem:[%s183 + $0x14] sm:$0xf]
        %v4079 = vld [vmem:[%s183 + $0x18] sm:$0xf]
        %v4080 = vld [vmem:[#allocation2 + $0x100] sm:$0xf]
        %v4081 = vld [vmem:[#allocation2 + $0x104] sm:$0xf]
        %v4087 = vunpack.c.l.b16 %v4075
        %v4088 = vunpack.c.l.b16 %v4076
        %v4089 = vunpack.c.l.b16 %v4077
        %v4090 = vunpack.c.l.b16 %v4078
        %v4091 = vunpack.c.l.b16 %v4079
        %v4092 = vpack.c.b16 %v4088, %v4087
        %v4093 = vpack.c.b16 %v4090, %v4089
        %v4094 = vpack.c.b16 %v4091, %v4091
        %v4097 = vunpack.c.l.b16 %v4080
        %v4098 = vunpack.c.l.b16 %v4081
        %v4099 = vpack.c.b16 %v4098, %v4097
        %v4102 = vsel %vm211, %v4092, 0
        %v4105 = vsel %vm211, %v4093, 0
        %v4108 = vsel %vm211, %v4094, 0
        %4110 = vmatprep.subr.bf16.mxu0 0
        %4111 = vmatpush1.bf16.msra.mxu0 0
        %4112 = vmatprep.subr.bf16.mxu0 0
        %4113 = vmatpush1.bf16.msra.mxu0 0
        %4114 = vmatprep.subr.bf16.mxu0 0
        %4115 = vmatpush1.bf16.msra.mxu0 0
        %4116 = vmatprep.subr.bf16.mxu0 0
        %4117 = vmatpush1.bf16.msra.mxu0 0
        %4118 = vmatprep.subr.bf16.mxu0 0
        %4119 = vmatpush1.bf16.msra.mxu0 0
        %4120 = vmatprep.subr.bf16.mxu0 0
        %4121 = vmatpush1.bf16.msra.mxu0 0
        %4122 = vmatprep.subr.bf16.mxu0 0
        %4123 = vmatpush1.bf16.msra.mxu0 0
        %4124 = vmatprep.subr.bf16.mxu0 0
        %4125 = vmatpush1.bf16.msra.mxu0 %v4099
        %4126 = vmatprep.subr.bf16.mxu0 0
        %4127 = vmatpush2.bf16.msra.mxu0 0
        %4128 = vmatprep.subr.bf16.mxu0 0
        %4129 = vmatpush2.bf16.msra.mxu0 0
        %4130 = vmatprep.subr.bf16.mxu0 0
        %4131 = vmatpush2.bf16.msra.mxu0 0
        %4132 = vmatprep.subr.bf16.mxu0 0
        %4133 = vmatpush2.bf16.msra.mxu0 0
        %4134 = vmatprep.subr.bf16.mxu0 0
        %4135 = vmatpush2.bf16.msra.mxu0 0
        %4136 = vmatprep.subr.bf16.mxu0 0
        %4137 = vmatpush2.bf16.msra.mxu0 0
        %4138 = vmatprep.subr.bf16.mxu0 0
        %4139 = vmatpush2.bf16.msra.mxu0 0
        %4140 = vmatprep.subr.bf16.mxu0 0
        %4141 = vmatpush2.bf16.msra.mxu0 0
        %4142 = vmatprep.mubr.bf16.mxu0 0
        %4143 = vmatmul.mubr.bf16.gmra.mxu0 %v4102
        %v4144 = vpop.f32.mrf.mxu0
        %v4145 = vadd.f32 0.0, %v4144
        %v4146 = vpop.f32.mrf.mxu0
        %v4147 = vpop.f32.mrf.mxu0
        %v4148 = vadd.f32 0.0, %v4147
        %v4149 = vpop.f32.mrf.mxu0
        %4150 = vmatprep.mubr.bf16.mxu0 0
        %4151 = vmatmul.mubr.bf16.gmra.mxu0 %v4105
        %v4152 = vpop.f32.mrf.mxu0
        %v4153 = vadd.f32 0.0, %v4152
        %v4154 = vpop.f32.mrf.mxu0
        %v4155 = vpop.f32.mrf.mxu0
        %v4156 = vadd.f32 0.0, %v4155
        %v4157 = vpop.f32.mrf.mxu0
        %4158 = vmatprep.mubr.bf16.mxu0 0
        %4159 = vmatmul.mubr.bf16.gmra.mxu0 %v4108
        %v4160 = vpop.f32.mrf.mxu0
        %v4161 = vadd.f32 0.0, %v4160
        %v4162 = vpop.f32.mrf.mxu0
        %v4163 = vpop.f32.mrf.mxu0
        %v4164 = vpop.f32.mrf.mxu0
        %4165 = vdwg.mxu0
        %v4166 = vld [vmem:[%s178] sm:$0xff]
        %v4167 = vld [vmem:[%s178 + $0x8] sm:$0xff]
        %v4168 = vld [vmem:[%s178 + $0x10] sm:$0xff]
        %v4169 = vld [vmem:[%s178 + $0x18] sm:$0xff]
        %v4170 = vld [vmem:[%s178 + $0x20] sm:$0xff]
        %v4171 = vadd.f32 %v4166, %v4145
        %v4172 = vadd.f32 %v4167, %v4148
        %v4173 = vadd.f32 %v4168, %v4153
        %v4174 = vadd.f32 %v4169, %v4156
        %v4175 = vadd.f32 %v4170, %v4161
        %4176 = vst [vmem:[%s178] sm:$0xff] %v4171
        %4177 = vst [vmem:[%s178 + $0x8] sm:$0xff] %v4172
        %4178 = vst [vmem:[%s178 + $0x10] sm:$0xff] %v4173
        %4179 = vst [vmem:[%s178 + $0x18] sm:$0xff] %v4174
        %4180 = vst [vmem:[%s178 + $0x20] sm:$0xff] %v4175
        %v4181 = vld [vmem:[%s183 + $0x2c] sm:$0xf]
        %v4182 = vld [vmem:[%s183 + $0x30] sm:$0xf]
        %v4183 = vld [vmem:[%s183 + $0x34] sm:$0xf]
        %v4184 = vld [vmem:[%s183 + $0x38] sm:$0xf]
        %v4185 = vld [vmem:[%s183 + $0x3c] sm:$0xf]
        %v4186 = vld [vmem:[#allocation2 + $0x108] sm:$0xf]
        %v4187 = vld [vmem:[#allocation2 + $0x10c] sm:$0xf]
        %v4193 = vunpack.c.l.b16 %v4181
        %v4194 = vunpack.c.l.b16 %v4182
        %v4195 = vunpack.c.l.b16 %v4183
        %v4196 = vunpack.c.l.b16 %v4184
        %v4197 = vunpack.c.l.b16 %v4185
        %v4198 = vpack.c.b16 %v4194, %v4193
        %v4199 = vpack.c.b16 %v4196, %v4195
        %v4200 = vpack.c.b16 %v4197, %v4197
        %v4203 = vunpack.c.l.b16 %v4186
        %v4204 = vunpack.c.l.b16 %v4187
        %v4205 = vpack.c.b16 %v4204, %v4203
        %v4208 = vsel %vm211, %v4198, 0
        %v4211 = vsel %vm211, %v4199, 0
        %v4214 = vsel %vm211, %v4200, 0
        %4216 = vmatprep.subr.bf16.mxu0 0
        %4217 = vmatpush1.bf16.msra.mxu0 0
        %4218 = vmatprep.subr.bf16.mxu0 0
        %4219 = vmatpush1.bf16.msra.mxu0 0
        %4220 = vmatprep.subr.bf16.mxu0 0
        %4221 = vmatpush1.bf16.msra.mxu0 0
        %4222 = vmatprep.subr.bf16.mxu0 0
        %4223 = vmatpush1.bf16.msra.mxu0 0
        %4224 = vmatprep.subr.bf16.mxu0 0
        %4225 = vmatpush1.bf16.msra.mxu0 0
        %4226 = vmatprep.subr.bf16.mxu0 0
        %4227 = vmatpush1.bf16.msra.mxu0 0
        %4228 = vmatprep.subr.bf16.mxu0 0
        %4229 = vmatpush1.bf16.msra.mxu0 0
        %4230 = vmatprep.subr.bf16.mxu0 0
        %4231 = vmatpush1.bf16.msra.mxu0 %v4205
        %4232 = vmatprep.subr.bf16.mxu0 0
        %4233 = vmatpush2.bf16.msra.mxu0 0
        %4234 = vmatprep.subr.bf16.mxu0 0
        %4235 = vmatpush2.bf16.msra.mxu0 0
        %4236 = vmatprep.subr.bf16.mxu0 0
        %4237 = vmatpush2.bf16.msra.mxu0 0
        %4238 = vmatprep.subr.bf16.mxu0 0
        %4239 = vmatpush2.bf16.msra.mxu0 0
        %4240 = vmatprep.subr.bf16.mxu0 0
        %4241 = vmatpush2.bf16.msra.mxu0 0
        %4242 = vmatprep.subr.bf16.mxu0 0
        %4243 = vmatpush2.bf16.msra.mxu0 0
        %4244 = vmatprep.subr.bf16.mxu0 0
        %4245 = vmatpush2.bf16.msra.mxu0 0
        %4246 = vmatprep.subr.bf16.mxu0 0
        %4247 = vmatpush2.bf16.msra.mxu0 0
        %4248 = vmatprep.mubr.bf16.mxu0 0
        %4249 = vmatmul.mubr.bf16.gmra.mxu0 %v4208
        %v4250 = vpop.f32.mrf.mxu0
        %v4251 = vadd.f32 0.0, %v4250
        %v4252 = vpop.f32.mrf.mxu0
        %v4253 = vpop.f32.mrf.mxu0
        %v4254 = vadd.f32 0.0, %v4253
        %v4255 = vpop.f32.mrf.mxu0
        %4256 = vmatprep.mubr.bf16.mxu0 0
        %4257 = vmatmul.mubr.bf16.gmra.mxu0 %v4211
        %v4258 = vpop.f32.mrf.mxu0
        %v4259 = vadd.f32 0.0, %v4258
        %v4260 = vpop.f32.mrf.mxu0
        %v4261 = vpop.f32.mrf.mxu0
        %v4262 = vadd.f32 0.0, %v4261
        %v4263 = vpop.f32.mrf.mxu0
        %4264 = vmatprep.mubr.bf16.mxu0 0
        %4265 = vmatmul.mubr.bf16.gmra.mxu0 %v4214
        %v4266 = vpop.f32.mrf.mxu0
        %v4267 = vadd.f32 0.0, %v4266
        %v4268 = vpop.f32.mrf.mxu0
        %v4269 = vpop.f32.mrf.mxu0
        %v4270 = vpop.f32.mrf.mxu0
        %4271 = vdwg.mxu0
        %v4272 = vld [vmem:[%s178] sm:$0xff]
        %v4273 = vld [vmem:[%s178 + $0x8] sm:$0xff]
        %v4274 = vld [vmem:[%s178 + $0x10] sm:$0xff]
        %v4275 = vld [vmem:[%s178 + $0x18] sm:$0xff]
        %v4276 = vld [vmem:[%s178 + $0x20] sm:$0xff]
        %v4277 = vadd.f32 %v4272, %v4251
        %v4278 = vadd.f32 %v4273, %v4254
        %v4279 = vadd.f32 %v4274, %v4259
        %v4280 = vadd.f32 %v4275, %v4262
        %v4281 = vadd.f32 %v4276, %v4267
        %4282 = vst [vmem:[%s178] sm:$0xff] %v4277
        %4283 = vst [vmem:[%s178 + $0x8] sm:$0xff] %v4278
        %4284 = vst [vmem:[%s178 + $0x10] sm:$0xff] %v4279
        %4285 = vst [vmem:[%s178 + $0x18] sm:$0xff] %v4280
        %4286 = vst [vmem:[%s178 + $0x20] sm:$0xff] %v4281
        %v4287 = vld [vmem:[%s183 + $0x8] sm:$0xf]
        %v4288 = vld [vmem:[%s183 + $0xc] sm:$0xf]
        %v4289 = vld [vmem:[%s183 + $0x10] sm:$0xf]
        %v4290 = vld [vmem:[%s183 + $0x14] sm:$0xf]
        %v4291 = vld [vmem:[%s183 + $0x18] sm:$0xf]
        %v4292 = vld [vmem:[%s183 + $0x1c] sm:$0x1]
        %v4293 = vld [vmem:[#allocation2 + $0x110] sm:$0xf]
        %v4294 = vld [vmem:[#allocation2 + $0x114] sm:$0xf]
        %v4301 = vunpack.c.l.b16 %v4287
        %v4302 = vunpack.c.l.b16 %v4288
        %v4303 = vunpack.c.l.b16 %v4289
        %v4304 = vunpack.c.l.b16 %v4290
        %v4305 = vunpack.c.l.b16 %v4291
        %v4306 = vunpack.c.l.b16 %v4292
        %v4307 = vpack.c.b16 %v4302, %v4301
        %v4308 = vpack.c.b16 %v4304, %v4303
        %v4309 = vpack.c.b16 %v4306, %v4305
        %v4311 = vshrl.u32 %v4307, 16
        %v4313 = vshll.u32 %v4307, 16
        %v4315 = vrot.slane %v4313, 1
        %v4316 = vor.u32 %v4311, %v4315
        %v4318 = vshll.u32 %v4308, 16
        %v4320 = vrot.slane %v4318, 1
        %v4321 = vsel %vm411, %v4316, %v4320
        %v4322 = vshrl.u32 %v4308, 16
        %v4324 = vor.u32 %v4322, %v4320
        %v4326 = vshll.u32 %v4309, 16
        %v4328 = vrot.slane %v4326, 1
        %v4329 = vsel %vm411, %v4324, %v4328
        %v4330 = vshrl.u32 %v4309, 16
        %v4332 = vor.u32 %v4330, %v4328
        %v4335 = vunpack.c.l.b16 %v4293
        %v4336 = vunpack.c.l.b16 %v4294
        %v4337 = vpack.c.b16 %v4336, %v4335
        %v4340 = vsel %vm211, %v4321, 0
        %v4343 = vsel %vm211, %v4329, 0
        %v4346 = vsel %vm211, %v4332, 0
        %4348 = vmatprep.subr.bf16.mxu0 0
        %4349 = vmatpush1.bf16.msra.mxu0 0
        %4350 = vmatprep.subr.bf16.mxu0 0
        %4351 = vmatpush1.bf16.msra.mxu0 0
        %4352 = vmatprep.subr.bf16.mxu0 0
        %4353 = vmatpush1.bf16.msra.mxu0 0
        %4354 = vmatprep.subr.bf16.mxu0 0
        %4355 = vmatpush1.bf16.msra.mxu0 0
        %4356 = vmatprep.subr.bf16.mxu0 0
        %4357 = vmatpush1.bf16.msra.mxu0 0
        %4358 = vmatprep.subr.bf16.mxu0 0
        %4359 = vmatpush1.bf16.msra.mxu0 0
        %4360 = vmatprep.subr.bf16.mxu0 0
        %4361 = vmatpush1.bf16.msra.mxu0 0
        %4362 = vmatprep.subr.bf16.mxu0 0
        %4363 = vmatpush1.bf16.msra.mxu0 %v4337
        %4364 = vmatprep.subr.bf16.mxu0 0
        %4365 = vmatpush2.bf16.msra.mxu0 0
        %4366 = vmatprep.subr.bf16.mxu0 0
        %4367 = vmatpush2.bf16.msra.mxu0 0
        %4368 = vmatprep.subr.bf16.mxu0 0
        %4369 = vmatpush2.bf16.msra.mxu0 0
        %4370 = vmatprep.subr.bf16.mxu0 0
        %4371 = vmatpush2.bf16.msra.mxu0 0
        %4372 = vmatprep.subr.bf16.mxu0 0
        %4373 = vmatpush2.bf16.msra.mxu0 0
        %4374 = vmatprep.subr.bf16.mxu0 0
        %4375 = vmatpush2.bf16.msra.mxu0 0
        %4376 = vmatprep.subr.bf16.mxu0 0
        %4377 = vmatpush2.bf16.msra.mxu0 0
        %4378 = vmatprep.subr.bf16.mxu0 0
        %4379 = vmatpush2.bf16.msra.mxu0 0
        %4380 = vmatprep.mubr.bf16.mxu0 0
        %4381 = vmatmul.mubr.bf16.gmra.mxu0 %v4340
        %v4382 = vpop.f32.mrf.mxu0
        %v4383 = vadd.f32 0.0, %v4382
        %v4384 = vpop.f32.mrf.mxu0
        %v4385 = vpop.f32.mrf.mxu0
        %v4386 = vadd.f32 0.0, %v4385
        %v4387 = vpop.f32.mrf.mxu0
        %4388 = vmatprep.mubr.bf16.mxu0 0
        %4389 = vmatmul.mubr.bf16.gmra.mxu0 %v4343
        %v4390 = vpop.f32.mrf.mxu0
        %v4391 = vadd.f32 0.0, %v4390
        %v4392 = vpop.f32.mrf.mxu0
        %v4393 = vpop.f32.mrf.mxu0
        %v4394 = vadd.f32 0.0, %v4393
        %v4395 = vpop.f32.mrf.mxu0
        %4396 = vmatprep.mubr.bf16.mxu0 0
        %4397 = vmatmul.mubr.bf16.gmra.mxu0 %v4346
        %v4398 = vpop.f32.mrf.mxu0
        %v4399 = vadd.f32 0.0, %v4398
        %v4400 = vpop.f32.mrf.mxu0
        %v4401 = vpop.f32.mrf.mxu0
        %v4402 = vpop.f32.mrf.mxu0
        %4403 = vdwg.mxu0
        %v4404 = vld [vmem:[%s178] sm:$0xff]
        %v4405 = vld [vmem:[%s178 + $0x8] sm:$0xff]
        %v4406 = vld [vmem:[%s178 + $0x10] sm:$0xff]
        %v4407 = vld [vmem:[%s178 + $0x18] sm:$0xff]
        %v4408 = vld [vmem:[%s178 + $0x20] sm:$0xff]
        %v4409 = vadd.f32 %v4404, %v4383
        %v4410 = vadd.f32 %v4405, %v4386
        %v4411 = vadd.f32 %v4406, %v4391
        %v4412 = vadd.f32 %v4407, %v4394
        %v4413 = vadd.f32 %v4408, %v4399
        %4414 = vst [vmem:[%s178] sm:$0xff] %v4409
        %4415 = vst [vmem:[%s178 + $0x8] sm:$0xff] %v4410
        %4416 = vst [vmem:[%s178 + $0x10] sm:$0xff] %v4411
        %4417 = vst [vmem:[%s178 + $0x18] sm:$0xff] %v4412
        %4418 = vst [vmem:[%s178 + $0x20] sm:$0xff] %v4413
        %v4419 = vld [vmem:[%s183 + $0x2c] sm:$0xf]
        %v4420 = vld [vmem:[%s183 + $0x30] sm:$0xf]
        %v4421 = vld [vmem:[%s183 + $0x34] sm:$0xf]
        %v4422 = vld [vmem:[%s183 + $0x38] sm:$0xf]
        %v4423 = vld [vmem:[%s183 + $0x3c] sm:$0xf]
        %v4424 = vld [vmem:[%s183 + $0x40] sm:$0x1]
        %v4425 = vld [vmem:[#allocation2 + $0x118] sm:$0xf]
        %v4426 = vld [vmem:[#allocation2 + $0x11c] sm:$0xf]
        %v4433 = vunpack.c.l.b16 %v4419
        %v4434 = vunpack.c.l.b16 %v4420
        %v4435 = vunpack.c.l.b16 %v4421
        %v4436 = vunpack.c.l.b16 %v4422
        %v4437 = vunpack.c.l.b16 %v4423
        %v4438 = vunpack.c.l.b16 %v4424
        %v4439 = vpack.c.b16 %v4434, %v4433
        %v4440 = vpack.c.b16 %v4436, %v4435
        %v4441 = vpack.c.b16 %v4438, %v4437
        %v4443 = vshrl.u32 %v4439, 16
        %v4445 = vshll.u32 %v4439, 16
        %v4447 = vrot.slane %v4445, 1
        %v4448 = vor.u32 %v4443, %v4447
        %v4450 = vshll.u32 %v4440, 16
        %v4452 = vrot.slane %v4450, 1
        %v4453 = vsel %vm411, %v4448, %v4452
        %v4454 = vshrl.u32 %v4440, 16
        %v4456 = vor.u32 %v4454, %v4452
        %v4458 = vshll.u32 %v4441, 16
        %v4460 = vrot.slane %v4458, 1
        %v4461 = vsel %vm411, %v4456, %v4460
        %v4462 = vshrl.u32 %v4441, 16
        %v4464 = vor.u32 %v4462, %v4460
        %v4467 = vunpack.c.l.b16 %v4425
        %v4468 = vunpack.c.l.b16 %v4426
        %v4469 = vpack.c.b16 %v4468, %v4467
        %v4472 = vsel %vm211, %v4453, 0
        %v4475 = vsel %vm211, %v4461, 0
        %v4478 = vsel %vm211, %v4464, 0
        %4480 = vmatprep.subr.bf16.mxu0 0
        %4481 = vmatpush1.bf16.msra.mxu0 0
        %4482 = vmatprep.subr.bf16.mxu0 0
        %4483 = vmatpush1.bf16.msra.mxu0 0
        %4484 = vmatprep.subr.bf16.mxu0 0
        %4485 = vmatpush1.bf16.msra.mxu0 0
        %4486 = vmatprep.subr.bf16.mxu0 0
        %4487 = vmatpush1.bf16.msra.mxu0 0
        %4488 = vmatprep.subr.bf16.mxu0 0
        %4489 = vmatpush1.bf16.msra.mxu0 0
        %4490 = vmatprep.subr.bf16.mxu0 0
        %4491 = vmatpush1.bf16.msra.mxu0 0
        %4492 = vmatprep.subr.bf16.mxu0 0
        %4493 = vmatpush1.bf16.msra.mxu0 0
        %4494 = vmatprep.subr.bf16.mxu0 0
        %4495 = vmatpush1.bf16.msra.mxu0 %v4469
        %4496 = vmatprep.subr.bf16.mxu0 0
        %4497 = vmatpush2.bf16.msra.mxu0 0
        %4498 = vmatprep.subr.bf16.mxu0 0
        %4499 = vmatpush2.bf16.msra.mxu0 0
        %4500 = vmatprep.subr.bf16.mxu0 0
        %4501 = vmatpush2.bf16.msra.mxu0 0
        %4502 = vmatprep.subr.bf16.mxu0 0
        %4503 = vmatpush2.bf16.msra.mxu0 0
        %4504 = vmatprep.subr.bf16.mxu0 0
        %4505 = vmatpush2.bf16.msra.mxu0 0
        %4506 = vmatprep.subr.bf16.mxu0 0
        %4507 = vmatpush2.bf16.msra.mxu0 0
        %4508 = vmatprep.subr.bf16.mxu0 0
        %4509 = vmatpush2.bf16.msra.mxu0 0
        %4510 = vmatprep.subr.bf16.mxu0 0
        %4511 = vmatpush2.bf16.msra.mxu0 0
        %4512 = vmatprep.mubr.bf16.mxu0 0
        %4513 = vmatmul.mubr.bf16.gmra.mxu0 %v4472
        %v4514 = vpop.f32.mrf.mxu0
        %v4515 = vadd.f32 0.0, %v4514
        %v4516 = vpop.f32.mrf.mxu0
        %v4517 = vpop.f32.mrf.mxu0
        %v4518 = vadd.f32 0.0, %v4517
        %v4519 = vpop.f32.mrf.mxu0
        %4520 = vmatprep.mubr.bf16.mxu0 0
        %4521 = vmatmul.mubr.bf16.gmra.mxu0 %v4475
        %v4522 = vpop.f32.mrf.mxu0
        %v4523 = vadd.f32 0.0, %v4522
        %v4524 = vpop.f32.mrf.mxu0
        %v4525 = vpop.f32.mrf.mxu0
        %v4526 = vadd.f32 0.0, %v4525
        %v4527 = vpop.f32.mrf.mxu0
        %4528 = vmatprep.mubr.bf16.mxu0 0
        %4529 = vmatmul.mubr.bf16.gmra.mxu0 %v4478
        %v4530 = vpop.f32.mrf.mxu0
        %v4531 = vadd.f32 0.0, %v4530
        %v4532 = vpop.f32.mrf.mxu0
        %v4533 = vpop.f32.mrf.mxu0
        %v4534 = vpop.f32.mrf.mxu0
        %4535 = vdwg.mxu0
        %v4536 = vld [vmem:[%s178] sm:$0xff]
        %v4537 = vld [vmem:[%s178 + $0x8] sm:$0xff]
        %v4538 = vld [vmem:[%s178 + $0x10] sm:$0xff]
        %v4539 = vld [vmem:[%s178 + $0x18] sm:$0xff]
        %v4540 = vld [vmem:[%s178 + $0x20] sm:$0xff]
        %v4541 = vadd.f32 %v4536, %v4515
        %v4542 = vadd.f32 %v4537, %v4518
        %v4543 = vadd.f32 %v4538, %v4523
        %v4544 = vadd.f32 %v4539, %v4526
        %v4545 = vadd.f32 %v4540, %v4531
        %4546 = vst [vmem:[%s178] sm:$0xff] %v4541
        %4547 = vst [vmem:[%s178 + $0x8] sm:$0xff] %v4542
        %4548 = vst [vmem:[%s178 + $0x10] sm:$0xff] %v4543
        %4549 = vst [vmem:[%s178 + $0x18] sm:$0xff] %v4544
        %4550 = vst [vmem:[%s178 + $0x20] sm:$0xff] %v4545
        %v4551 = vld [vmem:[%s183 + $0x8] sm:$0xe]
        %v4552 = vld [vmem:[%s183 + $0xc] sm:$0xf]
        %v4553 = vld [vmem:[%s183 + $0x10] sm:$0xf]
        %v4554 = vld [vmem:[%s183 + $0x14] sm:$0xf]
        %v4555 = vld [vmem:[%s183 + $0x18] sm:$0xf]
        %v4556 = vld [vmem:[%s183 + $0x1c] sm:$0x1]
        %v4557 = vld [vmem:[#allocation2 + $0x120] sm:$0xf]
        %v4558 = vld [vmem:[#allocation2 + $0x124] sm:$0xf]
        %v4565 = vunpack.c.l.b16 %v4551
        %v4566 = vunpack.c.l.b16 %v4552
        %v4567 = vunpack.c.l.b16 %v4553
        %v4568 = vunpack.c.l.b16 %v4554
        %v4569 = vunpack.c.l.b16 %v4555
        %v4570 = vunpack.c.l.b16 %v4556
        %v4571 = vpack.c.b16 %v4566, %v4565
        %v4572 = vpack.c.b16 %v4568, %v4567
        %v4573 = vpack.c.b16 %v4570, %v4569
        %v4574 = vrot.slane %v4571, 1
        %v4575 = vrot.slane %v4572, 1
        %v4576 = vsel %vm676, %v4574, %v4575
        %v4577 = vrot.slane %v4573, 1
        %v4578 = vsel %vm676, %v4575, %v4577
        %v4581 = vunpack.c.l.b16 %v4557
        %v4582 = vunpack.c.l.b16 %v4558
        %v4583 = vpack.c.b16 %v4582, %v4581
        %v4586 = vsel %vm211, %v4576, 0
        %v4589 = vsel %vm211, %v4578, 0
        %v4592 = vsel %vm211, %v4577, 0
        %4594 = vmatprep.subr.bf16.mxu0 0
        %4595 = vmatpush1.bf16.msra.mxu0 0
        %4596 = vmatprep.subr.bf16.mxu0 0
        %4597 = vmatpush1.bf16.msra.mxu0 0
        %4598 = vmatprep.subr.bf16.mxu0 0
        %4599 = vmatpush1.bf16.msra.mxu0 0
        %4600 = vmatprep.subr.bf16.mxu0 0
        %4601 = vmatpush1.bf16.msra.mxu0 0
        %4602 = vmatprep.subr.bf16.mxu0 0
        %4603 = vmatpush1.bf16.msra.mxu0 0
        %4604 = vmatprep.subr.bf16.mxu0 0
        %4605 = vmatpush1.bf16.msra.mxu0 0
        %4606 = vmatprep.subr.bf16.mxu0 0
        %4607 = vmatpush1.bf16.msra.mxu0 0
        %4608 = vmatprep.subr.bf16.mxu0 0
        %4609 = vmatpush1.bf16.msra.mxu0 %v4583
        %4610 = vmatprep.subr.bf16.mxu0 0
        %4611 = vmatpush2.bf16.msra.mxu0 0
        %4612 = vmatprep.subr.bf16.mxu0 0
        %4613 = vmatpush2.bf16.msra.mxu0 0
        %4614 = vmatprep.subr.bf16.mxu0 0
        %4615 = vmatpush2.bf16.msra.mxu0 0
        %4616 = vmatprep.subr.bf16.mxu0 0
        %4617 = vmatpush2.bf16.msra.mxu0 0
        %4618 = vmatprep.subr.bf16.mxu0 0
        %4619 = vmatpush2.bf16.msra.mxu0 0
        %4620 = vmatprep.subr.bf16.mxu0 0
        %4621 = vmatpush2.bf16.msra.mxu0 0
        %4622 = vmatprep.subr.bf16.mxu0 0
        %4623 = vmatpush2.bf16.msra.mxu0 0
        %4624 = vmatprep.subr.bf16.mxu0 0
        %4625 = vmatpush2.bf16.msra.mxu0 0
        %4626 = vmatprep.mubr.bf16.mxu0 0
        %4627 = vmatmul.mubr.bf16.gmra.mxu0 %v4586
        %v4628 = vpop.f32.mrf.mxu0
        %v4629 = vadd.f32 0.0, %v4628
        %v4630 = vpop.f32.mrf.mxu0
        %v4631 = vpop.f32.mrf.mxu0
        %v4632 = vadd.f32 0.0, %v4631
        %v4633 = vpop.f32.mrf.mxu0
        %4634 = vmatprep.mubr.bf16.mxu0 0
        %4635 = vmatmul.mubr.bf16.gmra.mxu0 %v4589
        %v4636 = vpop.f32.mrf.mxu0
        %v4637 = vadd.f32 0.0, %v4636
        %v4638 = vpop.f32.mrf.mxu0
        %v4639 = vpop.f32.mrf.mxu0
        %v4640 = vadd.f32 0.0, %v4639
        %v4641 = vpop.f32.mrf.mxu0
        %4642 = vmatprep.mubr.bf16.mxu0 0
        %4643 = vmatmul.mubr.bf16.gmra.mxu0 %v4592
        %v4644 = vpop.f32.mrf.mxu0
        %v4645 = vadd.f32 0.0, %v4644
        %v4646 = vpop.f32.mrf.mxu0
        %v4647 = vpop.f32.mrf.mxu0
        %v4648 = vpop.f32.mrf.mxu0
        %4649 = vdwg.mxu0
        %v4650 = vld [vmem:[%s178] sm:$0xff]
        %v4651 = vld [vmem:[%s178 + $0x8] sm:$0xff]
        %v4652 = vld [vmem:[%s178 + $0x10] sm:$0xff]
        %v4653 = vld [vmem:[%s178 + $0x18] sm:$0xff]
        %v4654 = vld [vmem:[%s178 + $0x20] sm:$0xff]
        %v4655 = vadd.f32 %v4650, %v4629
        %v4656 = vadd.f32 %v4651, %v4632
        %v4657 = vadd.f32 %v4652, %v4637
        %v4658 = vadd.f32 %v4653, %v4640
        %v4659 = vadd.f32 %v4654, %v4645
        %4660 = vst [vmem:[%s178] sm:$0xff] %v4655
        %4661 = vst [vmem:[%s178 + $0x8] sm:$0xff] %v4656
        %4662 = vst [vmem:[%s178 + $0x10] sm:$0xff] %v4657
        %4663 = vst [vmem:[%s178 + $0x18] sm:$0xff] %v4658
        %4664 = vst [vmem:[%s178 + $0x20] sm:$0xff] %v4659
        %v4665 = vld [vmem:[%s183 + $0x2c] sm:$0xe]
        %v4666 = vld [vmem:[%s183 + $0x30] sm:$0xf]
        %v4667 = vld [vmem:[%s183 + $0x34] sm:$0xf]
        %v4668 = vld [vmem:[%s183 + $0x38] sm:$0xf]
        %v4669 = vld [vmem:[%s183 + $0x3c] sm:$0xf]
        %v4670 = vld [vmem:[%s183 + $0x40] sm:$0x1]
        %v4671 = vld [vmem:[#allocation2 + $0x128] sm:$0xf]
        %v4672 = vld [vmem:[#allocation2 + $0x12c] sm:$0xf]
        %v4679 = vunpack.c.l.b16 %v4665
        %v4680 = vunpack.c.l.b16 %v4666
        %v4681 = vunpack.c.l.b16 %v4667
        %v4682 = vunpack.c.l.b16 %v4668
        %v4683 = vunpack.c.l.b16 %v4669
        %v4684 = vunpack.c.l.b16 %v4670
        %v4685 = vpack.c.b16 %v4680, %v4679
        %v4686 = vpack.c.b16 %v4682, %v4681
        %v4687 = vpack.c.b16 %v4684, %v4683
        %v4688 = vrot.slane %v4685, 1
        %v4689 = vrot.slane %v4686, 1
        %v4690 = vsel %vm676, %v4688, %v4689
        %v4691 = vrot.slane %v4687, 1
        %v4692 = vsel %vm676, %v4689, %v4691
        %v4695 = vunpack.c.l.b16 %v4671
        %v4696 = vunpack.c.l.b16 %v4672
        %v4697 = vpack.c.b16 %v4696, %v4695
        %v4700 = vsel %vm211, %v4690, 0
        %v4703 = vsel %vm211, %v4692, 0
        %v4706 = vsel %vm211, %v4691, 0
        %4708 = vmatprep.subr.bf16.mxu0 0
        %4709 = vmatpush1.bf16.msra.mxu0 0
        %4710 = vmatprep.subr.bf16.mxu0 0
        %4711 = vmatpush1.bf16.msra.mxu0 0
        %4712 = vmatprep.subr.bf16.mxu0 0
        %4713 = vmatpush1.bf16.msra.mxu0 0
        %4714 = vmatprep.subr.bf16.mxu0 0
        %4715 = vmatpush1.bf16.msra.mxu0 0
        %4716 = vmatprep.subr.bf16.mxu0 0
        %4717 = vmatpush1.bf16.msra.mxu0 0
        %4718 = vmatprep.subr.bf16.mxu0 0
        %4719 = vmatpush1.bf16.msra.mxu0 0
        %4720 = vmatprep.subr.bf16.mxu0 0
        %4721 = vmatpush1.bf16.msra.mxu0 0
        %4722 = vmatprep.subr.bf16.mxu0 0
        %4723 = vmatpush1.bf16.msra.mxu0 %v4697
        %4724 = vmatprep.subr.bf16.mxu0 0
        %4725 = vmatpush2.bf16.msra.mxu0 0
        %4726 = vmatprep.subr.bf16.mxu0 0
        %4727 = vmatpush2.bf16.msra.mxu0 0
        %4728 = vmatprep.subr.bf16.mxu0 0
        %4729 = vmatpush2.bf16.msra.mxu0 0
        %4730 = vmatprep.subr.bf16.mxu0 0
        %4731 = vmatpush2.bf16.msra.mxu0 0
        %4732 = vmatprep.subr.bf16.mxu0 0
        %4733 = vmatpush2.bf16.msra.mxu0 0
        %4734 = vmatprep.subr.bf16.mxu0 0
        %4735 = vmatpush2.bf16.msra.mxu0 0
        %4736 = vmatprep.subr.bf16.mxu0 0
        %4737 = vmatpush2.bf16.msra.mxu0 0
        %4738 = vmatprep.subr.bf16.mxu0 0
        %4739 = vmatpush2.bf16.msra.mxu0 0
        %4740 = vmatprep.mubr.bf16.mxu0 0
        %4741 = vmatmul.mubr.bf16.gmra.mxu0 %v4700
        %v4742 = vpop.f32.mrf.mxu0
        %v4743 = vadd.f32 0.0, %v4742
        %v4744 = vpop.f32.mrf.mxu0
        %v4745 = vpop.f32.mrf.mxu0
        %v4746 = vadd.f32 0.0, %v4745
        %v4747 = vpop.f32.mrf.mxu0
        %4748 = vmatprep.mubr.bf16.mxu0 0
        %4749 = vmatmul.mubr.bf16.gmra.mxu0 %v4703
        %v4750 = vpop.f32.mrf.mxu0
        %v4751 = vadd.f32 0.0, %v4750
        %v4752 = vpop.f32.mrf.mxu0
        %v4753 = vpop.f32.mrf.mxu0
        %v4754 = vadd.f32 0.0, %v4753
        %v4755 = vpop.f32.mrf.mxu0
        %4756 = vmatprep.mubr.bf16.mxu0 0
        %4757 = vmatmul.mubr.bf16.gmra.mxu0 %v4706
        %v4758 = vpop.f32.mrf.mxu0
        %v4759 = vadd.f32 0.0, %v4758
        %v4760 = vpop.f32.mrf.mxu0
        %v4761 = vpop.f32.mrf.mxu0
        %v4762 = vpop.f32.mrf.mxu0
        %4763 = vdwg.mxu0
        %v4764 = vld [vmem:[%s178] sm:$0xff]
        %v4765 = vld [vmem:[%s178 + $0x8] sm:$0xff]
        %v4766 = vld [vmem:[%s178 + $0x10] sm:$0xff]
        %v4767 = vld [vmem:[%s178 + $0x18] sm:$0xff]
        %v4768 = vld [vmem:[%s178 + $0x20] sm:$0xff]
        %v4769 = vadd.f32 %v4764, %v4743
        %v4770 = vadd.f32 %v4765, %v4746
        %v4771 = vadd.f32 %v4766, %v4751
        %v4772 = vadd.f32 %v4767, %v4754
        %v4773 = vadd.f32 %v4768, %v4759
        %4774 = vst [vmem:[%s178] sm:$0xff] %v4769
        %4775 = vst [vmem:[%s178 + $0x8] sm:$0xff] %v4770
        %4776 = vst [vmem:[%s178 + $0x10] sm:$0xff] %v4771
        %4777 = vst [vmem:[%s178 + $0x18] sm:$0xff] %v4772
        %4778 = vst [vmem:[%s178 + $0x20] sm:$0xff] %v4773
        %v4779 = vld [vmem:[%s183 + $0x8] sm:$0xe]
        %v4780 = vld [vmem:[%s183 + $0xc] sm:$0xf]
        %v4781 = vld [vmem:[%s183 + $0x10] sm:$0xf]
        %v4782 = vld [vmem:[%s183 + $0x14] sm:$0xf]
        %v4783 = vld [vmem:[%s183 + $0x18] sm:$0xf]
        %v4784 = vld [vmem:[%s183 + $0x1c] sm:$0x3]
        %v4785 = vld [vmem:[#allocation2 + $0x130] sm:$0xf]
        %v4786 = vld [vmem:[#allocation2 + $0x134] sm:$0xf]
        %v4793 = vunpack.c.l.b16 %v4779
        %v4794 = vunpack.c.l.b16 %v4780
        %v4795 = vunpack.c.l.b16 %v4781
        %v4796 = vunpack.c.l.b16 %v4782
        %v4797 = vunpack.c.l.b16 %v4783
        %v4798 = vunpack.c.l.b16 %v4784
        %v4799 = vpack.c.b16 %v4794, %v4793
        %v4800 = vpack.c.b16 %v4796, %v4795
        %v4801 = vpack.c.b16 %v4798, %v4797
        %v4803 = vshrl.u32 %v4799, 16
        %v4805 = vrot.slane %v4803, 1
        %v4806 = vshll.u32 %v4799, 16
        %v4808 = vrot.slane %v4806, 2
        %v4809 = vor.u32 %v4805, %v4808
        %v4811 = vshrl.u32 %v4800, 16
        %v4813 = vrot.slane %v4811, 1
        %v4814 = vshll.u32 %v4800, 16
        %v4816 = vrot.slane %v4814, 2
        %v4817 = vor.u32 %v4813, %v4816
        %v4818 = vsel %vm905, %v4809, %v4817
        %v4820 = vshrl.u32 %v4801, 16
        %v4822 = vrot.slane %v4820, 1
        %v4823 = vshll.u32 %v4801, 16
        %v4825 = vrot.slane %v4823, 2
        %v4826 = vor.u32 %v4822, %v4825
        %v4827 = vsel %vm905, %v4817, %v4826
        %v4830 = vunpack.c.l.b16 %v4785
        %v4831 = vunpack.c.l.b16 %v4786
        %v4832 = vpack.c.b16 %v4831, %v4830
        %v4835 = vsel %vm211, %v4818, 0
        %v4838 = vsel %vm211, %v4827, 0
        %v4841 = vsel %vm211, %v4826, 0
        %4843 = vmatprep.subr.bf16.mxu0 0
        %4844 = vmatpush1.bf16.msra.mxu0 0
        %4845 = vmatprep.subr.bf16.mxu0 0
        %4846 = vmatpush1.bf16.msra.mxu0 0
        %4847 = vmatprep.subr.bf16.mxu0 0
        %4848 = vmatpush1.bf16.msra.mxu0 0
        %4849 = vmatprep.subr.bf16.mxu0 0
        %4850 = vmatpush1.bf16.msra.mxu0 0
        %4851 = vmatprep.subr.bf16.mxu0 0
        %4852 = vmatpush1.bf16.msra.mxu0 0
        %4853 = vmatprep.subr.bf16.mxu0 0
        %4854 = vmatpush1.bf16.msra.mxu0 0
        %4855 = vmatprep.subr.bf16.mxu0 0
        %4856 = vmatpush1.bf16.msra.mxu0 0
        %4857 = vmatprep.subr.bf16.mxu0 0
        %4858 = vmatpush1.bf16.msra.mxu0 %v4832
        %4859 = vmatprep.subr.bf16.mxu0 0
        %4860 = vmatpush2.bf16.msra.mxu0 0
        %4861 = vmatprep.subr.bf16.mxu0 0
        %4862 = vmatpush2.bf16.msra.mxu0 0
        %4863 = vmatprep.subr.bf16.mxu0 0
        %4864 = vmatpush2.bf16.msra.mxu0 0
        %4865 = vmatprep.subr.bf16.mxu0 0
        %4866 = vmatpush2.bf16.msra.mxu0 0
        %4867 = vmatprep.subr.bf16.mxu0 0
        %4868 = vmatpush2.bf16.msra.mxu0 0
        %4869 = vmatprep.subr.bf16.mxu0 0
        %4870 = vmatpush2.bf16.msra.mxu0 0
        %4871 = vmatprep.subr.bf16.mxu0 0
        %4872 = vmatpush2.bf16.msra.mxu0 0
        %4873 = vmatprep.subr.bf16.mxu0 0
        %4874 = vmatpush2.bf16.msra.mxu0 0
        %4875 = vmatprep.mubr.bf16.mxu0 0
        %4876 = vmatmul.mubr.bf16.gmra.mxu0 %v4835
        %v4877 = vpop.f32.mrf.mxu0
        %v4878 = vadd.f32 0.0, %v4877
        %v4879 = vpop.f32.mrf.mxu0
        %v4880 = vpop.f32.mrf.mxu0
        %v4881 = vadd.f32 0.0, %v4880
        %v4882 = vpop.f32.mrf.mxu0
        %4883 = vmatprep.mubr.bf16.mxu0 0
        %4884 = vmatmul.mubr.bf16.gmra.mxu0 %v4838
        %v4885 = vpop.f32.mrf.mxu0
        %v4886 = vadd.f32 0.0, %v4885
        %v4887 = vpop.f32.mrf.mxu0
        %v4888 = vpop.f32.mrf.mxu0
        %v4889 = vadd.f32 0.0, %v4888
        %v4890 = vpop.f32.mrf.mxu0
        %4891 = vmatprep.mubr.bf16.mxu0 0
        %4892 = vmatmul.mubr.bf16.gmra.mxu0 %v4841
        %v4893 = vpop.f32.mrf.mxu0
        %v4894 = vadd.f32 0.0, %v4893
        %v4895 = vpop.f32.mrf.mxu0
        %v4896 = vpop.f32.mrf.mxu0
        %v4897 = vpop.f32.mrf.mxu0
        %4898 = vdwg.mxu0
        %v4899 = vld [vmem:[%s178] sm:$0xff]
        %v4900 = vld [vmem:[%s178 + $0x8] sm:$0xff]
        %v4901 = vld [vmem:[%s178 + $0x10] sm:$0xff]
        %v4902 = vld [vmem:[%s178 + $0x18] sm:$0xff]
        %v4903 = vld [vmem:[%s178 + $0x20] sm:$0xff]
        %v4904 = vadd.f32 %v4899, %v4878
        %v4905 = vadd.f32 %v4900, %v4881
        %v4906 = vadd.f32 %v4901, %v4886
        %v4907 = vadd.f32 %v4902, %v4889
        %v4908 = vadd.f32 %v4903, %v4894
        %4909 = vst [vmem:[%s178] sm:$0xff] %v4904
        %4910 = vst [vmem:[%s178 + $0x8] sm:$0xff] %v4905
        %4911 = vst [vmem:[%s178 + $0x10] sm:$0xff] %v4906
        %4912 = vst [vmem:[%s178 + $0x18] sm:$0xff] %v4907
        %4913 = vst [vmem:[%s178 + $0x20] sm:$0xff] %v4908
        %v4914 = vld [vmem:[%s183 + $0x2c] sm:$0xe]
        %v4915 = vld [vmem:[%s183 + $0x30] sm:$0xf]
        %v4916 = vld [vmem:[%s183 + $0x34] sm:$0xf]
        %v4917 = vld [vmem:[%s183 + $0x38] sm:$0xf]
        %v4918 = vld [vmem:[%s183 + $0x3c] sm:$0xf]
        %v4919 = vld [vmem:[%s183 + $0x40] sm:$0x3]
        %v4920 = vld [vmem:[#allocation2 + $0x138] sm:$0xf]
        %v4921 = vld [vmem:[#allocation2 + $0x13c] sm:$0xf]
        %v4928 = vunpack.c.l.b16 %v4914
        %v4929 = vunpack.c.l.b16 %v4915
        %v4930 = vunpack.c.l.b16 %v4916
        %v4931 = vunpack.c.l.b16 %v4917
        %v4932 = vunpack.c.l.b16 %v4918
        %v4933 = vunpack.c.l.b16 %v4919
        %v4934 = vpack.c.b16 %v4929, %v4928
        %v4935 = vpack.c.b16 %v4931, %v4930
        %v4936 = vpack.c.b16 %v4933, %v4932
        %v4938 = vshrl.u32 %v4934, 16
        %v4940 = vrot.slane %v4938, 1
        %v4941 = vshll.u32 %v4934, 16
        %v4943 = vrot.slane %v4941, 2
        %v4944 = vor.u32 %v4940, %v4943
        %v4946 = vshrl.u32 %v4935, 16
        %v4948 = vrot.slane %v4946, 1
        %v4949 = vshll.u32 %v4935, 16
        %v4951 = vrot.slane %v4949, 2
        %v4952 = vor.u32 %v4948, %v4951
        %v4953 = vsel %vm905, %v4944, %v4952
        %v4955 = vshrl.u32 %v4936, 16
        %v4957 = vrot.slane %v4955, 1
        %v4958 = vshll.u32 %v4936, 16
        %v4960 = vrot.slane %v4958, 2
        %v4961 = vor.u32 %v4957, %v4960
        %v4962 = vsel %vm905, %v4952, %v4961
        %v4965 = vunpack.c.l.b16 %v4920
        %v4966 = vunpack.c.l.b16 %v4921
        %v4967 = vpack.c.b16 %v4966, %v4965
        %v4970 = vsel %vm211, %v4953, 0
        %v4973 = vsel %vm211, %v4962, 0
        %v4976 = vsel %vm211, %v4961, 0
        %4978 = vmatprep.subr.bf16.mxu0 0
        %4979 = vmatpush1.bf16.msra.mxu0 0
        %4980 = vmatprep.subr.bf16.mxu0 0
        %4981 = vmatpush1.bf16.msra.mxu0 0
        %4982 = vmatprep.subr.bf16.mxu0 0
        %4983 = vmatpush1.bf16.msra.mxu0 0
        %4984 = vmatprep.subr.bf16.mxu0 0
        %4985 = vmatpush1.bf16.msra.mxu0 0
        %4986 = vmatprep.subr.bf16.mxu0 0
        %4987 = vmatpush1.bf16.msra.mxu0 0
        %4988 = vmatprep.subr.bf16.mxu0 0
        %4989 = vmatpush1.bf16.msra.mxu0 0
        %4990 = vmatprep.subr.bf16.mxu0 0
        %4991 = vmatpush1.bf16.msra.mxu0 0
        %4992 = vmatprep.subr.bf16.mxu0 0
        %4993 = vmatpush1.bf16.msra.mxu0 %v4967
        %4994 = vmatprep.subr.bf16.mxu0 0
        %4995 = vmatpush2.bf16.msra.mxu0 0
        %4996 = vmatprep.subr.bf16.mxu0 0
        %4997 = vmatpush2.bf16.msra.mxu0 0
        %4998 = vmatprep.subr.bf16.mxu0 0
        %4999 = vmatpush2.bf16.msra.mxu0 0
        %5000 = vmatprep.subr.bf16.mxu0 0
        %5001 = vmatpush2.bf16.msra.mxu0 0
        %5002 = vmatprep.subr.bf16.mxu0 0
        %5003 = vmatpush2.bf16.msra.mxu0 0
        %5004 = vmatprep.subr.bf16.mxu0 0
        %5005 = vmatpush2.bf16.msra.mxu0 0
        %5006 = vmatprep.subr.bf16.mxu0 0
        %5007 = vmatpush2.bf16.msra.mxu0 0
        %5008 = vmatprep.subr.bf16.mxu0 0
        %5009 = vmatpush2.bf16.msra.mxu0 0
        %5010 = vmatprep.mubr.bf16.mxu0 0
        %5011 = vmatmul.mubr.bf16.gmra.mxu0 %v4970
        %v5012 = vpop.f32.mrf.mxu0
        %v5013 = vadd.f32 0.0, %v5012
        %v5014 = vpop.f32.mrf.mxu0
        %v5015 = vpop.f32.mrf.mxu0
        %v5016 = vadd.f32 0.0, %v5015
        %v5017 = vpop.f32.mrf.mxu0
        %5018 = vmatprep.mubr.bf16.mxu0 0
        %5019 = vmatmul.mubr.bf16.gmra.mxu0 %v4973
        %v5020 = vpop.f32.mrf.mxu0
        %v5021 = vadd.f32 0.0, %v5020
        %v5022 = vpop.f32.mrf.mxu0
        %v5023 = vpop.f32.mrf.mxu0
        %v5024 = vadd.f32 0.0, %v5023
        %v5025 = vpop.f32.mrf.mxu0
        %5026 = vmatprep.mubr.bf16.mxu0 0
        %5027 = vmatmul.mubr.bf16.gmra.mxu0 %v4976
        %v5028 = vpop.f32.mrf.mxu0
        %v5029 = vadd.f32 0.0, %v5028
        %v5030 = vpop.f32.mrf.mxu0
        %v5031 = vpop.f32.mrf.mxu0
        %v5032 = vpop.f32.mrf.mxu0
        %5033 = vdwg.mxu0
        %v5034 = vld [vmem:[%s178] sm:$0xff]
        %v5035 = vld [vmem:[%s178 + $0x8] sm:$0xff]
        %v5036 = vld [vmem:[%s178 + $0x10] sm:$0xff]
        %v5037 = vld [vmem:[%s178 + $0x18] sm:$0xff]
        %v5038 = vld [vmem:[%s178 + $0x20] sm:$0xff]
        %v5039 = vadd.f32 %v5034, %v5013
        %v5040 = vadd.f32 %v5035, %v5016
        %v5041 = vadd.f32 %v5036, %v5021
        %v5042 = vadd.f32 %v5037, %v5024
        %v5043 = vadd.f32 %v5038, %v5029
        %5044 = vst [vmem:[%s178] sm:$0xff] %v5039
        %5045 = vst [vmem:[%s178 + $0x8] sm:$0xff] %v5040
        %5046 = vst [vmem:[%s178 + $0x10] sm:$0xff] %v5041
        %5047 = vst [vmem:[%s178 + $0x18] sm:$0xff] %v5042
        %5048 = vst [vmem:[%s178 + $0x20] sm:$0xff] %v5043
        %v5049 = vld [vmem:[%s183 + $0x50] sm:$0xf]
        %v5050 = vld [vmem:[%s183 + $0x54] sm:$0xf]
        %v5051 = vld [vmem:[%s183 + $0x58] sm:$0xf]
        %v5052 = vld [vmem:[%s183 + $0x5c] sm:$0xf]
        %v5053 = vld [vmem:[%s183 + $0x60] sm:$0xf]
        %v5054 = vld [vmem:[#allocation2 + $0x140] sm:$0xf]
        %v5055 = vld [vmem:[#allocation2 + $0x144] sm:$0xf]
        %v5061 = vunpack.c.l.b16 %v5049
        %v5062 = vunpack.c.l.b16 %v5050
        %v5063 = vunpack.c.l.b16 %v5051
        %v5064 = vunpack.c.l.b16 %v5052
        %v5065 = vunpack.c.l.b16 %v5053
        %v5066 = vpack.c.b16 %v5062, %v5061
        %v5067 = vpack.c.b16 %v5064, %v5063
        %v5068 = vpack.c.b16 %v5065, %v5065
        %v5071 = vunpack.c.l.b16 %v5054
        %v5072 = vunpack.c.l.b16 %v5055
        %v5073 = vpack.c.b16 %v5072, %v5071
        %v5076 = vsel %vm211, %v5066, 0
        %v5079 = vsel %vm211, %v5067, 0
        %v5082 = vsel %vm211, %v5068, 0
        %5084 = vmatprep.subr.bf16.mxu0 0
        %5085 = vmatpush1.bf16.msra.mxu0 0
        %5086 = vmatprep.subr.bf16.mxu0 0
        %5087 = vmatpush1.bf16.msra.mxu0 0
        %5088 = vmatprep.subr.bf16.mxu0 0
        %5089 = vmatpush1.bf16.msra.mxu0 0
        %5090 = vmatprep.subr.bf16.mxu0 0
        %5091 = vmatpush1.bf16.msra.mxu0 0
        %5092 = vmatprep.subr.bf16.mxu0 0
        %5093 = vmatpush1.bf16.msra.mxu0 0
        %5094 = vmatprep.subr.bf16.mxu0 0
        %5095 = vmatpush1.bf16.msra.mxu0 0
        %5096 = vmatprep.subr.bf16.mxu0 0
        %5097 = vmatpush1.bf16.msra.mxu0 0
        %5098 = vmatprep.subr.bf16.mxu0 0
        %5099 = vmatpush1.bf16.msra.mxu0 %v5073
        %5100 = vmatprep.subr.bf16.mxu0 0
        %5101 = vmatpush2.bf16.msra.mxu0 0
        %5102 = vmatprep.subr.bf16.mxu0 0
        %5103 = vmatpush2.bf16.msra.mxu0 0
        %5104 = vmatprep.subr.bf16.mxu0 0
        %5105 = vmatpush2.bf16.msra.mxu0 0
        %5106 = vmatprep.subr.bf16.mxu0 0
        %5107 = vmatpush2.bf16.msra.mxu0 0
        %5108 = vmatprep.subr.bf16.mxu0 0
        %5109 = vmatpush2.bf16.msra.mxu0 0
        %5110 = vmatprep.subr.bf16.mxu0 0
        %5111 = vmatpush2.bf16.msra.mxu0 0
        %5112 = vmatprep.subr.bf16.mxu0 0
        %5113 = vmatpush2.bf16.msra.mxu0 0
        %5114 = vmatprep.subr.bf16.mxu0 0
        %5115 = vmatpush2.bf16.msra.mxu0 0
        %5116 = vmatprep.mubr.bf16.mxu0 0
        %5117 = vmatmul.mubr.bf16.gmra.mxu0 %v5076
        %v5118 = vpop.f32.mrf.mxu0
        %v5119 = vadd.f32 0.0, %v5118
        %v5120 = vpop.f32.mrf.mxu0
        %v5121 = vpop.f32.mrf.mxu0
        %v5122 = vadd.f32 0.0, %v5121
        %v5123 = vpop.f32.mrf.mxu0
        %5124 = vmatprep.mubr.bf16.mxu0 0
        %5125 = vmatmul.mubr.bf16.gmra.mxu0 %v5079
        %v5126 = vpop.f32.mrf.mxu0
        %v5127 = vadd.f32 0.0, %v5126
        %v5128 = vpop.f32.mrf.mxu0
        %v5129 = vpop.f32.mrf.mxu0
        %v5130 = vadd.f32 0.0, %v5129
        %v5131 = vpop.f32.mrf.mxu0
        %5132 = vmatprep.mubr.bf16.mxu0 0
        %5133 = vmatmul.mubr.bf16.gmra.mxu0 %v5082
        %v5134 = vpop.f32.mrf.mxu0
        %v5135 = vadd.f32 0.0, %v5134
        %v5136 = vpop.f32.mrf.mxu0
        %v5137 = vpop.f32.mrf.mxu0
        %v5138 = vpop.f32.mrf.mxu0
        %5139 = vdwg.mxu0
        %v5140 = vld [vmem:[%s178] sm:$0xff]
        %v5141 = vld [vmem:[%s178 + $0x8] sm:$0xff]
        %v5142 = vld [vmem:[%s178 + $0x10] sm:$0xff]
        %v5143 = vld [vmem:[%s178 + $0x18] sm:$0xff]
        %v5144 = vld [vmem:[%s178 + $0x20] sm:$0xff]
        %v5145 = vadd.f32 %v5140, %v5119
        %v5146 = vadd.f32 %v5141, %v5122
        %v5147 = vadd.f32 %v5142, %v5127
        %v5148 = vadd.f32 %v5143, %v5130
        %v5149 = vadd.f32 %v5144, %v5135
        %5150 = vst [vmem:[%s178] sm:$0xff] %v5145
        %5151 = vst [vmem:[%s178 + $0x8] sm:$0xff] %v5146
        %5152 = vst [vmem:[%s178 + $0x10] sm:$0xff] %v5147
        %5153 = vst [vmem:[%s178 + $0x18] sm:$0xff] %v5148
        %5154 = vst [vmem:[%s178 + $0x20] sm:$0xff] %v5149
        %v5155 = vld [vmem:[%s183 + $0x74] sm:$0xf]
        %v5156 = vld [vmem:[%s183 + $0x78] sm:$0xf]
        %v5157 = vld [vmem:[%s183 + $0x7c] sm:$0xf]
        %v5158 = vld [vmem:[%s183 + $0x80] sm:$0xf]
        %v5159 = vld [vmem:[%s183 + $0x84] sm:$0xf]
        %v5160 = vld [vmem:[#allocation2 + $0x148] sm:$0xf]
        %v5161 = vld [vmem:[#allocation2 + $0x14c] sm:$0xf]
        %v5167 = vunpack.c.l.b16 %v5155
        %v5168 = vunpack.c.l.b16 %v5156
        %v5169 = vunpack.c.l.b16 %v5157
        %v5170 = vunpack.c.l.b16 %v5158
        %v5171 = vunpack.c.l.b16 %v5159
        %v5172 = vpack.c.b16 %v5168, %v5167
        %v5173 = vpack.c.b16 %v5170, %v5169
        %v5174 = vpack.c.b16 %v5171, %v5171
        %v5177 = vunpack.c.l.b16 %v5160
        %v5178 = vunpack.c.l.b16 %v5161
        %v5179 = vpack.c.b16 %v5178, %v5177
        %v5182 = vsel %vm211, %v5172, 0
        %v5185 = vsel %vm211, %v5173, 0
        %v5188 = vsel %vm211, %v5174, 0
        %5190 = vmatprep.subr.bf16.mxu0 0
        %5191 = vmatpush1.bf16.msra.mxu0 0
        %5192 = vmatprep.subr.bf16.mxu0 0
        %5193 = vmatpush1.bf16.msra.mxu0 0
        %5194 = vmatprep.subr.bf16.mxu0 0
        %5195 = vmatpush1.bf16.msra.mxu0 0
        %5196 = vmatprep.subr.bf16.mxu0 0
        %5197 = vmatpush1.bf16.msra.mxu0 0
        %5198 = vmatprep.subr.bf16.mxu0 0
        %5199 = vmatpush1.bf16.msra.mxu0 0
        %5200 = vmatprep.subr.bf16.mxu0 0
        %5201 = vmatpush1.bf16.msra.mxu0 0
        %5202 = vmatprep.subr.bf16.mxu0 0
        %5203 = vmatpush1.bf16.msra.mxu0 0
        %5204 = vmatprep.subr.bf16.mxu0 0
        %5205 = vmatpush1.bf16.msra.mxu0 %v5179
        %5206 = vmatprep.subr.bf16.mxu0 0
        %5207 = vmatpush2.bf16.msra.mxu0 0
        %5208 = vmatprep.subr.bf16.mxu0 0
        %5209 = vmatpush2.bf16.msra.mxu0 0
        %5210 = vmatprep.subr.bf16.mxu0 0
        %5211 = vmatpush2.bf16.msra.mxu0 0
        %5212 = vmatprep.subr.bf16.mxu0 0
        %5213 = vmatpush2.bf16.msra.mxu0 0
        %5214 = vmatprep.subr.bf16.mxu0 0
        %5215 = vmatpush2.bf16.msra.mxu0 0
        %5216 = vmatprep.subr.bf16.mxu0 0
        %5217 = vmatpush2.bf16.msra.mxu0 0
        %5218 = vmatprep.subr.bf16.mxu0 0
        %5219 = vmatpush2.bf16.msra.mxu0 0
        %5220 = vmatprep.subr.bf16.mxu0 0
        %5221 = vmatpush2.bf16.msra.mxu0 0
        %5222 = vmatprep.mubr.bf16.mxu0 0
        %5223 = vmatmul.mubr.bf16.gmra.mxu0 %v5182
        %v5224 = vpop.f32.mrf.mxu0
        %v5225 = vadd.f32 0.0, %v5224
        %v5226 = vpop.f32.mrf.mxu0
        %v5227 = vpop.f32.mrf.mxu0
        %v5228 = vadd.f32 0.0, %v5227
        %v5229 = vpop.f32.mrf.mxu0
        %5230 = vmatprep.mubr.bf16.mxu0 0
        %5231 = vmatmul.mubr.bf16.gmra.mxu0 %v5185
        %v5232 = vpop.f32.mrf.mxu0
        %v5233 = vadd.f32 0.0, %v5232
        %v5234 = vpop.f32.mrf.mxu0
        %v5235 = vpop.f32.mrf.mxu0
        %v5236 = vadd.f32 0.0, %v5235
        %v5237 = vpop.f32.mrf.mxu0
        %5238 = vmatprep.mubr.bf16.mxu0 0
        %5239 = vmatmul.mubr.bf16.gmra.mxu0 %v5188
        %v5240 = vpop.f32.mrf.mxu0
        %v5241 = vadd.f32 0.0, %v5240
        %v5242 = vpop.f32.mrf.mxu0
        %v5243 = vpop.f32.mrf.mxu0
        %v5244 = vpop.f32.mrf.mxu0
        %5245 = vdwg.mxu0
        %v5246 = vld [vmem:[%s178] sm:$0xff]
        %v5247 = vld [vmem:[%s178 + $0x8] sm:$0xff]
        %v5248 = vld [vmem:[%s178 + $0x10] sm:$0xff]
        %v5249 = vld [vmem:[%s178 + $0x18] sm:$0xff]
        %v5250 = vld [vmem:[%s178 + $0x20] sm:$0xff]
        %v5251 = vadd.f32 %v5246, %v5225
        %v5252 = vadd.f32 %v5247, %v5228
        %v5253 = vadd.f32 %v5248, %v5233
        %v5254 = vadd.f32 %v5249, %v5236
        %v5255 = vadd.f32 %v5250, %v5241
        %5256 = vst [vmem:[%s178] sm:$0xff] %v5251
        %5257 = vst [vmem:[%s178 + $0x8] sm:$0xff] %v5252
        %5258 = vst [vmem:[%s178 + $0x10] sm:$0xff] %v5253
        %5259 = vst [vmem:[%s178 + $0x18] sm:$0xff] %v5254
        %5260 = vst [vmem:[%s178 + $0x20] sm:$0xff] %v5255
        %v5261 = vld [vmem:[%s183 + $0x50] sm:$0xf]
        %v5262 = vld [vmem:[%s183 + $0x54] sm:$0xf]
        %v5263 = vld [vmem:[%s183 + $0x58] sm:$0xf]
        %v5264 = vld [vmem:[%s183 + $0x5c] sm:$0xf]
        %v5265 = vld [vmem:[%s183 + $0x60] sm:$0xf]
        %v5266 = vld [vmem:[%s183 + $0x64] sm:$0x1]
        %v5267 = vld [vmem:[#allocation2 + $0x150] sm:$0xf]
        %v5268 = vld [vmem:[#allocation2 + $0x154] sm:$0xf]
        %v5275 = vunpack.c.l.b16 %v5261
        %v5276 = vunpack.c.l.b16 %v5262
        %v5277 = vunpack.c.l.b16 %v5263
        %v5278 = vunpack.c.l.b16 %v5264
        %v5279 = vunpack.c.l.b16 %v5265
        %v5280 = vunpack.c.l.b16 %v5266
        %v5281 = vpack.c.b16 %v5276, %v5275
        %v5282 = vpack.c.b16 %v5278, %v5277
        %v5283 = vpack.c.b16 %v5280, %v5279
        %v5285 = vshrl.u32 %v5281, 16
        %v5287 = vshll.u32 %v5281, 16
        %v5289 = vrot.slane %v5287, 1
        %v5290 = vor.u32 %v5285, %v5289
        %v5292 = vshll.u32 %v5282, 16
        %v5294 = vrot.slane %v5292, 1
        %v5295 = vsel %vm411, %v5290, %v5294
        %v5296 = vshrl.u32 %v5282, 16
        %v5298 = vor.u32 %v5296, %v5294
        %v5300 = vshll.u32 %v5283, 16
        %v5302 = vrot.slane %v5300, 1
        %v5303 = vsel %vm411, %v5298, %v5302
        %v5304 = vshrl.u32 %v5283, 16
        %v5306 = vor.u32 %v5304, %v5302
        %v5309 = vunpack.c.l.b16 %v5267
        %v5310 = vunpack.c.l.b16 %v5268
        %v5311 = vpack.c.b16 %v5310, %v5309
        %v5314 = vsel %vm211, %v5295, 0
        %v5317 = vsel %vm211, %v5303, 0
        %v5320 = vsel %vm211, %v5306, 0
        %5322 = vmatprep.subr.bf16.mxu0 0
        %5323 = vmatpush1.bf16.msra.mxu0 0
        %5324 = vmatprep.subr.bf16.mxu0 0
        %5325 = vmatpush1.bf16.msra.mxu0 0
        %5326 = vmatprep.subr.bf16.mxu0 0
        %5327 = vmatpush1.bf16.msra.mxu0 0
        %5328 = vmatprep.subr.bf16.mxu0 0
        %5329 = vmatpush1.bf16.msra.mxu0 0
        %5330 = vmatprep.subr.bf16.mxu0 0
        %5331 = vmatpush1.bf16.msra.mxu0 0
        %5332 = vmatprep.subr.bf16.mxu0 0
        %5333 = vmatpush1.bf16.msra.mxu0 0
        %5334 = vmatprep.subr.bf16.mxu0 0
        %5335 = vmatpush1.bf16.msra.mxu0 0
        %5336 = vmatprep.subr.bf16.mxu0 0
        %5337 = vmatpush1.bf16.msra.mxu0 %v5311
        %5338 = vmatprep.subr.bf16.mxu0 0
        %5339 = vmatpush2.bf16.msra.mxu0 0
        %5340 = vmatprep.subr.bf16.mxu0 0
        %5341 = vmatpush2.bf16.msra.mxu0 0
        %5342 = vmatprep.subr.bf16.mxu0 0
        %5343 = vmatpush2.bf16.msra.mxu0 0
        %5344 = vmatprep.subr.bf16.mxu0 0
        %5345 = vmatpush2.bf16.msra.mxu0 0
        %5346 = vmatprep.subr.bf16.mxu0 0
        %5347 = vmatpush2.bf16.msra.mxu0 0
        %5348 = vmatprep.subr.bf16.mxu0 0
        %5349 = vmatpush2.bf16.msra.mxu0 0
        %5350 = vmatprep.subr.bf16.mxu0 0
        %5351 = vmatpush2.bf16.msra.mxu0 0
        %5352 = vmatprep.subr.bf16.mxu0 0
        %5353 = vmatpush2.bf16.msra.mxu0 0
        %5354 = vmatprep.mubr.bf16.mxu0 0
        %5355 = vmatmul.mubr.bf16.gmra.mxu0 %v5314
        %v5356 = vpop.f32.mrf.mxu0
        %v5357 = vadd.f32 0.0, %v5356
        %v5358 = vpop.f32.mrf.mxu0
        %v5359 = vpop.f32.mrf.mxu0
        %v5360 = vadd.f32 0.0, %v5359
        %v5361 = vpop.f32.mrf.mxu0
        %5362 = vmatprep.mubr.bf16.mxu0 0
        %5363 = vmatmul.mubr.bf16.gmra.mxu0 %v5317
        %v5364 = vpop.f32.mrf.mxu0
        %v5365 = vadd.f32 0.0, %v5364
        %v5366 = vpop.f32.mrf.mxu0
        %v5367 = vpop.f32.mrf.mxu0
        %v5368 = vadd.f32 0.0, %v5367
        %v5369 = vpop.f32.mrf.mxu0
        %5370 = vmatprep.mubr.bf16.mxu0 0
        %5371 = vmatmul.mubr.bf16.gmra.mxu0 %v5320
        %v5372 = vpop.f32.mrf.mxu0
        %v5373 = vadd.f32 0.0, %v5372
        %v5374 = vpop.f32.mrf.mxu0
        %v5375 = vpop.f32.mrf.mxu0
        %v5376 = vpop.f32.mrf.mxu0
        %5377 = vdwg.mxu0
        %v5378 = vld [vmem:[%s178] sm:$0xff]
        %v5379 = vld [vmem:[%s178 + $0x8] sm:$0xff]
        %v5380 = vld [vmem:[%s178 + $0x10] sm:$0xff]
        %v5381 = vld [vmem:[%s178 + $0x18] sm:$0xff]
        %v5382 = vld [vmem:[%s178 + $0x20] sm:$0xff]
        %v5383 = vadd.f32 %v5378, %v5357
        %v5384 = vadd.f32 %v5379, %v5360
        %v5385 = vadd.f32 %v5380, %v5365
        %v5386 = vadd.f32 %v5381, %v5368
        %v5387 = vadd.f32 %v5382, %v5373
        %5388 = vst [vmem:[%s178] sm:$0xff] %v5383
        %5389 = vst [vmem:[%s178 + $0x8] sm:$0xff] %v5384
        %5390 = vst [vmem:[%s178 + $0x10] sm:$0xff] %v5385
        %5391 = vst [vmem:[%s178 + $0x18] sm:$0xff] %v5386
        %5392 = vst [vmem:[%s178 + $0x20] sm:$0xff] %v5387
        %v5393 = vld [vmem:[%s183 + $0x74] sm:$0xf]
        %v5394 = vld [vmem:[%s183 + $0x78] sm:$0xf]
        %v5395 = vld [vmem:[%s183 + $0x7c] sm:$0xf]
        %v5396 = vld [vmem:[%s183 + $0x80] sm:$0xf]
        %v5397 = vld [vmem:[%s183 + $0x84] sm:$0xf]
        %v5398 = vld [vmem:[%s183 + $0x88] sm:$0x1]
        %v5399 = vld [vmem:[#allocation2 + $0x158] sm:$0xf]
        %v5400 = vld [vmem:[#allocation2 + $0x15c] sm:$0xf]
        %v5407 = vunpack.c.l.b16 %v5393
        %v5408 = vunpack.c.l.b16 %v5394
        %v5409 = vunpack.c.l.b16 %v5395
        %v5410 = vunpack.c.l.b16 %v5396
        %v5411 = vunpack.c.l.b16 %v5397
        %v5412 = vunpack.c.l.b16 %v5398
        %v5413 = vpack.c.b16 %v5408, %v5407
        %v5414 = vpack.c.b16 %v5410, %v5409
        %v5415 = vpack.c.b16 %v5412, %v5411
        %v5417 = vshrl.u32 %v5413, 16
        %v5419 = vshll.u32 %v5413, 16
        %v5421 = vrot.slane %v5419, 1
        %v5422 = vor.u32 %v5417, %v5421
        %v5424 = vshll.u32 %v5414, 16
        %v5426 = vrot.slane %v5424, 1
        %v5427 = vsel %vm411, %v5422, %v5426
        %v5428 = vshrl.u32 %v5414, 16
        %v5430 = vor.u32 %v5428, %v5426
        %v5432 = vshll.u32 %v5415, 16
        %v5434 = vrot.slane %v5432, 1
        %v5435 = vsel %vm411, %v5430, %v5434
        %v5436 = vshrl.u32 %v5415, 16
        %v5438 = vor.u32 %v5436, %v5434
        %v5441 = vunpack.c.l.b16 %v5399
        %v5442 = vunpack.c.l.b16 %v5400
        %v5443 = vpack.c.b16 %v5442, %v5441
        %v5446 = vsel %vm211, %v5427, 0
        %v5449 = vsel %vm211, %v5435, 0
        %v5452 = vsel %vm211, %v5438, 0
        %5454 = vmatprep.subr.bf16.mxu0 0
        %5455 = vmatpush1.bf16.msra.mxu0 0
        %5456 = vmatprep.subr.bf16.mxu0 0
        %5457 = vmatpush1.bf16.msra.mxu0 0
        %5458 = vmatprep.subr.bf16.mxu0 0
        %5459 = vmatpush1.bf16.msra.mxu0 0
        %5460 = vmatprep.subr.bf16.mxu0 0
        %5461 = vmatpush1.bf16.msra.mxu0 0
        %5462 = vmatprep.subr.bf16.mxu0 0
        %5463 = vmatpush1.bf16.msra.mxu0 0
        %5464 = vmatprep.subr.bf16.mxu0 0
        %5465 = vmatpush1.bf16.msra.mxu0 0
        %5466 = vmatprep.subr.bf16.mxu0 0
        %5467 = vmatpush1.bf16.msra.mxu0 0
        %5468 = vmatprep.subr.bf16.mxu0 0
        %5469 = vmatpush1.bf16.msra.mxu0 %v5443
        %5470 = vmatprep.subr.bf16.mxu0 0
        %5471 = vmatpush2.bf16.msra.mxu0 0
        %5472 = vmatprep.subr.bf16.mxu0 0
        %5473 = vmatpush2.bf16.msra.mxu0 0
        %5474 = vmatprep.subr.bf16.mxu0 0
        %5475 = vmatpush2.bf16.msra.mxu0 0
        %5476 = vmatprep.subr.bf16.mxu0 0
        %5477 = vmatpush2.bf16.msra.mxu0 0
        %5478 = vmatprep.subr.bf16.mxu0 0
        %5479 = vmatpush2.bf16.msra.mxu0 0
        %5480 = vmatprep.subr.bf16.mxu0 0
        %5481 = vmatpush2.bf16.msra.mxu0 0
        %5482 = vmatprep.subr.bf16.mxu0 0
        %5483 = vmatpush2.bf16.msra.mxu0 0
        %5484 = vmatprep.subr.bf16.mxu0 0
        %5485 = vmatpush2.bf16.msra.mxu0 0
        %5486 = vmatprep.mubr.bf16.mxu0 0
        %5487 = vmatmul.mubr.bf16.gmra.mxu0 %v5446
        %v5488 = vpop.f32.mrf.mxu0
        %v5489 = vadd.f32 0.0, %v5488
        %v5490 = vpop.f32.mrf.mxu0
        %v5491 = vpop.f32.mrf.mxu0
        %v5492 = vadd.f32 0.0, %v5491
        %v5493 = vpop.f32.mrf.mxu0
        %5494 = vmatprep.mubr.bf16.mxu0 0
        %5495 = vmatmul.mubr.bf16.gmra.mxu0 %v5449
        %v5496 = vpop.f32.mrf.mxu0
        %v5497 = vadd.f32 0.0, %v5496
        %v5498 = vpop.f32.mrf.mxu0
        %v5499 = vpop.f32.mrf.mxu0
        %v5500 = vadd.f32 0.0, %v5499
        %v5501 = vpop.f32.mrf.mxu0
        %5502 = vmatprep.mubr.bf16.mxu0 0
        %5503 = vmatmul.mubr.bf16.gmra.mxu0 %v5452
        %v5504 = vpop.f32.mrf.mxu0
        %v5505 = vadd.f32 0.0, %v5504
        %v5506 = vpop.f32.mrf.mxu0
        %v5507 = vpop.f32.mrf.mxu0
        %v5508 = vpop.f32.mrf.mxu0
        %5509 = vdwg.mxu0
        %v5510 = vld [vmem:[%s178] sm:$0xff]
        %v5511 = vld [vmem:[%s178 + $0x8] sm:$0xff]
        %v5512 = vld [vmem:[%s178 + $0x10] sm:$0xff]
        %v5513 = vld [vmem:[%s178 + $0x18] sm:$0xff]
        %v5514 = vld [vmem:[%s178 + $0x20] sm:$0xff]
        %v5515 = vadd.f32 %v5510, %v5489
        %v5516 = vadd.f32 %v5511, %v5492
        %v5517 = vadd.f32 %v5512, %v5497
        %v5518 = vadd.f32 %v5513, %v5500
        %v5519 = vadd.f32 %v5514, %v5505
        %5520 = vst [vmem:[%s178] sm:$0xff] %v5515
        %5521 = vst [vmem:[%s178 + $0x8] sm:$0xff] %v5516
        %5522 = vst [vmem:[%s178 + $0x10] sm:$0xff] %v5517
        %5523 = vst [vmem:[%s178 + $0x18] sm:$0xff] %v5518
        %5524 = vst [vmem:[%s178 + $0x20] sm:$0xff] %v5519
        %v5525 = vld [vmem:[%s183 + $0x50] sm:$0xe]
        %v5526 = vld [vmem:[%s183 + $0x54] sm:$0xf]
        %v5527 = vld [vmem:[%s183 + $0x58] sm:$0xf]
        %v5528 = vld [vmem:[%s183 + $0x5c] sm:$0xf]
        %v5529 = vld [vmem:[%s183 + $0x60] sm:$0xf]
        %v5530 = vld [vmem:[%s183 + $0x64] sm:$0x1]
        %v5531 = vld [vmem:[#allocation2 + $0x160] sm:$0xf]
        %v5532 = vld [vmem:[#allocation2 + $0x164] sm:$0xf]
        %v5539 = vunpack.c.l.b16 %v5525
        %v5540 = vunpack.c.l.b16 %v5526
        %v5541 = vunpack.c.l.b16 %v5527
        %v5542 = vunpack.c.l.b16 %v5528
        %v5543 = vunpack.c.l.b16 %v5529
        %v5544 = vunpack.c.l.b16 %v5530
        %v5545 = vpack.c.b16 %v5540, %v5539
        %v5546 = vpack.c.b16 %v5542, %v5541
        %v5547 = vpack.c.b16 %v5544, %v5543
        %v5548 = vrot.slane %v5545, 1
        %v5549 = vrot.slane %v5546, 1
        %v5550 = vsel %vm676, %v5548, %v5549
        %v5551 = vrot.slane %v5547, 1
        %v5552 = vsel %vm676, %v5549, %v5551
        %v5555 = vunpack.c.l.b16 %v5531
        %v5556 = vunpack.c.l.b16 %v5532
        %v5557 = vpack.c.b16 %v5556, %v5555
        %v5560 = vsel %vm211, %v5550, 0
        %v5563 = vsel %vm211, %v5552, 0
        %v5566 = vsel %vm211, %v5551, 0
        %5568 = vmatprep.subr.bf16.mxu0 0
        %5569 = vmatpush1.bf16.msra.mxu0 0
        %5570 = vmatprep.subr.bf16.mxu0 0
        %5571 = vmatpush1.bf16.msra.mxu0 0
        %5572 = vmatprep.subr.bf16.mxu0 0
        %5573 = vmatpush1.bf16.msra.mxu0 0
        %5574 = vmatprep.subr.bf16.mxu0 0
        %5575 = vmatpush1.bf16.msra.mxu0 0
        %5576 = vmatprep.subr.bf16.mxu0 0
        %5577 = vmatpush1.bf16.msra.mxu0 0
        %5578 = vmatprep.subr.bf16.mxu0 0
        %5579 = vmatpush1.bf16.msra.mxu0 0
        %5580 = vmatprep.subr.bf16.mxu0 0
        %5581 = vmatpush1.bf16.msra.mxu0 0
        %5582 = vmatprep.subr.bf16.mxu0 0
        %5583 = vmatpush1.bf16.msra.mxu0 %v5557
        %5584 = vmatprep.subr.bf16.mxu0 0
        %5585 = vmatpush2.bf16.msra.mxu0 0
        %5586 = vmatprep.subr.bf16.mxu0 0
        %5587 = vmatpush2.bf16.msra.mxu0 0
        %5588 = vmatprep.subr.bf16.mxu0 0
        %5589 = vmatpush2.bf16.msra.mxu0 0
        %5590 = vmatprep.subr.bf16.mxu0 0
        %5591 = vmatpush2.bf16.msra.mxu0 0
        %5592 = vmatprep.subr.bf16.mxu0 0
        %5593 = vmatpush2.bf16.msra.mxu0 0
        %5594 = vmatprep.subr.bf16.mxu0 0
        %5595 = vmatpush2.bf16.msra.mxu0 0
        %5596 = vmatprep.subr.bf16.mxu0 0
        %5597 = vmatpush2.bf16.msra.mxu0 0
        %5598 = vmatprep.subr.bf16.mxu0 0
        %5599 = vmatpush2.bf16.msra.mxu0 0
        %5600 = vmatprep.mubr.bf16.mxu0 0
        %5601 = vmatmul.mubr.bf16.gmra.mxu0 %v5560
        %v5602 = vpop.f32.mrf.mxu0
        %v5603 = vadd.f32 0.0, %v5602
        %v5604 = vpop.f32.mrf.mxu0
        %v5605 = vpop.f32.mrf.mxu0
        %v5606 = vadd.f32 0.0, %v5605
        %v5607 = vpop.f32.mrf.mxu0
        %5608 = vmatprep.mubr.bf16.mxu0 0
        %5609 = vmatmul.mubr.bf16.gmra.mxu0 %v5563
        %v5610 = vpop.f32.mrf.mxu0
        %v5611 = vadd.f32 0.0, %v5610
        %v5612 = vpop.f32.mrf.mxu0
        %v5613 = vpop.f32.mrf.mxu0
        %v5614 = vadd.f32 0.0, %v5613
        %v5615 = vpop.f32.mrf.mxu0
        %5616 = vmatprep.mubr.bf16.mxu0 0
        %5617 = vmatmul.mubr.bf16.gmra.mxu0 %v5566
        %v5618 = vpop.f32.mrf.mxu0
        %v5619 = vadd.f32 0.0, %v5618
        %v5620 = vpop.f32.mrf.mxu0
        %v5621 = vpop.f32.mrf.mxu0
        %v5622 = vpop.f32.mrf.mxu0
        %5623 = vdwg.mxu0
        %v5624 = vld [vmem:[%s178] sm:$0xff]
        %v5625 = vld [vmem:[%s178 + $0x8] sm:$0xff]
        %v5626 = vld [vmem:[%s178 + $0x10] sm:$0xff]
        %v5627 = vld [vmem:[%s178 + $0x18] sm:$0xff]
        %v5628 = vld [vmem:[%s178 + $0x20] sm:$0xff]
        %v5629 = vadd.f32 %v5624, %v5603
        %v5630 = vadd.f32 %v5625, %v5606
        %v5631 = vadd.f32 %v5626, %v5611
        %v5632 = vadd.f32 %v5627, %v5614
        %v5633 = vadd.f32 %v5628, %v5619
        %5634 = vst [vmem:[%s178] sm:$0xff] %v5629
        %5635 = vst [vmem:[%s178 + $0x8] sm:$0xff] %v5630
        %5636 = vst [vmem:[%s178 + $0x10] sm:$0xff] %v5631
        %5637 = vst [vmem:[%s178 + $0x18] sm:$0xff] %v5632
        %5638 = vst [vmem:[%s178 + $0x20] sm:$0xff] %v5633
        %v5639 = vld [vmem:[%s183 + $0x74] sm:$0xe]
        %v5640 = vld [vmem:[%s183 + $0x78] sm:$0xf]
        %v5641 = vld [vmem:[%s183 + $0x7c] sm:$0xf]
        %v5642 = vld [vmem:[%s183 + $0x80] sm:$0xf]
        %v5643 = vld [vmem:[%s183 + $0x84] sm:$0xf]
        %v5644 = vld [vmem:[%s183 + $0x88] sm:$0x1]
        %v5645 = vld [vmem:[#allocation2 + $0x168] sm:$0xf]
        %v5646 = vld [vmem:[#allocation2 + $0x16c] sm:$0xf]
        %v5653 = vunpack.c.l.b16 %v5639
        %v5654 = vunpack.c.l.b16 %v5640
        %v5655 = vunpack.c.l.b16 %v5641
        %v5656 = vunpack.c.l.b16 %v5642
        %v5657 = vunpack.c.l.b16 %v5643
        %v5658 = vunpack.c.l.b16 %v5644
        %v5659 = vpack.c.b16 %v5654, %v5653
        %v5660 = vpack.c.b16 %v5656, %v5655
        %v5661 = vpack.c.b16 %v5658, %v5657
        %v5662 = vrot.slane %v5659, 1
        %v5663 = vrot.slane %v5660, 1
        %v5664 = vsel %vm676, %v5662, %v5663
        %v5665 = vrot.slane %v5661, 1
        %v5666 = vsel %vm676, %v5663, %v5665
        %v5669 = vunpack.c.l.b16 %v5645
        %v5670 = vunpack.c.l.b16 %v5646
        %v5671 = vpack.c.b16 %v5670, %v5669
        %v5674 = vsel %vm211, %v5664, 0
        %v5677 = vsel %vm211, %v5666, 0
        %v5680 = vsel %vm211, %v5665, 0
        %5682 = vmatprep.subr.bf16.mxu0 0
        %5683 = vmatpush1.bf16.msra.mxu0 0
        %5684 = vmatprep.subr.bf16.mxu0 0
        %5685 = vmatpush1.bf16.msra.mxu0 0
        %5686 = vmatprep.subr.bf16.mxu0 0
        %5687 = vmatpush1.bf16.msra.mxu0 0
        %5688 = vmatprep.subr.bf16.mxu0 0
        %5689 = vmatpush1.bf16.msra.mxu0 0
        %5690 = vmatprep.subr.bf16.mxu0 0
        %5691 = vmatpush1.bf16.msra.mxu0 0
        %5692 = vmatprep.subr.bf16.mxu0 0
        %5693 = vmatpush1.bf16.msra.mxu0 0
        %5694 = vmatprep.subr.bf16.mxu0 0
        %5695 = vmatpush1.bf16.msra.mxu0 0
        %5696 = vmatprep.subr.bf16.mxu0 0
        %5697 = vmatpush1.bf16.msra.mxu0 %v5671
        %5698 = vmatprep.subr.bf16.mxu0 0
        %5699 = vmatpush2.bf16.msra.mxu0 0
        %5700 = vmatprep.subr.bf16.mxu0 0
        %5701 = vmatpush2.bf16.msra.mxu0 0
        %5702 = vmatprep.subr.bf16.mxu0 0
        %5703 = vmatpush2.bf16.msra.mxu0 0
        %5704 = vmatprep.subr.bf16.mxu0 0
        %5705 = vmatpush2.bf16.msra.mxu0 0
        %5706 = vmatprep.subr.bf16.mxu0 0
        %5707 = vmatpush2.bf16.msra.mxu0 0
        %5708 = vmatprep.subr.bf16.mxu0 0
        %5709 = vmatpush2.bf16.msra.mxu0 0
        %5710 = vmatprep.subr.bf16.mxu0 0
        %5711 = vmatpush2.bf16.msra.mxu0 0
        %5712 = vmatprep.subr.bf16.mxu0 0
        %5713 = vmatpush2.bf16.msra.mxu0 0
        %5714 = vmatprep.mubr.bf16.mxu0 0
        %5715 = vmatmul.mubr.bf16.gmra.mxu0 %v5674
        %v5716 = vpop.f32.mrf.mxu0
        %v5717 = vadd.f32 0.0, %v5716
        %v5718 = vpop.f32.mrf.mxu0
        %v5719 = vpop.f32.mrf.mxu0
        %v5720 = vadd.f32 0.0, %v5719
        %v5721 = vpop.f32.mrf.mxu0
        %5722 = vmatprep.mubr.bf16.mxu0 0
        %5723 = vmatmul.mubr.bf16.gmra.mxu0 %v5677
        %v5724 = vpop.f32.mrf.mxu0
        %v5725 = vadd.f32 0.0, %v5724
        %v5726 = vpop.f32.mrf.mxu0
        %v5727 = vpop.f32.mrf.mxu0
        %v5728 = vadd.f32 0.0, %v5727
        %v5729 = vpop.f32.mrf.mxu0
        %5730 = vmatprep.mubr.bf16.mxu0 0
        %5731 = vmatmul.mubr.bf16.gmra.mxu0 %v5680
        %v5732 = vpop.f32.mrf.mxu0
        %v5733 = vadd.f32 0.0, %v5732
        %v5734 = vpop.f32.mrf.mxu0
        %v5735 = vpop.f32.mrf.mxu0
        %v5736 = vpop.f32.mrf.mxu0
        %5737 = vdwg.mxu0
        %v5738 = vld [vmem:[%s178] sm:$0xff]
        %v5739 = vld [vmem:[%s178 + $0x8] sm:$0xff]
        %v5740 = vld [vmem:[%s178 + $0x10] sm:$0xff]
        %v5741 = vld [vmem:[%s178 + $0x18] sm:$0xff]
        %v5742 = vld [vmem:[%s178 + $0x20] sm:$0xff]
        %v5743 = vadd.f32 %v5738, %v5717
        %v5744 = vadd.f32 %v5739, %v5720
        %v5745 = vadd.f32 %v5740, %v5725
        %v5746 = vadd.f32 %v5741, %v5728
        %v5747 = vadd.f32 %v5742, %v5733
        %5748 = vst [vmem:[%s178] sm:$0xff] %v5743
        %5749 = vst [vmem:[%s178 + $0x8] sm:$0xff] %v5744
        %5750 = vst [vmem:[%s178 + $0x10] sm:$0xff] %v5745
        %5751 = vst [vmem:[%s178 + $0x18] sm:$0xff] %v5746
        %5752 = vst [vmem:[%s178 + $0x20] sm:$0xff] %v5747
        %v5753 = vld [vmem:[%s183 + $0x50] sm:$0xe]
        %v5754 = vld [vmem:[%s183 + $0x54] sm:$0xf]
        %v5755 = vld [vmem:[%s183 + $0x58] sm:$0xf]
        %v5756 = vld [vmem:[%s183 + $0x5c] sm:$0xf]
        %v5757 = vld [vmem:[%s183 + $0x60] sm:$0xf]
        %v5758 = vld [vmem:[%s183 + $0x64] sm:$0x3]
        %v5759 = vld [vmem:[#allocation2 + $0x170] sm:$0xf]
        %v5760 = vld [vmem:[#allocation2 + $0x174] sm:$0xf]
        %v5767 = vunpack.c.l.b16 %v5753
        %v5768 = vunpack.c.l.b16 %v5754
        %v5769 = vunpack.c.l.b16 %v5755
        %v5770 = vunpack.c.l.b16 %v5756
        %v5771 = vunpack.c.l.b16 %v5757
        %v5772 = vunpack.c.l.b16 %v5758
        %v5773 = vpack.c.b16 %v5768, %v5767
        %v5774 = vpack.c.b16 %v5770, %v5769
        %v5775 = vpack.c.b16 %v5772, %v5771
        %v5777 = vshrl.u32 %v5773, 16
        %v5779 = vrot.slane %v5777, 1
        %v5780 = vshll.u32 %v5773, 16
        %v5782 = vrot.slane %v5780, 2
        %v5783 = vor.u32 %v5779, %v5782
        %v5785 = vshrl.u32 %v5774, 16
        %v5787 = vrot.slane %v5785, 1
        %v5788 = vshll.u32 %v5774, 16
        %v5790 = vrot.slane %v5788, 2
        %v5791 = vor.u32 %v5787, %v5790
        %v5792 = vsel %vm905, %v5783, %v5791
        %v5794 = vshrl.u32 %v5775, 16
        %v5796 = vrot.slane %v5794, 1
        %v5797 = vshll.u32 %v5775, 16
        %v5799 = vrot.slane %v5797, 2
        %v5800 = vor.u32 %v5796, %v5799
        %v5801 = vsel %vm905, %v5791, %v5800
        %v5804 = vunpack.c.l.b16 %v5759
        %v5805 = vunpack.c.l.b16 %v5760
        %v5806 = vpack.c.b16 %v5805, %v5804
        %v5809 = vsel %vm211, %v5792, 0
        %v5812 = vsel %vm211, %v5801, 0
        %v5815 = vsel %vm211, %v5800, 0
        %5817 = vmatprep.subr.bf16.mxu0 0
        %5818 = vmatpush1.bf16.msra.mxu0 0
        %5819 = vmatprep.subr.bf16.mxu0 0
        %5820 = vmatpush1.bf16.msra.mxu0 0
        %5821 = vmatprep.subr.bf16.mxu0 0
        %5822 = vmatpush1.bf16.msra.mxu0 0
        %5823 = vmatprep.subr.bf16.mxu0 0
        %5824 = vmatpush1.bf16.msra.mxu0 0
        %5825 = vmatprep.subr.bf16.mxu0 0
        %5826 = vmatpush1.bf16.msra.mxu0 0
        %5827 = vmatprep.subr.bf16.mxu0 0
        %5828 = vmatpush1.bf16.msra.mxu0 0
        %5829 = vmatprep.subr.bf16.mxu0 0
        %5830 = vmatpush1.bf16.msra.mxu0 0
        %5831 = vmatprep.subr.bf16.mxu0 0
        %5832 = vmatpush1.bf16.msra.mxu0 %v5806
        %5833 = vmatprep.subr.bf16.mxu0 0
        %5834 = vmatpush2.bf16.msra.mxu0 0
        %5835 = vmatprep.subr.bf16.mxu0 0
        %5836 = vmatpush2.bf16.msra.mxu0 0
        %5837 = vmatprep.subr.bf16.mxu0 0
        %5838 = vmatpush2.bf16.msra.mxu0 0
        %5839 = vmatprep.subr.bf16.mxu0 0
        %5840 = vmatpush2.bf16.msra.mxu0 0
        %5841 = vmatprep.subr.bf16.mxu0 0
        %5842 = vmatpush2.bf16.msra.mxu0 0
        %5843 = vmatprep.subr.bf16.mxu0 0
        %5844 = vmatpush2.bf16.msra.mxu0 0
        %5845 = vmatprep.subr.bf16.mxu0 0
        %5846 = vmatpush2.bf16.msra.mxu0 0
        %5847 = vmatprep.subr.bf16.mxu0 0
        %5848 = vmatpush2.bf16.msra.mxu0 0
        %5849 = vmatprep.mubr.bf16.mxu0 0
        %5850 = vmatmul.mubr.bf16.gmra.mxu0 %v5809
        %v5851 = vpop.f32.mrf.mxu0
        %v5852 = vadd.f32 0.0, %v5851
        %v5853 = vpop.f32.mrf.mxu0
        %v5854 = vpop.f32.mrf.mxu0
        %v5855 = vadd.f32 0.0, %v5854
        %v5856 = vpop.f32.mrf.mxu0
        %5857 = vmatprep.mubr.bf16.mxu0 0
        %5858 = vmatmul.mubr.bf16.gmra.mxu0 %v5812
        %v5859 = vpop.f32.mrf.mxu0
        %v5860 = vadd.f32 0.0, %v5859
        %v5861 = vpop.f32.mrf.mxu0
        %v5862 = vpop.f32.mrf.mxu0
        %v5863 = vadd.f32 0.0, %v5862
        %v5864 = vpop.f32.mrf.mxu0
        %5865 = vmatprep.mubr.bf16.mxu0 0
        %5866 = vmatmul.mubr.bf16.gmra.mxu0 %v5815
        %v5867 = vpop.f32.mrf.mxu0
        %v5868 = vadd.f32 0.0, %v5867
        %v5869 = vpop.f32.mrf.mxu0
        %v5870 = vpop.f32.mrf.mxu0
        %v5871 = vpop.f32.mrf.mxu0
        %5872 = vdwg.mxu0
        %v5873 = vld [vmem:[%s178] sm:$0xff]
        %v5874 = vld [vmem:[%s178 + $0x8] sm:$0xff]
        %v5875 = vld [vmem:[%s178 + $0x10] sm:$0xff]
        %v5876 = vld [vmem:[%s178 + $0x18] sm:$0xff]
        %v5877 = vld [vmem:[%s178 + $0x20] sm:$0xff]
        %v5878 = vadd.f32 %v5873, %v5852
        %v5879 = vadd.f32 %v5874, %v5855
        %v5880 = vadd.f32 %v5875, %v5860
        %v5881 = vadd.f32 %v5876, %v5863
        %v5882 = vadd.f32 %v5877, %v5868
        %5883 = vst [vmem:[%s178] sm:$0xff] %v5878
        %5884 = vst [vmem:[%s178 + $0x8] sm:$0xff] %v5879
        %5885 = vst [vmem:[%s178 + $0x10] sm:$0xff] %v5880
        %5886 = vst [vmem:[%s178 + $0x18] sm:$0xff] %v5881
        %5887 = vst [vmem:[%s178 + $0x20] sm:$0xff] %v5882
        %v5888 = vld [vmem:[%s183 + $0x74] sm:$0xe]
        %v5889 = vld [vmem:[%s183 + $0x78] sm:$0xf]
        %v5890 = vld [vmem:[%s183 + $0x7c] sm:$0xf]
        %v5891 = vld [vmem:[%s183 + $0x80] sm:$0xf]
        %v5892 = vld [vmem:[%s183 + $0x84] sm:$0xf]
        %v5893 = vld [vmem:[%s183 + $0x88] sm:$0x3]
        %v5894 = vld [vmem:[#allocation2 + $0x178] sm:$0xf]
        %v5895 = vld [vmem:[#allocation2 + $0x17c] sm:$0xf]
        %v5902 = vunpack.c.l.b16 %v5888
        %v5903 = vunpack.c.l.b16 %v5889
        %v5904 = vunpack.c.l.b16 %v5890
        %v5905 = vunpack.c.l.b16 %v5891
        %v5906 = vunpack.c.l.b16 %v5892
        %v5907 = vunpack.c.l.b16 %v5893
        %v5908 = vpack.c.b16 %v5903, %v5902
        %v5909 = vpack.c.b16 %v5905, %v5904
        %v5910 = vpack.c.b16 %v5907, %v5906
        %v5912 = vshrl.u32 %v5908, 16
        %v5914 = vrot.slane %v5912, 1
        %v5915 = vshll.u32 %v5908, 16
        %v5917 = vrot.slane %v5915, 2
        %v5918 = vor.u32 %v5914, %v5917
        %v5920 = vshrl.u32 %v5909, 16
        %v5922 = vrot.slane %v5920, 1
        %v5923 = vshll.u32 %v5909, 16
        %v5925 = vrot.slane %v5923, 2
        %v5926 = vor.u32 %v5922, %v5925
        %v5927 = vsel %vm905, %v5918, %v5926
        %v5929 = vshrl.u32 %v5910, 16
        %v5931 = vrot.slane %v5929, 1
        %v5932 = vshll.u32 %v5910, 16
        %v5934 = vrot.slane %v5932, 2
        %v5935 = vor.u32 %v5931, %v5934
        %v5936 = vsel %vm905, %v5926, %v5935
        %v5939 = vunpack.c.l.b16 %v5894
        %v5940 = vunpack.c.l.b16 %v5895
        %v5941 = vpack.c.b16 %v5940, %v5939
        %v5944 = vsel %vm211, %v5927, 0
        %v5947 = vsel %vm211, %v5936, 0
        %v5950 = vsel %vm211, %v5935, 0
        %5952 = vmatprep.subr.bf16.mxu0 0
        %5953 = vmatpush1.bf16.msra.mxu0 0
        %5954 = vmatprep.subr.bf16.mxu0 0
        %5955 = vmatpush1.bf16.msra.mxu0 0
        %5956 = vmatprep.subr.bf16.mxu0 0
        %5957 = vmatpush1.bf16.msra.mxu0 0
        %5958 = vmatprep.subr.bf16.mxu0 0
        %5959 = vmatpush1.bf16.msra.mxu0 0
        %5960 = vmatprep.subr.bf16.mxu0 0
        %5961 = vmatpush1.bf16.msra.mxu0 0
        %5962 = vmatprep.subr.bf16.mxu0 0
        %5963 = vmatpush1.bf16.msra.mxu0 0
        %5964 = vmatprep.subr.bf16.mxu0 0
        %5965 = vmatpush1.bf16.msra.mxu0 0
        %5966 = vmatprep.subr.bf16.mxu0 0
        %5967 = vmatpush1.bf16.msra.mxu0 %v5941
        %5968 = vmatprep.subr.bf16.mxu0 0
        %5969 = vmatpush2.bf16.msra.mxu0 0
        %5970 = vmatprep.subr.bf16.mxu0 0
        %5971 = vmatpush2.bf16.msra.mxu0 0
        %5972 = vmatprep.subr.bf16.mxu0 0
        %5973 = vmatpush2.bf16.msra.mxu0 0
        %5974 = vmatprep.subr.bf16.mxu0 0
        %5975 = vmatpush2.bf16.msra.mxu0 0
        %5976 = vmatprep.subr.bf16.mxu0 0
        %5977 = vmatpush2.bf16.msra.mxu0 0
        %5978 = vmatprep.subr.bf16.mxu0 0
        %5979 = vmatpush2.bf16.msra.mxu0 0
        %5980 = vmatprep.subr.bf16.mxu0 0
        %5981 = vmatpush2.bf16.msra.mxu0 0
        %5982 = vmatprep.subr.bf16.mxu0 0
        %5983 = vmatpush2.bf16.msra.mxu0 0
        %5984 = vmatprep.mubr.bf16.mxu0 0
        %5985 = vmatmul.mubr.bf16.gmra.mxu0 %v5944
        %v5986 = vpop.f32.mrf.mxu0
        %v5987 = vadd.f32 0.0, %v5986
        %v5988 = vpop.f32.mrf.mxu0
        %v5989 = vpop.f32.mrf.mxu0
        %v5990 = vadd.f32 0.0, %v5989
        %v5991 = vpop.f32.mrf.mxu0
        %5992 = vmatprep.mubr.bf16.mxu0 0
        %5993 = vmatmul.mubr.bf16.gmra.mxu0 %v5947
        %v5994 = vpop.f32.mrf.mxu0
        %v5995 = vadd.f32 0.0, %v5994
        %v5996 = vpop.f32.mrf.mxu0
        %v5997 = vpop.f32.mrf.mxu0
        %v5998 = vadd.f32 0.0, %v5997
        %v5999 = vpop.f32.mrf.mxu0
        %6000 = vmatprep.mubr.bf16.mxu0 0
        %6001 = vmatmul.mubr.bf16.gmra.mxu0 %v5950
        %v6002 = vpop.f32.mrf.mxu0
        %v6003 = vadd.f32 0.0, %v6002
        %v6004 = vpop.f32.mrf.mxu0
        %v6005 = vpop.f32.mrf.mxu0
        %v6006 = vpop.f32.mrf.mxu0
        %6007 = vdwg.mxu0
        %v6008 = vld [vmem:[%s178] sm:$0xff]
        %v6009 = vld [vmem:[%s178 + $0x8] sm:$0xff]
        %v6010 = vld [vmem:[%s178 + $0x10] sm:$0xff]
        %v6011 = vld [vmem:[%s178 + $0x18] sm:$0xff]
        %v6012 = vld [vmem:[%s178 + $0x20] sm:$0xff]
        %v6013 = vadd.f32 %v6008, %v5987
        %v6014 = vadd.f32 %v6009, %v5990
        %v6015 = vadd.f32 %v6010, %v5995
        %v6016 = vadd.f32 %v6011, %v5998
        %v6017 = vadd.f32 %v6012, %v6003
        %6018 = vst [vmem:[%s178] sm:$0xff] %v6013
        %6019 = vst [vmem:[%s178 + $0x8] sm:$0xff] %v6014
        %6020 = vst [vmem:[%s178 + $0x10] sm:$0xff] %v6015
        %6021 = vst [vmem:[%s178 + $0x18] sm:$0xff] %v6016
        %6022 = vst [vmem:[%s178 + $0x20] sm:$0xff] %v6017
        %v6023 = vld [vmem:[%s183 + $0xc] sm:$0xf]
        %v6024 = vld [vmem:[%s183 + $0x10] sm:$0xf]
        %v6025 = vld [vmem:[%s183 + $0x14] sm:$0xf]
        %v6026 = vld [vmem:[%s183 + $0x18] sm:$0xf]
        %v6027 = vld [vmem:[%s183 + $0x1c] sm:$0xf]
        %v6028 = vld [vmem:[#allocation2 + $0x180] sm:$0xf]
        %v6029 = vld [vmem:[#allocation2 + $0x184] sm:$0xf]
        %v6035 = vunpack.c.l.b16 %v6023
        %v6036 = vunpack.c.l.b16 %v6024
        %v6037 = vunpack.c.l.b16 %v6025
        %v6038 = vunpack.c.l.b16 %v6026
        %v6039 = vunpack.c.l.b16 %v6027
        %v6040 = vpack.c.b16 %v6036, %v6035
        %v6041 = vpack.c.b16 %v6038, %v6037
        %v6042 = vpack.c.b16 %v6039, %v6039
        %v6045 = vunpack.c.l.b16 %v6028
        %v6046 = vunpack.c.l.b16 %v6029
        %v6047 = vpack.c.b16 %v6046, %v6045
        %v6050 = vsel %vm211, %v6040, 0
        %v6053 = vsel %vm211, %v6041, 0
        %v6056 = vsel %vm211, %v6042, 0
        %6058 = vmatprep.subr.bf16.mxu0 0
        %6059 = vmatpush1.bf16.msra.mxu0 0
        %6060 = vmatprep.subr.bf16.mxu0 0
        %6061 = vmatpush1.bf16.msra.mxu0 0
        %6062 = vmatprep.subr.bf16.mxu0 0
        %6063 = vmatpush1.bf16.msra.mxu0 0
        %6064 = vmatprep.subr.bf16.mxu0 0
        %6065 = vmatpush1.bf16.msra.mxu0 0
        %6066 = vmatprep.subr.bf16.mxu0 0
        %6067 = vmatpush1.bf16.msra.mxu0 0
        %6068 = vmatprep.subr.bf16.mxu0 0
        %6069 = vmatpush1.bf16.msra.mxu0 0
        %6070 = vmatprep.subr.bf16.mxu0 0
        %6071 = vmatpush1.bf16.msra.mxu0 0
        %6072 = vmatprep.subr.bf16.mxu0 0
        %6073 = vmatpush1.bf16.msra.mxu0 %v6047
        %6074 = vmatprep.subr.bf16.mxu0 0
        %6075 = vmatpush2.bf16.msra.mxu0 0
        %6076 = vmatprep.subr.bf16.mxu0 0
        %6077 = vmatpush2.bf16.msra.mxu0 0
        %6078 = vmatprep.subr.bf16.mxu0 0
        %6079 = vmatpush2.bf16.msra.mxu0 0
        %6080 = vmatprep.subr.bf16.mxu0 0
        %6081 = vmatpush2.bf16.msra.mxu0 0
        %6082 = vmatprep.subr.bf16.mxu0 0
        %6083 = vmatpush2.bf16.msra.mxu0 0
        %6084 = vmatprep.subr.bf16.mxu0 0
        %6085 = vmatpush2.bf16.msra.mxu0 0
        %6086 = vmatprep.subr.bf16.mxu0 0
        %6087 = vmatpush2.bf16.msra.mxu0 0
        %6088 = vmatprep.subr.bf16.mxu0 0
        %6089 = vmatpush2.bf16.msra.mxu0 0
        %6090 = vmatprep.mubr.bf16.mxu0 0
        %6091 = vmatmul.mubr.bf16.gmra.mxu0 %v6050
        %v6092 = vpop.f32.mrf.mxu0
        %v6093 = vadd.f32 0.0, %v6092
        %v6094 = vpop.f32.mrf.mxu0
        %v6095 = vpop.f32.mrf.mxu0
        %v6096 = vadd.f32 0.0, %v6095
        %v6097 = vpop.f32.mrf.mxu0
        %6098 = vmatprep.mubr.bf16.mxu0 0
        %6099 = vmatmul.mubr.bf16.gmra.mxu0 %v6053
        %v6100 = vpop.f32.mrf.mxu0
        %v6101 = vadd.f32 0.0, %v6100
        %v6102 = vpop.f32.mrf.mxu0
        %v6103 = vpop.f32.mrf.mxu0
        %v6104 = vadd.f32 0.0, %v6103
        %v6105 = vpop.f32.mrf.mxu0
        %6106 = vmatprep.mubr.bf16.mxu0 0
        %6107 = vmatmul.mubr.bf16.gmra.mxu0 %v6056
        %v6108 = vpop.f32.mrf.mxu0
        %v6109 = vadd.f32 0.0, %v6108
        %v6110 = vpop.f32.mrf.mxu0
        %v6111 = vpop.f32.mrf.mxu0
        %v6112 = vpop.f32.mrf.mxu0
        %6113 = vdwg.mxu0
        %v6114 = vld [vmem:[%s178] sm:$0xff]
        %v6115 = vld [vmem:[%s178 + $0x8] sm:$0xff]
        %v6116 = vld [vmem:[%s178 + $0x10] sm:$0xff]
        %v6117 = vld [vmem:[%s178 + $0x18] sm:$0xff]
        %v6118 = vld [vmem:[%s178 + $0x20] sm:$0xff]
        %v6119 = vadd.f32 %v6114, %v6093
        %v6120 = vadd.f32 %v6115, %v6096
        %v6121 = vadd.f32 %v6116, %v6101
        %v6122 = vadd.f32 %v6117, %v6104
        %v6123 = vadd.f32 %v6118, %v6109
        %6124 = vst [vmem:[%s178] sm:$0xff] %v6119
        %6125 = vst [vmem:[%s178 + $0x8] sm:$0xff] %v6120
        %6126 = vst [vmem:[%s178 + $0x10] sm:$0xff] %v6121
        %6127 = vst [vmem:[%s178 + $0x18] sm:$0xff] %v6122
        %6128 = vst [vmem:[%s178 + $0x20] sm:$0xff] %v6123
        %v6129 = vld [vmem:[%s183 + $0x30] sm:$0xf]
        %v6130 = vld [vmem:[%s183 + $0x34] sm:$0xf]
        %v6131 = vld [vmem:[%s183 + $0x38] sm:$0xf]
        %v6132 = vld [vmem:[%s183 + $0x3c] sm:$0xf]
        %v6133 = vld [vmem:[%s183 + $0x40] sm:$0xf]
        %v6134 = vld [vmem:[#allocation2 + $0x188] sm:$0xf]
        %v6135 = vld [vmem:[#allocation2 + $0x18c] sm:$0xf]
        %v6141 = vunpack.c.l.b16 %v6129
        %v6142 = vunpack.c.l.b16 %v6130
        %v6143 = vunpack.c.l.b16 %v6131
        %v6144 = vunpack.c.l.b16 %v6132
        %v6145 = vunpack.c.l.b16 %v6133
        %v6146 = vpack.c.b16 %v6142, %v6141
        %v6147 = vpack.c.b16 %v6144, %v6143
        %v6148 = vpack.c.b16 %v6145, %v6145
        %v6151 = vunpack.c.l.b16 %v6134
        %v6152 = vunpack.c.l.b16 %v6135
        %v6153 = vpack.c.b16 %v6152, %v6151
        %v6156 = vsel %vm211, %v6146, 0
        %v6159 = vsel %vm211, %v6147, 0
        %v6162 = vsel %vm211, %v6148, 0
        %6164 = vmatprep.subr.bf16.mxu0 0
        %6165 = vmatpush1.bf16.msra.mxu0 0
        %6166 = vmatprep.subr.bf16.mxu0 0
        %6167 = vmatpush1.bf16.msra.mxu0 0
        %6168 = vmatprep.subr.bf16.mxu0 0
        %6169 = vmatpush1.bf16.msra.mxu0 0
        %6170 = vmatprep.subr.bf16.mxu0 0
        %6171 = vmatpush1.bf16.msra.mxu0 0
        %6172 = vmatprep.subr.bf16.mxu0 0
        %6173 = vmatpush1.bf16.msra.mxu0 0
        %6174 = vmatprep.subr.bf16.mxu0 0
        %6175 = vmatpush1.bf16.msra.mxu0 0
        %6176 = vmatprep.subr.bf16.mxu0 0
        %6177 = vmatpush1.bf16.msra.mxu0 0
        %6178 = vmatprep.subr.bf16.mxu0 0
        %6179 = vmatpush1.bf16.msra.mxu0 %v6153
        %6180 = vmatprep.subr.bf16.mxu0 0
        %6181 = vmatpush2.bf16.msra.mxu0 0
        %6182 = vmatprep.subr.bf16.mxu0 0
        %6183 = vmatpush2.bf16.msra.mxu0 0
        %6184 = vmatprep.subr.bf16.mxu0 0
        %6185 = vmatpush2.bf16.msra.mxu0 0
        %6186 = vmatprep.subr.bf16.mxu0 0
        %6187 = vmatpush2.bf16.msra.mxu0 0
        %6188 = vmatprep.subr.bf16.mxu0 0
        %6189 = vmatpush2.bf16.msra.mxu0 0
        %6190 = vmatprep.subr.bf16.mxu0 0
        %6191 = vmatpush2.bf16.msra.mxu0 0
        %6192 = vmatprep.subr.bf16.mxu0 0
        %6193 = vmatpush2.bf16.msra.mxu0 0
        %6194 = vmatprep.subr.bf16.mxu0 0
        %6195 = vmatpush2.bf16.msra.mxu0 0
        %6196 = vmatprep.mubr.bf16.mxu0 0
        %6197 = vmatmul.mubr.bf16.gmra.mxu0 %v6156
        %v6198 = vpop.f32.mrf.mxu0
        %v6199 = vadd.f32 0.0, %v6198
        %v6200 = vpop.f32.mrf.mxu0
        %v6201 = vpop.f32.mrf.mxu0
        %v6202 = vadd.f32 0.0, %v6201
        %v6203 = vpop.f32.mrf.mxu0
        %6204 = vmatprep.mubr.bf16.mxu0 0
        %6205 = vmatmul.mubr.bf16.gmra.mxu0 %v6159
        %v6206 = vpop.f32.mrf.mxu0
        %v6207 = vadd.f32 0.0, %v6206
        %v6208 = vpop.f32.mrf.mxu0
        %v6209 = vpop.f32.mrf.mxu0
        %v6210 = vadd.f32 0.0, %v6209
        %v6211 = vpop.f32.mrf.mxu0
        %6212 = vmatprep.mubr.bf16.mxu0 0
        %6213 = vmatmul.mubr.bf16.gmra.mxu0 %v6162
        %v6214 = vpop.f32.mrf.mxu0
        %v6215 = vadd.f32 0.0, %v6214
        %v6216 = vpop.f32.mrf.mxu0
        %v6217 = vpop.f32.mrf.mxu0
        %v6218 = vpop.f32.mrf.mxu0
        %6219 = vdwg.mxu0
        %v6220 = vld [vmem:[%s178] sm:$0xff]
        %v6221 = vld [vmem:[%s178 + $0x8] sm:$0xff]
        %v6222 = vld [vmem:[%s178 + $0x10] sm:$0xff]
        %v6223 = vld [vmem:[%s178 + $0x18] sm:$0xff]
        %v6224 = vld [vmem:[%s178 + $0x20] sm:$0xff]
        %v6225 = vadd.f32 %v6220, %v6199
        %v6226 = vadd.f32 %v6221, %v6202
        %v6227 = vadd.f32 %v6222, %v6207
        %v6228 = vadd.f32 %v6223, %v6210
        %v6229 = vadd.f32 %v6224, %v6215
        %6230 = vst [vmem:[%s178] sm:$0xff] %v6225
        %6231 = vst [vmem:[%s178 + $0x8] sm:$0xff] %v6226
        %6232 = vst [vmem:[%s178 + $0x10] sm:$0xff] %v6227
        %6233 = vst [vmem:[%s178 + $0x18] sm:$0xff] %v6228
        %6234 = vst [vmem:[%s178 + $0x20] sm:$0xff] %v6229
        %v6235 = vld [vmem:[%s183 + $0xc] sm:$0xf]
        %v6236 = vld [vmem:[%s183 + $0x10] sm:$0xf]
        %v6237 = vld [vmem:[%s183 + $0x14] sm:$0xf]
        %v6238 = vld [vmem:[%s183 + $0x18] sm:$0xf]
        %v6239 = vld [vmem:[%s183 + $0x1c] sm:$0xf]
        %v6240 = vld [vmem:[%s183 + $0x20] sm:$0x1]
        %v6241 = vld [vmem:[#allocation2 + $0x190] sm:$0xf]
        %v6242 = vld [vmem:[#allocation2 + $0x194] sm:$0xf]
        %v6249 = vunpack.c.l.b16 %v6235
        %v6250 = vunpack.c.l.b16 %v6236
        %v6251 = vunpack.c.l.b16 %v6237
        %v6252 = vunpack.c.l.b16 %v6238
        %v6253 = vunpack.c.l.b16 %v6239
        %v6254 = vunpack.c.l.b16 %v6240
        %v6255 = vpack.c.b16 %v6250, %v6249
        %v6256 = vpack.c.b16 %v6252, %v6251
        %v6257 = vpack.c.b16 %v6254, %v6253
        %v6259 = vshrl.u32 %v6255, 16
        %v6261 = vshll.u32 %v6255, 16
        %v6263 = vrot.slane %v6261, 1
        %v6264 = vor.u32 %v6259, %v6263
        %v6266 = vshll.u32 %v6256, 16
        %v6268 = vrot.slane %v6266, 1
        %v6269 = vsel %vm411, %v6264, %v6268
        %v6270 = vshrl.u32 %v6256, 16
        %v6272 = vor.u32 %v6270, %v6268
        %v6274 = vshll.u32 %v6257, 16
        %v6276 = vrot.slane %v6274, 1
        %v6277 = vsel %vm411, %v6272, %v6276
        %v6278 = vshrl.u32 %v6257, 16
        %v6280 = vor.u32 %v6278, %v6276
        %v6283 = vunpack.c.l.b16 %v6241
        %v6284 = vunpack.c.l.b16 %v6242
        %v6285 = vpack.c.b16 %v6284, %v6283
        %v6288 = vsel %vm211, %v6269, 0
        %v6291 = vsel %vm211, %v6277, 0
        %v6294 = vsel %vm211, %v6280, 0
        %6296 = vmatprep.subr.bf16.mxu0 0
        %6297 = vmatpush1.bf16.msra.mxu0 0
        %6298 = vmatprep.subr.bf16.mxu0 0
        %6299 = vmatpush1.bf16.msra.mxu0 0
        %6300 = vmatprep.subr.bf16.mxu0 0
        %6301 = vmatpush1.bf16.msra.mxu0 0
        %6302 = vmatprep.subr.bf16.mxu0 0
        %6303 = vmatpush1.bf16.msra.mxu0 0
        %6304 = vmatprep.subr.bf16.mxu0 0
        %6305 = vmatpush1.bf16.msra.mxu0 0
        %6306 = vmatprep.subr.bf16.mxu0 0
        %6307 = vmatpush1.bf16.msra.mxu0 0
        %6308 = vmatprep.subr.bf16.mxu0 0
        %6309 = vmatpush1.bf16.msra.mxu0 0
        %6310 = vmatprep.subr.bf16.mxu0 0
        %6311 = vmatpush1.bf16.msra.mxu0 %v6285
        %6312 = vmatprep.subr.bf16.mxu0 0
        %6313 = vmatpush2.bf16.msra.mxu0 0
        %6314 = vmatprep.subr.bf16.mxu0 0
        %6315 = vmatpush2.bf16.msra.mxu0 0
        %6316 = vmatprep.subr.bf16.mxu0 0
        %6317 = vmatpush2.bf16.msra.mxu0 0
        %6318 = vmatprep.subr.bf16.mxu0 0
        %6319 = vmatpush2.bf16.msra.mxu0 0
        %6320 = vmatprep.subr.bf16.mxu0 0
        %6321 = vmatpush2.bf16.msra.mxu0 0
        %6322 = vmatprep.subr.bf16.mxu0 0
        %6323 = vmatpush2.bf16.msra.mxu0 0
        %6324 = vmatprep.subr.bf16.mxu0 0
        %6325 = vmatpush2.bf16.msra.mxu0 0
        %6326 = vmatprep.subr.bf16.mxu0 0
        %6327 = vmatpush2.bf16.msra.mxu0 0
        %6328 = vmatprep.mubr.bf16.mxu0 0
        %6329 = vmatmul.mubr.bf16.gmra.mxu0 %v6288
        %v6330 = vpop.f32.mrf.mxu0
        %v6331 = vadd.f32 0.0, %v6330
        %v6332 = vpop.f32.mrf.mxu0
        %v6333 = vpop.f32.mrf.mxu0
        %v6334 = vadd.f32 0.0, %v6333
        %v6335 = vpop.f32.mrf.mxu0
        %6336 = vmatprep.mubr.bf16.mxu0 0
        %6337 = vmatmul.mubr.bf16.gmra.mxu0 %v6291
        %v6338 = vpop.f32.mrf.mxu0
        %v6339 = vadd.f32 0.0, %v6338
        %v6340 = vpop.f32.mrf.mxu0
        %v6341 = vpop.f32.mrf.mxu0
        %v6342 = vadd.f32 0.0, %v6341
        %v6343 = vpop.f32.mrf.mxu0
        %6344 = vmatprep.mubr.bf16.mxu0 0
        %6345 = vmatmul.mubr.bf16.gmra.mxu0 %v6294
        %v6346 = vpop.f32.mrf.mxu0
        %v6347 = vadd.f32 0.0, %v6346
        %v6348 = vpop.f32.mrf.mxu0
        %v6349 = vpop.f32.mrf.mxu0
        %v6350 = vpop.f32.mrf.mxu0
        %6351 = vdwg.mxu0
        %v6352 = vld [vmem:[%s178] sm:$0xff]
        %v6353 = vld [vmem:[%s178 + $0x8] sm:$0xff]
        %v6354 = vld [vmem:[%s178 + $0x10] sm:$0xff]
        %v6355 = vld [vmem:[%s178 + $0x18] sm:$0xff]
        %v6356 = vld [vmem:[%s178 + $0x20] sm:$0xff]
        %v6357 = vadd.f32 %v6352, %v6331
        %v6358 = vadd.f32 %v6353, %v6334
        %v6359 = vadd.f32 %v6354, %v6339
        %v6360 = vadd.f32 %v6355, %v6342
        %v6361 = vadd.f32 %v6356, %v6347
        %6362 = vst [vmem:[%s178] sm:$0xff] %v6357
        %6363 = vst [vmem:[%s178 + $0x8] sm:$0xff] %v6358
        %6364 = vst [vmem:[%s178 + $0x10] sm:$0xff] %v6359
        %6365 = vst [vmem:[%s178 + $0x18] sm:$0xff] %v6360
        %6366 = vst [vmem:[%s178 + $0x20] sm:$0xff] %v6361
        %v6367 = vld [vmem:[%s183 + $0x30] sm:$0xf]
        %v6368 = vld [vmem:[%s183 + $0x34] sm:$0xf]
        %v6369 = vld [vmem:[%s183 + $0x38] sm:$0xf]
        %v6370 = vld [vmem:[%s183 + $0x3c] sm:$0xf]
        %v6371 = vld [vmem:[%s183 + $0x40] sm:$0xf]
        %v6372 = vld [vmem:[%s183 + $0x44] sm:$0x1]
        %v6373 = vld [vmem:[#allocation2 + $0x198] sm:$0xf]
        %v6374 = vld [vmem:[#allocation2 + $0x19c] sm:$0xf]
        %v6381 = vunpack.c.l.b16 %v6367
        %v6382 = vunpack.c.l.b16 %v6368
        %v6383 = vunpack.c.l.b16 %v6369
        %v6384 = vunpack.c.l.b16 %v6370
        %v6385 = vunpack.c.l.b16 %v6371
        %v6386 = vunpack.c.l.b16 %v6372
        %v6387 = vpack.c.b16 %v6382, %v6381
        %v6388 = vpack.c.b16 %v6384, %v6383
        %v6389 = vpack.c.b16 %v6386, %v6385
        %v6391 = vshrl.u32 %v6387, 16
        %v6393 = vshll.u32 %v6387, 16
        %v6395 = vrot.slane %v6393, 1
        %v6396 = vor.u32 %v6391, %v6395
        %v6398 = vshll.u32 %v6388, 16
        %v6400 = vrot.slane %v6398, 1
        %v6401 = vsel %vm411, %v6396, %v6400
        %v6402 = vshrl.u32 %v6388, 16
        %v6404 = vor.u32 %v6402, %v6400
        %v6406 = vshll.u32 %v6389, 16
        %v6408 = vrot.slane %v6406, 1
        %v6409 = vsel %vm411, %v6404, %v6408
        %v6410 = vshrl.u32 %v6389, 16
        %v6412 = vor.u32 %v6410, %v6408
        %v6415 = vunpack.c.l.b16 %v6373
        %v6416 = vunpack.c.l.b16 %v6374
        %v6417 = vpack.c.b16 %v6416, %v6415
        %v6420 = vsel %vm211, %v6401, 0
        %v6423 = vsel %vm211, %v6409, 0
        %v6426 = vsel %vm211, %v6412, 0
        %6428 = vmatprep.subr.bf16.mxu0 0
        %6429 = vmatpush1.bf16.msra.mxu0 0
        %6430 = vmatprep.subr.bf16.mxu0 0
        %6431 = vmatpush1.bf16.msra.mxu0 0
        %6432 = vmatprep.subr.bf16.mxu0 0
        %6433 = vmatpush1.bf16.msra.mxu0 0
        %6434 = vmatprep.subr.bf16.mxu0 0
        %6435 = vmatpush1.bf16.msra.mxu0 0
        %6436 = vmatprep.subr.bf16.mxu0 0
        %6437 = vmatpush1.bf16.msra.mxu0 0
        %6438 = vmatprep.subr.bf16.mxu0 0
        %6439 = vmatpush1.bf16.msra.mxu0 0
        %6440 = vmatprep.subr.bf16.mxu0 0
        %6441 = vmatpush1.bf16.msra.mxu0 0
        %6442 = vmatprep.subr.bf16.mxu0 0
        %6443 = vmatpush1.bf16.msra.mxu0 %v6417
        %6444 = vmatprep.subr.bf16.mxu0 0
        %6445 = vmatpush2.bf16.msra.mxu0 0
        %6446 = vmatprep.subr.bf16.mxu0 0
        %6447 = vmatpush2.bf16.msra.mxu0 0
        %6448 = vmatprep.subr.bf16.mxu0 0
        %6449 = vmatpush2.bf16.msra.mxu0 0
        %6450 = vmatprep.subr.bf16.mxu0 0
        %6451 = vmatpush2.bf16.msra.mxu0 0
        %6452 = vmatprep.subr.bf16.mxu0 0
        %6453 = vmatpush2.bf16.msra.mxu0 0
        %6454 = vmatprep.subr.bf16.mxu0 0
        %6455 = vmatpush2.bf16.msra.mxu0 0
        %6456 = vmatprep.subr.bf16.mxu0 0
        %6457 = vmatpush2.bf16.msra.mxu0 0
        %6458 = vmatprep.subr.bf16.mxu0 0
        %6459 = vmatpush2.bf16.msra.mxu0 0
        %6460 = vmatprep.mubr.bf16.mxu0 0
        %6461 = vmatmul.mubr.bf16.gmra.mxu0 %v6420
        %v6462 = vpop.f32.mrf.mxu0
        %v6463 = vadd.f32 0.0, %v6462
        %v6464 = vpop.f32.mrf.mxu0
        %v6465 = vpop.f32.mrf.mxu0
        %v6466 = vadd.f32 0.0, %v6465
        %v6467 = vpop.f32.mrf.mxu0
        %6468 = vmatprep.mubr.bf16.mxu0 0
        %6469 = vmatmul.mubr.bf16.gmra.mxu0 %v6423
        %v6470 = vpop.f32.mrf.mxu0
        %v6471 = vadd.f32 0.0, %v6470
        %v6472 = vpop.f32.mrf.mxu0
        %v6473 = vpop.f32.mrf.mxu0
        %v6474 = vadd.f32 0.0, %v6473
        %v6475 = vpop.f32.mrf.mxu0
        %6476 = vmatprep.mubr.bf16.mxu0 0
        %6477 = vmatmul.mubr.bf16.gmra.mxu0 %v6426
        %v6478 = vpop.f32.mrf.mxu0
        %v6479 = vadd.f32 0.0, %v6478
        %v6480 = vpop.f32.mrf.mxu0
        %v6481 = vpop.f32.mrf.mxu0
        %v6482 = vpop.f32.mrf.mxu0
        %6483 = vdwg.mxu0
        %v6484 = vld [vmem:[%s178] sm:$0xff]
        %v6485 = vld [vmem:[%s178 + $0x8] sm:$0xff]
        %v6486 = vld [vmem:[%s178 + $0x10] sm:$0xff]
        %v6487 = vld [vmem:[%s178 + $0x18] sm:$0xff]
        %v6488 = vld [vmem:[%s178 + $0x20] sm:$0xff]
        %v6489 = vadd.f32 %v6484, %v6463
        %v6490 = vadd.f32 %v6485, %v6466
        %v6491 = vadd.f32 %v6486, %v6471
        %v6492 = vadd.f32 %v6487, %v6474
        %v6493 = vadd.f32 %v6488, %v6479
        %6494 = vst [vmem:[%s178] sm:$0xff] %v6489
        %6495 = vst [vmem:[%s178 + $0x8] sm:$0xff] %v6490
        %6496 = vst [vmem:[%s178 + $0x10] sm:$0xff] %v6491
        %6497 = vst [vmem:[%s178 + $0x18] sm:$0xff] %v6492
        %6498 = vst [vmem:[%s178 + $0x20] sm:$0xff] %v6493
        %v6499 = vld [vmem:[%s183 + $0xc] sm:$0xe]
        %v6500 = vld [vmem:[%s183 + $0x10] sm:$0xf]
        %v6501 = vld [vmem:[%s183 + $0x14] sm:$0xf]
        %v6502 = vld [vmem:[%s183 + $0x18] sm:$0xf]
        %v6503 = vld [vmem:[%s183 + $0x1c] sm:$0xf]
        %v6504 = vld [vmem:[%s183 + $0x20] sm:$0x1]
        %v6505 = vld [vmem:[#allocation2 + $0x1a0] sm:$0xf]
        %v6506 = vld [vmem:[#allocation2 + $0x1a4] sm:$0xf]
        %v6513 = vunpack.c.l.b16 %v6499
        %v6514 = vunpack.c.l.b16 %v6500
        %v6515 = vunpack.c.l.b16 %v6501
        %v6516 = vunpack.c.l.b16 %v6502
        %v6517 = vunpack.c.l.b16 %v6503
        %v6518 = vunpack.c.l.b16 %v6504
        %v6519 = vpack.c.b16 %v6514, %v6513
        %v6520 = vpack.c.b16 %v6516, %v6515
        %v6521 = vpack.c.b16 %v6518, %v6517
        %v6522 = vrot.slane %v6519, 1
        %v6523 = vrot.slane %v6520, 1
        %v6524 = vsel %vm676, %v6522, %v6523
        %v6525 = vrot.slane %v6521, 1
        %v6526 = vsel %vm676, %v6523, %v6525
        %v6529 = vunpack.c.l.b16 %v6505
        %v6530 = vunpack.c.l.b16 %v6506
        %v6531 = vpack.c.b16 %v6530, %v6529
        %v6534 = vsel %vm211, %v6524, 0
        %v6537 = vsel %vm211, %v6526, 0
        %v6540 = vsel %vm211, %v6525, 0
        %6542 = vmatprep.subr.bf16.mxu0 0
        %6543 = vmatpush1.bf16.msra.mxu0 0
        %6544 = vmatprep.subr.bf16.mxu0 0
        %6545 = vmatpush1.bf16.msra.mxu0 0
        %6546 = vmatprep.subr.bf16.mxu0 0
        %6547 = vmatpush1.bf16.msra.mxu0 0
        %6548 = vmatprep.subr.bf16.mxu0 0
        %6549 = vmatpush1.bf16.msra.mxu0 0
        %6550 = vmatprep.subr.bf16.mxu0 0
        %6551 = vmatpush1.bf16.msra.mxu0 0
        %6552 = vmatprep.subr.bf16.mxu0 0
        %6553 = vmatpush1.bf16.msra.mxu0 0
        %6554 = vmatprep.subr.bf16.mxu0 0
        %6555 = vmatpush1.bf16.msra.mxu0 0
        %6556 = vmatprep.subr.bf16.mxu0 0
        %6557 = vmatpush1.bf16.msra.mxu0 %v6531
        %6558 = vmatprep.subr.bf16.mxu0 0
        %6559 = vmatpush2.bf16.msra.mxu0 0
        %6560 = vmatprep.subr.bf16.mxu0 0
        %6561 = vmatpush2.bf16.msra.mxu0 0
        %6562 = vmatprep.subr.bf16.mxu0 0
        %6563 = vmatpush2.bf16.msra.mxu0 0
        %6564 = vmatprep.subr.bf16.mxu0 0
        %6565 = vmatpush2.bf16.msra.mxu0 0
        %6566 = vmatprep.subr.bf16.mxu0 0
        %6567 = vmatpush2.bf16.msra.mxu0 0
        %6568 = vmatprep.subr.bf16.mxu0 0
        %6569 = vmatpush2.bf16.msra.mxu0 0
        %6570 = vmatprep.subr.bf16.mxu0 0
        %6571 = vmatpush2.bf16.msra.mxu0 0
        %6572 = vmatprep.subr.bf16.mxu0 0
        %6573 = vmatpush2.bf16.msra.mxu0 0
        %6574 = vmatprep.mubr.bf16.mxu0 0
        %6575 = vmatmul.mubr.bf16.gmra.mxu0 %v6534
        %v6576 = vpop.f32.mrf.mxu0
        %v6577 = vadd.f32 0.0, %v6576
        %v6578 = vpop.f32.mrf.mxu0
        %v6579 = vpop.f32.mrf.mxu0
        %v6580 = vadd.f32 0.0, %v6579
        %v6581 = vpop.f32.mrf.mxu0
        %6582 = vmatprep.mubr.bf16.mxu0 0
        %6583 = vmatmul.mubr.bf16.gmra.mxu0 %v6537
        %v6584 = vpop.f32.mrf.mxu0
        %v6585 = vadd.f32 0.0, %v6584
        %v6586 = vpop.f32.mrf.mxu0
        %v6587 = vpop.f32.mrf.mxu0
        %v6588 = vadd.f32 0.0, %v6587
        %v6589 = vpop.f32.mrf.mxu0
        %6590 = vmatprep.mubr.bf16.mxu0 0
        %6591 = vmatmul.mubr.bf16.gmra.mxu0 %v6540
        %v6592 = vpop.f32.mrf.mxu0
        %v6593 = vadd.f32 0.0, %v6592
        %v6594 = vpop.f32.mrf.mxu0
        %v6595 = vpop.f32.mrf.mxu0
        %v6596 = vpop.f32.mrf.mxu0
        %6597 = vdwg.mxu0
        %v6598 = vld [vmem:[%s178] sm:$0xff]
        %v6599 = vld [vmem:[%s178 + $0x8] sm:$0xff]
        %v6600 = vld [vmem:[%s178 + $0x10] sm:$0xff]
        %v6601 = vld [vmem:[%s178 + $0x18] sm:$0xff]
        %v6602 = vld [vmem:[%s178 + $0x20] sm:$0xff]
        %v6603 = vadd.f32 %v6598, %v6577
        %v6604 = vadd.f32 %v6599, %v6580
        %v6605 = vadd.f32 %v6600, %v6585
        %v6606 = vadd.f32 %v6601, %v6588
        %v6607 = vadd.f32 %v6602, %v6593
        %6608 = vst [vmem:[%s178] sm:$0xff] %v6603
        %6609 = vst [vmem:[%s178 + $0x8] sm:$0xff] %v6604
        %6610 = vst [vmem:[%s178 + $0x10] sm:$0xff] %v6605
        %6611 = vst [vmem:[%s178 + $0x18] sm:$0xff] %v6606
        %6612 = vst [vmem:[%s178 + $0x20] sm:$0xff] %v6607
        %v6613 = vld [vmem:[%s183 + $0x30] sm:$0xe]
        %v6614 = vld [vmem:[%s183 + $0x34] sm:$0xf]
        %v6615 = vld [vmem:[%s183 + $0x38] sm:$0xf]
        %v6616 = vld [vmem:[%s183 + $0x3c] sm:$0xf]
        %v6617 = vld [vmem:[%s183 + $0x40] sm:$0xf]
        %v6618 = vld [vmem:[%s183 + $0x44] sm:$0x1]
        %v6619 = vld [vmem:[#allocation2 + $0x1a8] sm:$0xf]
        %v6620 = vld [vmem:[#allocation2 + $0x1ac] sm:$0xf]
        %v6627 = vunpack.c.l.b16 %v6613
        %v6628 = vunpack.c.l.b16 %v6614
        %v6629 = vunpack.c.l.b16 %v6615
        %v6630 = vunpack.c.l.b16 %v6616
        %v6631 = vunpack.c.l.b16 %v6617
        %v6632 = vunpack.c.l.b16 %v6618
        %v6633 = vpack.c.b16 %v6628, %v6627
        %v6634 = vpack.c.b16 %v6630, %v6629
        %v6635 = vpack.c.b16 %v6632, %v6631
        %v6636 = vrot.slane %v6633, 1
        %v6637 = vrot.slane %v6634, 1
        %v6638 = vsel %vm676, %v6636, %v6637
        %v6639 = vrot.slane %v6635, 1
        %v6640 = vsel %vm676, %v6637, %v6639
        %v6643 = vunpack.c.l.b16 %v6619
        %v6644 = vunpack.c.l.b16 %v6620
        %v6645 = vpack.c.b16 %v6644, %v6643
        %v6648 = vsel %vm211, %v6638, 0
        %v6651 = vsel %vm211, %v6640, 0
        %v6654 = vsel %vm211, %v6639, 0
        %6656 = vmatprep.subr.bf16.mxu0 0
        %6657 = vmatpush1.bf16.msra.mxu0 0
        %6658 = vmatprep.subr.bf16.mxu0 0
        %6659 = vmatpush1.bf16.msra.mxu0 0
        %6660 = vmatprep.subr.bf16.mxu0 0
        %6661 = vmatpush1.bf16.msra.mxu0 0
        %6662 = vmatprep.subr.bf16.mxu0 0
        %6663 = vmatpush1.bf16.msra.mxu0 0
        %6664 = vmatprep.subr.bf16.mxu0 0
        %6665 = vmatpush1.bf16.msra.mxu0 0
        %6666 = vmatprep.subr.bf16.mxu0 0
        %6667 = vmatpush1.bf16.msra.mxu0 0
        %6668 = vmatprep.subr.bf16.mxu0 0
        %6669 = vmatpush1.bf16.msra.mxu0 0
        %6670 = vmatprep.subr.bf16.mxu0 0
        %6671 = vmatpush1.bf16.msra.mxu0 %v6645
        %6672 = vmatprep.subr.bf16.mxu0 0
        %6673 = vmatpush2.bf16.msra.mxu0 0
        %6674 = vmatprep.subr.bf16.mxu0 0
        %6675 = vmatpush2.bf16.msra.mxu0 0
        %6676 = vmatprep.subr.bf16.mxu0 0
        %6677 = vmatpush2.bf16.msra.mxu0 0
        %6678 = vmatprep.subr.bf16.mxu0 0
        %6679 = vmatpush2.bf16.msra.mxu0 0
        %6680 = vmatprep.subr.bf16.mxu0 0
        %6681 = vmatpush2.bf16.msra.mxu0 0
        %6682 = vmatprep.subr.bf16.mxu0 0
        %6683 = vmatpush2.bf16.msra.mxu0 0
        %6684 = vmatprep.subr.bf16.mxu0 0
        %6685 = vmatpush2.bf16.msra.mxu0 0
        %6686 = vmatprep.subr.bf16.mxu0 0
        %6687 = vmatpush2.bf16.msra.mxu0 0
        %6688 = vmatprep.mubr.bf16.mxu0 0
        %6689 = vmatmul.mubr.bf16.gmra.mxu0 %v6648
        %v6690 = vpop.f32.mrf.mxu0
        %v6691 = vadd.f32 0.0, %v6690
        %v6692 = vpop.f32.mrf.mxu0
        %v6693 = vpop.f32.mrf.mxu0
        %v6694 = vadd.f32 0.0, %v6693
        %v6695 = vpop.f32.mrf.mxu0
        %6696 = vmatprep.mubr.bf16.mxu0 0
        %6697 = vmatmul.mubr.bf16.gmra.mxu0 %v6651
        %v6698 = vpop.f32.mrf.mxu0
        %v6699 = vadd.f32 0.0, %v6698
        %v6700 = vpop.f32.mrf.mxu0
        %v6701 = vpop.f32.mrf.mxu0
        %v6702 = vadd.f32 0.0, %v6701
        %v6703 = vpop.f32.mrf.mxu0
        %6704 = vmatprep.mubr.bf16.mxu0 0
        %6705 = vmatmul.mubr.bf16.gmra.mxu0 %v6654
        %v6706 = vpop.f32.mrf.mxu0
        %v6707 = vadd.f32 0.0, %v6706
        %v6708 = vpop.f32.mrf.mxu0
        %v6709 = vpop.f32.mrf.mxu0
        %v6710 = vpop.f32.mrf.mxu0
        %6711 = vdwg.mxu0
        %v6712 = vld [vmem:[%s178] sm:$0xff]
        %v6713 = vld [vmem:[%s178 + $0x8] sm:$0xff]
        %v6714 = vld [vmem:[%s178 + $0x10] sm:$0xff]
        %v6715 = vld [vmem:[%s178 + $0x18] sm:$0xff]
        %v6716 = vld [vmem:[%s178 + $0x20] sm:$0xff]
        %v6717 = vadd.f32 %v6712, %v6691
        %v6718 = vadd.f32 %v6713, %v6694
        %v6719 = vadd.f32 %v6714, %v6699
        %v6720 = vadd.f32 %v6715, %v6702
        %v6721 = vadd.f32 %v6716, %v6707
        %6722 = vst [vmem:[%s178] sm:$0xff] %v6717
        %6723 = vst [vmem:[%s178 + $0x8] sm:$0xff] %v6718
        %6724 = vst [vmem:[%s178 + $0x10] sm:$0xff] %v6719
        %6725 = vst [vmem:[%s178 + $0x18] sm:$0xff] %v6720
        %6726 = vst [vmem:[%s178 + $0x20] sm:$0xff] %v6721
        %v6727 = vld [vmem:[%s183 + $0xc] sm:$0xe]
        %v6728 = vld [vmem:[%s183 + $0x10] sm:$0xf]
        %v6729 = vld [vmem:[%s183 + $0x14] sm:$0xf]
        %v6730 = vld [vmem:[%s183 + $0x18] sm:$0xf]
        %v6731 = vld [vmem:[%s183 + $0x1c] sm:$0xf]
        %v6732 = vld [vmem:[%s183 + $0x20] sm:$0x3]
        %v6733 = vld [vmem:[#allocation2 + $0x1b0] sm:$0xf]
        %v6734 = vld [vmem:[#allocation2 + $0x1b4] sm:$0xf]
        %v6741 = vunpack.c.l.b16 %v6727
        %v6742 = vunpack.c.l.b16 %v6728
        %v6743 = vunpack.c.l.b16 %v6729
        %v6744 = vunpack.c.l.b16 %v6730
        %v6745 = vunpack.c.l.b16 %v6731
        %v6746 = vunpack.c.l.b16 %v6732
        %v6747 = vpack.c.b16 %v6742, %v6741
        %v6748 = vpack.c.b16 %v6744, %v6743
        %v6749 = vpack.c.b16 %v6746, %v6745
        %v6751 = vshrl.u32 %v6747, 16
        %v6753 = vrot.slane %v6751, 1
        %v6754 = vshll.u32 %v6747, 16
        %v6756 = vrot.slane %v6754, 2
        %v6757 = vor.u32 %v6753, %v6756
        %v6759 = vshrl.u32 %v6748, 16
        %v6761 = vrot.slane %v6759, 1
        %v6762 = vshll.u32 %v6748, 16
        %v6764 = vrot.slane %v6762, 2
        %v6765 = vor.u32 %v6761, %v6764
        %v6766 = vsel %vm905, %v6757, %v6765
        %v6768 = vshrl.u32 %v6749, 16
        %v6770 = vrot.slane %v6768, 1
        %v6771 = vshll.u32 %v6749, 16
        %v6773 = vrot.slane %v6771, 2
        %v6774 = vor.u32 %v6770, %v6773
        %v6775 = vsel %vm905, %v6765, %v6774
        %v6778 = vunpack.c.l.b16 %v6733
        %v6779 = vunpack.c.l.b16 %v6734
        %v6780 = vpack.c.b16 %v6779, %v6778
        %v6783 = vsel %vm211, %v6766, 0
        %v6786 = vsel %vm211, %v6775, 0
        %v6789 = vsel %vm211, %v6774, 0
        %6791 = vmatprep.subr.bf16.mxu0 0
        %6792 = vmatpush1.bf16.msra.mxu0 0
        %6793 = vmatprep.subr.bf16.mxu0 0
        %6794 = vmatpush1.bf16.msra.mxu0 0
        %6795 = vmatprep.subr.bf16.mxu0 0
        %6796 = vmatpush1.bf16.msra.mxu0 0
        %6797 = vmatprep.subr.bf16.mxu0 0
        %6798 = vmatpush1.bf16.msra.mxu0 0
        %6799 = vmatprep.subr.bf16.mxu0 0
        %6800 = vmatpush1.bf16.msra.mxu0 0
        %6801 = vmatprep.subr.bf16.mxu0 0
        %6802 = vmatpush1.bf16.msra.mxu0 0
        %6803 = vmatprep.subr.bf16.mxu0 0
        %6804 = vmatpush1.bf16.msra.mxu0 0
        %6805 = vmatprep.subr.bf16.mxu0 0
        %6806 = vmatpush1.bf16.msra.mxu0 %v6780
        %6807 = vmatprep.subr.bf16.mxu0 0
        %6808 = vmatpush2.bf16.msra.mxu0 0
        %6809 = vmatprep.subr.bf16.mxu0 0
        %6810 = vmatpush2.bf16.msra.mxu0 0
        %6811 = vmatprep.subr.bf16.mxu0 0
        %6812 = vmatpush2.bf16.msra.mxu0 0
        %6813 = vmatprep.subr.bf16.mxu0 0
        %6814 = vmatpush2.bf16.msra.mxu0 0
        %6815 = vmatprep.subr.bf16.mxu0 0
        %6816 = vmatpush2.bf16.msra.mxu0 0
        %6817 = vmatprep.subr.bf16.mxu0 0
        %6818 = vmatpush2.bf16.msra.mxu0 0
        %6819 = vmatprep.subr.bf16.mxu0 0
        %6820 = vmatpush2.bf16.msra.mxu0 0
        %6821 = vmatprep.subr.bf16.mxu0 0
        %6822 = vmatpush2.bf16.msra.mxu0 0
        %6823 = vmatprep.mubr.bf16.mxu0 0
        %6824 = vmatmul.mubr.bf16.gmra.mxu0 %v6783
        %v6825 = vpop.f32.mrf.mxu0
        %v6826 = vadd.f32 0.0, %v6825
        %v6827 = vpop.f32.mrf.mxu0
        %v6828 = vpop.f32.mrf.mxu0
        %v6829 = vadd.f32 0.0, %v6828
        %v6830 = vpop.f32.mrf.mxu0
        %6831 = vmatprep.mubr.bf16.mxu0 0
        %6832 = vmatmul.mubr.bf16.gmra.mxu0 %v6786
        %v6833 = vpop.f32.mrf.mxu0
        %v6834 = vadd.f32 0.0, %v6833
        %v6835 = vpop.f32.mrf.mxu0
        %v6836 = vpop.f32.mrf.mxu0
        %v6837 = vadd.f32 0.0, %v6836
        %v6838 = vpop.f32.mrf.mxu0
        %6839 = vmatprep.mubr.bf16.mxu0 0
        %6840 = vmatmul.mubr.bf16.gmra.mxu0 %v6789
        %v6841 = vpop.f32.mrf.mxu0
        %v6842 = vadd.f32 0.0, %v6841
        %v6843 = vpop.f32.mrf.mxu0
        %v6844 = vpop.f32.mrf.mxu0
        %v6845 = vpop.f32.mrf.mxu0
        %6846 = vdwg.mxu0
        %v6847 = vld [vmem:[%s178] sm:$0xff]
        %v6848 = vld [vmem:[%s178 + $0x8] sm:$0xff]
        %v6849 = vld [vmem:[%s178 + $0x10] sm:$0xff]
        %v6850 = vld [vmem:[%s178 + $0x18] sm:$0xff]
        %v6851 = vld [vmem:[%s178 + $0x20] sm:$0xff]
        %v6852 = vadd.f32 %v6847, %v6826
        %v6853 = vadd.f32 %v6848, %v6829
        %v6854 = vadd.f32 %v6849, %v6834
        %v6855 = vadd.f32 %v6850, %v6837
        %v6856 = vadd.f32 %v6851, %v6842
        %6857 = vst [vmem:[%s178] sm:$0xff] %v6852
        %6858 = vst [vmem:[%s178 + $0x8] sm:$0xff] %v6853
        %6859 = vst [vmem:[%s178 + $0x10] sm:$0xff] %v6854
        %6860 = vst [vmem:[%s178 + $0x18] sm:$0xff] %v6855
        %6861 = vst [vmem:[%s178 + $0x20] sm:$0xff] %v6856
        %v6862 = vld [vmem:[%s183 + $0x30] sm:$0xe]
        %v6863 = vld [vmem:[%s183 + $0x34] sm:$0xf]
        %v6864 = vld [vmem:[%s183 + $0x38] sm:$0xf]
        %v6865 = vld [vmem:[%s183 + $0x3c] sm:$0xf]
        %v6866 = vld [vmem:[%s183 + $0x40] sm:$0xf]
        %v6867 = vld [vmem:[%s183 + $0x44] sm:$0x3]
        %v6868 = vld [vmem:[#allocation2 + $0x1b8] sm:$0xf]
        %v6869 = vld [vmem:[#allocation2 + $0x1bc] sm:$0xf]
        %v6876 = vunpack.c.l.b16 %v6862
        %v6877 = vunpack.c.l.b16 %v6863
        %v6878 = vunpack.c.l.b16 %v6864
        %v6879 = vunpack.c.l.b16 %v6865
        %v6880 = vunpack.c.l.b16 %v6866
        %v6881 = vunpack.c.l.b16 %v6867
        %v6882 = vpack.c.b16 %v6877, %v6876
        %v6883 = vpack.c.b16 %v6879, %v6878
        %v6884 = vpack.c.b16 %v6881, %v6880
        %v6886 = vshrl.u32 %v6882, 16
        %v6888 = vrot.slane %v6886, 1
        %v6889 = vshll.u32 %v6882, 16
        %v6891 = vrot.slane %v6889, 2
        %v6892 = vor.u32 %v6888, %v6891
        %v6894 = vshrl.u32 %v6883, 16
        %v6896 = vrot.slane %v6894, 1
        %v6897 = vshll.u32 %v6883, 16
        %v6899 = vrot.slane %v6897, 2
        %v6900 = vor.u32 %v6896, %v6899
        %v6901 = vsel %vm905, %v6892, %v6900
        %v6903 = vshrl.u32 %v6884, 16
        %v6905 = vrot.slane %v6903, 1
        %v6906 = vshll.u32 %v6884, 16
        %v6908 = vrot.slane %v6906, 2
        %v6909 = vor.u32 %v6905, %v6908
        %v6910 = vsel %vm905, %v6900, %v6909
        %v6913 = vunpack.c.l.b16 %v6868
        %v6914 = vunpack.c.l.b16 %v6869
        %v6915 = vpack.c.b16 %v6914, %v6913
        %v6918 = vsel %vm211, %v6901, 0
        %v6921 = vsel %vm211, %v6910, 0
        %v6924 = vsel %vm211, %v6909, 0
        %6926 = vmatprep.subr.bf16.mxu0 0
        %6927 = vmatpush1.bf16.msra.mxu0 0
        %6928 = vmatprep.subr.bf16.mxu0 0
        %6929 = vmatpush1.bf16.msra.mxu0 0
        %6930 = vmatprep.subr.bf16.mxu0 0
        %6931 = vmatpush1.bf16.msra.mxu0 0
        %6932 = vmatprep.subr.bf16.mxu0 0
        %6933 = vmatpush1.bf16.msra.mxu0 0
        %6934 = vmatprep.subr.bf16.mxu0 0
        %6935 = vmatpush1.bf16.msra.mxu0 0
        %6936 = vmatprep.subr.bf16.mxu0 0
        %6937 = vmatpush1.bf16.msra.mxu0 0
        %6938 = vmatprep.subr.bf16.mxu0 0
        %6939 = vmatpush1.bf16.msra.mxu0 0
        %6940 = vmatprep.subr.bf16.mxu0 0
        %6941 = vmatpush1.bf16.msra.mxu0 %v6915
        %6942 = vmatprep.subr.bf16.mxu0 0
        %6943 = vmatpush2.bf16.msra.mxu0 0
        %6944 = vmatprep.subr.bf16.mxu0 0
        %6945 = vmatpush2.bf16.msra.mxu0 0
        %6946 = vmatprep.subr.bf16.mxu0 0
        %6947 = vmatpush2.bf16.msra.mxu0 0
        %6948 = vmatprep.subr.bf16.mxu0 0
        %6949 = vmatpush2.bf16.msra.mxu0 0
        %6950 = vmatprep.subr.bf16.mxu0 0
        %6951 = vmatpush2.bf16.msra.mxu0 0
        %6952 = vmatprep.subr.bf16.mxu0 0
        %6953 = vmatpush2.bf16.msra.mxu0 0
        %6954 = vmatprep.subr.bf16.mxu0 0
        %6955 = vmatpush2.bf16.msra.mxu0 0
        %6956 = vmatprep.subr.bf16.mxu0 0
        %6957 = vmatpush2.bf16.msra.mxu0 0
        %6958 = vmatprep.mubr.bf16.mxu0 0
        %6959 = vmatmul.mubr.bf16.gmra.mxu0 %v6918
        %v6960 = vpop.f32.mrf.mxu0
        %v6961 = vadd.f32 0.0, %v6960
        %v6962 = vpop.f32.mrf.mxu0
        %v6963 = vpop.f32.mrf.mxu0
        %v6964 = vadd.f32 0.0, %v6963
        %v6965 = vpop.f32.mrf.mxu0
        %6966 = vmatprep.mubr.bf16.mxu0 0
        %6967 = vmatmul.mubr.bf16.gmra.mxu0 %v6921
        %v6968 = vpop.f32.mrf.mxu0
        %v6969 = vadd.f32 0.0, %v6968
        %v6970 = vpop.f32.mrf.mxu0
        %v6971 = vpop.f32.mrf.mxu0
        %v6972 = vadd.f32 0.0, %v6971
        %v6973 = vpop.f32.mrf.mxu0
        %6974 = vmatprep.mubr.bf16.mxu0 0
        %6975 = vmatmul.mubr.bf16.gmra.mxu0 %v6924
        %v6976 = vpop.f32.mrf.mxu0
        %v6977 = vadd.f32 0.0, %v6976
        %v6978 = vpop.f32.mrf.mxu0
        %v6979 = vpop.f32.mrf.mxu0
        %v6980 = vpop.f32.mrf.mxu0
        %6981 = vdwg.mxu0
        %v6982 = vld [vmem:[%s178] sm:$0xff]
        %v6983 = vld [vmem:[%s178 + $0x8] sm:$0xff]
        %v6984 = vld [vmem:[%s178 + $0x10] sm:$0xff]
        %v6985 = vld [vmem:[%s178 + $0x18] sm:$0xff]
        %v6986 = vld [vmem:[%s178 + $0x20] sm:$0xff]
        %v6987 = vadd.f32 %v6982, %v6961
        %v6988 = vadd.f32 %v6983, %v6964
        %v6989 = vadd.f32 %v6984, %v6969
        %v6990 = vadd.f32 %v6985, %v6972
        %v6991 = vadd.f32 %v6986, %v6977
        %6992 = vst [vmem:[%s178] sm:$0xff] %v6987
        %6993 = vst [vmem:[%s178 + $0x8] sm:$0xff] %v6988
        %6994 = vst [vmem:[%s178 + $0x10] sm:$0xff] %v6989
        %6995 = vst [vmem:[%s178 + $0x18] sm:$0xff] %v6990
        %6996 = vst [vmem:[%s178 + $0x20] sm:$0xff] %v6991
        %v6997 = vld [vmem:[%s183 + $0x54] sm:$0xf]
        %v6998 = vld [vmem:[%s183 + $0x58] sm:$0xf]
        %v6999 = vld [vmem:[%s183 + $0x5c] sm:$0xf]
        %v7000 = vld [vmem:[%s183 + $0x60] sm:$0xf]
        %v7001 = vld [vmem:[%s183 + $0x64] sm:$0xf]
        %v7002 = vld [vmem:[#allocation2 + $0x1c0] sm:$0xf]
        %v7003 = vld [vmem:[#allocation2 + $0x1c4] sm:$0xf]
        %v7009 = vunpack.c.l.b16 %v6997
        %v7010 = vunpack.c.l.b16 %v6998
        %v7011 = vunpack.c.l.b16 %v6999
        %v7012 = vunpack.c.l.b16 %v7000
        %v7013 = vunpack.c.l.b16 %v7001
        %v7014 = vpack.c.b16 %v7010, %v7009
        %v7015 = vpack.c.b16 %v7012, %v7011
        %v7016 = vpack.c.b16 %v7013, %v7013
        %v7019 = vunpack.c.l.b16 %v7002
        %v7020 = vunpack.c.l.b16 %v7003
        %v7021 = vpack.c.b16 %v7020, %v7019
        %v7024 = vsel %vm211, %v7014, 0
        %v7027 = vsel %vm211, %v7015, 0
        %v7030 = vsel %vm211, %v7016, 0
        %7032 = vmatprep.subr.bf16.mxu0 0
        %7033 = vmatpush1.bf16.msra.mxu0 0
        %7034 = vmatprep.subr.bf16.mxu0 0
        %7035 = vmatpush1.bf16.msra.mxu0 0
        %7036 = vmatprep.subr.bf16.mxu0 0
        %7037 = vmatpush1.bf16.msra.mxu0 0
        %7038 = vmatprep.subr.bf16.mxu0 0
        %7039 = vmatpush1.bf16.msra.mxu0 0
        %7040 = vmatprep.subr.bf16.mxu0 0
        %7041 = vmatpush1.bf16.msra.mxu0 0
        %7042 = vmatprep.subr.bf16.mxu0 0
        %7043 = vmatpush1.bf16.msra.mxu0 0
        %7044 = vmatprep.subr.bf16.mxu0 0
        %7045 = vmatpush1.bf16.msra.mxu0 0
        %7046 = vmatprep.subr.bf16.mxu0 0
        %7047 = vmatpush1.bf16.msra.mxu0 %v7021
        %7048 = vmatprep.subr.bf16.mxu0 0
        %7049 = vmatpush2.bf16.msra.mxu0 0
        %7050 = vmatprep.subr.bf16.mxu0 0
        %7051 = vmatpush2.bf16.msra.mxu0 0
        %7052 = vmatprep.subr.bf16.mxu0 0
        %7053 = vmatpush2.bf16.msra.mxu0 0
        %7054 = vmatprep.subr.bf16.mxu0 0
        %7055 = vmatpush2.bf16.msra.mxu0 0
        %7056 = vmatprep.subr.bf16.mxu0 0
        %7057 = vmatpush2.bf16.msra.mxu0 0
        %7058 = vmatprep.subr.bf16.mxu0 0
        %7059 = vmatpush2.bf16.msra.mxu0 0
        %7060 = vmatprep.subr.bf16.mxu0 0
        %7061 = vmatpush2.bf16.msra.mxu0 0
        %7062 = vmatprep.subr.bf16.mxu0 0
        %7063 = vmatpush2.bf16.msra.mxu0 0
        %7064 = vmatprep.mubr.bf16.mxu0 0
        %7065 = vmatmul.mubr.bf16.gmra.mxu0 %v7024
        %v7066 = vpop.f32.mrf.mxu0
        %v7067 = vadd.f32 0.0, %v7066
        %v7068 = vpop.f32.mrf.mxu0
        %v7069 = vpop.f32.mrf.mxu0
        %v7070 = vadd.f32 0.0, %v7069
        %v7071 = vpop.f32.mrf.mxu0
        %7072 = vmatprep.mubr.bf16.mxu0 0
        %7073 = vmatmul.mubr.bf16.gmra.mxu0 %v7027
        %v7074 = vpop.f32.mrf.mxu0
        %v7075 = vadd.f32 0.0, %v7074
        %v7076 = vpop.f32.mrf.mxu0
        %v7077 = vpop.f32.mrf.mxu0
        %v7078 = vadd.f32 0.0, %v7077
        %v7079 = vpop.f32.mrf.mxu0
        %7080 = vmatprep.mubr.bf16.mxu0 0
        %7081 = vmatmul.mubr.bf16.gmra.mxu0 %v7030
        %v7082 = vpop.f32.mrf.mxu0
        %v7083 = vadd.f32 0.0, %v7082
        %v7084 = vpop.f32.mrf.mxu0
        %v7085 = vpop.f32.mrf.mxu0
        %v7086 = vpop.f32.mrf.mxu0
        %7087 = vdwg.mxu0
        %v7088 = vld [vmem:[%s178] sm:$0xff]
        %v7089 = vld [vmem:[%s178 + $0x8] sm:$0xff]
        %v7090 = vld [vmem:[%s178 + $0x10] sm:$0xff]
        %v7091 = vld [vmem:[%s178 + $0x18] sm:$0xff]
        %v7092 = vld [vmem:[%s178 + $0x20] sm:$0xff]
        %v7093 = vadd.f32 %v7088, %v7067
        %v7094 = vadd.f32 %v7089, %v7070
        %v7095 = vadd.f32 %v7090, %v7075
        %v7096 = vadd.f32 %v7091, %v7078
        %v7097 = vadd.f32 %v7092, %v7083
        %7098 = vst [vmem:[%s178] sm:$0xff] %v7093
        %7099 = vst [vmem:[%s178 + $0x8] sm:$0xff] %v7094
        %7100 = vst [vmem:[%s178 + $0x10] sm:$0xff] %v7095
        %7101 = vst [vmem:[%s178 + $0x18] sm:$0xff] %v7096
        %7102 = vst [vmem:[%s178 + $0x20] sm:$0xff] %v7097
        %v7103 = vld [vmem:[%s183 + $0x78] sm:$0xf]
        %v7104 = vld [vmem:[%s183 + $0x7c] sm:$0xf]
        %v7105 = vld [vmem:[%s183 + $0x80] sm:$0xf]
        %v7106 = vld [vmem:[%s183 + $0x84] sm:$0xf]
        %v7107 = vld [vmem:[%s183 + $0x88] sm:$0xf]
        %v7108 = vld [vmem:[#allocation2 + $0x1c8] sm:$0xf]
        %v7109 = vld [vmem:[#allocation2 + $0x1cc] sm:$0xf]
        %v7115 = vunpack.c.l.b16 %v7103
        %v7116 = vunpack.c.l.b16 %v7104
        %v7117 = vunpack.c.l.b16 %v7105
        %v7118 = vunpack.c.l.b16 %v7106
        %v7119 = vunpack.c.l.b16 %v7107
        %v7120 = vpack.c.b16 %v7116, %v7115
        %v7121 = vpack.c.b16 %v7118, %v7117
        %v7122 = vpack.c.b16 %v7119, %v7119
        %v7125 = vunpack.c.l.b16 %v7108
        %v7126 = vunpack.c.l.b16 %v7109
        %v7127 = vpack.c.b16 %v7126, %v7125
        %v7130 = vsel %vm211, %v7120, 0
        %v7133 = vsel %vm211, %v7121, 0
        %v7136 = vsel %vm211, %v7122, 0
        %7138 = vmatprep.subr.bf16.mxu0 0
        %7139 = vmatpush1.bf16.msra.mxu0 0
        %7140 = vmatprep.subr.bf16.mxu0 0
        %7141 = vmatpush1.bf16.msra.mxu0 0
        %7142 = vmatprep.subr.bf16.mxu0 0
        %7143 = vmatpush1.bf16.msra.mxu0 0
        %7144 = vmatprep.subr.bf16.mxu0 0
        %7145 = vmatpush1.bf16.msra.mxu0 0
        %7146 = vmatprep.subr.bf16.mxu0 0
        %7147 = vmatpush1.bf16.msra.mxu0 0
        %7148 = vmatprep.subr.bf16.mxu0 0
        %7149 = vmatpush1.bf16.msra.mxu0 0
        %7150 = vmatprep.subr.bf16.mxu0 0
        %7151 = vmatpush1.bf16.msra.mxu0 0
        %7152 = vmatprep.subr.bf16.mxu0 0
        %7153 = vmatpush1.bf16.msra.mxu0 %v7127
        %7154 = vmatprep.subr.bf16.mxu0 0
        %7155 = vmatpush2.bf16.msra.mxu0 0
        %7156 = vmatprep.subr.bf16.mxu0 0
        %7157 = vmatpush2.bf16.msra.mxu0 0
        %7158 = vmatprep.subr.bf16.mxu0 0
        %7159 = vmatpush2.bf16.msra.mxu0 0
        %7160 = vmatprep.subr.bf16.mxu0 0
        %7161 = vmatpush2.bf16.msra.mxu0 0
        %7162 = vmatprep.subr.bf16.mxu0 0
        %7163 = vmatpush2.bf16.msra.mxu0 0
        %7164 = vmatprep.subr.bf16.mxu0 0
        %7165 = vmatpush2.bf16.msra.mxu0 0
        %7166 = vmatprep.subr.bf16.mxu0 0
        %7167 = vmatpush2.bf16.msra.mxu0 0
        %7168 = vmatprep.subr.bf16.mxu0 0
        %7169 = vmatpush2.bf16.msra.mxu0 0
        %7170 = vmatprep.mubr.bf16.mxu0 0
        %7171 = vmatmul.mubr.bf16.gmra.mxu0 %v7130
        %v7172 = vpop.f32.mrf.mxu0
        %v7173 = vadd.f32 0.0, %v7172
        %v7174 = vpop.f32.mrf.mxu0
        %v7175 = vpop.f32.mrf.mxu0
        %v7176 = vadd.f32 0.0, %v7175
        %v7177 = vpop.f32.mrf.mxu0
        %7178 = vmatprep.mubr.bf16.mxu0 0
        %7179 = vmatmul.mubr.bf16.gmra.mxu0 %v7133
        %v7180 = vpop.f32.mrf.mxu0
        %v7181 = vadd.f32 0.0, %v7180
        %v7182 = vpop.f32.mrf.mxu0
        %v7183 = vpop.f32.mrf.mxu0
        %v7184 = vadd.f32 0.0, %v7183
        %v7185 = vpop.f32.mrf.mxu0
        %7186 = vmatprep.mubr.bf16.mxu0 0
        %7187 = vmatmul.mubr.bf16.gmra.mxu0 %v7136
        %v7188 = vpop.f32.mrf.mxu0
        %v7189 = vadd.f32 0.0, %v7188
        %v7190 = vpop.f32.mrf.mxu0
        %v7191 = vpop.f32.mrf.mxu0
        %v7192 = vpop.f32.mrf.mxu0
        %7193 = vdwg.mxu0
        %v7194 = vld [vmem:[%s178] sm:$0xff]
        %v7195 = vld [vmem:[%s178 + $0x8] sm:$0xff]
        %v7196 = vld [vmem:[%s178 + $0x10] sm:$0xff]
        %v7197 = vld [vmem:[%s178 + $0x18] sm:$0xff]
        %v7198 = vld [vmem:[%s178 + $0x20] sm:$0xff]
        %v7199 = vadd.f32 %v7194, %v7173
        %v7200 = vadd.f32 %v7195, %v7176
        %v7201 = vadd.f32 %v7196, %v7181
        %v7202 = vadd.f32 %v7197, %v7184
        %v7203 = vadd.f32 %v7198, %v7189
        %7204 = vst [vmem:[%s178] sm:$0xff] %v7199
        %7205 = vst [vmem:[%s178 + $0x8] sm:$0xff] %v7200
        %7206 = vst [vmem:[%s178 + $0x10] sm:$0xff] %v7201
        %7207 = vst [vmem:[%s178 + $0x18] sm:$0xff] %v7202
        %7208 = vst [vmem:[%s178 + $0x20] sm:$0xff] %v7203
        %v7209 = vld [vmem:[%s183 + $0x54] sm:$0xf]
        %v7210 = vld [vmem:[%s183 + $0x58] sm:$0xf]
        %v7211 = vld [vmem:[%s183 + $0x5c] sm:$0xf]
        %v7212 = vld [vmem:[%s183 + $0x60] sm:$0xf]
        %v7213 = vld [vmem:[%s183 + $0x64] sm:$0xf]
        %v7214 = vld [vmem:[%s183 + $0x68] sm:$0x1]
        %v7215 = vld [vmem:[#allocation2 + $0x1d0] sm:$0xf]
        %v7216 = vld [vmem:[#allocation2 + $0x1d4] sm:$0xf]
        %v7223 = vunpack.c.l.b16 %v7209
        %v7224 = vunpack.c.l.b16 %v7210
        %v7225 = vunpack.c.l.b16 %v7211
        %v7226 = vunpack.c.l.b16 %v7212
        %v7227 = vunpack.c.l.b16 %v7213
        %v7228 = vunpack.c.l.b16 %v7214
        %v7229 = vpack.c.b16 %v7224, %v7223
        %v7230 = vpack.c.b16 %v7226, %v7225
        %v7231 = vpack.c.b16 %v7228, %v7227
        %v7233 = vshrl.u32 %v7229, 16
        %v7235 = vshll.u32 %v7229, 16
        %v7237 = vrot.slane %v7235, 1
        %v7238 = vor.u32 %v7233, %v7237
        %v7240 = vshll.u32 %v7230, 16
        %v7242 = vrot.slane %v7240, 1
        %v7243 = vsel %vm411, %v7238, %v7242
        %v7244 = vshrl.u32 %v7230, 16
        %v7246 = vor.u32 %v7244, %v7242
        %v7248 = vshll.u32 %v7231, 16
        %v7250 = vrot.slane %v7248, 1
        %v7251 = vsel %vm411, %v7246, %v7250
        %v7252 = vshrl.u32 %v7231, 16
        %v7254 = vor.u32 %v7252, %v7250
        %v7257 = vunpack.c.l.b16 %v7215
        %v7258 = vunpack.c.l.b16 %v7216
        %v7259 = vpack.c.b16 %v7258, %v7257
        %v7262 = vsel %vm211, %v7243, 0
        %v7265 = vsel %vm211, %v7251, 0
        %v7268 = vsel %vm211, %v7254, 0
        %7270 = vmatprep.subr.bf16.mxu0 0
        %7271 = vmatpush1.bf16.msra.mxu0 0
        %7272 = vmatprep.subr.bf16.mxu0 0
        %7273 = vmatpush1.bf16.msra.mxu0 0
        %7274 = vmatprep.subr.bf16.mxu0 0
        %7275 = vmatpush1.bf16.msra.mxu0 0
        %7276 = vmatprep.subr.bf16.mxu0 0
        %7277 = vmatpush1.bf16.msra.mxu0 0
        %7278 = vmatprep.subr.bf16.mxu0 0
        %7279 = vmatpush1.bf16.msra.mxu0 0
        %7280 = vmatprep.subr.bf16.mxu0 0
        %7281 = vmatpush1.bf16.msra.mxu0 0
        %7282 = vmatprep.subr.bf16.mxu0 0
        %7283 = vmatpush1.bf16.msra.mxu0 0
        %7284 = vmatprep.subr.bf16.mxu0 0
        %7285 = vmatpush1.bf16.msra.mxu0 %v7259
        %7286 = vmatprep.subr.bf16.mxu0 0
        %7287 = vmatpush2.bf16.msra.mxu0 0
        %7288 = vmatprep.subr.bf16.mxu0 0
        %7289 = vmatpush2.bf16.msra.mxu0 0
        %7290 = vmatprep.subr.bf16.mxu0 0
        %7291 = vmatpush2.bf16.msra.mxu0 0
        %7292 = vmatprep.subr.bf16.mxu0 0
        %7293 = vmatpush2.bf16.msra.mxu0 0
        %7294 = vmatprep.subr.bf16.mxu0 0
        %7295 = vmatpush2.bf16.msra.mxu0 0
        %7296 = vmatprep.subr.bf16.mxu0 0
        %7297 = vmatpush2.bf16.msra.mxu0 0
        %7298 = vmatprep.subr.bf16.mxu0 0
        %7299 = vmatpush2.bf16.msra.mxu0 0
        %7300 = vmatprep.subr.bf16.mxu0 0
        %7301 = vmatpush2.bf16.msra.mxu0 0
        %7302 = vmatprep.mubr.bf16.mxu0 0
        %7303 = vmatmul.mubr.bf16.gmra.mxu0 %v7262
        %v7304 = vpop.f32.mrf.mxu0
        %v7305 = vadd.f32 0.0, %v7304
        %v7306 = vpop.f32.mrf.mxu0
        %v7307 = vpop.f32.mrf.mxu0
        %v7308 = vadd.f32 0.0, %v7307
        %v7309 = vpop.f32.mrf.mxu0
        %7310 = vmatprep.mubr.bf16.mxu0 0
        %7311 = vmatmul.mubr.bf16.gmra.mxu0 %v7265
        %v7312 = vpop.f32.mrf.mxu0
        %v7313 = vadd.f32 0.0, %v7312
        %v7314 = vpop.f32.mrf.mxu0
        %v7315 = vpop.f32.mrf.mxu0
        %v7316 = vadd.f32 0.0, %v7315
        %v7317 = vpop.f32.mrf.mxu0
        %7318 = vmatprep.mubr.bf16.mxu0 0
        %7319 = vmatmul.mubr.bf16.gmra.mxu0 %v7268
        %v7320 = vpop.f32.mrf.mxu0
        %v7321 = vadd.f32 0.0, %v7320
        %v7322 = vpop.f32.mrf.mxu0
        %v7323 = vpop.f32.mrf.mxu0
        %v7324 = vpop.f32.mrf.mxu0
        %7325 = vdwg.mxu0
        %v7326 = vld [vmem:[%s178] sm:$0xff]
        %v7327 = vld [vmem:[%s178 + $0x8] sm:$0xff]
        %v7328 = vld [vmem:[%s178 + $0x10] sm:$0xff]
        %v7329 = vld [vmem:[%s178 + $0x18] sm:$0xff]
        %v7330 = vld [vmem:[%s178 + $0x20] sm:$0xff]
        %v7331 = vadd.f32 %v7326, %v7305
        %v7332 = vadd.f32 %v7327, %v7308
        %v7333 = vadd.f32 %v7328, %v7313
        %v7334 = vadd.f32 %v7329, %v7316
        %v7335 = vadd.f32 %v7330, %v7321
        %7336 = vst [vmem:[%s178] sm:$0xff] %v7331
        %7337 = vst [vmem:[%s178 + $0x8] sm:$0xff] %v7332
        %7338 = vst [vmem:[%s178 + $0x10] sm:$0xff] %v7333
        %7339 = vst [vmem:[%s178 + $0x18] sm:$0xff] %v7334
        %7340 = vst [vmem:[%s178 + $0x20] sm:$0xff] %v7335
        %v7341 = vld [vmem:[%s183 + $0x78] sm:$0xf]
        %v7342 = vld [vmem:[%s183 + $0x7c] sm:$0xf]
        %v7343 = vld [vmem:[%s183 + $0x80] sm:$0xf]
        %v7344 = vld [vmem:[%s183 + $0x84] sm:$0xf]
        %v7345 = vld [vmem:[%s183 + $0x88] sm:$0xf]
        %v7346 = vld [vmem:[%s183 + $0x8c] sm:$0x1]
        %v7347 = vld [vmem:[#allocation2 + $0x1d8] sm:$0xf]
        %v7348 = vld [vmem:[#allocation2 + $0x1dc] sm:$0xf]
        %v7355 = vunpack.c.l.b16 %v7341
        %v7356 = vunpack.c.l.b16 %v7342
        %v7357 = vunpack.c.l.b16 %v7343
        %v7358 = vunpack.c.l.b16 %v7344
        %v7359 = vunpack.c.l.b16 %v7345
        %v7360 = vunpack.c.l.b16 %v7346
        %v7361 = vpack.c.b16 %v7356, %v7355
        %v7362 = vpack.c.b16 %v7358, %v7357
        %v7363 = vpack.c.b16 %v7360, %v7359
        %v7365 = vshrl.u32 %v7361, 16
        %v7367 = vshll.u32 %v7361, 16
        %v7369 = vrot.slane %v7367, 1
        %v7370 = vor.u32 %v7365, %v7369
        %v7372 = vshll.u32 %v7362, 16
        %v7374 = vrot.slane %v7372, 1
        %v7375 = vsel %vm411, %v7370, %v7374
        %v7376 = vshrl.u32 %v7362, 16
        %v7378 = vor.u32 %v7376, %v7374
        %v7380 = vshll.u32 %v7363, 16
        %v7382 = vrot.slane %v7380, 1
        %v7383 = vsel %vm411, %v7378, %v7382
        %v7384 = vshrl.u32 %v7363, 16
        %v7386 = vor.u32 %v7384, %v7382
        %v7389 = vunpack.c.l.b16 %v7347
        %v7390 = vunpack.c.l.b16 %v7348
        %v7391 = vpack.c.b16 %v7390, %v7389
        %v7394 = vsel %vm211, %v7375, 0
        %v7397 = vsel %vm211, %v7383, 0
        %v7400 = vsel %vm211, %v7386, 0
        %7402 = vmatprep.subr.bf16.mxu0 0
        %7403 = vmatpush1.bf16.msra.mxu0 0
        %7404 = vmatprep.subr.bf16.mxu0 0
        %7405 = vmatpush1.bf16.msra.mxu0 0
        %7406 = vmatprep.subr.bf16.mxu0 0
        %7407 = vmatpush1.bf16.msra.mxu0 0
        %7408 = vmatprep.subr.bf16.mxu0 0
        %7409 = vmatpush1.bf16.msra.mxu0 0
        %7410 = vmatprep.subr.bf16.mxu0 0
        %7411 = vmatpush1.bf16.msra.mxu0 0
        %7412 = vmatprep.subr.bf16.mxu0 0
        %7413 = vmatpush1.bf16.msra.mxu0 0
        %7414 = vmatprep.subr.bf16.mxu0 0
        %7415 = vmatpush1.bf16.msra.mxu0 0
        %7416 = vmatprep.subr.bf16.mxu0 0
        %7417 = vmatpush1.bf16.msra.mxu0 %v7391
        %7418 = vmatprep.subr.bf16.mxu0 0
        %7419 = vmatpush2.bf16.msra.mxu0 0
        %7420 = vmatprep.subr.bf16.mxu0 0
        %7421 = vmatpush2.bf16.msra.mxu0 0
        %7422 = vmatprep.subr.bf16.mxu0 0
        %7423 = vmatpush2.bf16.msra.mxu0 0
        %7424 = vmatprep.subr.bf16.mxu0 0
        %7425 = vmatpush2.bf16.msra.mxu0 0
        %7426 = vmatprep.subr.bf16.mxu0 0
        %7427 = vmatpush2.bf16.msra.mxu0 0
        %7428 = vmatprep.subr.bf16.mxu0 0
        %7429 = vmatpush2.bf16.msra.mxu0 0
        %7430 = vmatprep.subr.bf16.mxu0 0
        %7431 = vmatpush2.bf16.msra.mxu0 0
        %7432 = vmatprep.subr.bf16.mxu0 0
        %7433 = vmatpush2.bf16.msra.mxu0 0
        %7434 = vmatprep.mubr.bf16.mxu0 0
        %7435 = vmatmul.mubr.bf16.gmra.mxu0 %v7394
        %v7436 = vpop.f32.mrf.mxu0
        %v7437 = vadd.f32 0.0, %v7436
        %v7438 = vpop.f32.mrf.mxu0
        %v7439 = vpop.f32.mrf.mxu0
        %v7440 = vadd.f32 0.0, %v7439
        %v7441 = vpop.f32.mrf.mxu0
        %7442 = vmatprep.mubr.bf16.mxu0 0
        %7443 = vmatmul.mubr.bf16.gmra.mxu0 %v7397
        %v7444 = vpop.f32.mrf.mxu0
        %v7445 = vadd.f32 0.0, %v7444
        %v7446 = vpop.f32.mrf.mxu0
        %v7447 = vpop.f32.mrf.mxu0
        %v7448 = vadd.f32 0.0, %v7447
        %v7449 = vpop.f32.mrf.mxu0
        %7450 = vmatprep.mubr.bf16.mxu0 0
        %7451 = vmatmul.mubr.bf16.gmra.mxu0 %v7400
        %v7452 = vpop.f32.mrf.mxu0
        %v7453 = vadd.f32 0.0, %v7452
        %v7454 = vpop.f32.mrf.mxu0
        %v7455 = vpop.f32.mrf.mxu0
        %v7456 = vpop.f32.mrf.mxu0
        %7457 = vdwg.mxu0
        %v7458 = vld [vmem:[%s178] sm:$0xff]
        %v7459 = vld [vmem:[%s178 + $0x8] sm:$0xff]
        %v7460 = vld [vmem:[%s178 + $0x10] sm:$0xff]
        %v7461 = vld [vmem:[%s178 + $0x18] sm:$0xff]
        %v7462 = vld [vmem:[%s178 + $0x20] sm:$0xff]
        %v7463 = vadd.f32 %v7458, %v7437
        %v7464 = vadd.f32 %v7459, %v7440
        %v7465 = vadd.f32 %v7460, %v7445
        %v7466 = vadd.f32 %v7461, %v7448
        %v7467 = vadd.f32 %v7462, %v7453
        %7468 = vst [vmem:[%s178] sm:$0xff] %v7463
        %7469 = vst [vmem:[%s178 + $0x8] sm:$0xff] %v7464
        %7470 = vst [vmem:[%s178 + $0x10] sm:$0xff] %v7465
        %7471 = vst [vmem:[%s178 + $0x18] sm:$0xff] %v7466
        %7472 = vst [vmem:[%s178 + $0x20] sm:$0xff] %v7467
        %v7473 = vld [vmem:[%s183 + $0x54] sm:$0xe]
        %v7474 = vld [vmem:[%s183 + $0x58] sm:$0xf]
        %v7475 = vld [vmem:[%s183 + $0x5c] sm:$0xf]
        %v7476 = vld [vmem:[%s183 + $0x60] sm:$0xf]
        %v7477 = vld [vmem:[%s183 + $0x64] sm:$0xf]
        %v7478 = vld [vmem:[%s183 + $0x68] sm:$0x1]
        %v7479 = vld [vmem:[#allocation2 + $0x1e0] sm:$0xf]
        %v7480 = vld [vmem:[#allocation2 + $0x1e4] sm:$0xf]
        %v7487 = vunpack.c.l.b16 %v7473
        %v7488 = vunpack.c.l.b16 %v7474
        %v7489 = vunpack.c.l.b16 %v7475
        %v7490 = vunpack.c.l.b16 %v7476
        %v7491 = vunpack.c.l.b16 %v7477
        %v7492 = vunpack.c.l.b16 %v7478
        %v7493 = vpack.c.b16 %v7488, %v7487
        %v7494 = vpack.c.b16 %v7490, %v7489
        %v7495 = vpack.c.b16 %v7492, %v7491
        %v7496 = vrot.slane %v7493, 1
        %v7497 = vrot.slane %v7494, 1
        %v7498 = vsel %vm676, %v7496, %v7497
        %v7499 = vrot.slane %v7495, 1
        %v7500 = vsel %vm676, %v7497, %v7499
        %v7503 = vunpack.c.l.b16 %v7479
        %v7504 = vunpack.c.l.b16 %v7480
        %v7505 = vpack.c.b16 %v7504, %v7503
        %v7508 = vsel %vm211, %v7498, 0
        %v7511 = vsel %vm211, %v7500, 0
        %v7514 = vsel %vm211, %v7499, 0
        %7516 = vmatprep.subr.bf16.mxu0 0
        %7517 = vmatpush1.bf16.msra.mxu0 0
        %7518 = vmatprep.subr.bf16.mxu0 0
        %7519 = vmatpush1.bf16.msra.mxu0 0
        %7520 = vmatprep.subr.bf16.mxu0 0
        %7521 = vmatpush1.bf16.msra.mxu0 0
        %7522 = vmatprep.subr.bf16.mxu0 0
        %7523 = vmatpush1.bf16.msra.mxu0 0
        %7524 = vmatprep.subr.bf16.mxu0 0
        %7525 = vmatpush1.bf16.msra.mxu0 0
        %7526 = vmatprep.subr.bf16.mxu0 0
        %7527 = vmatpush1.bf16.msra.mxu0 0
        %7528 = vmatprep.subr.bf16.mxu0 0
        %7529 = vmatpush1.bf16.msra.mxu0 0
        %7530 = vmatprep.subr.bf16.mxu0 0
        %7531 = vmatpush1.bf16.msra.mxu0 %v7505
        %7532 = vmatprep.subr.bf16.mxu0 0
        %7533 = vmatpush2.bf16.msra.mxu0 0
        %7534 = vmatprep.subr.bf16.mxu0 0
        %7535 = vmatpush2.bf16.msra.mxu0 0
        %7536 = vmatprep.subr.bf16.mxu0 0
        %7537 = vmatpush2.bf16.msra.mxu0 0
        %7538 = vmatprep.subr.bf16.mxu0 0
        %7539 = vmatpush2.bf16.msra.mxu0 0
        %7540 = vmatprep.subr.bf16.mxu0 0
        %7541 = vmatpush2.bf16.msra.mxu0 0
        %7542 = vmatprep.subr.bf16.mxu0 0
        %7543 = vmatpush2.bf16.msra.mxu0 0
        %7544 = vmatprep.subr.bf16.mxu0 0
        %7545 = vmatpush2.bf16.msra.mxu0 0
        %7546 = vmatprep.subr.bf16.mxu0 0
        %7547 = vmatpush2.bf16.msra.mxu0 0
        %7548 = vmatprep.mubr.bf16.mxu0 0
        %7549 = vmatmul.mubr.bf16.gmra.mxu0 %v7508
        %v7550 = vpop.f32.mrf.mxu0
        %v7551 = vadd.f32 0.0, %v7550
        %v7552 = vpop.f32.mrf.mxu0
        %v7553 = vpop.f32.mrf.mxu0
        %v7554 = vadd.f32 0.0, %v7553
        %v7555 = vpop.f32.mrf.mxu0
        %7556 = vmatprep.mubr.bf16.mxu0 0
        %7557 = vmatmul.mubr.bf16.gmra.mxu0 %v7511
        %v7558 = vpop.f32.mrf.mxu0
        %v7559 = vadd.f32 0.0, %v7558
        %v7560 = vpop.f32.mrf.mxu0
        %v7561 = vpop.f32.mrf.mxu0
        %v7562 = vadd.f32 0.0, %v7561
        %v7563 = vpop.f32.mrf.mxu0
        %7564 = vmatprep.mubr.bf16.mxu0 0
        %7565 = vmatmul.mubr.bf16.gmra.mxu0 %v7514
        %v7566 = vpop.f32.mrf.mxu0
        %v7567 = vadd.f32 0.0, %v7566
        %v7568 = vpop.f32.mrf.mxu0
        %v7569 = vpop.f32.mrf.mxu0
        %v7570 = vpop.f32.mrf.mxu0
        %7571 = vdwg.mxu0
        %v7572 = vld [vmem:[%s178] sm:$0xff]
        %v7573 = vld [vmem:[%s178 + $0x8] sm:$0xff]
        %v7574 = vld [vmem:[%s178 + $0x10] sm:$0xff]
        %v7575 = vld [vmem:[%s178 + $0x18] sm:$0xff]
        %v7576 = vld [vmem:[%s178 + $0x20] sm:$0xff]
        %v7577 = vadd.f32 %v7572, %v7551
        %v7578 = vadd.f32 %v7573, %v7554
        %v7579 = vadd.f32 %v7574, %v7559
        %v7580 = vadd.f32 %v7575, %v7562
        %v7581 = vadd.f32 %v7576, %v7567
        %7582 = vst [vmem:[%s178] sm:$0xff] %v7577
        %7583 = vst [vmem:[%s178 + $0x8] sm:$0xff] %v7578
        %7584 = vst [vmem:[%s178 + $0x10] sm:$0xff] %v7579
        %7585 = vst [vmem:[%s178 + $0x18] sm:$0xff] %v7580
        %7586 = vst [vmem:[%s178 + $0x20] sm:$0xff] %v7581
        %v7587 = vld [vmem:[%s183 + $0x78] sm:$0xe]
        %v7588 = vld [vmem:[%s183 + $0x7c] sm:$0xf]
        %v7589 = vld [vmem:[%s183 + $0x80] sm:$0xf]
        %v7590 = vld [vmem:[%s183 + $0x84] sm:$0xf]
        %v7591 = vld [vmem:[%s183 + $0x88] sm:$0xf]
        %v7592 = vld [vmem:[%s183 + $0x8c] sm:$0x1]
        %v7593 = vld [vmem:[#allocation2 + $0x1e8] sm:$0xf]
        %v7594 = vld [vmem:[#allocation2 + $0x1ec] sm:$0xf]
        %v7601 = vunpack.c.l.b16 %v7587
        %v7602 = vunpack.c.l.b16 %v7588
        %v7603 = vunpack.c.l.b16 %v7589
        %v7604 = vunpack.c.l.b16 %v7590
        %v7605 = vunpack.c.l.b16 %v7591
        %v7606 = vunpack.c.l.b16 %v7592
        %v7607 = vpack.c.b16 %v7602, %v7601
        %v7608 = vpack.c.b16 %v7604, %v7603
        %v7609 = vpack.c.b16 %v7606, %v7605
        %v7610 = vrot.slane %v7607, 1
        %v7611 = vrot.slane %v7608, 1
        %v7612 = vsel %vm676, %v7610, %v7611
        %v7613 = vrot.slane %v7609, 1
        %v7614 = vsel %vm676, %v7611, %v7613
        %v7617 = vunpack.c.l.b16 %v7593
        %v7618 = vunpack.c.l.b16 %v7594
        %v7619 = vpack.c.b16 %v7618, %v7617
        %v7622 = vsel %vm211, %v7612, 0
        %v7625 = vsel %vm211, %v7614, 0
        %v7628 = vsel %vm211, %v7613, 0
        %7630 = vmatprep.subr.bf16.mxu0 0
        %7631 = vmatpush1.bf16.msra.mxu0 0
        %7632 = vmatprep.subr.bf16.mxu0 0
        %7633 = vmatpush1.bf16.msra.mxu0 0
        %7634 = vmatprep.subr.bf16.mxu0 0
        %7635 = vmatpush1.bf16.msra.mxu0 0
        %7636 = vmatprep.subr.bf16.mxu0 0
        %7637 = vmatpush1.bf16.msra.mxu0 0
        %7638 = vmatprep.subr.bf16.mxu0 0
        %7639 = vmatpush1.bf16.msra.mxu0 0
        %7640 = vmatprep.subr.bf16.mxu0 0
        %7641 = vmatpush1.bf16.msra.mxu0 0
        %7642 = vmatprep.subr.bf16.mxu0 0
        %7643 = vmatpush1.bf16.msra.mxu0 0
        %7644 = vmatprep.subr.bf16.mxu0 0
        %7645 = vmatpush1.bf16.msra.mxu0 %v7619
        %7646 = vmatprep.subr.bf16.mxu0 0
        %7647 = vmatpush2.bf16.msra.mxu0 0
        %7648 = vmatprep.subr.bf16.mxu0 0
        %7649 = vmatpush2.bf16.msra.mxu0 0
        %7650 = vmatprep.subr.bf16.mxu0 0
        %7651 = vmatpush2.bf16.msra.mxu0 0
        %7652 = vmatprep.subr.bf16.mxu0 0
        %7653 = vmatpush2.bf16.msra.mxu0 0
        %7654 = vmatprep.subr.bf16.mxu0 0
        %7655 = vmatpush2.bf16.msra.mxu0 0
        %7656 = vmatprep.subr.bf16.mxu0 0
        %7657 = vmatpush2.bf16.msra.mxu0 0
        %7658 = vmatprep.subr.bf16.mxu0 0
        %7659 = vmatpush2.bf16.msra.mxu0 0
        %7660 = vmatprep.subr.bf16.mxu0 0
        %7661 = vmatpush2.bf16.msra.mxu0 0
        %7662 = vmatprep.mubr.bf16.mxu0 0
        %7663 = vmatmul.mubr.bf16.gmra.mxu0 %v7622
        %v7664 = vpop.f32.mrf.mxu0
        %v7665 = vadd.f32 0.0, %v7664
        %v7666 = vpop.f32.mrf.mxu0
        %v7667 = vpop.f32.mrf.mxu0
        %v7668 = vadd.f32 0.0, %v7667
        %v7669 = vpop.f32.mrf.mxu0
        %7670 = vmatprep.mubr.bf16.mxu0 0
        %7671 = vmatmul.mubr.bf16.gmra.mxu0 %v7625
        %v7672 = vpop.f32.mrf.mxu0
        %v7673 = vadd.f32 0.0, %v7672
        %v7674 = vpop.f32.mrf.mxu0
        %v7675 = vpop.f32.mrf.mxu0
        %v7676 = vadd.f32 0.0, %v7675
        %v7677 = vpop.f32.mrf.mxu0
        %7678 = vmatprep.mubr.bf16.mxu0 0
        %7679 = vmatmul.mubr.bf16.gmra.mxu0 %v7628
        %v7680 = vpop.f32.mrf.mxu0
        %v7681 = vadd.f32 0.0, %v7680
        %v7682 = vpop.f32.mrf.mxu0
        %v7683 = vpop.f32.mrf.mxu0
        %v7684 = vpop.f32.mrf.mxu0
        %7685 = vdwg.mxu0
        %v7686 = vld [vmem:[%s178] sm:$0xff]
        %v7687 = vld [vmem:[%s178 + $0x8] sm:$0xff]
        %v7688 = vld [vmem:[%s178 + $0x10] sm:$0xff]
        %v7689 = vld [vmem:[%s178 + $0x18] sm:$0xff]
        %v7690 = vld [vmem:[%s178 + $0x20] sm:$0xff]
        %v7691 = vadd.f32 %v7686, %v7665
        %v7692 = vadd.f32 %v7687, %v7668
        %v7693 = vadd.f32 %v7688, %v7673
        %v7694 = vadd.f32 %v7689, %v7676
        %v7695 = vadd.f32 %v7690, %v7681
        %7696 = vst [vmem:[%s178] sm:$0xff] %v7691
        %7697 = vst [vmem:[%s178 + $0x8] sm:$0xff] %v7692
        %7698 = vst [vmem:[%s178 + $0x10] sm:$0xff] %v7693
        %7699 = vst [vmem:[%s178 + $0x18] sm:$0xff] %v7694
        %7700 = vst [vmem:[%s178 + $0x20] sm:$0xff] %v7695
        %v7701 = vld [vmem:[%s183 + $0x54] sm:$0xe]
        %v7702 = vld [vmem:[%s183 + $0x58] sm:$0xf]
        %v7703 = vld [vmem:[%s183 + $0x5c] sm:$0xf]
        %v7704 = vld [vmem:[%s183 + $0x60] sm:$0xf]
        %v7705 = vld [vmem:[%s183 + $0x64] sm:$0xf]
        %v7706 = vld [vmem:[%s183 + $0x68] sm:$0x3]
        %v7707 = vld [vmem:[#allocation2 + $0x1f0] sm:$0xf]
        %v7708 = vld [vmem:[#allocation2 + $0x1f4] sm:$0xf]
        %v7715 = vunpack.c.l.b16 %v7701
        %v7716 = vunpack.c.l.b16 %v7702
        %v7717 = vunpack.c.l.b16 %v7703
        %v7718 = vunpack.c.l.b16 %v7704
        %v7719 = vunpack.c.l.b16 %v7705
        %v7720 = vunpack.c.l.b16 %v7706
        %v7721 = vpack.c.b16 %v7716, %v7715
        %v7722 = vpack.c.b16 %v7718, %v7717
        %v7723 = vpack.c.b16 %v7720, %v7719
        %v7725 = vshrl.u32 %v7721, 16
        %v7727 = vrot.slane %v7725, 1
        %v7728 = vshll.u32 %v7721, 16
        %v7730 = vrot.slane %v7728, 2
        %v7731 = vor.u32 %v7727, %v7730
        %v7733 = vshrl.u32 %v7722, 16
        %v7735 = vrot.slane %v7733, 1
        %v7736 = vshll.u32 %v7722, 16
        %v7738 = vrot.slane %v7736, 2
        %v7739 = vor.u32 %v7735, %v7738
        %v7740 = vsel %vm905, %v7731, %v7739
        %v7742 = vshrl.u32 %v7723, 16
        %v7744 = vrot.slane %v7742, 1
        %v7745 = vshll.u32 %v7723, 16
        %v7747 = vrot.slane %v7745, 2
        %v7748 = vor.u32 %v7744, %v7747
        %v7749 = vsel %vm905, %v7739, %v7748
        %v7752 = vunpack.c.l.b16 %v7707
        %v7753 = vunpack.c.l.b16 %v7708
        %v7754 = vpack.c.b16 %v7753, %v7752
        %v7757 = vsel %vm211, %v7740, 0
        %v7760 = vsel %vm211, %v7749, 0
        %v7763 = vsel %vm211, %v7748, 0
        %7765 = vmatprep.subr.bf16.mxu0 0
        %7766 = vmatpush1.bf16.msra.mxu0 0
        %7767 = vmatprep.subr.bf16.mxu0 0
        %7768 = vmatpush1.bf16.msra.mxu0 0
        %7769 = vmatprep.subr.bf16.mxu0 0
        %7770 = vmatpush1.bf16.msra.mxu0 0
        %7771 = vmatprep.subr.bf16.mxu0 0
        %7772 = vmatpush1.bf16.msra.mxu0 0
        %7773 = vmatprep.subr.bf16.mxu0 0
        %7774 = vmatpush1.bf16.msra.mxu0 0
        %7775 = vmatprep.subr.bf16.mxu0 0
        %7776 = vmatpush1.bf16.msra.mxu0 0
        %7777 = vmatprep.subr.bf16.mxu0 0
        %7778 = vmatpush1.bf16.msra.mxu0 0
        %7779 = vmatprep.subr.bf16.mxu0 0
        %7780 = vmatpush1.bf16.msra.mxu0 %v7754
        %7781 = vmatprep.subr.bf16.mxu0 0
        %7782 = vmatpush2.bf16.msra.mxu0 0
        %7783 = vmatprep.subr.bf16.mxu0 0
        %7784 = vmatpush2.bf16.msra.mxu0 0
        %7785 = vmatprep.subr.bf16.mxu0 0
        %7786 = vmatpush2.bf16.msra.mxu0 0
        %7787 = vmatprep.subr.bf16.mxu0 0
        %7788 = vmatpush2.bf16.msra.mxu0 0
        %7789 = vmatprep.subr.bf16.mxu0 0
        %7790 = vmatpush2.bf16.msra.mxu0 0
        %7791 = vmatprep.subr.bf16.mxu0 0
        %7792 = vmatpush2.bf16.msra.mxu0 0
        %7793 = vmatprep.subr.bf16.mxu0 0
        %7794 = vmatpush2.bf16.msra.mxu0 0
        %7795 = vmatprep.subr.bf16.mxu0 0
        %7796 = vmatpush2.bf16.msra.mxu0 0
        %7797 = vmatprep.mubr.bf16.mxu0 0
        %7798 = vmatmul.mubr.bf16.gmra.mxu0 %v7757
        %v7799 = vpop.f32.mrf.mxu0
        %v7800 = vadd.f32 0.0, %v7799
        %v7801 = vpop.f32.mrf.mxu0
        %v7802 = vpop.f32.mrf.mxu0
        %v7803 = vadd.f32 0.0, %v7802
        %v7804 = vpop.f32.mrf.mxu0
        %7805 = vmatprep.mubr.bf16.mxu0 0
        %7806 = vmatmul.mubr.bf16.gmra.mxu0 %v7760
        %v7807 = vpop.f32.mrf.mxu0
        %v7808 = vadd.f32 0.0, %v7807
        %v7809 = vpop.f32.mrf.mxu0
        %v7810 = vpop.f32.mrf.mxu0
        %v7811 = vadd.f32 0.0, %v7810
        %v7812 = vpop.f32.mrf.mxu0
        %7813 = vmatprep.mubr.bf16.mxu0 0
        %7814 = vmatmul.mubr.bf16.gmra.mxu0 %v7763
        %v7815 = vpop.f32.mrf.mxu0
        %v7816 = vadd.f32 0.0, %v7815
        %v7817 = vpop.f32.mrf.mxu0
        %v7818 = vpop.f32.mrf.mxu0
        %v7819 = vpop.f32.mrf.mxu0
        %7820 = vdwg.mxu0
        %v7821 = vld [vmem:[%s178] sm:$0xff]
        %v7822 = vld [vmem:[%s178 + $0x8] sm:$0xff]
        %v7823 = vld [vmem:[%s178 + $0x10] sm:$0xff]
        %v7824 = vld [vmem:[%s178 + $0x18] sm:$0xff]
        %v7825 = vld [vmem:[%s178 + $0x20] sm:$0xff]
        %v7826 = vadd.f32 %v7821, %v7800
        %v7827 = vadd.f32 %v7822, %v7803
        %v7828 = vadd.f32 %v7823, %v7808
        %v7829 = vadd.f32 %v7824, %v7811
        %v7830 = vadd.f32 %v7825, %v7816
        %7831 = vst [vmem:[%s178] sm:$0xff] %v7826
        %7832 = vst [vmem:[%s178 + $0x8] sm:$0xff] %v7827
        %7833 = vst [vmem:[%s178 + $0x10] sm:$0xff] %v7828
        %7834 = vst [vmem:[%s178 + $0x18] sm:$0xff] %v7829
        %7835 = vst [vmem:[%s178 + $0x20] sm:$0xff] %v7830
        %v7836 = vld [vmem:[%s183 + $0x78] sm:$0xe]
        %v7837 = vld [vmem:[%s183 + $0x7c] sm:$0xf]
        %v7838 = vld [vmem:[%s183 + $0x80] sm:$0xf]
        %v7839 = vld [vmem:[%s183 + $0x84] sm:$0xf]
        %v7840 = vld [vmem:[%s183 + $0x88] sm:$0xf]
        %v7841 = vld [vmem:[%s183 + $0x8c] sm:$0x3]
        %v7842 = vld [vmem:[#allocation2 + $0x1f8] sm:$0xf]
        %v7843 = vld [vmem:[#allocation2 + $0x1fc] sm:$0xf]
        %v7850 = vunpack.c.l.b16 %v7836
        %v7851 = vunpack.c.l.b16 %v7837
        %v7852 = vunpack.c.l.b16 %v7838
        %v7853 = vunpack.c.l.b16 %v7839
        %v7854 = vunpack.c.l.b16 %v7840
        %v7855 = vunpack.c.l.b16 %v7841
        %v7856 = vpack.c.b16 %v7851, %v7850
        %v7857 = vpack.c.b16 %v7853, %v7852
        %v7858 = vpack.c.b16 %v7855, %v7854
        %v7860 = vshrl.u32 %v7856, 16
        %v7862 = vrot.slane %v7860, 1
        %v7863 = vshll.u32 %v7856, 16
        %v7865 = vrot.slane %v7863, 2
        %v7866 = vor.u32 %v7862, %v7865
        %v7868 = vshrl.u32 %v7857, 16
        %v7870 = vrot.slane %v7868, 1
        %v7871 = vshll.u32 %v7857, 16
        %v7873 = vrot.slane %v7871, 2
        %v7874 = vor.u32 %v7870, %v7873
        %v7875 = vsel %vm905, %v7866, %v7874
        %v7877 = vshrl.u32 %v7858, 16
        %v7879 = vrot.slane %v7877, 1
        %v7880 = vshll.u32 %v7858, 16
        %v7882 = vrot.slane %v7880, 2
        %v7883 = vor.u32 %v7879, %v7882
        %v7884 = vsel %vm905, %v7874, %v7883
        %v7887 = vunpack.c.l.b16 %v7842
        %v7888 = vunpack.c.l.b16 %v7843
        %v7889 = vpack.c.b16 %v7888, %v7887
        %v7892 = vsel %vm211, %v7875, 0
        %v7895 = vsel %vm211, %v7884, 0
        %v7898 = vsel %vm211, %v7883, 0
        %7900 = vmatprep.subr.bf16.mxu0 0
        %7901 = vmatpush1.bf16.msra.mxu0 0
        %7902 = vmatprep.subr.bf16.mxu0 0
        %7903 = vmatpush1.bf16.msra.mxu0 0
        %7904 = vmatprep.subr.bf16.mxu0 0
        %7905 = vmatpush1.bf16.msra.mxu0 0
        %7906 = vmatprep.subr.bf16.mxu0 0
        %7907 = vmatpush1.bf16.msra.mxu0 0
        %7908 = vmatprep.subr.bf16.mxu0 0
        %7909 = vmatpush1.bf16.msra.mxu0 0
        %7910 = vmatprep.subr.bf16.mxu0 0
        %7911 = vmatpush1.bf16.msra.mxu0 0
        %7912 = vmatprep.subr.bf16.mxu0 0
        %7913 = vmatpush1.bf16.msra.mxu0 0
        %7914 = vmatprep.subr.bf16.mxu0 0
        %7915 = vmatpush1.bf16.msra.mxu0 %v7889
        %7916 = vmatprep.subr.bf16.mxu0 0
        %7917 = vmatpush2.bf16.msra.mxu0 0
        %7918 = vmatprep.subr.bf16.mxu0 0
        %7919 = vmatpush2.bf16.msra.mxu0 0
        %7920 = vmatprep.subr.bf16.mxu0 0
        %7921 = vmatpush2.bf16.msra.mxu0 0
        %7922 = vmatprep.subr.bf16.mxu0 0
        %7923 = vmatpush2.bf16.msra.mxu0 0
        %7924 = vmatprep.subr.bf16.mxu0 0
        %7925 = vmatpush2.bf16.msra.mxu0 0
        %7926 = vmatprep.subr.bf16.mxu0 0
        %7927 = vmatpush2.bf16.msra.mxu0 0
        %7928 = vmatprep.subr.bf16.mxu0 0
        %7929 = vmatpush2.bf16.msra.mxu0 0
        %7930 = vmatprep.subr.bf16.mxu0 0
        %7931 = vmatpush2.bf16.msra.mxu0 0
        %7932 = vmatprep.mubr.bf16.mxu0 0
        %7933 = vmatmul.mubr.bf16.gmra.mxu0 %v7892
        %v7934 = vpop.f32.mrf.mxu0
        %v7935 = vadd.f32 0.0, %v7934
        %v7936 = vpop.f32.mrf.mxu0
        %v7937 = vpop.f32.mrf.mxu0
        %v7938 = vadd.f32 0.0, %v7937
        %v7939 = vpop.f32.mrf.mxu0
        %7940 = vmatprep.mubr.bf16.mxu0 0
        %7941 = vmatmul.mubr.bf16.gmra.mxu0 %v7895
        %v7942 = vpop.f32.mrf.mxu0
        %v7943 = vadd.f32 0.0, %v7942
        %v7944 = vpop.f32.mrf.mxu0
        %v7945 = vpop.f32.mrf.mxu0
        %v7946 = vadd.f32 0.0, %v7945
        %v7947 = vpop.f32.mrf.mxu0
        %7948 = vmatprep.mubr.bf16.mxu0 0
        %7949 = vmatmul.mubr.bf16.gmra.mxu0 %v7898
        %v7950 = vpop.f32.mrf.mxu0
        %v7951 = vadd.f32 0.0, %v7950
        %v7952 = vpop.f32.mrf.mxu0
        %v7953 = vpop.f32.mrf.mxu0
        %v7954 = vpop.f32.mrf.mxu0
        %7955 = vdwg.mxu0
        %v7956 = vld [vmem:[%s178] sm:$0xff]
        %v7957 = vld [vmem:[%s178 + $0x8] sm:$0xff]
        %v7958 = vld [vmem:[%s178 + $0x10] sm:$0xff]
        %v7959 = vld [vmem:[%s178 + $0x18] sm:$0xff]
        %v7960 = vld [vmem:[%s178 + $0x20] sm:$0xff]
        %v7961 = vadd.f32 %v7956, %v7935
        %v7962 = vadd.f32 %v7957, %v7938
        %v7963 = vadd.f32 %v7958, %v7943
        %v7964 = vadd.f32 %v7959, %v7946
        %v7965 = vadd.f32 %v7960, %v7951
        %7966 = vst [vmem:[%s178] sm:$0xff] %v7961
        %7967 = vst [vmem:[%s178 + $0x8] sm:$0xff] %v7962
        %7968 = vst [vmem:[%s178 + $0x10] sm:$0xff] %v7963
        %7969 = vst [vmem:[%s178 + $0x18] sm:$0xff] %v7964
        %7970 = vst [vmem:[%s178 + $0x20] sm:$0xff] %v7965
        %v7971 = vld [vmem:[%s178] sm:$0xff]
        %v7972 = vld [vmem:[%s178 + $0x8] sm:$0xff]
        %v7973 = vld [vmem:[%s178 + $0x10] sm:$0xff]
        %v7974 = vld [vmem:[%s178 + $0x18] sm:$0xff]
        %v7975 = vld [vmem:[%s178 + $0x20] sm:$0xff]
        %v7976 = vld [vmem:[%s2] sm:$0x1]
        %v7978 = vlaneseq
        %v7979 = vshrl.u32 %v7978, 7
        %v7980 = vsub.s32 0, %v7979
        %v7981 = vrot.slane %v7976, %v7980
        %v7983 = vadd.f32 %v7971, %v7981
        %v7984 = vadd.f32 %v7972, %v7981
        %v7985 = vadd.f32 %v7973, %v7981
        %v7986 = vadd.f32 %v7974, %v7981
        %v7987 = vadd.f32 %v7975, %v7981
        %v7988 = vmul.f32 %v7983, %v7983
        %v7989 = vmul.f32 %v7984, %v7984
        %v7990 = vmul.f32 %v7985, %v7985
        %v7991 = vmul.f32 %v7986, %v7986
        %v7992 = vmul.f32 %v7987, %v7987
        %7993 = vrot.lane.b32.xlu0 %v7988, 16
        %v7994 = vpop.permute.xlu0 %7993
        %7995 = vrot.lane.b32.xlu0 %v7989, 16
        %v7996 = vpop.permute.xlu0 %7995
        %7997 = vrot.lane.b32.xlu0 %v7990, 16
        %v7998 = vpop.permute.xlu0 %7997
        %7999 = vrot.lane.b32.xlu0 %v7991, 16
        %v8000 = vpop.permute.xlu0 %7999
        %8001 = vrot.lane.b32.xlu0 %v7992, 16
        %v8002 = vpop.permute.xlu0 %8001
        %v8003 = vadd.f32 %v7988, %v7994
        %v8004 = vadd.f32 %v7989, %v7996
        %v8005 = vadd.f32 %v7990, %v7998
        %v8006 = vadd.f32 %v7991, %v8000
        %v8007 = vadd.f32 %v7992, %v8002
        %8008 = vrot.lane.b32.xlu0 %v8003, 32
        %v8009 = vpop.permute.xlu0 %8008
        %8010 = vrot.lane.b32.xlu0 %v8004, 32
        %v8011 = vpop.permute.xlu0 %8010
        %8012 = vrot.lane.b32.xlu0 %v8005, 32
        %v8013 = vpop.permute.xlu0 %8012
        %8014 = vrot.lane.b32.xlu0 %v8006, 32
        %v8015 = vpop.permute.xlu0 %8014
        %8016 = vrot.lane.b32.xlu0 %v8007, 32
        %v8017 = vpop.permute.xlu0 %8016
        %v8018 = vadd.f32 %v8003, %v8009
        %v8019 = vadd.f32 %v8004, %v8011
        %v8020 = vadd.f32 %v8005, %v8013
        %v8021 = vadd.f32 %v8006, %v8015
        %v8022 = vadd.f32 %v8007, %v8017
        %8023 = vrot.lane.b32.xlu0 %v8018, 64
        %v8024 = vpop.permute.xlu0 %8023
        %8025 = vrot.lane.b32.xlu0 %v8019, 64
        %v8026 = vpop.permute.xlu0 %8025
        %8027 = vrot.lane.b32.xlu0 %v8020, 64
        %v8028 = vpop.permute.xlu0 %8027
        %8029 = vrot.lane.b32.xlu0 %v8021, 64
        %v8030 = vpop.permute.xlu0 %8029
        %8031 = vrot.lane.b32.xlu0 %v8022, 64
        %v8032 = vpop.permute.xlu0 %8031
        %v8033 = vadd.f32 %v8018, %v8024
        %v8034 = vadd.f32 %v8019, %v8026
        %v8035 = vadd.f32 %v8020, %v8028
        %v8036 = vadd.f32 %v8021, %v8030
        %v8037 = vadd.f32 %v8022, %v8032
        %v8038 = vrsqrt.pop %v8033
        %v8039 = vmul.f32 %v8033, %v8038
        %vm8040 = vcmp.eq.f32.partialorder %v8033, inf
        %v8041 = vsel %vm8040, %v8033, %v8039
        %vm8042 = vcmp.eq.f32.partialorder %v8033, 0.0
        %v8043 = vand.u32 %v8033, 2147483648
        %v8044 = vsel %vm8042, %v8043, %v8041
        %v8045 = vrsqrt.pop %v8034
        %v8046 = vmul.f32 %v8034, %v8045
        %vm8047 = vcmp.eq.f32.partialorder %v8034, inf
        %v8048 = vsel %vm8047, %v8034, %v8046
        %vm8049 = vcmp.eq.f32.partialorder %v8034, 0.0
        %v8050 = vand.u32 %v8034, 2147483648
        %v8051 = vsel %vm8049, %v8050, %v8048
        %v8052 = vrsqrt.pop %v8035
        %v8053 = vmul.f32 %v8035, %v8052
        %vm8054 = vcmp.eq.f32.partialorder %v8035, inf
        %v8055 = vsel %vm8054, %v8035, %v8053
        %vm8056 = vcmp.eq.f32.partialorder %v8035, 0.0
        %v8057 = vand.u32 %v8035, 2147483648
        %v8058 = vsel %vm8056, %v8057, %v8055
        %v8059 = vrsqrt.pop %v8036
        %v8060 = vmul.f32 %v8036, %v8059
        %vm8061 = vcmp.eq.f32.partialorder %v8036, inf
        %v8062 = vsel %vm8061, %v8036, %v8060
        %vm8063 = vcmp.eq.f32.partialorder %v8036, 0.0
        %v8064 = vand.u32 %v8036, 2147483648
        %v8065 = vsel %vm8063, %v8064, %v8062
        %v8066 = vrsqrt.pop %v8037
        %v8067 = vmul.f32 %v8037, %v8066
        %vm8068 = vcmp.eq.f32.partialorder %v8037, inf
        %v8069 = vsel %vm8068, %v8037, %v8067
        %vm8070 = vcmp.eq.f32.partialorder %v8037, 0.0
        %v8071 = vand.u32 %v8037, 2147483648
        %v8072 = vsel %vm8070, %v8071, %v8069
        %v8073 = vadd.f32 %v8033, 1.0
        %v8074 = vadd.f32 %v8034, 1.0
        %v8075 = vadd.f32 %v8035, 1.0
        %v8076 = vadd.f32 %v8036, 1.0
        %v8077 = vadd.f32 %v8037, 1.0
        %v8078 = vrcp.pop %v8073
        %v8079 = vmul.f32 %v8044, %v8078
        %v8080 = vrcp.pop %v8074
        %v8081 = vmul.f32 %v8051, %v8080
        %v8082 = vrcp.pop %v8075
        %v8083 = vmul.f32 %v8058, %v8082
        %v8084 = vrcp.pop %v8076
        %v8085 = vmul.f32 %v8065, %v8084
        %v8086 = vrcp.pop %v8077
        %v8087 = vmul.f32 %v8072, %v8086
        %v8088 = vmul.f32 %v7983, %v8079
        %v8089 = vmul.f32 %v7984, %v8081
        %v8090 = vmul.f32 %v7985, %v8083
        %v8091 = vmul.f32 %v7986, %v8085
        %v8092 = vmul.f32 %v7987, %v8087
        %8093 = vst [vmem:[%s178] sm:$0xff] %v8088
        %8094 = vst [vmem:[%s178 + $0x8] sm:$0xff] %v8089
        %8095 = vst [vmem:[%s178 + $0x10] sm:$0xff] %v8090
        %8096 = vst [vmem:[%s178 + $0x18] sm:$0xff] %v8091
        %8097 = vst [vmem:[%s178 + $0x20] sm:$0xff] %v8092
        %s8098 = sand.u32 %s94, 1
        %s8099 = scalar_lea.sflag [#allocation4], %s8098
        %s8100 = sand.u32 %s94, 1
        %s8101 = smul.addr %s8100, 40
        %s8102 = scalar_lea.vmem [#allocation5], %s8101
        // Predicated region
        $region37: #{tpu_custom_call.1} parent=31 // pred_check
          %p8103 = pneg %p104
        $region38: #{tpu_custom_call.1} parent=31 // pred_check_branch
          %8105 = sbr.rel (%p8103) target = $region40
        $region39: #{tpu_custom_call.1} parent=31 // pred_region
          %s8107 = ssub.s32 640, 640
          %8108 = vsyncadd %s8099, %s8107
          %s8109 = smul.addr %s18, 5
          %s8110 = smul.addr %s8109, 128
          %s8111 = scalar_lea.hbm %s3, %s8110
          %s8112 = sshll.u32 %s8102, 4
          %s8113 = int_to_ptr.vmem [resolvable:$true] %s8112
          %8118 = dma.vmem_to_hbm [thread:$0]  %s8113, 640, %s8111, %s8099, 128, 128, 8
        $region40: #{tpu_custom_call.1} parent=31 // pred_fallthru
          _
      $region32: #{tpu_custom_call.1} parent=5 // pred_fallthru
        _
      %p8119 = scmp.le.s32.totalorder 2, %s13
      // Predicated region
      $region41: #{tpu_custom_call.1} parent=5 // pred_check
        %p8120 = pneg %p8119
      $region42: #{tpu_custom_call.1} parent=5 // pred_check_branch
        %8122 = sbr.rel (%p8120) target = $region44
      $region43: #{tpu_custom_call.1} parent=5 // pred_region
        %s8123 = ssub.s32 %s13, 2
        // Predicated region
        $region45: #{tpu_custom_call.1} parent=43 // pred_check
          %p8124 = pneg %p110
        $region46: #{tpu_custom_call.1} parent=43 // pred_check_branch
          %8126 = sbr.rel (%p8124) target = $region48
        $region47: #{tpu_custom_call.1} parent=43 // pred_region
          %s8127 = sand.u32 %s95, 1
          %s8128 = scalar_lea.sflag [#allocation4], %s8127
          %s8129 = sand.u32 %s95, 1
          %s8130 = smul.addr %s8129, 40
          %s8131 = scalar_lea.vmem [#allocation5], %s8130
          %8132 = dma.done %s8128, 640
        $region48: #{tpu_custom_call.1} parent=43 // pred_fallthru
          _
      $region44: #{tpu_custom_call.1} parent=5 // pred_fallthru
        _
    $region6: #{tpu_custom_call.1} parent=1 // loop_footer
      %s17 = sadd.s32 1, %s13
    $region7: #{tpu_custom_call.1} parent=1 // loop_footer_branch
      %12 = sbr.rel target = $region3
    $region8: #{tpu_custom_call.1} parent=1 // loop_exit
      _
    %8133 = vsyncpa [#allocation3], 1
    %s8134 = scalar_lea.sflag [#allocation3], 1
    %8135 = vsyncpa %s8134, 1
    %8136 = vsyncpa [#allocation4], 1
    %s8137 = scalar_lea.sflag [#allocation4], 1
    %8138 = vsyncpa %s8137, 1

</llo_original>
